<compile_context>
chip_gen: v6e
topology: v6e:2x2x1
jax: 0.10.0
libtpu: 0.0.40
codegen_flags: <defaults>
</compile_context>

<pallas_src>
import math

import jax
import jax.numpy as jnp
from jax.experimental import pallas as pl
from jax.experimental.pallas import tpu as pltpu

# -------------------------- scaled configuration --------------------------
B_IN, C_IN, T_IN, H_IN, W_IN = 1, 3, 4, 64, 64

C_DINO = 96      # orig 1536 (DINOv2 giant feature / cls dim)
C_CONV2 = 48     # orig 768
C_DECONV3 = 24   # orig 384
FLOW_EMBED = 12  # orig 192 (video-swin embed dim)
C_SW1, C_SW2, C_SW3 = 24, 48, 96        # orig 384, 768, 1536
C_CAT1, C_CAT2, C_CAT3 = 16, 32, 64     # orig 256, 512, 1024

# ------------------------------ compiler params ------------------------------
_CompilerParams = getattr(pltpu, "CompilerParams", None) or getattr(pltpu, "TPUCompilerParams")
_MOSAIC_PARAMS = _CompilerParams(
    dimension_semantics=("parallel",),        # shard the row grid across TCs on v7x
    vmem_limit_bytes=64 * 1024 * 1024,        # headroom for larger row tiles at scale
)

ROW_TILE = 512  # review: 512-row tiles ~85% of HBM roofline vs ~29% at 128 rows.


def _round_up(x, m):
    return ((x + m - 1) // m) * m


def _row_tiling(M, tm=ROW_TILE):
    """Row tile + padded row count.  Every demo-scale M is a multiple of 8 and <= 512,
    so no pad / slice copies are ever emitted; at larger M a 512-row tile is used."""
    if M <= tm:
        t = _round_up(max(M, 8), 8)
        return t, t
    return tm, _round_up(M, tm)


# ------------------------------ Pallas kernels ------------------------------
def _mm_bias_kernel(x_ref, w_ref, b_ref, o_ref):
    o_ref[...] = (
        jnp.dot(x_ref[...], w_ref[...], preferred_element_type=jnp.float32) + b_ref[...]
    )


def _mm_bias_ln_kernel(x_ref, w_ref, b_ref, lnw_ref, lnb_ref, o_ref):
    y = jnp.dot(x_ref[...], w_ref[...], preferred_element_type=jnp.float32) + b_ref[...]
    mu = jnp.mean(y, axis=-1, keepdims=True)
    var = jnp.mean((y - mu) ** 2, axis=-1, keepdims=True)
    o_ref[...] = (y - mu) * jax.lax.rsqrt(var + 1e-5) * lnw_ref[...] + lnb_ref[...]


def _time_ms_kernel(cols_ref, res_ref, wt_ref, bt_ref, wa_ref, lnw_ref, lnb_ref, o_ref):
    # three temporal branches (k=3/5/7 padded to 7 taps, concatenated along N=3C)
    branches = (
        jnp.dot(cols_ref[...], wt_ref[...], preferred_element_type=jnp.float32) + bt_ref[...]
    )
    # tavg (3C -> C, zero-init, bias=False), fused: branches never leave VMEM
    xnew = jnp.dot(
        branches.astype(jnp.bfloat16), wa_ref[...], preferred_element_type=jnp.float32
    )
    # TODO(synk): PyTorch nn.GELU() is exact-erf; tanh approximation used for safe Mosaic lowering.
    a = 0.5 * xnew * (1.0 + jnp.tanh(0.7978845608028654 * (xnew + 0.044715 * xnew * xnew * xnew)))
    mu = jnp.mean(a, axis=-1, keepdims=True)
    var = jnp.mean((a - mu) ** 2, axis=-1, keepdims=True)
    o_ref[...] = (a - mu) * jax.lax.rsqrt(var + 1e-5) * lnw_ref[...] + lnb_ref[...] + res_ref[...]


# ------------------------------ Pallas wrappers ------------------------------
def pallas_matmul(x, w, bias=None, ln=None, tm=ROW_TILE):
    """(M, K) @ (K, N) + bias, optionally fused with LayerNorm(N).

    Operands are cast to bf16 for the MXU; accumulation / epilogue stays f32.
    NOTE: at full (unscaled) channel counts the resident (K, N) weight would need a
    K-tiled reduction grid axis; at demo scale it always fits comfortably in VMEM.
    """
    M, K = x.shape
    N = w.shape[1]
    tile, Mp = _row_tiling(M, tm)
    xb = x.astype(jnp.bfloat16)
    if Mp != M:
        xb = jnp.pad(xb, ((0, Mp - M), (0, 0)))
    if bias is None:
        bias = jnp.zeros((N,), jnp.float32)
    args = [xb, w.astype(jnp.bfloat16), bias.reshape(1, N).astype(jnp.float32)]
    in_specs = [
        pl.BlockSpec((tile, K), lambda i: (i, 0)),
        pl.BlockSpec((K, N), lambda i: (0, 0)),
        pl.BlockSpec((1, N), lambda i: (0, 0)),
    ]
    kernel = _mm_bias_kernel
    if ln is not None:
        lnw, lnb = ln
        args += [lnw.reshape(1, N).astype(jnp.float32), lnb.reshape(1, N).astype(jnp.float32)]
        in_specs += [
            pl.BlockSpec((1, N), lambda i: (0, 0)),
            pl.BlockSpec((1, N), lambda i: (0, 0)),
        ]
        kernel = _mm_bias_ln_kernel
    out = pl.pallas_call(
        kernel,
        out_shape=jax.ShapeDtypeStruct((Mp, N), jnp.float32),
        grid=(Mp // tile,),
        in_specs=in_specs,
        out_specs=pl.BlockSpec((tile, N), lambda i: (i, 0)),
        compiler_params=_MOSAIC_PARAMS,
    )(*args)
    return out if Mp == M else out[:M]


def pallas_time_ms(cols, res, wt, bt, wavg, lnw, lnb, tm=ROW_TILE):
    """Fused TimeGlobalMultiScaleBlock tail: (M,7C)@(7C,3C)+b -> @(3C,C) -> GELU -> LN -> +res."""
    M, K7 = cols.shape
    C3 = wt.shape[1]
    C = wavg.shape[1]
    tile, Mp = _row_tiling(M, tm)
    cols_b = cols.astype(jnp.bfloat16)
    res_f = res.astype(jnp.float32)
    if Mp != M:
        cols_b = jnp.pad(cols_b, ((0, Mp - M), (0, 0)))
        res_f = jnp.pad(res_f, ((0, Mp - M), (0, 0)))
    out = pl.pallas_call(
        _time_ms_kernel,
        out_shape=jax.ShapeDtypeStruct((Mp, C), jnp.float32),
        grid=(Mp // tile,),
        in_specs=[
            pl.BlockSpec((tile, K7), lambda i: (i, 0)),
            pl.BlockSpec((tile, C), lambda i: (i, 0)),
            pl.BlockSpec((K7, C3), lambda i: (0, 0)),
            pl.BlockSpec((1, C3), lambda i: (0, 0)),
            pl.BlockSpec((C3, C), lambda i: (0, 0)),
            pl.BlockSpec((1, C), lambda i: (0, 0)),
            pl.BlockSpec((1, C), lambda i: (0, 0)),
        ],
        out_specs=pl.BlockSpec((tile, C), lambda i: (i, 0)),
        compiler_params=_MOSAIC_PARAMS,
    )(
        cols_b,
        res_f,
        wt.astype(jnp.bfloat16),
        bt.reshape(1, C3).astype(jnp.float32),
        wavg.astype(jnp.bfloat16),
        lnw.reshape(1, C).astype(jnp.float32),
        lnb.reshape(1, C).astype(jnp.float32),
    )
    return out if Mp == M else out[:M]


# ------------------------------ helper glue ------------------------------
def temporal_im2col(x_cl, k):
    """x_cl (B,T,H,W,C) -> (B,T,H,W,k*C), feature index = tap*C + c (zero-padded in T)."""
    B, T, H, W, C = x_cl.shape
    p = k // 2
    xp = jnp.pad(x_cl, ((0, 0), (p, p), (0, 0), (0, 0), (0, 0)))
    cols = [xp[:, j:j + T] for j in range(k)]
    return jnp.concatenate(cols, axis=-1)


def spatial_im2col(x_cl, k):
    """x_cl (B,T,H,W,C) -> (B,T,H,W,k*k*C), feature index = (i*k+j)*C + c."""
    B, T, H, W, C = x_cl.shape
    p = k // 2
    xp = jnp.pad(x_cl, ((0, 0), (0, 0), (p, p), (p, p), (0, 0)))
    cols = [xp[:, :, i:i + H, j:j + W] for i in range(k) for j in range(k)]
    return jnp.concatenate(cols, axis=-1)


def trilinear_resize(x_cl, t, h, w):
    B, T, H, W, C = x_cl.shape
    return jax.image.resize(x_cl, (B, t, h, w, C), method="trilinear", antialias=False)


def eca_ksize(c, b=1, gamma=2):
    k = int(abs((math.log(c, 2) + b) / gamma))
    return k if k % 2 else k + 1


def _pad_temporal_taps(wk, K=7):
    """torch (Cout, Cin, k) temporal-conv weight -> (K*Cin, Cout), zero-padded to K taps,
    matching the k=K temporal im2col feature order (tap*Cin + cin)."""
    c_out, c_in, k = wk.shape
    w_t = jnp.transpose(wk, (2, 1, 0))                 # (k, Cin, Cout)
    off = (K - k) // 2
    full = jnp.zeros((K, c_in, c_out), jnp.float32)
    full = full.at[off:off + k].set(w_t)
    return full.reshape(K * c_in, c_out)


# ------------------------------ sub-modules ------------------------------
def time_ms_block(x_cl, p):
    """TimeGlobalMultiScaleBlock (trans=False): tconv k=3/5/7 -> cat -> tavg(0-init) ->
    GELU -> LayerNorm -> + residual.  All branches share one k=7 im2col (bf16) and the
    whole block is a single fused Pallas kernel."""
    B, T, H, W, C = x_cl.shape
    M = B * T * H * W
    cols = temporal_im2col(x_cl.astype(jnp.bfloat16), 7).reshape(M, 7 * C)
    wt = jnp.concatenate(
        [_pad_temporal_taps(p["w3"]), _pad_temporal_taps(p["w5"]), _pad_temporal_taps(p["w7"])],
        axis=1,
    )                                                   # (7C, 3C)
    bt = jnp.concatenate([p["b3"], p["b5"], p["b7"]])   # (3C,)
    res = x_cl.reshape(M, C)
    y = pallas_time_ms(cols, res, wt, bt, p["wavg"], p["ln_w"], p["ln_b"])
    return y.reshape(B, T, H, W, C)


def ts_att_block(xrgb_cl, xflow_cl, p):
    """TSAttBlock (ksize=1, stride=1): cat -> ChannAT -> 1x1x1 conv (bias=False).

    ChannAT: x*sigmoid(g)+x == x*(1+sigmoid(g)); the per-(batch,channel) gate is folded
    into the 1x1 conv weight ((x*g)@W == x@(diag(g)W)), so the whole block is one Pallas
    matmul per batch element — no pooled/scale kernels and no extra HBM round trip.
    The pooled mean / ECA 1-D channel conv / sigmoid are tiny (B, C) ops done in plain XLA.
    """
    x = jnp.concatenate([xrgb_cl, xflow_cl], axis=-1)
    B, T, H, W, C2 = x.shape
    pooled = jnp.mean(x.reshape(B, T * H * W, C2), axis=1)          # AdaptiveAvgPool3d(1)
    k = p["eca_col"].shape[0]
    pooled_p = jnp.pad(pooled, ((0, 0), (k // 2, k // 2)))
    gate = sum(p["eca_col"][i] * pooled_p[:, i:i + C2] for i in range(k))
    scale = 1.0 + jax.nn.sigmoid(gate)                              # (B, C2)
    n_out = p["w"].shape[1]
    outs = []
    for b in range(B):                                              # B == 1 in the demo
        w_g = scale[b][:, None] * p["w"]                            # fold gate into weight
        rows = x[b].reshape(T * H * W, C2)
        outs.append(pallas_matmul(rows, w_g).reshape(T, H, W, n_out))
    return jnp.stack(outs, axis=0)


def uptime(x_cl, w, b):
    """ConvTranspose3d(C, C, (2,1,1), stride=(2,1,1)) — the two pointwise matmuls are fused
    into one matmul with 2C output columns, then interleaved along T."""
    B, T, H, W, C = x_cl.shape
    w2 = jnp.concatenate([w[:, :, 0, 0, 0], w[:, :, 1, 0, 0]], axis=1)   # (C, 2C)
    b2 = jnp.concatenate([b, b])
    rows = x_cl.reshape(-1, C)
    out = pallas_matmul(rows, w2, b2).reshape(B, T, H, W, 2, C)
    out = jnp.transpose(out, (0, 1, 4, 2, 3, 5)).reshape(B, 2 * T, H, W, C)
    return out


def spatial_conv_pair(x_cl, w_a, b_a, w_b, b_b):
    """Two Conv3d with kernel (1,3,3), stride 1, pad (0,1,1) on the SAME input: one shared
    9C im2col (bf16) and one matmul with concatenated output channels."""
    B, T, H, W, C = x_cl.shape
    M = B * T * H * W
    cols = spatial_im2col(x_cl.astype(jnp.bfloat16), 3).reshape(M, 9 * C)
    # TODO(synk): at full scale the 9C im2col should move in-kernel (tap accumulation) to
    # avoid the 9x HBM materialization; at demo scale it is negligible.

    def to_mat(w):
        return jnp.transpose(w[:, :, 0], (2, 3, 1, 0)).reshape(9 * C, w.shape[0])

    w_cat = jnp.concatenate([to_mat(w_a), to_mat(w_b)], axis=1)
    b_cat = jnp.concatenate([b_a, b_b])
    out = pallas_matmul(cols, w_cat, b_cat)
    ca = w_a.shape[0]
    return out[:, :ca].reshape(B, T, H, W, ca), out[:, ca:].reshape(B, T, H, W, -1)


def rgb_backbone(x, p):
    """viedoDINORGB stub: per-frame 16x16 patch embedding + mean-pooled cls token."""
    # TODO(synk): frozen pretrained DINOv2 ViT-giant-p14 backbone is not reproducible here;
    # replaced by a Pallas patch-embed projection producing (cls_token, featmap) shapes.
    B, Cin, T, H, W = x.shape
    P = 16
    x_cl = jnp.transpose(x, (0, 2, 3, 4, 1))
    hp, wp = H // P, W // P
    pat = x_cl.reshape(B, T, hp, P, wp, P, Cin)
    pat = jnp.transpose(pat, (0, 1, 2, 4, 3, 5, 6)).reshape(B * T * hp * wp, P * P * Cin)
    tok = pallas_matmul(pat, p["w_pe"], p["b_pe"]).reshape(B, T, hp, wp, C_DINO)
    cls = jnp.mean(tok.reshape(B, T, hp * wp, C_DINO), axis=2)   # (B, T, C_DINO)
    return cls, tok                                              # featmap channels-last


def flow_backbone(x, p):
    """viedoswinFlow stub: PatchEmbed3D (2,4,4) + LN, then three pyramid levels + norm3."""
    # TODO(synk): Video Swin BasicLayer window-attention stages are external pretrained
    # modules; replaced with avg-pool + Pallas pointwise projections at the documented
    # dims/strides (384@H/8, 768@H/16, 1536@H/32, scaled by 1/16).
    B, Cin, T, H, W = x.shape
    pt, ph, pw = 2, 4, 4
    Tp, Hp, Wp = T // pt, H // ph, W // pw
    x_cl = jnp.transpose(x, (0, 2, 3, 4, 1))
    pat = x_cl.reshape(B, Tp, pt, Hp, ph, Wp, pw, Cin)
    pat = jnp.transpose(pat, (0, 1, 3, 5, 2, 4, 6, 7)).reshape(B * Tp * Hp * Wp, pt * ph * pw * Cin)
    emb = pallas_matmul(pat, p["w_pe"], p["b_pe"], ln=(p["pe_ln_w"], p["pe_ln_b"]))
    emb = emb.reshape(B, Tp, Hp, Wp, FLOW_EMBED)

    def pool_proj(e, s, w, b, ln=None):
        Bq, Tq, Hq, Wq, Cq = e.shape
        ep = e.reshape(Bq, Tq, Hq // s, s, Wq // s, s, Cq).mean(axis=(3, 5))
        o = pallas_matmul(ep.reshape(-1, Cq), w, b, ln=ln)
        return o.reshape(Bq, Tq, Hq // s, Wq // s, -1)

    xsw1 = pool_proj(emb, 2, p["w1"], p["b1"])                               # (B,T/2,H/8, W/8, C_SW1)
    xsw2 = pool_proj(emb, 4, p["w2"], p["b2"])                               # (B,T/2,H/16,W/16,C_SW2)
    xsw3 = pool_proj(emb, 8, p["w3"], p["b3"], ln=(p["norm3_w"], p["norm3_b"]))  # norm3 fused
    return xsw1, xsw2, xsw3


# ------------------------------ full forward ------------------------------
def ts_video_swin_backbone(xrgb, params):
    B, _, T, H, W = xrgb.shape

    xsw1, xsw2, xsw3 = flow_backbone(xrgb, params["flow"])
    xsw1 = uptime(xsw1, params["uptime1_w"], params["uptime1_b"])
    xsw2 = uptime(xsw2, params["uptime2_w"], params["uptime2_b"])
    xsw3 = uptime(xsw3, params["uptime3_w"], params["uptime3_b"])

    cls_token, out_feat = rgb_backbone(xrgb, params["rgb"])
    out_feat = time_ms_block(out_feat, params["tconv"])

    out_feat_1 = trilinear_resize(out_feat, out_feat.shape[1], H // 32, W // 32)
    # TODO(synk): BaseConv3DDINO / BaseTransConv3DDINO definitions are not available;
    # both are implemented as (1,3,3) same-size spatial convs (their outputs are
    # immediately trilinearly resized, so spatial extent is governed by the resize).
    conv2_o, deconv3_o = spatial_conv_pair(
        out_feat, params["conv2_w"], params["conv2_b"], params["deconv3_w"], params["deconv3_b"]
    )
    out_feat_2 = trilinear_resize(conv2_o, conv2_o.shape[1], H // 16, W // 16)
    out_feat_3 = trilinear_resize(deconv3_o, deconv3_o.shape[1], H // 8, W // 8)

    x2 = ts_att_block(out_feat_3, xsw1, params["catconv1"])
    x3 = ts_att_block(out_feat_2, xsw2, params["catconv2"])
    x4 = ts_att_block(out_feat_1, xsw3, params["catconv3"])

    x2 = time_ms_block(x2, params["tconv_1"])
    x3 = time_ms_block(x3, params["tconv_2"])
    x4 = time_ms_block(x4, params["tconv_3"])

    to_ncthw = lambda a: jnp.transpose(a, (0, 4, 1, 2, 3))
    return [cls_token, to_ncthw(x2), to_ncthw(x3), to_ncthw(x4)]


# ------------------------------ parameters ------------------------------
def make_params(key):
    keys = iter(jax.random.split(key, 64))

    def nrm(shape, scale=0.02):
        return scale * jax.random.normal(next(keys), shape, dtype=jnp.float32)

    zeros = lambda s: jnp.zeros(s, jnp.float32)
    ones = lambda s: jnp.ones(s, jnp.float32)

    P = {}
    P["flow"] = dict(
        w_pe=nrm((2 * 4 * 4 * 3, FLOW_EMBED)), b_pe=zeros((FLOW_EMBED,)),
        pe_ln_w=ones((FLOW_EMBED,)), pe_ln_b=zeros((FLOW_EMBED,)),
        w1=nrm((FLOW_EMBED, C_SW1)), b1=zeros((C_SW1,)),
        w2=nrm((FLOW_EMBED, C_SW2)), b2=zeros((C_SW2,)),
        w3=nrm((FLOW_EMBED, C_SW3)), b3=zeros((C_SW3,)),
        norm3_w=ones((C_SW3,)), norm3_b=zeros((C_SW3,)),
    )
    P["rgb"] = dict(w_pe=nrm((16 * 16 * 3, C_DINO)), b_pe=zeros((C_DINO,)))

    for name, c in (("uptime1", C_SW1), ("uptime2", C_SW2), ("uptime3", C_SW3)):
        P[name + "_w"] = nrm((c, c, 2, 1, 1))   # torch ConvTranspose3d weight (Cin,Cout,2,1,1)
        P[name + "_b"] = zeros((c,))

    P["conv2_w"] = nrm((C_CONV2, C_DINO, 1, 3, 3))
    P["conv2_b"] = zeros((C_CONV2,))
    P["deconv3_w"] = nrm((C_DECONV3, C_DINO, 1, 3, 3))
    P["deconv3_b"] = zeros((C_DECONV3,))

    def tms(c):  # TimeGlobalMultiScaleBlock params; tavg weight is zero-init (as in module)
        return dict(
            w3=nrm((c, c, 3)), b3=zeros((c,)),
            w5=nrm((c, c, 5)), b5=zeros((c,)),
            w7=nrm((c, c, 7)), b7=zeros((c,)),
            wavg=zeros((3 * c, c)),
            ln_w=ones((c,)), ln_b=zeros((c,)),
        )

    P["tconv"] = tms(C_DINO)
    P["tconv_1"] = tms(C_CAT1)
    P["tconv_2"] = tms(C_CAT2)
    P["tconv_3"] = tms(C_CAT3)

    def cat(cin2, cout):  # TSAttBlock: ChannAT conveca is zero-init (init_zero=True)
        return dict(eca_col=zeros((eca_ksize(cin2),)), w=nrm((cin2, cout)))

    P["catconv1"] = cat(2 * C_DECONV3, C_CAT1)
    P["catconv2"] = cat(2 * C_CONV2, C_CAT2)
    P["catconv3"] = cat(2 * C_DINO, C_CAT3)
    return P


# ------------------------------ main ------------------------------
if __name__ == "__main__":
    key = jax.random.PRNGKey(0)
    kx, kp = jax.random.split(key)
    x = jax.random.normal(kx, (B_IN, C_IN, T_IN, H_IN, W_IN), dtype=jnp.float32)
    params = make_params(kp)

    fwd = jax.jit(lambda inp: ts_video_swin_backbone(inp, params))
    outs = fwd(x)
    outs = jax.block_until_ready(outs)

    # sanity: expected shapes (scaled): cls (B,T,96), x2 (B,16,T,8,8), x3 (B,32,T,4,4), x4 (B,64,T,2,2)
    assert outs[0].shape == (B_IN, T_IN, C_DINO)
    assert outs[1].shape == (B_IN, C_CAT1, T_IN, H_IN // 8, W_IN // 8)
    assert outs[2].shape == (B_IN, C_CAT2, T_IN, H_IN // 16, W_IN // 16)
    assert outs[3].shape == (B_IN, C_CAT3, T_IN, H_IN // 32, W_IN // 32)

    print("KERNEL_OK")
</pallas_src>

<mosaic_0001>
module attributes {stable_mosaic.version = 11 : i64} {
  func.func @_mm_bias_kernel(%arg0: i32, %arg1: memref<64x768xbf16, #tpu.memory_space<vmem>>, %arg2: memref<768x96xbf16, #tpu.memory_space<vmem>>, %arg3: memref<1x96xf32, #tpu.memory_space<vmem>>, %arg4: memref<64x96xf32, #tpu.memory_space<vmem>>) attributes {dimension_semantics = [#tpu.dimension_semantics<parallel>], iteration_bounds = array<i64: 1>, scalar_prefetch = 0 : i64, scratch_operands = 0 : i64, tpu.core_type = #tpu.core_type<tc>, window_params = [{transform_indices = @transform_0, window_bounds = array<i64: 64, 768>}, {pipeline_mode = #tpu.pipeline_mode<synchronous>, transform_indices = @transform_1, window_bounds = array<i64: 768, 96>}, {pipeline_mode = #tpu.pipeline_mode<synchronous>, transform_indices = @transform_2, window_bounds = array<i64: 1, 96>}, {transform_indices = @transform_3, window_bounds = array<i64: 64, 96>}]} {
    %c0 = arith.constant 0 : index
    %c0_0 = arith.constant 0 : index
    %0 = vector.load %arg1[%c0, %c0_0] : memref<64x768xbf16, #tpu.memory_space<vmem>>, vector<64x768xbf16>
    %c0_1 = arith.constant 0 : index
    %c0_2 = arith.constant 0 : index
    %1 = vector.load %arg2[%c0_1, %c0_2] : memref<768x96xbf16, #tpu.memory_space<vmem>>, vector<768x96xbf16>
    %cst = arith.constant dense<0.000000e+00> : vector<64x96xf32>
    %2 = tpu.matmul %0, %1, %cst {dimension_numbers = #tpu.dot_dimension_numbers<[1], [0], [0], [1], [0, 0, 1, 1], [], []>} : vector<64x768xbf16>, vector<768x96xbf16>, vector<64x96xf32> -> vector<64x96xf32>
    %c0_3 = arith.constant 0 : index
    %c0_4 = arith.constant 0 : index
    %3 = vector.load %arg3[%c0_3, %c0_4] : memref<1x96xf32, #tpu.memory_space<vmem>>, vector<1x96xf32>
    %4 = vector.broadcast %3 : vector<1x96xf32> to vector<64x96xf32>
    %5 = arith.addf %2, %4 : vector<64x96xf32>
    %c0_5 = arith.constant 0 : index
    %c0_6 = arith.constant 0 : index
    %6 = vector.load %arg4[%c0_5, %c0_6] : memref<64x96xf32, #tpu.memory_space<vmem>>, vector<64x96xf32>
    tpu.vector_store %arg4[%c0_5, %c0_6], %5 {strides = array<i32>} : memref<64x96xf32, #tpu.memory_space<vmem>>, vector<64x96xf32>,
    return
  }
  func.func @transform_0(%arg0: i32) -> (i32, i32) {
    %c0_i32 = arith.constant 0 : i32
    %c0_i32_0 = arith.constant 0 : i32
    return %arg0, %c0_i32 : i32, i32
  }
  func.func @transform_1(%arg0: i32) -> (i32, i32) {
    %c0_i32 = arith.constant 0 : i32
    %c0_i32_0 = arith.constant 0 : i32
    %c0_i32_1 = arith.constant 0 : i32
    return %c0_i32, %c0_i32_0 : i32, i32
  }
  func.func @transform_2(%arg0: i32) -> (i32, i32) {
    %c0_i32 = arith.constant 0 : i32
    %c0_i32_0 = arith.constant 0 : i32
    %c0_i32_1 = arith.constant 0 : i32
    return %c0_i32, %c0_i32_0 : i32, i32
  }
  func.func @transform_3(%arg0: i32) -> (i32, i32) {
    %c0_i32 = arith.constant 0 : i32
    %c0_i32_0 = arith.constant 0 : i32
    return %arg0, %c0_i32 : i32, i32
  }
}

module attributes {stable_mosaic.version = 11 : i64} {
  func.func @_mm_bias_ln_kernel(%arg0: i32, %arg1: memref<512x96xbf16, #tpu.memory_space<vmem>>, %arg2: memref<96x12xbf16, #tpu.memory_space<vmem>>, %arg3: memref<1x12xf32, #tpu.memory_space<vmem>>, %arg4: memref<1x12xf32, #tpu.memory_space<vmem>>, %arg5: memref<1x12xf32, #tpu.memory_space<vmem>>, %arg6: memref<512x12xf32, #tpu.memory_space<vmem>>) attributes {dimension_semantics = [#tpu.dimension_semantics<parallel>], iteration_bounds = array<i64: 1>, scalar_prefetch = 0 : i64, scratch_operands = 0 : i64, tpu.core_type = #tpu.core_type<tc>, window_params = [{transform_indices = @transform_0, window_bounds = array<i64: 512, 96>}, {pipeline_mode = #tpu.pipeline_mode<synchronous>, transform_indices = @transform_1, window_bounds = array<i64: 96, 12>}, {pipeline_mode = #tpu.pipeline_mode<synchronous>, transform_indices = @transform_2, window_bounds = array<i64: 1, 12>}, {pipeline_mode = #tpu.pipeline_mode<synchronous>, transform_indices = @transform_3, window_bounds = array<i64: 1, 12>}, {pipeline_mode = #tpu.pipeline_mode<synchronous>, transform_indices = @transform_4, window_bounds = array<i64: 1, 12>}, {transform_indices = @transform_5, window_bounds = array<i64: 512, 12>}]} {
    %c0 = arith.constant 0 : index
    %c0_0 = arith.constant 0 : index
    %0 = vector.load %arg1[%c0, %c0_0] : memref<512x96xbf16, #tpu.memory_space<vmem>>, vector<512x96xbf16>
    %c0_1 = arith.constant 0 : index
    %c0_2 = arith.constant 0 : index
    %1 = vector.load %arg2[%c0_1, %c0_2] : memref<96x12xbf16, #tpu.memory_space<vmem>>, vector<96x12xbf16>
    %cst = arith.constant dense<0.000000e+00> : vector<512x12xf32>
    %2 = tpu.matmul %0, %1, %cst {dimension_numbers = #tpu.dot_dimension_numbers<[1], [0], [0], [1], [0, 0, 1, 1], [], []>} : vector<512x96xbf16>, vector<96x12xbf16>, vector<512x12xf32> -> vector<512x12xf32>
    %c0_3 = arith.constant 0 : index
    %c0_4 = arith.constant 0 : index
    %3 = vector.load %arg3[%c0_3, %c0_4] : memref<1x12xf32, #tpu.memory_space<vmem>>, vector<1x12xf32>
    %4 = vector.broadcast %3 : vector<1x12xf32> to vector<512x12xf32>
    %5 = arith.addf %2, %4 : vector<512x12xf32>
    %cst_5 = arith.constant dense<0.000000e+00> : vector<512xf32>
    %6 = vector.multi_reduction <add>, %5, %cst_5 [1] : vector<512x12xf32> to vector<512xf32>
    %7 = vector.shape_cast %6 : vector<512xf32> to vector<512x1xf32>
    %cst_6 = arith.constant 1.200000e+01 : f32
    %8 = vector.broadcast %cst_6 : f32 to vector<512x1xf32>
    %9 = arith.divf %7, %8 : vector<512x1xf32>
    %10 = vector.broadcast %9 : vector<512x1xf32> to vector<512x12xf32>
    %11 = arith.subf %5, %10 : vector<512x12xf32>
    %12 = arith.mulf %11, %11 : vector<512x12xf32>
    %cst_7 = arith.constant dense<0.000000e+00> : vector<512xf32>
    %13 = vector.multi_reduction <add>, %12, %cst_7 [1] : vector<512x12xf32> to vector<512xf32>
    %14 = vector.shape_cast %13 : vector<512xf32> to vector<512x1xf32>
    %cst_8 = arith.constant 1.200000e+01 : f32
    %15 = vector.broadcast %cst_8 : f32 to vector<512x1xf32>
    %16 = arith.divf %14, %15 : vector<512x1xf32>
    %17 = vector.broadcast %9 : vector<512x1xf32> to vector<512x12xf32>
    %18 = arith.subf %5, %17 : vector<512x12xf32>
    %cst_9 = arith.constant 9.99999974E-6 : f32
    %19 = vector.broadcast %cst_9 : f32 to vector<512x1xf32>
    %20 = arith.addf %16, %19 : vector<512x1xf32>
    %21 = math.rsqrt %20 : vector<512x1xf32>
    %22 = vector.broadcast %21 : vector<512x1xf32> to vector<512x12xf32>
    %23 = arith.mulf %18, %22 : vector<512x12xf32>
    %c0_10 = arith.constant 0 : index
    %c0_11 = arith.constant 0 : index
    %24 = vector.load %arg4[%c0_10, %c0_11] : memref<1x12xf32, #tpu.memory_space<vmem>>, vector<1x12xf32>
    %25 = vector.broadcast %24 : vector<1x12xf32> to vector<512x12xf32>
    %26 = arith.mulf %23, %25 : vector<512x12xf32>
    %c0_12 = arith.constant 0 : index
    %c0_13 = arith.constant 0 : index
    %27 = vector.load %arg5[%c0_12, %c0_13] : memref<1x12xf32, #tpu.memory_space<vmem>>, vector<1x12xf32>
    %28 = vector.broadcast %27 : vector<1x12xf32> to vector<512x12xf32>
    %29 = arith.addf %26, %28 : vector<512x12xf32>
    %c0_14 = arith.constant 0 : index
    %c0_15 = arith.constant 0 : index
    %30 = vector.load %arg6[%c0_14, %c0_15] : memref<512x12xf32, #tpu.memory_space<vmem>>, vector<512x12xf32>
    tpu.vector_store %arg6[%c0_14, %c0_15], %29 {strides = array<i32>} : memref<512x12xf32, #tpu.memory_space<vmem>>, vector<512x12xf32>,
    return
  }
  func.func @transform_0(%arg0: i32) -> (i32, i32) {
    %c0_i32 = arith.constant 0 : i32
    %c0_i32_0 = arith.constant 0 : i32
    return %arg0, %c0_i32 : i32, i32
  }
  func.func @transform_1(%arg0: i32) -> (i32, i32) {
    %c0_i32 = arith.constant 0 : i32
    %c0_i32_0 = arith.constant 0 : i32
    %c0_i32_1 = arith.constant 0 : i32
    return %c0_i32, %c0_i32_0 : i32, i32
  }
  func.func @transform_2(%arg0: i32) -> (i32, i32) {
    %c0_i32 = arith.constant 0 : i32
    %c0_i32_0 = arith.constant 0 : i32
    %c0_i32_1 = arith.constant 0 : i32
    return %c0_i32, %c0_i32_0 : i32, i32
  }
  func.func @transform_3(%arg0: i32) -> (i32, i32) {
    %c0_i32 = arith.constant 0 : i32
    %c0_i32_0 = arith.constant 0 : i32
    %c0_i32_1 = arith.constant 0 : i32
    return %c0_i32, %c0_i32_0 : i32, i32
  }
  func.func @transform_4(%arg0: i32) -> (i32, i32) {
    %c0_i32 = arith.constant 0 : i32
    %c0_i32_0 = arith.constant 0 : i32
    %c0_i32_1 = arith.constant 0 : i32
    return %c0_i32, %c0_i32_0 : i32, i32
  }
  func.func @transform_5(%arg0: i32) -> (i32, i32) {
    %c0_i32 = arith.constant 0 : i32
    %c0_i32_0 = arith.constant 0 : i32
    return %arg0, %c0_i32 : i32, i32
  }
}

module attributes {stable_mosaic.version = 11 : i64} {
  func.func @_mm_bias_kernel(%arg0: i32, %arg1: memref<128x12xbf16, #tpu.memory_space<vmem>>, %arg2: memref<12x24xbf16, #tpu.memory_space<vmem>>, %arg3: memref<1x24xf32, #tpu.memory_space<vmem>>, %arg4: memref<128x24xf32, #tpu.memory_space<vmem>>) attributes {dimension_semantics = [#tpu.dimension_semantics<parallel>], iteration_bounds = array<i64: 1>, scalar_prefetch = 0 : i64, scratch_operands = 0 : i64, tpu.core_type = #tpu.core_type<tc>, window_params = [{transform_indices = @transform_0, window_bounds = array<i64: 128, 12>}, {pipeline_mode = #tpu.pipeline_mode<synchronous>, transform_indices = @transform_1, window_bounds = array<i64: 12, 24>}, {pipeline_mode = #tpu.pipeline_mode<synchronous>, transform_indices = @transform_2, window_bounds = array<i64: 1, 24>}, {transform_indices = @transform_3, window_bounds = array<i64: 128, 24>}]} {
    %c0 = arith.constant 0 : index
    %c0_0 = arith.constant 0 : index
    %0 = vector.load %arg1[%c0, %c0_0] : memref<128x12xbf16, #tpu.memory_space<vmem>>, vector<128x12xbf16>
    %c0_1 = arith.constant 0 : index
    %c0_2 = arith.constant 0 : index
    %1 = vector.load %arg2[%c0_1, %c0_2] : memref<12x24xbf16, #tpu.memory_space<vmem>>, vector<12x24xbf16>
    %cst = arith.constant dense<0.000000e+00> : vector<128x24xf32>
    %2 = tpu.matmul %0, %1, %cst {dimension_numbers = #tpu.dot_dimension_numbers<[1], [0], [0], [1], [0, 0, 1, 1], [], []>} : vector<128x12xbf16>, vector<12x24xbf16>, vector<128x24xf32> -> vector<128x24xf32>
    %c0_3 = arith.constant 0 : index
    %c0_4 = arith.constant 0 : index
    %3 = vector.load %arg3[%c0_3, %c0_4] : memref<1x24xf32, #tpu.memory_space<vmem>>, vector<1x24xf32>
    %4 = vector.broadcast %3 : vector<1x24xf32> to vector<128x24xf32>
    %5 = arith.addf %2, %4 : vector<128x24xf32>
    %c0_5 = arith.constant 0 : index
    %c0_6 = arith.constant 0 : index
    %6 = vector.load %arg4[%c0_5, %c0_6] : memref<128x24xf32, #tpu.memory_space<vmem>>, vector<128x24xf32>
    tpu.vector_store %arg4[%c0_5, %c0_6], %5 {strides = array<i32>} : memref<128x24xf32, #tpu.memory_space<vmem>>, vector<128x24xf32>,
    return
  }
  func.func @transform_0(%arg0: i32) -> (i32, i32) {
    %c0_i32 = arith.constant 0 : i32
    %c0_i32_0 = arith.constant 0 : i32
    return %arg0, %c0_i32 : i32, i32
  }
  func.func @transform_1(%arg0: i32) -> (i32, i32) {
    %c0_i32 = arith.constant 0 : i32
    %c0_i32_0 = arith.constant 0 : i32
    %c0_i32_1 = arith.constant 0 : i32
    return %c0_i32, %c0_i32_0 : i32, i32
  }
  func.func @transform_2(%arg0: i32) -> (i32, i32) {
    %c0_i32 = arith.constant 0 : i32
    %c0_i32_0 = arith.constant 0 : i32
    %c0_i32_1 = arith.constant 0 : i32
    return %c0_i32, %c0_i32_0 : i32, i32
  }
  func.func @transform_3(%arg0: i32) -> (i32, i32) {
    %c0_i32 = arith.constant 0 : i32
    %c0_i32_0 = arith.constant 0 : i32
    return %arg0, %c0_i32 : i32, i32
  }
}

module attributes {stable_mosaic.version = 11 : i64} {
  func.func @_mm_bias_kernel(%arg0: i32, %arg1: memref<128x24xbf16, #tpu.memory_space<vmem>>, %arg2: memref<24x48xbf16, #tpu.memory_space<vmem>>, %arg3: memref<1x48xf32, #tpu.memory_space<vmem>>, %arg4: memref<128x48xf32, #tpu.memory_space<vmem>>) attributes {dimension_semantics = [#tpu.dimension_semantics<parallel>], iteration_bounds = array<i64: 1>, scalar_prefetch = 0 : i64, scratch_operands = 0 : i64, tpu.core_type = #tpu.core_type<tc>, window_params = [{transform_indices = @transform_0, window_bounds = array<i64: 128, 24>}, {pipeline_mode = #tpu.pipeline_mode<synchronous>, transform_indices = @transform_1, window_bounds = array<i64: 24, 48>}, {pipeline_mode = #tpu.pipeline_mode<synchronous>, transform_indices = @transform_2, window_bounds = array<i64: 1, 48>}, {transform_indices = @transform_3, window_bounds = array<i64: 128, 48>}]} {
    %c0 = arith.constant 0 : index
    %c0_0 = arith.constant 0 : index
    %0 = vector.load %arg1[%c0, %c0_0] : memref<128x24xbf16, #tpu.memory_space<vmem>>, vector<128x24xbf16>
    %c0_1 = arith.constant 0 : index
    %c0_2 = arith.constant 0 : index
    %1 = vector.load %arg2[%c0_1, %c0_2] : memref<24x48xbf16, #tpu.memory_space<vmem>>, vector<24x48xbf16>
    %cst = arith.constant dense<0.000000e+00> : vector<128x48xf32>
    %2 = tpu.matmul %0, %1, %cst {dimension_numbers = #tpu.dot_dimension_numbers<[1], [0], [0], [1], [0, 0, 1, 1], [], []>} : vector<128x24xbf16>, vector<24x48xbf16>, vector<128x48xf32> -> vector<128x48xf32>
    %c0_3 = arith.constant 0 : index
    %c0_4 = arith.constant 0 : index
    %3 = vector.load %arg3[%c0_3, %c0_4] : memref<1x48xf32, #tpu.memory_space<vmem>>, vector<1x48xf32>
    %4 = vector.broadcast %3 : vector<1x48xf32> to vector<128x48xf32>
    %5 = arith.addf %2, %4 : vector<128x48xf32>
    %c0_5 = arith.constant 0 : index
    %c0_6 = arith.constant 0 : index
    %6 = vector.load %arg4[%c0_5, %c0_6] : memref<128x48xf32, #tpu.memory_space<vmem>>, vector<128x48xf32>
    tpu.vector_store %arg4[%c0_5, %c0_6], %5 {strides = array<i32>} : memref<128x48xf32, #tpu.memory_space<vmem>>, vector<128x48xf32>,
    return
  }
  func.func @transform_0(%arg0: i32) -> (i32, i32) {
    %c0_i32 = arith.constant 0 : i32
    %c0_i32_0 = arith.constant 0 : i32
    return %arg0, %c0_i32 : i32, i32
  }
  func.func @transform_1(%arg0: i32) -> (i32, i32) {
    %c0_i32 = arith.constant 0 : i32
    %c0_i32_0 = arith.constant 0 : i32
    %c0_i32_1 = arith.constant 0 : i32
    return %c0_i32, %c0_i32_0 : i32, i32
  }
  func.func @transform_2(%arg0: i32) -> (i32, i32) {
    %c0_i32 = arith.constant 0 : i32
    %c0_i32_0 = arith.constant 0 : i32
    %c0_i32_1 = arith.constant 0 : i32
    return %c0_i32, %c0_i32_0 : i32, i32
  }
  func.func @transform_3(%arg0: i32) -> (i32, i32) {
    %c0_i32 = arith.constant 0 : i32
    %c0_i32_0 = arith.constant 0 : i32
    return %arg0, %c0_i32 : i32, i32
  }
}

module attributes {stable_mosaic.version = 11 : i64} {
  func.func @_time_ms_kernel(%arg0: i32, %arg1: memref<64x672xbf16, #tpu.memory_space<vmem>>, %arg2: memref<64x96xf32, #tpu.memory_space<vmem>>, %arg3: memref<672x288xbf16, #tpu.memory_space<vmem>>, %arg4: memref<1x288xf32, #tpu.memory_space<vmem>>, %arg5: memref<288x96xbf16, #tpu.memory_space<vmem>>, %arg6: memref<1x96xf32, #tpu.memory_space<vmem>>, %arg7: memref<1x96xf32, #tpu.memory_space<vmem>>, %arg8: memref<64x96xf32, #tpu.memory_space<vmem>>) attributes {dimension_semantics = [#tpu.dimension_semantics<parallel>], iteration_bounds = array<i64: 1>, scalar_prefetch = 0 : i64, scratch_operands = 0 : i64, tpu.core_type = #tpu.core_type<tc>, window_params = [{transform_indices = @transform_0, window_bounds = array<i64: 64, 672>}, {transform_indices = @transform_1, window_bounds = array<i64: 64, 96>}, {pipeline_mode = #tpu.pipeline_mode<synchronous>, transform_indices = @transform_2, window_bounds = array<i64: 672, 288>}, {pipeline_mode = #tpu.pipeline_mode<synchronous>, transform_indices = @transform_3, window_bounds = array<i64: 1, 288>}, {pipeline_mode = #tpu.pipeline_mode<synchronous>, transform_indices = @transform_4, window_bounds = array<i64: 288, 96>}, {pipeline_mode = #tpu.pipeline_mode<synchronous>, transform_indices = @transform_5, window_bounds = array<i64: 1, 96>}, {pipeline_mode = #tpu.pipeline_mode<synchronous>, transform_indices = @transform_6, window_bounds = array<i64: 1, 96>}, {transform_indices = @transform_7, window_bounds = array<i64: 64, 96>}]} {
    %c0 = arith.constant 0 : index
    %c0_0 = arith.constant 0 : index
    %0 = vector.load %arg1[%c0, %c0_0] : memref<64x672xbf16, #tpu.memory_space<vmem>>, vector<64x672xbf16>
    %c0_1 = arith.constant 0 : index
    %c0_2 = arith.constant 0 : index
    %1 = vector.load %arg3[%c0_1, %c0_2] : memref<672x288xbf16, #tpu.memory_space<vmem>>, vector<672x288xbf16>
    %cst = arith.constant dense<0.000000e+00> : vector<64x288xf32>
    %2 = tpu.matmul %0, %1, %cst {dimension_numbers = #tpu.dot_dimension_numbers<[1], [0], [0], [1], [0, 0, 1, 1], [], []>} : vector<64x672xbf16>, vector<672x288xbf16>, vector<64x288xf32> -> vector<64x288xf32>
    %c0_3 = arith.constant 0 : index
    %c0_4 = arith.constant 0 : index
    %3 = vector.load %arg4[%c0_3, %c0_4] : memref<1x288xf32, #tpu.memory_space<vmem>>, vector<1x288xf32>
    %4 = vector.broadcast %3 : vector<1x288xf32> to vector<64x288xf32>
    %5 = arith.addf %2, %4 : vector<64x288xf32>
    %6 = arith.truncf %5 : vector<64x288xf32> to vector<64x288xbf16>
    %c0_5 = arith.constant 0 : index
    %c0_6 = arith.constant 0 : index
    %7 = vector.load %arg5[%c0_5, %c0_6] : memref<288x96xbf16, #tpu.memory_space<vmem>>, vector<288x96xbf16>
    %cst_7 = arith.constant dense<0.000000e+00> : vector<64x96xf32>
    %8 = tpu.matmul %6, %7, %cst_7 {dimension_numbers = #tpu.dot_dimension_numbers<[1], [0], [0], [1], [0, 0, 1, 1], [], []>} : vector<64x288xbf16>, vector<288x96xbf16>, vector<64x96xf32> -> vector<64x96xf32>
    %cst_8 = arith.constant 5.000000e-01 : f32
    %9 = vector.broadcast %cst_8 : f32 to vector<64x96xf32>
    %10 = arith.mulf %9, %8 : vector<64x96xf32>
    %cst_9 = arith.constant 4.471500e-02 : f32
    %11 = vector.broadcast %cst_9 : f32 to vector<64x96xf32>
    %12 = arith.mulf %11, %8 : vector<64x96xf32>
    %13 = arith.mulf %12, %8 : vector<64x96xf32>
    %14 = arith.mulf %13, %8 : vector<64x96xf32>
    %15 = arith.addf %8, %14 : vector<64x96xf32>
    %cst_10 = arith.constant 0.797884583 : f32
    %16 = vector.broadcast %cst_10 : f32 to vector<64x96xf32>
    %17 = arith.mulf %16, %15 : vector<64x96xf32>
    %18 = math.tanh %17 : vector<64x96xf32>
    %cst_11 = arith.constant 1.000000e+00 : f32
    %19 = vector.broadcast %cst_11 : f32 to vector<64x96xf32>
    %20 = arith.addf %19, %18 : vector<64x96xf32>
    %21 = arith.mulf %10, %20 : vector<64x96xf32>
    %cst_12 = arith.constant dense<0.000000e+00> : vector<64xf32>
    %22 = vector.multi_reduction <add>, %21, %cst_12 [1] : vector<64x96xf32> to vector<64xf32>
    %23 = vector.shape_cast %22 : vector<64xf32> to vector<64x1xf32>
    %cst_13 = arith.constant 9.600000e+01 : f32
    %24 = vector.broadcast %cst_13 : f32 to vector<64x1xf32>
    %25 = arith.divf %23, %24 : vector<64x1xf32>
    %26 = vector.broadcast %25 : vector<64x1xf32> to vector<64x96xf32>
    %27 = arith.subf %21, %26 : vector<64x96xf32>
    %28 = arith.mulf %27, %27 : vector<64x96xf32>
    %cst_14 = arith.constant dense<0.000000e+00> : vector<64xf32>
    %29 = vector.multi_reduction <add>, %28, %cst_14 [1] : vector<64x96xf32> to vector<64xf32>
    %30 = vector.shape_cast %29 : vector<64xf32> to vector<64x1xf32>
    %cst_15 = arith.constant 9.600000e+01 : f32
    %31 = vector.broadcast %cst_15 : f32 to vector<64x1xf32>
    %32 = arith.divf %30, %31 : vector<64x1xf32>
    %33 = vector.broadcast %25 : vector<64x1xf32> to vector<64x96xf32>
    %34 = arith.subf %21, %33 : vector<64x96xf32>
    %cst_16 = arith.constant 9.99999974E-6 : f32
    %35 = vector.broadcast %cst_16 : f32 to vector<64x1xf32>
    %36 = arith.addf %32, %35 : vector<64x1xf32>
    %37 = math.rsqrt %36 : vector<64x1xf32>
    %38 = vector.broadcast %37 : vector<64x1xf32> to vector<64x96xf32>
    %39 = arith.mulf %34, %38 : vector<64x96xf32>
    %c0_17 = arith.constant 0 : index
    %c0_18 = arith.constant 0 : index
    %40 = vector.load %arg6[%c0_17, %c0_18] : memref<1x96xf32, #tpu.memory_space<vmem>>, vector<1x96xf32>
    %41 = vector.broadcast %40 : vector<1x96xf32> to vector<64x96xf32>
    %42 = arith.mulf %39, %41 : vector<64x96xf32>
    %c0_19 = arith.constant 0 : index
    %c0_20 = arith.constant 0 : index
    %43 = vector.load %arg7[%c0_19, %c0_20] : memref<1x96xf32, #tpu.memory_space<vmem>>, vector<1x96xf32>
    %44 = vector.broadcast %43 : vector<1x96xf32> to vector<64x96xf32>
    %45 = arith.addf %42, %44 : vector<64x96xf32>
    %c0_21 = arith.constant 0 : index
    %c0_22 = arith.constant 0 : index
    %46 = vector.load %arg2[%c0_21, %c0_22] : memref<64x96xf32, #tpu.memory_space<vmem>>, vector<64x96xf32>
    %47 = arith.addf %45, %46 : vector<64x96xf32>
    %c0_23 = arith.constant 0 : index
    %c0_24 = arith.constant 0 : index
    %48 = vector.load %arg8[%c0_23, %c0_24] : memref<64x96xf32, #tpu.memory_space<vmem>>, vector<64x96xf32>
    tpu.vector_store %arg8[%c0_23, %c0_24], %47 {strides = array<i32>} : memref<64x96xf32, #tpu.memory_space<vmem>>, vector<64x96xf32>,
    return
  }
  func.func @transform_0(%arg0: i32) -> (i32, i32) {
    %c0_i32 = arith.constant 0 : i32
    %c0_i32_0 = arith.constant 0 : i32
    return %arg0, %c0_i32 : i32, i32
  }
  func.func @transform_1(%arg0: i32) -> (i32, i32) {
    %c0_i32 = arith.constant 0 : i32
    %c0_i32_0 = arith.constant 0 : i32
    return %arg0, %c0_i32 : i32, i32
  }
  func.func @transform_2(%arg0: i32) -> (i32, i32) {
    %c0_i32 = arith.constant 0 : i32
    %c0_i32_0 = arith.constant 0 : i32
    %c0_i32_1 = arith.constant 0 : i32
    return %c0_i32, %c0_i32_0 : i32, i32
  }
  func.func @transform_3(%arg0: i32) -> (i32, i32) {
    %c0_i32 = arith.constant 0 : i32
    %c0_i32_0 = arith.constant 0 : i32
    %c0_i32_1 = arith.constant 0 : i32
    return %c0_i32, %c0_i32_0 : i32, i32
  }
  func.func @transform_4(%arg0: i32) -> (i32, i32) {
    %c0_i32 = arith.constant 0 : i32
    %c0_i32_0 = arith.constant 0 : i32
    %c0_i32_1 = arith.constant 0 : i32
    return %c0_i32, %c0_i32_0 : i32, i32
  }
  func.func @transform_5(%arg0: i32) -> (i32, i32) {
    %c0_i32 = arith.constant 0 : i32
    %c0_i32_0 = arith.constant 0 : i32
    %c0_i32_1 = arith.constant 0 : i32
    return %c0_i32, %c0_i32_0 : i32, i32
  }
  func.func @transform_6(%arg0: i32) -> (i32, i32) {
    %c0_i32 = arith.constant 0 : i32
    %c0_i32_0 = arith.constant 0 : i32
    %c0_i32_1 = arith.constant 0 : i32
    return %c0_i32, %c0_i32_0 : i32, i32
  }
  func.func @transform_7(%arg0: i32) -> (i32, i32) {
    %c0_i32 = arith.constant 0 : i32
    %c0_i32_0 = arith.constant 0 : i32
    return %arg0, %c0_i32 : i32, i32
  }
}

module attributes {stable_mosaic.version = 11 : i64} {
  func.func @_mm_bias_kernel(%arg0: i32, %arg1: memref<64x864xbf16, #tpu.memory_space<vmem>>, %arg2: memref<864x72xbf16, #tpu.memory_space<vmem>>, %arg3: memref<1x72xf32, #tpu.memory_space<vmem>>, %arg4: memref<64x72xf32, #tpu.memory_space<vmem>>) attributes {dimension_semantics = [#tpu.dimension_semantics<parallel>], iteration_bounds = array<i64: 1>, scalar_prefetch = 0 : i64, scratch_operands = 0 : i64, tpu.core_type = #tpu.core_type<tc>, window_params = [{transform_indices = @transform_0, window_bounds = array<i64: 64, 864>}, {pipeline_mode = #tpu.pipeline_mode<synchronous>, transform_indices = @transform_1, window_bounds = array<i64: 864, 72>}, {pipeline_mode = #tpu.pipeline_mode<synchronous>, transform_indices = @transform_2, window_bounds = array<i64: 1, 72>}, {transform_indices = @transform_3, window_bounds = array<i64: 64, 72>}]} {
    %c0 = arith.constant 0 : index
    %c0_0 = arith.constant 0 : index
    %0 = vector.load %arg1[%c0, %c0_0] : memref<64x864xbf16, #tpu.memory_space<vmem>>, vector<64x864xbf16>
    %c0_1 = arith.constant 0 : index
    %c0_2 = arith.constant 0 : index
    %1 = vector.load %arg2[%c0_1, %c0_2] : memref<864x72xbf16, #tpu.memory_space<vmem>>, vector<864x72xbf16>
    %cst = arith.constant dense<0.000000e+00> : vector<64x72xf32>
    %2 = tpu.matmul %0, %1, %cst {dimension_numbers = #tpu.dot_dimension_numbers<[1], [0], [0], [1], [0, 0, 1, 1], [], []>} : vector<64x864xbf16>, vector<864x72xbf16>, vector<64x72xf32> -> vector<64x72xf32>
    %c0_3 = arith.constant 0 : index
    %c0_4 = arith.constant 0 : index
    %3 = vector.load %arg3[%c0_3, %c0_4] : memref<1x72xf32, #tpu.memory_space<vmem>>, vector<1x72xf32>
    %4 = vector.broadcast %3 : vector<1x72xf32> to vector<64x72xf32>
    %5 = arith.addf %2, %4 : vector<64x72xf32>
    %c0_5 = arith.constant 0 : index
    %c0_6 = arith.constant 0 : index
    %6 = vector.load %arg4[%c0_5, %c0_6] : memref<64x72xf32, #tpu.memory_space<vmem>>, vector<64x72xf32>
    tpu.vector_store %arg4[%c0_5, %c0_6], %5 {strides = array<i32>} : memref<64x72xf32, #tpu.memory_space<vmem>>, vector<64x72xf32>,
    return
  }
  func.func @transform_0(%arg0: i32) -> (i32, i32) {
    %c0_i32 = arith.constant 0 : i32
    %c0_i32_0 = arith.constant 0 : i32
    return %arg0, %c0_i32 : i32, i32
  }
  func.func @transform_1(%arg0: i32) -> (i32, i32) {
    %c0_i32 = arith.constant 0 : i32
    %c0_i32_0 = arith.constant 0 : i32
    %c0_i32_1 = arith.constant 0 : i32
    return %c0_i32, %c0_i32_0 : i32, i32
  }
  func.func @transform_2(%arg0: i32) -> (i32, i32) {
    %c0_i32 = arith.constant 0 : i32
    %c0_i32_0 = arith.constant 0 : i32
    %c0_i32_1 = arith.constant 0 : i32
    return %c0_i32, %c0_i32_0 : i32, i32
  }
  func.func @transform_3(%arg0: i32) -> (i32, i32) {
    %c0_i32 = arith.constant 0 : i32
    %c0_i32_0 = arith.constant 0 : i32
    return %arg0, %c0_i32 : i32, i32
  }
}

module attributes {stable_mosaic.version = 11 : i64} {
  func.func @_mm_bias_kernel(%arg0: i32, %arg1: memref<256x48xbf16, #tpu.memory_space<vmem>>, %arg2: memref<48x16xbf16, #tpu.memory_space<vmem>>, %arg3: memref<1x16xf32, #tpu.memory_space<vmem>>, %arg4: memref<256x16xf32, #tpu.memory_space<vmem>>) attributes {dimension_semantics = [#tpu.dimension_semantics<parallel>], iteration_bounds = array<i64: 1>, scalar_prefetch = 0 : i64, scratch_operands = 0 : i64, tpu.core_type = #tpu.core_type<tc>, window_params = [{transform_indices = @transform_0, window_bounds = array<i64: 256, 48>}, {pipeline_mode = #tpu.pipeline_mode<synchronous>, transform_indices = @transform_1, window_bounds = array<i64: 48, 16>}, {pipeline_mode = #tpu.pipeline_mode<synchronous>, transform_indices = @transform_2, window_bounds = array<i64: 1, 16>}, {transform_indices = @transform_3, window_bounds = array<i64: 256, 16>}]} {
    %c0 = arith.constant 0 : index
    %c0_0 = arith.constant 0 : index
    %0 = vector.load %arg1[%c0, %c0_0] : memref<256x48xbf16, #tpu.memory_space<vmem>>, vector<256x48xbf16>
    %c0_1 = arith.constant 0 : index
    %c0_2 = arith.constant 0 : index
    %1 = vector.load %arg2[%c0_1, %c0_2] : memref<48x16xbf16, #tpu.memory_space<vmem>>, vector<48x16xbf16>
    %cst = arith.constant dense<0.000000e+00> : vector<256x16xf32>
    %2 = tpu.matmul %0, %1, %cst {dimension_numbers = #tpu.dot_dimension_numbers<[1], [0], [0], [1], [0, 0, 1, 1], [], []>} : vector<256x48xbf16>, vector<48x16xbf16>, vector<256x16xf32> -> vector<256x16xf32>
    %c0_3 = arith.constant 0 : index
    %c0_4 = arith.constant 0 : index
    %3 = vector.load %arg3[%c0_3, %c0_4] : memref<1x16xf32, #tpu.memory_space<vmem>>, vector<1x16xf32>
    %4 = vector.broadcast %3 : vector<1x16xf32> to vector<256x16xf32>
    %5 = arith.addf %2, %4 : vector<256x16xf32>
    %c0_5 = arith.constant 0 : index
    %c0_6 = arith.constant 0 : index
    %6 = vector.load %arg4[%c0_5, %c0_6] : memref<256x16xf32, #tpu.memory_space<vmem>>, vector<256x16xf32>
    tpu.vector_store %arg4[%c0_5, %c0_6], %5 {strides = array<i32>} : memref<256x16xf32, #tpu.memory_space<vmem>>, vector<256x16xf32>,
    return
  }
  func.func @transform_0(%arg0: i32) -> (i32, i32) {
    %c0_i32 = arith.constant 0 : i32
    %c0_i32_0 = arith.constant 0 : i32
    return %arg0, %c0_i32 : i32, i32
  }
  func.func @transform_1(%arg0: i32) -> (i32, i32) {
    %c0_i32 = arith.constant 0 : i32
    %c0_i32_0 = arith.constant 0 : i32
    %c0_i32_1 = arith.constant 0 : i32
    return %c0_i32, %c0_i32_0 : i32, i32
  }
  func.func @transform_2(%arg0: i32) -> (i32, i32) {
    %c0_i32 = arith.constant 0 : i32
    %c0_i32_0 = arith.constant 0 : i32
    %c0_i32_1 = arith.constant 0 : i32
    return %c0_i32, %c0_i32_0 : i32, i32
  }
  func.func @transform_3(%arg0: i32) -> (i32, i32) {
    %c0_i32 = arith.constant 0 : i32
    %c0_i32_0 = arith.constant 0 : i32
    return %arg0, %c0_i32 : i32, i32
  }
}

module attributes {stable_mosaic.version = 11 : i64} {
  func.func @_time_ms_kernel(%arg0: i32, %arg1: memref<256x112xbf16, #tpu.memory_space<vmem>>, %arg2: memref<256x16xf32, #tpu.memory_space<vmem>>, %arg3: memref<112x48xbf16, #tpu.memory_space<vmem>>, %arg4: memref<1x48xf32, #tpu.memory_space<vmem>>, %arg5: memref<48x16xbf16, #tpu.memory_space<vmem>>, %arg6: memref<1x16xf32, #tpu.memory_space<vmem>>, %arg7: memref<1x16xf32, #tpu.memory_space<vmem>>, %arg8: memref<256x16xf32, #tpu.memory_space<vmem>>) attributes {dimension_semantics = [#tpu.dimension_semantics<parallel>], iteration_bounds = array<i64: 1>, scalar_prefetch = 0 : i64, scratch_operands = 0 : i64, tpu.core_type = #tpu.core_type<tc>, window_params = [{transform_indices = @transform_0, window_bounds = array<i64: 256, 112>}, {transform_indices = @transform_1, window_bounds = array<i64: 256, 16>}, {pipeline_mode = #tpu.pipeline_mode<synchronous>, transform_indices = @transform_2, window_bounds = array<i64: 112, 48>}, {pipeline_mode = #tpu.pipeline_mode<synchronous>, transform_indices = @transform_3, window_bounds = array<i64: 1, 48>}, {pipeline_mode = #tpu.pipeline_mode<synchronous>, transform_indices = @transform_4, window_bounds = array<i64: 48, 16>}, {pipeline_mode = #tpu.pipeline_mode<synchronous>, transform_indices = @transform_5, window_bounds = array<i64: 1, 16>}, {pipeline_mode = #tpu.pipeline_mode<synchronous>, transform_indices = @transform_6, window_bounds = array<i64: 1, 16>}, {transform_indices = @transform_7, window_bounds = array<i64: 256, 16>}]} {
    %c0 = arith.constant 0 : index
    %c0_0 = arith.constant 0 : index
    %0 = vector.load %arg1[%c0, %c0_0] : memref<256x112xbf16, #tpu.memory_space<vmem>>, vector<256x112xbf16>
    %c0_1 = arith.constant 0 : index
    %c0_2 = arith.constant 0 : index
    %1 = vector.load %arg3[%c0_1, %c0_2] : memref<112x48xbf16, #tpu.memory_space<vmem>>, vector<112x48xbf16>
    %cst = arith.constant dense<0.000000e+00> : vector<256x48xf32>
    %2 = tpu.matmul %0, %1, %cst {dimension_numbers = #tpu.dot_dimension_numbers<[1], [0], [0], [1], [0, 0, 1, 1], [], []>} : vector<256x112xbf16>, vector<112x48xbf16>, vector<256x48xf32> -> vector<256x48xf32>
    %c0_3 = arith.constant 0 : index
    %c0_4 = arith.constant 0 : index
    %3 = vector.load %arg4[%c0_3, %c0_4] : memref<1x48xf32, #tpu.memory_space<vmem>>, vector<1x48xf32>
    %4 = vector.broadcast %3 : vector<1x48xf32> to vector<256x48xf32>
    %5 = arith.addf %2, %4 : vector<256x48xf32>
    %6 = arith.truncf %5 : vector<256x48xf32> to vector<256x48xbf16>
    %c0_5 = arith.constant 0 : index
    %c0_6 = arith.constant 0 : index
    %7 = vector.load %arg5[%c0_5, %c0_6] : memref<48x16xbf16, #tpu.memory_space<vmem>>, vector<48x16xbf16>
    %cst_7 = arith.constant dense<0.000000e+00> : vector<256x16xf32>
    %8 = tpu.matmul %6, %7, %cst_7 {dimension_numbers = #tpu.dot_dimension_numbers<[1], [0], [0], [1], [0, 0, 1, 1], [], []>} : vector<256x48xbf16>, vector<48x16xbf16>, vector<256x16xf32> -> vector<256x16xf32>
    %cst_8 = arith.constant 5.000000e-01 : f32
    %9 = vector.broadcast %cst_8 : f32 to vector<256x16xf32>
    %10 = arith.mulf %9, %8 : vector<256x16xf32>
    %cst_9 = arith.constant 4.471500e-02 : f32
    %11 = vector.broadcast %cst_9 : f32 to vector<256x16xf32>
    %12 = arith.mulf %11, %8 : vector<256x16xf32>
    %13 = arith.mulf %12, %8 : vector<256x16xf32>
    %14 = arith.mulf %13, %8 : vector<256x16xf32>
    %15 = arith.addf %8, %14 : vector<256x16xf32>
    %cst_10 = arith.constant 0.797884583 : f32
    %16 = vector.broadcast %cst_10 : f32 to vector<256x16xf32>
    %17 = arith.mulf %16, %15 : vector<256x16xf32>
    %18 = math.tanh %17 : vector<256x16xf32>
    %cst_11 = arith.constant 1.000000e+00 : f32
    %19 = vector.broadcast %cst_11 : f32 to vector<256x16xf32>
    %20 = arith.addf %19, %18 : vector<256x16xf32>
    %21 = arith.mulf %10, %20 : vector<256x16xf32>
    %cst_12 = arith.constant dense<0.000000e+00> : vector<256xf32>
    %22 = vector.multi_reduction <add>, %21, %cst_12 [1] : vector<256x16xf32> to vector<256xf32>
    %23 = vector.shape_cast %22 : vector<256xf32> to vector<256x1xf32>
    %cst_13 = arith.constant 1.600000e+01 : f32
    %24 = vector.broadcast %cst_13 : f32 to vector<256x1xf32>
    %25 = arith.divf %23, %24 : vector<256x1xf32>
    %26 = vector.broadcast %25 : vector<256x1xf32> to vector<256x16xf32>
    %27 = arith.subf %21, %26 : vector<256x16xf32>
    %28 = arith.mulf %27, %27 : vector<256x16xf32>
    %cst_14 = arith.constant dense<0.000000e+00> : vector<256xf32>
    %29 = vector.multi_reduction <add>, %28, %cst_14 [1] : vector<256x16xf32> to vector<256xf32>
    %30 = vector.shape_cast %29 : vector<256xf32> to vector<256x1xf32>
    %cst_15 = arith.constant 1.600000e+01 : f32
    %31 = vector.broadcast %cst_15 : f32 to vector<256x1xf32>
    %32 = arith.divf %30, %31 : vector<256x1xf32>
    %33 = vector.broadcast %25 : vector<256x1xf32> to vector<256x16xf32>
    %34 = arith.subf %21, %33 : vector<256x16xf32>
    %cst_16 = arith.constant 9.99999974E-6 : f32
    %35 = vector.broadcast %cst_16 : f32 to vector<256x1xf32>
    %36 = arith.addf %32, %35 : vector<256x1xf32>
    %37 = math.rsqrt %36 : vector<256x1xf32>
    %38 = vector.broadcast %37 : vector<256x1xf32> to vector<256x16xf32>
    %39 = arith.mulf %34, %38 : vector<256x16xf32>
    %c0_17 = arith.constant 0 : index
    %c0_18 = arith.constant 0 : index
    %40 = vector.load %arg6[%c0_17, %c0_18] : memref<1x16xf32, #tpu.memory_space<vmem>>, vector<1x16xf32>
    %41 = vector.broadcast %40 : vector<1x16xf32> to vector<256x16xf32>
    %42 = arith.mulf %39, %41 : vector<256x16xf32>
    %c0_19 = arith.constant 0 : index
    %c0_20 = arith.constant 0 : index
    %43 = vector.load %arg7[%c0_19, %c0_20] : memref<1x16xf32, #tpu.memory_space<vmem>>, vector<1x16xf32>
    %44 = vector.broadcast %43 : vector<1x16xf32> to vector<256x16xf32>
    %45 = arith.addf %42, %44 : vector<256x16xf32>
    %c0_21 = arith.constant 0 : index
    %c0_22 = arith.constant 0 : index
    %46 = vector.load %arg2[%c0_21, %c0_22] : memref<256x16xf32, #tpu.memory_space<vmem>>, vector<256x16xf32>
    %47 = arith.addf %45, %46 : vector<256x16xf32>
    %c0_23 = arith.constant 0 : index
    %c0_24 = arith.constant 0 : index
    %48 = vector.load %arg8[%c0_23, %c0_24] : memref<256x16xf32, #tpu.memory_space<vmem>>, vector<256x16xf32>
    tpu.vector_store %arg8[%c0_23, %c0_24], %47 {strides = array<i32>} : memref<256x16xf32, #tpu.memory_space<vmem>>, vector<256x16xf32>,
    return
  }
  func.func @transform_0(%arg0: i32) -> (i32, i32) {
    %c0_i32 = arith.constant 0 : i32
    %c0_i32_0 = arith.constant 0 : i32
    return %arg0, %c0_i32 : i32, i32
  }
  func.func @transform_1(%arg0: i32) -> (i32, i32) {
    %c0_i32 = arith.constant 0 : i32
    %c0_i32_0 = arith.constant 0 : i32
    return %arg0, %c0_i32 : i32, i32
  }
  func.func @transform_2(%arg0: i32) -> (i32, i32) {
    %c0_i32 = arith.constant 0 : i32
    %c0_i32_0 = arith.constant 0 : i32
    %c0_i32_1 = arith.constant 0 : i32
    return %c0_i32, %c0_i32_0 : i32, i32
  }
  func.func @transform_3(%arg0: i32) -> (i32, i32) {
    %c0_i32 = arith.constant 0 : i32
    %c0_i32_0 = arith.constant 0 : i32
    %c0_i32_1 = arith.constant 0 : i32
    return %c0_i32, %c0_i32_0 : i32, i32
  }
  func.func @transform_4(%arg0: i32) -> (i32, i32) {
    %c0_i32 = arith.constant 0 : i32
    %c0_i32_0 = arith.constant 0 : i32
    %c0_i32_1 = arith.constant 0 : i32
    return %c0_i32, %c0_i32_0 : i32, i32
  }
  func.func @transform_5(%arg0: i32) -> (i32, i32) {
    %c0_i32 = arith.constant 0 : i32
    %c0_i32_0 = arith.constant 0 : i32
    %c0_i32_1 = arith.constant 0 : i32
    return %c0_i32, %c0_i32_0 : i32, i32
  }
  func.func @transform_6(%arg0: i32) -> (i32, i32) {
    %c0_i32 = arith.constant 0 : i32
    %c0_i32_0 = arith.constant 0 : i32
    %c0_i32_1 = arith.constant 0 : i32
    return %c0_i32, %c0_i32_0 : i32, i32
  }
  func.func @transform_7(%arg0: i32) -> (i32, i32) {
    %c0_i32 = arith.constant 0 : i32
    %c0_i32_0 = arith.constant 0 : i32
    return %arg0, %c0_i32 : i32, i32
  }
}

module attributes {stable_mosaic.version = 11 : i64} {
  func.func @_mm_bias_kernel(%arg0: i32, %arg1: memref<32x12xbf16, #tpu.memory_space<vmem>>, %arg2: memref<12x48xbf16, #tpu.memory_space<vmem>>, %arg3: memref<1x48xf32, #tpu.memory_space<vmem>>, %arg4: memref<32x48xf32, #tpu.memory_space<vmem>>) attributes {dimension_semantics = [#tpu.dimension_semantics<parallel>], iteration_bounds = array<i64: 1>, scalar_prefetch = 0 : i64, scratch_operands = 0 : i64, tpu.core_type = #tpu.core_type<tc>, window_params = [{transform_indices = @transform_0, window_bounds = array<i64: 32, 12>}, {pipeline_mode = #tpu.pipeline_mode<synchronous>, transform_indices = @transform_1, window_bounds = array<i64: 12, 48>}, {pipeline_mode = #tpu.pipeline_mode<synchronous>, transform_indices = @transform_2, window_bounds = array<i64: 1, 48>}, {transform_indices = @transform_3, window_bounds = array<i64: 32, 48>}]} {
    %c0 = arith.constant 0 : index
    %c0_0 = arith.constant 0 : index
    %0 = vector.load %arg1[%c0, %c0_0] : memref<32x12xbf16, #tpu.memory_space<vmem>>, vector<32x12xbf16>
    %c0_1 = arith.constant 0 : index
    %c0_2 = arith.constant 0 : index
    %1 = vector.load %arg2[%c0_1, %c0_2] : memref<12x48xbf16, #tpu.memory_space<vmem>>, vector<12x48xbf16>
    %cst = arith.constant dense<0.000000e+00> : vector<32x48xf32>
    %2 = tpu.matmul %0, %1, %cst {dimension_numbers = #tpu.dot_dimension_numbers<[1], [0], [0], [1], [0, 0, 1, 1], [], []>} : vector<32x12xbf16>, vector<12x48xbf16>, vector<32x48xf32> -> vector<32x48xf32>
    %c0_3 = arith.constant 0 : index
    %c0_4 = arith.constant 0 : index
    %3 = vector.load %arg3[%c0_3, %c0_4] : memref<1x48xf32, #tpu.memory_space<vmem>>, vector<1x48xf32>
    %4 = vector.broadcast %3 : vector<1x48xf32> to vector<32x48xf32>
    %5 = arith.addf %2, %4 : vector<32x48xf32>
    %c0_5 = arith.constant 0 : index
    %c0_6 = arith.constant 0 : index
    %6 = vector.load %arg4[%c0_5, %c0_6] : memref<32x48xf32, #tpu.memory_space<vmem>>, vector<32x48xf32>
    tpu.vector_store %arg4[%c0_5, %c0_6], %5 {strides = array<i32>} : memref<32x48xf32, #tpu.memory_space<vmem>>, vector<32x48xf32>,
    return
  }
  func.func @transform_0(%arg0: i32) -> (i32, i32) {
    %c0_i32 = arith.constant 0 : i32
    %c0_i32_0 = arith.constant 0 : i32
    return %arg0, %c0_i32 : i32, i32
  }
  func.func @transform_1(%arg0: i32) -> (i32, i32) {
    %c0_i32 = arith.constant 0 : i32
    %c0_i32_0 = arith.constant 0 : i32
    %c0_i32_1 = arith.constant 0 : i32
    return %c0_i32, %c0_i32_0 : i32, i32
  }
  func.func @transform_2(%arg0: i32) -> (i32, i32) {
    %c0_i32 = arith.constant 0 : i32
    %c0_i32_0 = arith.constant 0 : i32
    %c0_i32_1 = arith.constant 0 : i32
    return %c0_i32, %c0_i32_0 : i32, i32
  }
  func.func @transform_3(%arg0: i32) -> (i32, i32) {
    %c0_i32 = arith.constant 0 : i32
    %c0_i32_0 = arith.constant 0 : i32
    return %arg0, %c0_i32 : i32, i32
  }
}

module attributes {stable_mosaic.version = 11 : i64} {
  func.func @_mm_bias_kernel(%arg0: i32, %arg1: memref<32x48xbf16, #tpu.memory_space<vmem>>, %arg2: memref<48x96xbf16, #tpu.memory_space<vmem>>, %arg3: memref<1x96xf32, #tpu.memory_space<vmem>>, %arg4: memref<32x96xf32, #tpu.memory_space<vmem>>) attributes {dimension_semantics = [#tpu.dimension_semantics<parallel>], iteration_bounds = array<i64: 1>, scalar_prefetch = 0 : i64, scratch_operands = 0 : i64, tpu.core_type = #tpu.core_type<tc>, window_params = [{transform_indices = @transform_0, window_bounds = array<i64: 32, 48>}, {pipeline_mode = #tpu.pipeline_mode<synchronous>, transform_indices = @transform_1, window_bounds = array<i64: 48, 96>}, {pipeline_mode = #tpu.pipeline_mode<synchronous>, transform_indices = @transform_2, window_bounds = array<i64: 1, 96>}, {transform_indices = @transform_3, window_bounds = array<i64: 32, 96>}]} {
    %c0 = arith.constant 0 : index
    %c0_0 = arith.constant 0 : index
    %0 = vector.load %arg1[%c0, %c0_0] : memref<32x48xbf16, #tpu.memory_space<vmem>>, vector<32x48xbf16>
    %c0_1 = arith.constant 0 : index
    %c0_2 = arith.constant 0 : index
    %1 = vector.load %arg2[%c0_1, %c0_2] : memref<48x96xbf16, #tpu.memory_space<vmem>>, vector<48x96xbf16>
    %cst = arith.constant dense<0.000000e+00> : vector<32x96xf32>
    %2 = tpu.matmul %0, %1, %cst {dimension_numbers = #tpu.dot_dimension_numbers<[1], [0], [0], [1], [0, 0, 1, 1], [], []>} : vector<32x48xbf16>, vector<48x96xbf16>, vector<32x96xf32> -> vector<32x96xf32>
    %c0_3 = arith.constant 0 : index
    %c0_4 = arith.constant 0 : index
    %3 = vector.load %arg3[%c0_3, %c0_4] : memref<1x96xf32, #tpu.memory_space<vmem>>, vector<1x96xf32>
    %4 = vector.broadcast %3 : vector<1x96xf32> to vector<32x96xf32>
    %5 = arith.addf %2, %4 : vector<32x96xf32>
    %c0_5 = arith.constant 0 : index
    %c0_6 = arith.constant 0 : index
    %6 = vector.load %arg4[%c0_5, %c0_6] : memref<32x96xf32, #tpu.memory_space<vmem>>, vector<32x96xf32>
    tpu.vector_store %arg4[%c0_5, %c0_6], %5 {strides = array<i32>} : memref<32x96xf32, #tpu.memory_space<vmem>>, vector<32x96xf32>,
    return
  }
  func.func @transform_0(%arg0: i32) -> (i32, i32) {
    %c0_i32 = arith.constant 0 : i32
    %c0_i32_0 = arith.constant 0 : i32
    return %arg0, %c0_i32 : i32, i32
  }
  func.func @transform_1(%arg0: i32) -> (i32, i32) {
    %c0_i32 = arith.constant 0 : i32
    %c0_i32_0 = arith.constant 0 : i32
    %c0_i32_1 = arith.constant 0 : i32
    return %c0_i32, %c0_i32_0 : i32, i32
  }
  func.func @transform_2(%arg0: i32) -> (i32, i32) {
    %c0_i32 = arith.constant 0 : i32
    %c0_i32_0 = arith.constant 0 : i32
    %c0_i32_1 = arith.constant 0 : i32
    return %c0_i32, %c0_i32_0 : i32, i32
  }
  func.func @transform_3(%arg0: i32) -> (i32, i32) {
    %c0_i32 = arith.constant 0 : i32
    %c0_i32_0 = arith.constant 0 : i32
    return %arg0, %c0_i32 : i32, i32
  }
}

module attributes {stable_mosaic.version = 11 : i64} {
  func.func @_mm_bias_kernel(%arg0: i32, %arg1: memref<64x96xbf16, #tpu.memory_space<vmem>>, %arg2: memref<96x32xbf16, #tpu.memory_space<vmem>>, %arg3: memref<1x32xf32, #tpu.memory_space<vmem>>, %arg4: memref<64x32xf32, #tpu.memory_space<vmem>>) attributes {dimension_semantics = [#tpu.dimension_semantics<parallel>], iteration_bounds = array<i64: 1>, scalar_prefetch = 0 : i64, scratch_operands = 0 : i64, tpu.core_type = #tpu.core_type<tc>, window_params = [{transform_indices = @transform_0, window_bounds = array<i64: 64, 96>}, {pipeline_mode = #tpu.pipeline_mode<synchronous>, transform_indices = @transform_1, window_bounds = array<i64: 96, 32>}, {pipeline_mode = #tpu.pipeline_mode<synchronous>, transform_indices = @transform_2, window_bounds = array<i64: 1, 32>}, {transform_indices = @transform_3, window_bounds = array<i64: 64, 32>}]} {
    %c0 = arith.constant 0 : index
    %c0_0 = arith.constant 0 : index
    %0 = vector.load %arg1[%c0, %c0_0] : memref<64x96xbf16, #tpu.memory_space<vmem>>, vector<64x96xbf16>
    %c0_1 = arith.constant 0 : index
    %c0_2 = arith.constant 0 : index
    %1 = vector.load %arg2[%c0_1, %c0_2] : memref<96x32xbf16, #tpu.memory_space<vmem>>, vector<96x32xbf16>
    %cst = arith.constant dense<0.000000e+00> : vector<64x32xf32>
    %2 = tpu.matmul %0, %1, %cst {dimension_numbers = #tpu.dot_dimension_numbers<[1], [0], [0], [1], [0, 0, 1, 1], [], []>} : vector<64x96xbf16>, vector<96x32xbf16>, vector<64x32xf32> -> vector<64x32xf32>
    %c0_3 = arith.constant 0 : index
    %c0_4 = arith.constant 0 : index
    %3 = vector.load %arg3[%c0_3, %c0_4] : memref<1x32xf32, #tpu.memory_space<vmem>>, vector<1x32xf32>
    %4 = vector.broadcast %3 : vector<1x32xf32> to vector<64x32xf32>
    %5 = arith.addf %2, %4 : vector<64x32xf32>
    %c0_5 = arith.constant 0 : index
    %c0_6 = arith.constant 0 : index
    %6 = vector.load %arg4[%c0_5, %c0_6] : memref<64x32xf32, #tpu.memory_space<vmem>>, vector<64x32xf32>
    tpu.vector_store %arg4[%c0_5, %c0_6], %5 {strides = array<i32>} : memref<64x32xf32, #tpu.memory_space<vmem>>, vector<64x32xf32>,
    return
  }
  func.func @transform_0(%arg0: i32) -> (i32, i32) {
    %c0_i32 = arith.constant 0 : i32
    %c0_i32_0 = arith.constant 0 : i32
    return %arg0, %c0_i32 : i32, i32
  }
  func.func @transform_1(%arg0: i32) -> (i32, i32) {
    %c0_i32 = arith.constant 0 : i32
    %c0_i32_0 = arith.constant 0 : i32
    %c0_i32_1 = arith.constant 0 : i32
    return %c0_i32, %c0_i32_0 : i32, i32
  }
  func.func @transform_2(%arg0: i32) -> (i32, i32) {
    %c0_i32 = arith.constant 0 : i32
    %c0_i32_0 = arith.constant 0 : i32
    %c0_i32_1 = arith.constant 0 : i32
    return %c0_i32, %c0_i32_0 : i32, i32
  }
  func.func @transform_3(%arg0: i32) -> (i32, i32) {
    %c0_i32 = arith.constant 0 : i32
    %c0_i32_0 = arith.constant 0 : i32
    return %arg0, %c0_i32 : i32, i32
  }
}

module attributes {stable_mosaic.version = 11 : i64} {
  func.func @_time_ms_kernel(%arg0: i32, %arg1: memref<64x224xbf16, #tpu.memory_space<vmem>>, %arg2: memref<64x32xf32, #tpu.memory_space<vmem>>, %arg3: memref<224x96xbf16, #tpu.memory_space<vmem>>, %arg4: memref<1x96xf32, #tpu.memory_space<vmem>>, %arg5: memref<96x32xbf16, #tpu.memory_space<vmem>>, %arg6: memref<1x32xf32, #tpu.memory_space<vmem>>, %arg7: memref<1x32xf32, #tpu.memory_space<vmem>>, %arg8: memref<64x32xf32, #tpu.memory_space<vmem>>) attributes {dimension_semantics = [#tpu.dimension_semantics<parallel>], iteration_bounds = array<i64: 1>, scalar_prefetch = 0 : i64, scratch_operands = 0 : i64, tpu.core_type = #tpu.core_type<tc>, window_params = [{transform_indices = @transform_0, window_bounds = array<i64: 64, 224>}, {transform_indices = @transform_1, window_bounds = array<i64: 64, 32>}, {pipeline_mode = #tpu.pipeline_mode<synchronous>, transform_indices = @transform_2, window_bounds = array<i64: 224, 96>}, {pipeline_mode = #tpu.pipeline_mode<synchronous>, transform_indices = @transform_3, window_bounds = array<i64: 1, 96>}, {pipeline_mode = #tpu.pipeline_mode<synchronous>, transform_indices = @transform_4, window_bounds = array<i64: 96, 32>}, {pipeline_mode = #tpu.pipeline_mode<synchronous>, transform_indices = @transform_5, window_bounds = array<i64: 1, 32>}, {pipeline_mode = #tpu.pipeline_mode<synchronous>, transform_indices = @transform_6, window_bounds = array<i64: 1, 32>}, {transform_indices = @transform_7, window_bounds = array<i64: 64, 32>}]} {
    %c0 = arith.constant 0 : index
    %c0_0 = arith.constant 0 : index
    %0 = vector.load %arg1[%c0, %c0_0] : memref<64x224xbf16, #tpu.memory_space<vmem>>, vector<64x224xbf16>
    %c0_1 = arith.constant 0 : index
    %c0_2 = arith.constant 0 : index
    %1 = vector.load %arg3[%c0_1, %c0_2] : memref<224x96xbf16, #tpu.memory_space<vmem>>, vector<224x96xbf16>
    %cst = arith.constant dense<0.000000e+00> : vector<64x96xf32>
    %2 = tpu.matmul %0, %1, %cst {dimension_numbers = #tpu.dot_dimension_numbers<[1], [0], [0], [1], [0, 0, 1, 1], [], []>} : vector<64x224xbf16>, vector<224x96xbf16>, vector<64x96xf32> -> vector<64x96xf32>
    %c0_3 = arith.constant 0 : index
    %c0_4 = arith.constant 0 : index
    %3 = vector.load %arg4[%c0_3, %c0_4] : memref<1x96xf32, #tpu.memory_space<vmem>>, vector<1x96xf32>
    %4 = vector.broadcast %3 : vector<1x96xf32> to vector<64x96xf32>
    %5 = arith.addf %2, %4 : vector<64x96xf32>
    %6 = arith.truncf %5 : vector<64x96xf32> to vector<64x96xbf16>
    %c0_5 = arith.constant 0 : index
    %c0_6 = arith.constant 0 : index
    %7 = vector.load %arg5[%c0_5, %c0_6] : memref<96x32xbf16, #tpu.memory_space<vmem>>, vector<96x32xbf16>
    %cst_7 = arith.constant dense<0.000000e+00> : vector<64x32xf32>
    %8 = tpu.matmul %6, %7, %cst_7 {dimension_numbers = #tpu.dot_dimension_numbers<[1], [0], [0], [1], [0, 0, 1, 1], [], []>} : vector<64x96xbf16>, vector<96x32xbf16>, vector<64x32xf32> -> vector<64x32xf32>
    %cst_8 = arith.constant 5.000000e-01 : f32
    %9 = vector.broadcast %cst_8 : f32 to vector<64x32xf32>
    %10 = arith.mulf %9, %8 : vector<64x32xf32>
    %cst_9 = arith.constant 4.471500e-02 : f32
    %11 = vector.broadcast %cst_9 : f32 to vector<64x32xf32>
    %12 = arith.mulf %11, %8 : vector<64x32xf32>
    %13 = arith.mulf %12, %8 : vector<64x32xf32>
    %14 = arith.mulf %13, %8 : vector<64x32xf32>
    %15 = arith.addf %8, %14 : vector<64x32xf32>
    %cst_10 = arith.constant 0.797884583 : f32
    %16 = vector.broadcast %cst_10 : f32 to vector<64x32xf32>
    %17 = arith.mulf %16, %15 : vector<64x32xf32>
    %18 = math.tanh %17 : vector<64x32xf32>
    %cst_11 = arith.constant 1.000000e+00 : f32
    %19 = vector.broadcast %cst_11 : f32 to vector<64x32xf32>
    %20 = arith.addf %19, %18 : vector<64x32xf32>
    %21 = arith.mulf %10, %20 : vector<64x32xf32>
    %cst_12 = arith.constant dense<0.000000e+00> : vector<64xf32>
    %22 = vector.multi_reduction <add>, %21, %cst_12 [1] : vector<64x32xf32> to vector<64xf32>
    %23 = vector.shape_cast %22 : vector<64xf32> to vector<64x1xf32>
    %cst_13 = arith.constant 3.200000e+01 : f32
    %24 = vector.broadcast %cst_13 : f32 to vector<64x1xf32>
    %25 = arith.divf %23, %24 : vector<64x1xf32>
    %26 = vector.broadcast %25 : vector<64x1xf32> to vector<64x32xf32>
    %27 = arith.subf %21, %26 : vector<64x32xf32>
    %28 = arith.mulf %27, %27 : vector<64x32xf32>
    %cst_14 = arith.constant dense<0.000000e+00> : vector<64xf32>
    %29 = vector.multi_reduction <add>, %28, %cst_14 [1] : vector<64x32xf32> to vector<64xf32>
    %30 = vector.shape_cast %29 : vector<64xf32> to vector<64x1xf32>
    %cst_15 = arith.constant 3.200000e+01 : f32
    %31 = vector.broadcast %cst_15 : f32 to vector<64x1xf32>
    %32 = arith.divf %30, %31 : vector<64x1xf32>
    %33 = vector.broadcast %25 : vector<64x1xf32> to vector<64x32xf32>
    %34 = arith.subf %21, %33 : vector<64x32xf32>
    %cst_16 = arith.constant 9.99999974E-6 : f32
    %35 = vector.broadcast %cst_16 : f32 to vector<64x1xf32>
    %36 = arith.addf %32, %35 : vector<64x1xf32>
    %37 = math.rsqrt %36 : vector<64x1xf32>
    %38 = vector.broadcast %37 : vector<64x1xf32> to vector<64x32xf32>
    %39 = arith.mulf %34, %38 : vector<64x32xf32>
    %c0_17 = arith.constant 0 : index
    %c0_18 = arith.constant 0 : index
    %40 = vector.load %arg6[%c0_17, %c0_18] : memref<1x32xf32, #tpu.memory_space<vmem>>, vector<1x32xf32>
    %41 = vector.broadcast %40 : vector<1x32xf32> to vector<64x32xf32>
    %42 = arith.mulf %39, %41 : vector<64x32xf32>
    %c0_19 = arith.constant 0 : index
    %c0_20 = arith.constant 0 : index
    %43 = vector.load %arg7[%c0_19, %c0_20] : memref<1x32xf32, #tpu.memory_space<vmem>>, vector<1x32xf32>
    %44 = vector.broadcast %43 : vector<1x32xf32> to vector<64x32xf32>
    %45 = arith.addf %42, %44 : vector<64x32xf32>
    %c0_21 = arith.constant 0 : index
    %c0_22 = arith.constant 0 : index
    %46 = vector.load %arg2[%c0_21, %c0_22] : memref<64x32xf32, #tpu.memory_space<vmem>>, vector<64x32xf32>
    %47 = arith.addf %45, %46 : vector<64x32xf32>
    %c0_23 = arith.constant 0 : index
    %c0_24 = arith.constant 0 : index
    %48 = vector.load %arg8[%c0_23, %c0_24] : memref<64x32xf32, #tpu.memory_space<vmem>>, vector<64x32xf32>
    tpu.vector_store %arg8[%c0_23, %c0_24], %47 {strides = array<i32>} : memref<64x32xf32, #tpu.memory_space<vmem>>, vector<64x32xf32>,
    return
  }
  func.func @transform_0(%arg0: i32) -> (i32, i32) {
    %c0_i32 = arith.constant 0 : i32
    %c0_i32_0 = arith.constant 0 : i32
    return %arg0, %c0_i32 : i32, i32
  }
  func.func @transform_1(%arg0: i32) -> (i32, i32) {
    %c0_i32 = arith.constant 0 : i32
    %c0_i32_0 = arith.constant 0 : i32
    return %arg0, %c0_i32 : i32, i32
  }
  func.func @transform_2(%arg0: i32) -> (i32, i32) {
    %c0_i32 = arith.constant 0 : i32
    %c0_i32_0 = arith.constant 0 : i32
    %c0_i32_1 = arith.constant 0 : i32
    return %c0_i32, %c0_i32_0 : i32, i32
  }
  func.func @transform_3(%arg0: i32) -> (i32, i32) {
    %c0_i32 = arith.constant 0 : i32
    %c0_i32_0 = arith.constant 0 : i32
    %c0_i32_1 = arith.constant 0 : i32
    return %c0_i32, %c0_i32_0 : i32, i32
  }
  func.func @transform_4(%arg0: i32) -> (i32, i32) {
    %c0_i32 = arith.constant 0 : i32
    %c0_i32_0 = arith.constant 0 : i32
    %c0_i32_1 = arith.constant 0 : i32
    return %c0_i32, %c0_i32_0 : i32, i32
  }
  func.func @transform_5(%arg0: i32) -> (i32, i32) {
    %c0_i32 = arith.constant 0 : i32
    %c0_i32_0 = arith.constant 0 : i32
    %c0_i32_1 = arith.constant 0 : i32
    return %c0_i32, %c0_i32_0 : i32, i32
  }
  func.func @transform_6(%arg0: i32) -> (i32, i32) {
    %c0_i32 = arith.constant 0 : i32
    %c0_i32_0 = arith.constant 0 : i32
    %c0_i32_1 = arith.constant 0 : i32
    return %c0_i32, %c0_i32_0 : i32, i32
  }
  func.func @transform_7(%arg0: i32) -> (i32, i32) {
    %c0_i32 = arith.constant 0 : i32
    %c0_i32_0 = arith.constant 0 : i32
    return %arg0, %c0_i32 : i32, i32
  }
}

module attributes {stable_mosaic.version = 11 : i64} {
  func.func @_mm_bias_ln_kernel(%arg0: i32, %arg1: memref<8x12xbf16, #tpu.memory_space<vmem>>, %arg2: memref<12x96xbf16, #tpu.memory_space<vmem>>, %arg3: memref<1x96xf32, #tpu.memory_space<vmem>>, %arg4: memref<1x96xf32, #tpu.memory_space<vmem>>, %arg5: memref<1x96xf32, #tpu.memory_space<vmem>>, %arg6: memref<8x96xf32, #tpu.memory_space<vmem>>) attributes {dimension_semantics = [#tpu.dimension_semantics<parallel>], iteration_bounds = array<i64: 1>, scalar_prefetch = 0 : i64, scratch_operands = 0 : i64, tpu.core_type = #tpu.core_type<tc>, window_params = [{transform_indices = @transform_0, window_bounds = array<i64: 8, 12>}, {pipeline_mode = #tpu.pipeline_mode<synchronous>, transform_indices = @transform_1, window_bounds = array<i64: 12, 96>}, {pipeline_mode = #tpu.pipeline_mode<synchronous>, transform_indices = @transform_2, window_bounds = array<i64: 1, 96>}, {pipeline_mode = #tpu.pipeline_mode<synchronous>, transform_indices = @transform_3, window_bounds = array<i64: 1, 96>}, {pipeline_mode = #tpu.pipeline_mode<synchronous>, transform_indices = @transform_4, window_bounds = array<i64: 1, 96>}, {transform_indices = @transform_5, window_bounds = array<i64: 8, 96>}]} {
    %c0 = arith.constant 0 : index
    %c0_0 = arith.constant 0 : index
    %0 = vector.load %arg1[%c0, %c0_0] : memref<8x12xbf16, #tpu.memory_space<vmem>>, vector<8x12xbf16>
    %c0_1 = arith.constant 0 : index
    %c0_2 = arith.constant 0 : index
    %1 = vector.load %arg2[%c0_1, %c0_2] : memref<12x96xbf16, #tpu.memory_space<vmem>>, vector<12x96xbf16>
    %cst = arith.constant dense<0.000000e+00> : vector<8x96xf32>
    %2 = tpu.matmul %0, %1, %cst {dimension_numbers = #tpu.dot_dimension_numbers<[1], [0], [0], [1], [0, 0, 1, 1], [], []>} : vector<8x12xbf16>, vector<12x96xbf16>, vector<8x96xf32> -> vector<8x96xf32>
    %c0_3 = arith.constant 0 : index
    %c0_4 = arith.constant 0 : index
    %3 = vector.load %arg3[%c0_3, %c0_4] : memref<1x96xf32, #tpu.memory_space<vmem>>, vector<1x96xf32>
    %4 = vector.broadcast %3 : vector<1x96xf32> to vector<8x96xf32>
    %5 = arith.addf %2, %4 : vector<8x96xf32>
    %cst_5 = arith.constant dense<0.000000e+00> : vector<8xf32>
    %6 = vector.multi_reduction <add>, %5, %cst_5 [1] : vector<8x96xf32> to vector<8xf32>
    %7 = vector.shape_cast %6 : vector<8xf32> to vector<8x1xf32>
    %cst_6 = arith.constant 9.600000e+01 : f32
    %8 = vector.broadcast %cst_6 : f32 to vector<8x1xf32>
    %9 = arith.divf %7, %8 : vector<8x1xf32>
    %10 = vector.broadcast %9 : vector<8x1xf32> to vector<8x96xf32>
    %11 = arith.subf %5, %10 : vector<8x96xf32>
    %12 = arith.mulf %11, %11 : vector<8x96xf32>
    %cst_7 = arith.constant dense<0.000000e+00> : vector<8xf32>
    %13 = vector.multi_reduction <add>, %12, %cst_7 [1] : vector<8x96xf32> to vector<8xf32>
    %14 = vector.shape_cast %13 : vector<8xf32> to vector<8x1xf32>
    %cst_8 = arith.constant 9.600000e+01 : f32
    %15 = vector.broadcast %cst_8 : f32 to vector<8x1xf32>
    %16 = arith.divf %14, %15 : vector<8x1xf32>
    %17 = vector.broadcast %9 : vector<8x1xf32> to vector<8x96xf32>
    %18 = arith.subf %5, %17 : vector<8x96xf32>
    %cst_9 = arith.constant 9.99999974E-6 : f32
    %19 = vector.broadcast %cst_9 : f32 to vector<8x1xf32>
    %20 = arith.addf %16, %19 : vector<8x1xf32>
    %21 = math.rsqrt %20 : vector<8x1xf32>
    %22 = vector.broadcast %21 : vector<8x1xf32> to vector<8x96xf32>
    %23 = arith.mulf %18, %22 : vector<8x96xf32>
    %c0_10 = arith.constant 0 : index
    %c0_11 = arith.constant 0 : index
    %24 = vector.load %arg4[%c0_10, %c0_11] : memref<1x96xf32, #tpu.memory_space<vmem>>, vector<1x96xf32>
    %25 = vector.broadcast %24 : vector<1x96xf32> to vector<8x96xf32>
    %26 = arith.mulf %23, %25 : vector<8x96xf32>
    %c0_12 = arith.constant 0 : index
    %c0_13 = arith.constant 0 : index
    %27 = vector.load %arg5[%c0_12, %c0_13] : memref<1x96xf32, #tpu.memory_space<vmem>>, vector<1x96xf32>
    %28 = vector.broadcast %27 : vector<1x96xf32> to vector<8x96xf32>
    %29 = arith.addf %26, %28 : vector<8x96xf32>
    %c0_14 = arith.constant 0 : index
    %c0_15 = arith.constant 0 : index
    %30 = vector.load %arg6[%c0_14, %c0_15] : memref<8x96xf32, #tpu.memory_space<vmem>>, vector<8x96xf32>
    tpu.vector_store %arg6[%c0_14, %c0_15], %29 {strides = array<i32>} : memref<8x96xf32, #tpu.memory_space<vmem>>, vector<8x96xf32>,
    return
  }
  func.func @transform_0(%arg0: i32) -> (i32, i32) {
    %c0_i32 = arith.constant 0 : i32
    %c0_i32_0 = arith.constant 0 : i32
    return %arg0, %c0_i32 : i32, i32
  }
  func.func @transform_1(%arg0: i32) -> (i32, i32) {
    %c0_i32 = arith.constant 0 : i32
    %c0_i32_0 = arith.constant 0 : i32
    %c0_i32_1 = arith.constant 0 : i32
    return %c0_i32, %c0_i32_0 : i32, i32
  }
  func.func @transform_2(%arg0: i32) -> (i32, i32) {
    %c0_i32 = arith.constant 0 : i32
    %c0_i32_0 = arith.constant 0 : i32
    %c0_i32_1 = arith.constant 0 : i32
    return %c0_i32, %c0_i32_0 : i32, i32
  }
  func.func @transform_3(%arg0: i32) -> (i32, i32) {
    %c0_i32 = arith.constant 0 : i32
    %c0_i32_0 = arith.constant 0 : i32
    %c0_i32_1 = arith.constant 0 : i32
    return %c0_i32, %c0_i32_0 : i32, i32
  }
  func.func @transform_4(%arg0: i32) -> (i32, i32) {
    %c0_i32 = arith.constant 0 : i32
    %c0_i32_0 = arith.constant 0 : i32
    %c0_i32_1 = arith.constant 0 : i32
    return %c0_i32, %c0_i32_0 : i32, i32
  }
  func.func @transform_5(%arg0: i32) -> (i32, i32) {
    %c0_i32 = arith.constant 0 : i32
    %c0_i32_0 = arith.constant 0 : i32
    return %arg0, %c0_i32 : i32, i32
  }
}

module attributes {stable_mosaic.version = 11 : i64} {
  func.func @_mm_bias_kernel(%arg0: i32, %arg1: memref<8x96xbf16, #tpu.memory_space<vmem>>, %arg2: memref<96x192xbf16, #tpu.memory_space<vmem>>, %arg3: memref<1x192xf32, #tpu.memory_space<vmem>>, %arg4: memref<8x192xf32, #tpu.memory_space<vmem>>) attributes {dimension_semantics = [#tpu.dimension_semantics<parallel>], iteration_bounds = array<i64: 1>, scalar_prefetch = 0 : i64, scratch_operands = 0 : i64, tpu.core_type = #tpu.core_type<tc>, window_params = [{transform_indices = @transform_0, window_bounds = array<i64: 8, 96>}, {pipeline_mode = #tpu.pipeline_mode<synchronous>, transform_indices = @transform_1, window_bounds = array<i64: 96, 192>}, {pipeline_mode = #tpu.pipeline_mode<synchronous>, transform_indices = @transform_2, window_bounds = array<i64: 1, 192>}, {transform_indices = @transform_3, window_bounds = array<i64: 8, 192>}]} {
    %c0 = arith.constant 0 : index
    %c0_0 = arith.constant 0 : index
    %0 = vector.load %arg1[%c0, %c0_0] : memref<8x96xbf16, #tpu.memory_space<vmem>>, vector<8x96xbf16>
    %c0_1 = arith.constant 0 : index
    %c0_2 = arith.constant 0 : index
    %1 = vector.load %arg2[%c0_1, %c0_2] : memref<96x192xbf16, #tpu.memory_space<vmem>>, vector<96x192xbf16>
    %cst = arith.constant dense<0.000000e+00> : vector<8x192xf32>
    %2 = tpu.matmul %0, %1, %cst {dimension_numbers = #tpu.dot_dimension_numbers<[1], [0], [0], [1], [0, 0, 1, 1], [], []>} : vector<8x96xbf16>, vector<96x192xbf16>, vector<8x192xf32> -> vector<8x192xf32>
    %c0_3 = arith.constant 0 : index
    %c0_4 = arith.constant 0 : index
    %3 = vector.load %arg3[%c0_3, %c0_4] : memref<1x192xf32, #tpu.memory_space<vmem>>, vector<1x192xf32>
    %4 = vector.broadcast %3 : vector<1x192xf32> to vector<8x192xf32>
    %5 = arith.addf %2, %4 : vector<8x192xf32>
    %c0_5 = arith.constant 0 : index
    %c0_6 = arith.constant 0 : index
    %6 = vector.load %arg4[%c0_5, %c0_6] : memref<8x192xf32, #tpu.memory_space<vmem>>, vector<8x192xf32>
    tpu.vector_store %arg4[%c0_5, %c0_6], %5 {strides = array<i32>} : memref<8x192xf32, #tpu.memory_space<vmem>>, vector<8x192xf32>,
    return
  }
  func.func @transform_0(%arg0: i32) -> (i32, i32) {
    %c0_i32 = arith.constant 0 : i32
    %c0_i32_0 = arith.constant 0 : i32
    return %arg0, %c0_i32 : i32, i32
  }
  func.func @transform_1(%arg0: i32) -> (i32, i32) {
    %c0_i32 = arith.constant 0 : i32
    %c0_i32_0 = arith.constant 0 : i32
    %c0_i32_1 = arith.constant 0 : i32
    return %c0_i32, %c0_i32_0 : i32, i32
  }
  func.func @transform_2(%arg0: i32) -> (i32, i32) {
    %c0_i32 = arith.constant 0 : i32
    %c0_i32_0 = arith.constant 0 : i32
    %c0_i32_1 = arith.constant 0 : i32
    return %c0_i32, %c0_i32_0 : i32, i32
  }
  func.func @transform_3(%arg0: i32) -> (i32, i32) {
    %c0_i32 = arith.constant 0 : i32
    %c0_i32_0 = arith.constant 0 : i32
    return %arg0, %c0_i32 : i32, i32
  }
}

module attributes {stable_mosaic.version = 11 : i64} {
  func.func @_mm_bias_kernel(%arg0: i32, %arg1: memref<16x192xbf16, #tpu.memory_space<vmem>>, %arg2: memref<192x64xbf16, #tpu.memory_space<vmem>>, %arg3: memref<1x64xf32, #tpu.memory_space<vmem>>, %arg4: memref<16x64xf32, #tpu.memory_space<vmem>>) attributes {dimension_semantics = [#tpu.dimension_semantics<parallel>], iteration_bounds = array<i64: 1>, scalar_prefetch = 0 : i64, scratch_operands = 0 : i64, tpu.core_type = #tpu.core_type<tc>, window_params = [{transform_indices = @transform_0, window_bounds = array<i64: 16, 192>}, {pipeline_mode = #tpu.pipeline_mode<synchronous>, transform_indices = @transform_1, window_bounds = array<i64: 192, 64>}, {pipeline_mode = #tpu.pipeline_mode<synchronous>, transform_indices = @transform_2, window_bounds = array<i64: 1, 64>}, {transform_indices = @transform_3, window_bounds = array<i64: 16, 64>}]} {
    %c0 = arith.constant 0 : index
    %c0_0 = arith.constant 0 : index
    %0 = vector.load %arg1[%c0, %c0_0] : memref<16x192xbf16, #tpu.memory_space<vmem>>, vector<16x192xbf16>
    %c0_1 = arith.constant 0 : index
    %c0_2 = arith.constant 0 : index
    %1 = vector.load %arg2[%c0_1, %c0_2] : memref<192x64xbf16, #tpu.memory_space<vmem>>, vector<192x64xbf16>
    %cst = arith.constant dense<0.000000e+00> : vector<16x64xf32>
    %2 = tpu.matmul %0, %1, %cst {dimension_numbers = #tpu.dot_dimension_numbers<[1], [0], [0], [1], [0, 0, 1, 1], [], []>} : vector<16x192xbf16>, vector<192x64xbf16>, vector<16x64xf32> -> vector<16x64xf32>
    %c0_3 = arith.constant 0 : index
    %c0_4 = arith.constant 0 : index
    %3 = vector.load %arg3[%c0_3, %c0_4] : memref<1x64xf32, #tpu.memory_space<vmem>>, vector<1x64xf32>
    %4 = vector.broadcast %3 : vector<1x64xf32> to vector<16x64xf32>
    %5 = arith.addf %2, %4 : vector<16x64xf32>
    %c0_5 = arith.constant 0 : index
    %c0_6 = arith.constant 0 : index
    %6 = vector.load %arg4[%c0_5, %c0_6] : memref<16x64xf32, #tpu.memory_space<vmem>>, vector<16x64xf32>
    tpu.vector_store %arg4[%c0_5, %c0_6], %5 {strides = array<i32>} : memref<16x64xf32, #tpu.memory_space<vmem>>, vector<16x64xf32>,
    return
  }
  func.func @transform_0(%arg0: i32) -> (i32, i32) {
    %c0_i32 = arith.constant 0 : i32
    %c0_i32_0 = arith.constant 0 : i32
    return %arg0, %c0_i32 : i32, i32
  }
  func.func @transform_1(%arg0: i32) -> (i32, i32) {
    %c0_i32 = arith.constant 0 : i32
    %c0_i32_0 = arith.constant 0 : i32
    %c0_i32_1 = arith.constant 0 : i32
    return %c0_i32, %c0_i32_0 : i32, i32
  }
  func.func @transform_2(%arg0: i32) -> (i32, i32) {
    %c0_i32 = arith.constant 0 : i32
    %c0_i32_0 = arith.constant 0 : i32
    %c0_i32_1 = arith.constant 0 : i32
    return %c0_i32, %c0_i32_0 : i32, i32
  }
  func.func @transform_3(%arg0: i32) -> (i32, i32) {
    %c0_i32 = arith.constant 0 : i32
    %c0_i32_0 = arith.constant 0 : i32
    return %arg0, %c0_i32 : i32, i32
  }
}

module attributes {stable_mosaic.version = 11 : i64} {
  func.func @_time_ms_kernel(%arg0: i32, %arg1: memref<16x448xbf16, #tpu.memory_space<vmem>>, %arg2: memref<16x64xf32, #tpu.memory_space<vmem>>, %arg3: memref<448x192xbf16, #tpu.memory_space<vmem>>, %arg4: memref<1x192xf32, #tpu.memory_space<vmem>>, %arg5: memref<192x64xbf16, #tpu.memory_space<vmem>>, %arg6: memref<1x64xf32, #tpu.memory_space<vmem>>, %arg7: memref<1x64xf32, #tpu.memory_space<vmem>>, %arg8: memref<16x64xf32, #tpu.memory_space<vmem>>) attributes {dimension_semantics = [#tpu.dimension_semantics<parallel>], iteration_bounds = array<i64: 1>, scalar_prefetch = 0 : i64, scratch_operands = 0 : i64, tpu.core_type = #tpu.core_type<tc>, window_params = [{transform_indices = @transform_0, window_bounds = array<i64: 16, 448>}, {transform_indices = @transform_1, window_bounds = array<i64: 16, 64>}, {pipeline_mode = #tpu.pipeline_mode<synchronous>, transform_indices = @transform_2, window_bounds = array<i64: 448, 192>}, {pipeline_mode = #tpu.pipeline_mode<synchronous>, transform_indices = @transform_3, window_bounds = array<i64: 1, 192>}, {pipeline_mode = #tpu.pipeline_mode<synchronous>, transform_indices = @transform_4, window_bounds = array<i64: 192, 64>}, {pipeline_mode = #tpu.pipeline_mode<synchronous>, transform_indices = @transform_5, window_bounds = array<i64: 1, 64>}, {pipeline_mode = #tpu.pipeline_mode<synchronous>, transform_indices = @transform_6, window_bounds = array<i64: 1, 64>}, {transform_indices = @transform_7, window_bounds = array<i64: 16, 64>}]} {
    %c0 = arith.constant 0 : index
    %c0_0 = arith.constant 0 : index
    %0 = vector.load %arg1[%c0, %c0_0] : memref<16x448xbf16, #tpu.memory_space<vmem>>, vector<16x448xbf16>
    %c0_1 = arith.constant 0 : index
    %c0_2 = arith.constant 0 : index
    %1 = vector.load %arg3[%c0_1, %c0_2] : memref<448x192xbf16, #tpu.memory_space<vmem>>, vector<448x192xbf16>
    %cst = arith.constant dense<0.000000e+00> : vector<16x192xf32>
    %2 = tpu.matmul %0, %1, %cst {dimension_numbers = #tpu.dot_dimension_numbers<[1], [0], [0], [1], [0, 0, 1, 1], [], []>} : vector<16x448xbf16>, vector<448x192xbf16>, vector<16x192xf32> -> vector<16x192xf32>
    %c0_3 = arith.constant 0 : index
    %c0_4 = arith.constant 0 : index
    %3 = vector.load %arg4[%c0_3, %c0_4] : memref<1x192xf32, #tpu.memory_space<vmem>>, vector<1x192xf32>
    %4 = vector.broadcast %3 : vector<1x192xf32> to vector<16x192xf32>
    %5 = arith.addf %2, %4 : vector<16x192xf32>
    %6 = arith.truncf %5 : vector<16x192xf32> to vector<16x192xbf16>
    %c0_5 = arith.constant 0 : index
    %c0_6 = arith.constant 0 : index
    %7 = vector.load %arg5[%c0_5, %c0_6] : memref<192x64xbf16, #tpu.memory_space<vmem>>, vector<192x64xbf16>
    %cst_7 = arith.constant dense<0.000000e+00> : vector<16x64xf32>
    %8 = tpu.matmul %6, %7, %cst_7 {dimension_numbers = #tpu.dot_dimension_numbers<[1], [0], [0], [1], [0, 0, 1, 1], [], []>} : vector<16x192xbf16>, vector<192x64xbf16>, vector<16x64xf32> -> vector<16x64xf32>
    %cst_8 = arith.constant 5.000000e-01 : f32
    %9 = vector.broadcast %cst_8 : f32 to vector<16x64xf32>
    %10 = arith.mulf %9, %8 : vector<16x64xf32>
    %cst_9 = arith.constant 4.471500e-02 : f32
    %11 = vector.broadcast %cst_9 : f32 to vector<16x64xf32>
    %12 = arith.mulf %11, %8 : vector<16x64xf32>
    %13 = arith.mulf %12, %8 : vector<16x64xf32>
    %14 = arith.mulf %13, %8 : vector<16x64xf32>
    %15 = arith.addf %8, %14 : vector<16x64xf32>
    %cst_10 = arith.constant 0.797884583 : f32
    %16 = vector.broadcast %cst_10 : f32 to vector<16x64xf32>
    %17 = arith.mulf %16, %15 : vector<16x64xf32>
    %18 = math.tanh %17 : vector<16x64xf32>
    %cst_11 = arith.constant 1.000000e+00 : f32
    %19 = vector.broadcast %cst_11 : f32 to vector<16x64xf32>
    %20 = arith.addf %19, %18 : vector<16x64xf32>
    %21 = arith.mulf %10, %20 : vector<16x64xf32>
    %cst_12 = arith.constant dense<0.000000e+00> : vector<16xf32>
    %22 = vector.multi_reduction <add>, %21, %cst_12 [1] : vector<16x64xf32> to vector<16xf32>
    %23 = vector.shape_cast %22 : vector<16xf32> to vector<16x1xf32>
    %cst_13 = arith.constant 6.400000e+01 : f32
    %24 = vector.broadcast %cst_13 : f32 to vector<16x1xf32>
    %25 = arith.divf %23, %24 : vector<16x1xf32>
    %26 = vector.broadcast %25 : vector<16x1xf32> to vector<16x64xf32>
    %27 = arith.subf %21, %26 : vector<16x64xf32>
    %28 = arith.mulf %27, %27 : vector<16x64xf32>
    %cst_14 = arith.constant dense<0.000000e+00> : vector<16xf32>
    %29 = vector.multi_reduction <add>, %28, %cst_14 [1] : vector<16x64xf32> to vector<16xf32>
    %30 = vector.shape_cast %29 : vector<16xf32> to vector<16x1xf32>
    %cst_15 = arith.constant 6.400000e+01 : f32
    %31 = vector.broadcast %cst_15 : f32 to vector<16x1xf32>
    %32 = arith.divf %30, %31 : vector<16x1xf32>
    %33 = vector.broadcast %25 : vector<16x1xf32> to vector<16x64xf32>
    %34 = arith.subf %21, %33 : vector<16x64xf32>
    %cst_16 = arith.constant 9.99999974E-6 : f32
    %35 = vector.broadcast %cst_16 : f32 to vector<16x1xf32>
    %36 = arith.addf %32, %35 : vector<16x1xf32>
    %37 = math.rsqrt %36 : vector<16x1xf32>
    %38 = vector.broadcast %37 : vector<16x1xf32> to vector<16x64xf32>
    %39 = arith.mulf %34, %38 : vector<16x64xf32>
    %c0_17 = arith.constant 0 : index
    %c0_18 = arith.constant 0 : index
    %40 = vector.load %arg6[%c0_17, %c0_18] : memref<1x64xf32, #tpu.memory_space<vmem>>, vector<1x64xf32>
    %41 = vector.broadcast %40 : vector<1x64xf32> to vector<16x64xf32>
    %42 = arith.mulf %39, %41 : vector<16x64xf32>
    %c0_19 = arith.constant 0 : index
    %c0_20 = arith.constant 0 : index
    %43 = vector.load %arg7[%c0_19, %c0_20] : memref<1x64xf32, #tpu.memory_space<vmem>>, vector<1x64xf32>
    %44 = vector.broadcast %43 : vector<1x64xf32> to vector<16x64xf32>
    %45 = arith.addf %42, %44 : vector<16x64xf32>
    %c0_21 = arith.constant 0 : index
    %c0_22 = arith.constant 0 : index
    %46 = vector.load %arg2[%c0_21, %c0_22] : memref<16x64xf32, #tpu.memory_space<vmem>>, vector<16x64xf32>
    %47 = arith.addf %45, %46 : vector<16x64xf32>
    %c0_23 = arith.constant 0 : index
    %c0_24 = arith.constant 0 : index
    %48 = vector.load %arg8[%c0_23, %c0_24] : memref<16x64xf32, #tpu.memory_space<vmem>>, vector<16x64xf32>
    tpu.vector_store %arg8[%c0_23, %c0_24], %47 {strides = array<i32>} : memref<16x64xf32, #tpu.memory_space<vmem>>, vector<16x64xf32>,
    return
  }
  func.func @transform_0(%arg0: i32) -> (i32, i32) {
    %c0_i32 = arith.constant 0 : i32
    %c0_i32_0 = arith.constant 0 : i32
    return %arg0, %c0_i32 : i32, i32
  }
  func.func @transform_1(%arg0: i32) -> (i32, i32) {
    %c0_i32 = arith.constant 0 : i32
    %c0_i32_0 = arith.constant 0 : i32
    return %arg0, %c0_i32 : i32, i32
  }
  func.func @transform_2(%arg0: i32) -> (i32, i32) {
    %c0_i32 = arith.constant 0 : i32
    %c0_i32_0 = arith.constant 0 : i32
    %c0_i32_1 = arith.constant 0 : i32
    return %c0_i32, %c0_i32_0 : i32, i32
  }
  func.func @transform_3(%arg0: i32) -> (i32, i32) {
    %c0_i32 = arith.constant 0 : i32
    %c0_i32_0 = arith.constant 0 : i32
    %c0_i32_1 = arith.constant 0 : i32
    return %c0_i32, %c0_i32_0 : i32, i32
  }
  func.func @transform_4(%arg0: i32) -> (i32, i32) {
    %c0_i32 = arith.constant 0 : i32
    %c0_i32_0 = arith.constant 0 : i32
    %c0_i32_1 = arith.constant 0 : i32
    return %c0_i32, %c0_i32_0 : i32, i32
  }
  func.func @transform_5(%arg0: i32) -> (i32, i32) {
    %c0_i32 = arith.constant 0 : i32
    %c0_i32_0 = arith.constant 0 : i32
    %c0_i32_1 = arith.constant 0 : i32
    return %c0_i32, %c0_i32_0 : i32, i32
  }
  func.func @transform_6(%arg0: i32) -> (i32, i32) {
    %c0_i32 = arith.constant 0 : i32
    %c0_i32_0 = arith.constant 0 : i32
    %c0_i32_1 = arith.constant 0 : i32
    return %c0_i32, %c0_i32_0 : i32, i32
  }
  func.func @transform_7(%arg0: i32) -> (i32, i32) {
    %c0_i32 = arith.constant 0 : i32
    %c0_i32_0 = arith.constant 0 : i32
    return %arg0, %c0_i32 : i32, i32
  }
}

</mosaic_0001>

<llo_original>
// kernel: _lambda_.23
$region0: #{_lambda_.23}
  #allocation0 [shape = 'u32[]', space=smem, size = 0x4, offset = 0x4, fixed_abs, tag = 'smem constant byte address 0x4 - core index']
  #allocation1 [shape = 'u32[144,128]{1,0:T(1,128)}', space=vmem, size = 0x12000, scoped, tag = 'internal scratch']
  %s0 = inlined_call_operand.vmem [shape: bf16[64,768], index: 0, kind: input, shape index: {}]
  %s1 = inlined_call_operand.vmem [shape: bf16[768,96], index: 1, kind: input, shape index: {}]
  %s2 = inlined_call_operand.vmem [shape: f32[1,96], index: 2, kind: input, shape index: {}]
  %s3 = inlined_call_operand.vmem [shape: f32[64,96], index: 3, kind: output, shape index: {}]
  %s4 = sld [smem:[#allocation0]]
  $region22: #{_lambda_.23} parent=0
    _
  %s6 = ssub.s32 1, %s4
  %s7 = scalar_select 0, %s6, %s4
  // Predicated region
  $region2: #{_lambda_.23} parent=0 // pred_check
    _
  $region3: #{_lambda_.23} parent=0 // pred_check_branch
    %9 = sbr.rel (0) target = $region5
  $region4: #{_lambda_.23} parent=0 // pred_region
    _
  $region5: #{_lambda_.23} parent=0 // pred_fallthru
    _
  // Predicated region
  $region6: #{_lambda_.23} parent=0 // pred_check
    _
  $region7: #{_lambda_.23} parent=0 // pred_check_branch
    %11 = sbr.rel (0) target = $region9
  $region8: #{_lambda_.23} parent=0 // pred_region
    _
  $region9: #{_lambda_.23} parent=0 // pred_fallthru
    _
  // Predicated region
  $region10: #{_lambda_.23} parent=0 // pred_check
    _
  $region11: #{_lambda_.23} parent=0 // pred_check_branch
    %13 = sbr.rel (0) target = $region13
  $region12: #{_lambda_.23} parent=0 // pred_region
    _
  $region13: #{_lambda_.23} parent=0 // pred_fallthru
    _
  %v15 = vld [vmem:[%s0] sm:$0xff]
  %v16 = vld [vmem:[%s0 + $0x8] sm:$0xff]
  %v17 = vld [vmem:[%s0 + $0x10] sm:$0xff]
  %v18 = vld [vmem:[%s0 + $0x18] sm:$0xff]
  %v19 = vld [vmem:[%s0 + $0x20] sm:$0xff]
  %v20 = vld [vmem:[%s0 + $0x28] sm:$0xff]
  %v21 = vld [vmem:[%s0 + $0x30] sm:$0xff]
  %v22 = vld [vmem:[%s0 + $0x38] sm:$0xff]
  %v23 = vld [vmem:[%s0 + $0x40] sm:$0xff]
  %v24 = vld [vmem:[%s0 + $0x48] sm:$0xff]
  %v25 = vld [vmem:[%s0 + $0x50] sm:$0xff]
  %v26 = vld [vmem:[%s0 + $0x58] sm:$0xff]
  %v27 = vld [vmem:[%s0 + $0x60] sm:$0xff]
  %v28 = vld [vmem:[%s0 + $0x68] sm:$0xff]
  %v29 = vld [vmem:[%s0 + $0x70] sm:$0xff]
  %v30 = vld [vmem:[%s0 + $0x78] sm:$0xff]
  %v31 = vld [vmem:[%s0 + $0x80] sm:$0xff]
  %v32 = vld [vmem:[%s0 + $0x88] sm:$0xff]
  %v33 = vld [vmem:[%s0 + $0x90] sm:$0xff]
  %v34 = vld [vmem:[%s0 + $0x98] sm:$0xff]
  %v35 = vld [vmem:[%s0 + $0xa0] sm:$0xff]
  %v36 = vld [vmem:[%s0 + $0xa8] sm:$0xff]
  %v37 = vld [vmem:[%s0 + $0xb0] sm:$0xff]
  %v38 = vld [vmem:[%s0 + $0xb8] sm:$0xff]
  %v39 = vld [vmem:[%s1] sm:$0xf]
  %v40 = vld [vmem:[%s1 + $0x4] sm:$0xf]
  %v41 = vld [vmem:[%s1 + $0x8] sm:$0xf]
  %v42 = vld [vmem:[%s1 + $0xc] sm:$0xf]
  %v43 = vld [vmem:[%s1 + $0x10] sm:$0xf]
  %v44 = vld [vmem:[%s1 + $0x14] sm:$0xf]
  %v45 = vld [vmem:[%s1 + $0x18] sm:$0xf]
  %v46 = vld [vmem:[%s1 + $0x1c] sm:$0xf]
  %v47 = vld [vmem:[%s1 + $0x20] sm:$0xf]
  %v48 = vld [vmem:[%s1 + $0x24] sm:$0xf]
  %v49 = vld [vmem:[%s1 + $0x28] sm:$0xf]
  %v50 = vld [vmem:[%s1 + $0x2c] sm:$0xf]
  %v51 = vld [vmem:[%s1 + $0x30] sm:$0xf]
  %v52 = vld [vmem:[%s1 + $0x34] sm:$0xf]
  %v53 = vld [vmem:[%s1 + $0x38] sm:$0xf]
  %v54 = vld [vmem:[%s1 + $0x3c] sm:$0xf]
  %v55 = vld [vmem:[%s1 + $0x40] sm:$0xf]
  %v56 = vld [vmem:[%s1 + $0x44] sm:$0xf]
  %v57 = vld [vmem:[%s1 + $0x48] sm:$0xf]
  %v58 = vld [vmem:[%s1 + $0x4c] sm:$0xf]
  %v59 = vld [vmem:[%s1 + $0x50] sm:$0xf]
  %v60 = vld [vmem:[%s1 + $0x54] sm:$0xf]
  %v61 = vld [vmem:[%s1 + $0x58] sm:$0xf]
  %v62 = vld [vmem:[%s1 + $0x5c] sm:$0xf]
  %v63 = vld [vmem:[%s1 + $0x60] sm:$0xf]
  %v64 = vld [vmem:[%s1 + $0x64] sm:$0xf]
  %v65 = vld [vmem:[%s1 + $0x68] sm:$0xf]
  %v66 = vld [vmem:[%s1 + $0x6c] sm:$0xf]
  %v67 = vld [vmem:[%s1 + $0x70] sm:$0xf]
  %v68 = vld [vmem:[%s1 + $0x74] sm:$0xf]
  %v69 = vld [vmem:[%s1 + $0x78] sm:$0xf]
  %v70 = vld [vmem:[%s1 + $0x7c] sm:$0xf]
  %v71 = vld [vmem:[%s1 + $0x80] sm:$0xf]
  %v72 = vld [vmem:[%s1 + $0x84] sm:$0xf]
  %v73 = vld [vmem:[%s1 + $0x88] sm:$0xf]
  %v74 = vld [vmem:[%s1 + $0x8c] sm:$0xf]
  %v75 = vld [vmem:[%s1 + $0x90] sm:$0xf]
  %v76 = vld [vmem:[%s1 + $0x94] sm:$0xf]
  %v77 = vld [vmem:[%s1 + $0x98] sm:$0xf]
  %v78 = vld [vmem:[%s1 + $0x9c] sm:$0xf]
  %v79 = vld [vmem:[%s1 + $0xa0] sm:$0xf]
  %v80 = vld [vmem:[%s1 + $0xa4] sm:$0xf]
  %v81 = vld [vmem:[%s1 + $0xa8] sm:$0xf]
  %v82 = vld [vmem:[%s1 + $0xac] sm:$0xf]
  %v83 = vld [vmem:[%s1 + $0xb0] sm:$0xf]
  %v84 = vld [vmem:[%s1 + $0xb4] sm:$0xf]
  %v85 = vld [vmem:[%s1 + $0xb8] sm:$0xf]
  %v86 = vld [vmem:[%s1 + $0xbc] sm:$0xf]
  %v87 = vld [vmem:[%s1 + $0xc0] sm:$0xf]
  %v88 = vld [vmem:[%s1 + $0xc4] sm:$0xf]
  %v89 = vld [vmem:[%s1 + $0xc8] sm:$0xf]
  %v90 = vld [vmem:[%s1 + $0xcc] sm:$0xf]
  %v91 = vld [vmem:[%s1 + $0xd0] sm:$0xf]
  %v92 = vld [vmem:[%s1 + $0xd4] sm:$0xf]
  %v93 = vld [vmem:[%s1 + $0xd8] sm:$0xf]
  %v94 = vld [vmem:[%s1 + $0xdc] sm:$0xf]
  %v95 = vld [vmem:[%s1 + $0xe0] sm:$0xf]
  %v96 = vld [vmem:[%s1 + $0xe4] sm:$0xf]
  %v97 = vld [vmem:[%s1 + $0xe8] sm:$0xf]
  %v98 = vld [vmem:[%s1 + $0xec] sm:$0xf]
  %v99 = vld [vmem:[%s1 + $0xf0] sm:$0xf]
  %v100 = vld [vmem:[%s1 + $0xf4] sm:$0xf]
  %v101 = vld [vmem:[%s1 + $0xf8] sm:$0xf]
  %v102 = vld [vmem:[%s1 + $0xfc] sm:$0xf]
  %v103 = vld [vmem:[%s1 + $0x100] sm:$0xf]
  %v104 = vld [vmem:[%s1 + $0x104] sm:$0xf]
  %v105 = vld [vmem:[%s1 + $0x108] sm:$0xf]
  %v106 = vld [vmem:[%s1 + $0x10c] sm:$0xf]
  %v107 = vld [vmem:[%s1 + $0x110] sm:$0xf]
  %v108 = vld [vmem:[%s1 + $0x114] sm:$0xf]
  %v109 = vld [vmem:[%s1 + $0x118] sm:$0xf]
  %v110 = vld [vmem:[%s1 + $0x11c] sm:$0xf]
  %v111 = vld [vmem:[%s1 + $0x120] sm:$0xf]
  %v112 = vld [vmem:[%s1 + $0x124] sm:$0xf]
  %v113 = vld [vmem:[%s1 + $0x128] sm:$0xf]
  %v114 = vld [vmem:[%s1 + $0x12c] sm:$0xf]
  %v115 = vld [vmem:[%s1 + $0x130] sm:$0xf]
  %v116 = vld [vmem:[%s1 + $0x134] sm:$0xf]
  %v117 = vld [vmem:[%s1 + $0x138] sm:$0xf]
  %v118 = vld [vmem:[%s1 + $0x13c] sm:$0xf]
  %v119 = vld [vmem:[%s1 + $0x140] sm:$0xf]
  %v120 = vld [vmem:[%s1 + $0x144] sm:$0xf]
  %v121 = vld [vmem:[%s1 + $0x148] sm:$0xf]
  %v122 = vld [vmem:[%s1 + $0x14c] sm:$0xf]
  %v123 = vld [vmem:[%s1 + $0x150] sm:$0xf]
  %v124 = vld [vmem:[%s1 + $0x154] sm:$0xf]
  %v125 = vld [vmem:[%s1 + $0x158] sm:$0xf]
  %v126 = vld [vmem:[%s1 + $0x15c] sm:$0xf]
  %v127 = vld [vmem:[%s1 + $0x160] sm:$0xf]
  %v128 = vld [vmem:[%s1 + $0x164] sm:$0xf]
  %v129 = vld [vmem:[%s1 + $0x168] sm:$0xf]
  %v130 = vld [vmem:[%s1 + $0x16c] sm:$0xf]
  %v131 = vld [vmem:[%s1 + $0x170] sm:$0xf]
  %v132 = vld [vmem:[%s1 + $0x174] sm:$0xf]
  %v133 = vld [vmem:[%s1 + $0x178] sm:$0xf]
  %v134 = vld [vmem:[%s1 + $0x17c] sm:$0xf]
  %v135 = vld [vmem:[%s2] sm:$0x1]
  %v137 = vlaneseq
  %v138 = vshrl.u32 %v137, 7
  %v139 = vsub.s32 0, %v138
  %v140 = vrot.slane %v135, %v139
  %v166 = vunpack.c.l.b16 %v15
  %v167 = vunpack.c.h.b16 %v15
  %v168 = vunpack.c.l.b16 %v16
  %v169 = vunpack.c.h.b16 %v16
  %v170 = vunpack.c.l.b16 %v17
  %v171 = vunpack.c.h.b16 %v17
  %v172 = vunpack.c.l.b16 %v18
  %v173 = vunpack.c.h.b16 %v18
  %v174 = vunpack.c.l.b16 %v19
  %v175 = vunpack.c.h.b16 %v19
  %v176 = vunpack.c.l.b16 %v20
  %v177 = vunpack.c.h.b16 %v20
  %v178 = vunpack.c.l.b16 %v21
  %v179 = vunpack.c.h.b16 %v21
  %v180 = vunpack.c.l.b16 %v22
  %v181 = vunpack.c.h.b16 %v22
  %v182 = vunpack.c.l.b16 %v23
  %v183 = vunpack.c.h.b16 %v23
  %v184 = vunpack.c.l.b16 %v24
  %v185 = vunpack.c.h.b16 %v24
  %v186 = vunpack.c.l.b16 %v25
  %v187 = vunpack.c.h.b16 %v25
  %v188 = vunpack.c.l.b16 %v26
  %v189 = vunpack.c.h.b16 %v26
  %v190 = vunpack.c.l.b16 %v27
  %v191 = vunpack.c.h.b16 %v27
  %v192 = vunpack.c.l.b16 %v28
  %v193 = vunpack.c.h.b16 %v28
  %v194 = vunpack.c.l.b16 %v29
  %v195 = vunpack.c.h.b16 %v29
  %v196 = vunpack.c.l.b16 %v30
  %v197 = vunpack.c.h.b16 %v30
  %v198 = vunpack.c.l.b16 %v31
  %v199 = vunpack.c.h.b16 %v31
  %v200 = vunpack.c.l.b16 %v32
  %v201 = vunpack.c.h.b16 %v32
  %v202 = vunpack.c.l.b16 %v33
  %v203 = vunpack.c.h.b16 %v33
  %v204 = vunpack.c.l.b16 %v34
  %v205 = vunpack.c.h.b16 %v34
  %v206 = vunpack.c.l.b16 %v35
  %v207 = vunpack.c.h.b16 %v35
  %v208 = vunpack.c.l.b16 %v36
  %v209 = vunpack.c.h.b16 %v36
  %v210 = vunpack.c.l.b16 %v37
  %v211 = vunpack.c.h.b16 %v37
  %v212 = vunpack.c.l.b16 %v38
  %v213 = vunpack.c.h.b16 %v38
  %v214 = vpack.c.b16 %v172, %v166
  %v215 = vpack.c.b16 %v173, %v167
  %v216 = vpack.c.b16 %v174, %v168
  %v217 = vpack.c.b16 %v175, %v169
  %v218 = vpack.c.b16 %v176, %v170
  %v219 = vpack.c.b16 %v177, %v171
  %v220 = vpack.c.b16 %v184, %v178
  %v221 = vpack.c.b16 %v185, %v179
  %v222 = vpack.c.b16 %v186, %v180
  %v223 = vpack.c.b16 %v187, %v181
  %v224 = vpack.c.b16 %v188, %v182
  %v225 = vpack.c.b16 %v189, %v183
  %v226 = vpack.c.b16 %v196, %v190
  %v227 = vpack.c.b16 %v197, %v191
  %v228 = vpack.c.b16 %v198, %v192
  %v229 = vpack.c.b16 %v199, %v193
  %v230 = vpack.c.b16 %v200, %v194
  %v231 = vpack.c.b16 %v201, %v195
  %v232 = vpack.c.b16 %v208, %v202
  %v233 = vpack.c.b16 %v209, %v203
  %v234 = vpack.c.b16 %v210, %v204
  %v235 = vpack.c.b16 %v211, %v205
  %v236 = vpack.c.b16 %v212, %v206
  %v237 = vpack.c.b16 %v213, %v207
  %v358 = vunpack.c.l.b16 %v39
  %v359 = vunpack.c.l.b16 %v40
  %v360 = vunpack.c.l.b16 %v41
  %v361 = vunpack.c.l.b16 %v42
  %v362 = vunpack.c.l.b16 %v43
  %v363 = vunpack.c.l.b16 %v44
  %v364 = vunpack.c.l.b16 %v45
  %v365 = vunpack.c.l.b16 %v46
  %v366 = vunpack.c.l.b16 %v47
  %v367 = vunpack.c.l.b16 %v48
  %v368 = vunpack.c.l.b16 %v49
  %v369 = vunpack.c.l.b16 %v50
  %v370 = vunpack.c.l.b16 %v51
  %v371 = vunpack.c.l.b16 %v52
  %v372 = vunpack.c.l.b16 %v53
  %v373 = vunpack.c.l.b16 %v54
  %v374 = vunpack.c.l.b16 %v55
  %v375 = vunpack.c.l.b16 %v56
  %v376 = vunpack.c.l.b16 %v57
  %v377 = vunpack.c.l.b16 %v58
  %v378 = vunpack.c.l.b16 %v59
  %v379 = vunpack.c.l.b16 %v60
  %v380 = vunpack.c.l.b16 %v61
  %v381 = vunpack.c.l.b16 %v62
  %v382 = vunpack.c.l.b16 %v63
  %v383 = vunpack.c.l.b16 %v64
  %v384 = vunpack.c.l.b16 %v65
  %v385 = vunpack.c.l.b16 %v66
  %v386 = vunpack.c.l.b16 %v67
  %v387 = vunpack.c.l.b16 %v68
  %v388 = vunpack.c.l.b16 %v69
  %v389 = vunpack.c.l.b16 %v70
  %v390 = vunpack.c.l.b16 %v71
  %v391 = vunpack.c.l.b16 %v72
  %v392 = vunpack.c.l.b16 %v73
  %v393 = vunpack.c.l.b16 %v74
  %v394 = vunpack.c.l.b16 %v75
  %v395 = vunpack.c.l.b16 %v76
  %v396 = vunpack.c.l.b16 %v77
  %v397 = vunpack.c.l.b16 %v78
  %v398 = vunpack.c.l.b16 %v79
  %v399 = vunpack.c.l.b16 %v80
  %v400 = vunpack.c.l.b16 %v81
  %v401 = vunpack.c.l.b16 %v82
  %v402 = vunpack.c.l.b16 %v83
  %v403 = vunpack.c.l.b16 %v84
  %v404 = vunpack.c.l.b16 %v85
  %v405 = vunpack.c.l.b16 %v86
  %v406 = vunpack.c.l.b16 %v87
  %v407 = vunpack.c.l.b16 %v88
  %v408 = vunpack.c.l.b16 %v89
  %v409 = vunpack.c.l.b16 %v90
  %v410 = vunpack.c.l.b16 %v91
  %v411 = vunpack.c.l.b16 %v92
  %v412 = vunpack.c.l.b16 %v93
  %v413 = vunpack.c.l.b16 %v94
  %v414 = vunpack.c.l.b16 %v95
  %v415 = vunpack.c.l.b16 %v96
  %v416 = vunpack.c.l.b16 %v97
  %v417 = vunpack.c.l.b16 %v98
  %v418 = vunpack.c.l.b16 %v99
  %v419 = vunpack.c.l.b16 %v100
  %v420 = vunpack.c.l.b16 %v101
  %v421 = vunpack.c.l.b16 %v102
  %v422 = vunpack.c.l.b16 %v103
  %v423 = vunpack.c.l.b16 %v104
  %v424 = vunpack.c.l.b16 %v105
  %v425 = vunpack.c.l.b16 %v106
  %v426 = vunpack.c.l.b16 %v107
  %v427 = vunpack.c.l.b16 %v108
  %v428 = vunpack.c.l.b16 %v109
  %v429 = vunpack.c.l.b16 %v110
  %v430 = vunpack.c.l.b16 %v111
  %v431 = vunpack.c.l.b16 %v112
  %v432 = vunpack.c.l.b16 %v113
  %v433 = vunpack.c.l.b16 %v114
  %v434 = vunpack.c.l.b16 %v115
  %v435 = vunpack.c.l.b16 %v116
  %v436 = vunpack.c.l.b16 %v117
  %v437 = vunpack.c.l.b16 %v118
  %v438 = vunpack.c.l.b16 %v119
  %v439 = vunpack.c.l.b16 %v120
  %v440 = vunpack.c.l.b16 %v121
  %v441 = vunpack.c.l.b16 %v122
  %v442 = vunpack.c.l.b16 %v123
  %v443 = vunpack.c.l.b16 %v124
  %v444 = vunpack.c.l.b16 %v125
  %v445 = vunpack.c.l.b16 %v126
  %v446 = vunpack.c.l.b16 %v127
  %v447 = vunpack.c.l.b16 %v128
  %v448 = vunpack.c.l.b16 %v129
  %v449 = vunpack.c.l.b16 %v130
  %v450 = vunpack.c.l.b16 %v131
  %v451 = vunpack.c.l.b16 %v132
  %v452 = vunpack.c.l.b16 %v133
  %v453 = vunpack.c.l.b16 %v134
  %v454 = vpack.c.b16 %v359, %v358
  %v455 = vpack.c.b16 %v361, %v360
  %v456 = vpack.c.b16 %v363, %v362
  %v457 = vpack.c.b16 %v365, %v364
  %v458 = vpack.c.b16 %v367, %v366
  %v459 = vpack.c.b16 %v369, %v368
  %v460 = vpack.c.b16 %v371, %v370
  %v461 = vpack.c.b16 %v373, %v372
  %v462 = vpack.c.b16 %v375, %v374
  %v463 = vpack.c.b16 %v377, %v376
  %v464 = vpack.c.b16 %v379, %v378
  %v465 = vpack.c.b16 %v381, %v380
  %v466 = vpack.c.b16 %v383, %v382
  %v467 = vpack.c.b16 %v385, %v384
  %v468 = vpack.c.b16 %v387, %v386
  %v469 = vpack.c.b16 %v389, %v388
  %v470 = vpack.c.b16 %v391, %v390
  %v471 = vpack.c.b16 %v393, %v392
  %v472 = vpack.c.b16 %v395, %v394
  %v473 = vpack.c.b16 %v397, %v396
  %v474 = vpack.c.b16 %v399, %v398
  %v475 = vpack.c.b16 %v401, %v400
  %v476 = vpack.c.b16 %v403, %v402
  %v477 = vpack.c.b16 %v405, %v404
  %v478 = vpack.c.b16 %v407, %v406
  %v479 = vpack.c.b16 %v409, %v408
  %v480 = vpack.c.b16 %v411, %v410
  %v481 = vpack.c.b16 %v413, %v412
  %v482 = vpack.c.b16 %v415, %v414
  %v483 = vpack.c.b16 %v417, %v416
  %v484 = vpack.c.b16 %v419, %v418
  %v485 = vpack.c.b16 %v421, %v420
  %v486 = vpack.c.b16 %v423, %v422
  %v487 = vpack.c.b16 %v425, %v424
  %v488 = vpack.c.b16 %v427, %v426
  %v489 = vpack.c.b16 %v429, %v428
  %v490 = vpack.c.b16 %v431, %v430
  %v491 = vpack.c.b16 %v433, %v432
  %v492 = vpack.c.b16 %v435, %v434
  %v493 = vpack.c.b16 %v437, %v436
  %v494 = vpack.c.b16 %v439, %v438
  %v495 = vpack.c.b16 %v441, %v440
  %v496 = vpack.c.b16 %v443, %v442
  %v497 = vpack.c.b16 %v445, %v444
  %v498 = vpack.c.b16 %v447, %v446
  %v499 = vpack.c.b16 %v449, %v448
  %v500 = vpack.c.b16 %v451, %v450
  %v501 = vpack.c.b16 %v453, %v452
  %550 = vmatprep.subr.bf16.mxu0 0
  %551 = vmatpush1.bf16.msra.mxu0 %v461
  %552 = vmatprep.subr.bf16.mxu0 0
  %553 = vmatpush1.bf16.msra.mxu0 %v460
  %554 = vmatprep.subr.bf16.mxu0 0
  %555 = vmatpush1.bf16.msra.mxu0 %v459
  %556 = vmatprep.subr.bf16.mxu0 0
  %557 = vmatpush1.bf16.msra.mxu0 %v458
  %558 = vmatprep.subr.bf16.mxu0 0
  %559 = vmatpush1.bf16.msra.mxu0 %v457
  %560 = vmatprep.subr.bf16.mxu0 0
  %561 = vmatpush1.bf16.msra.mxu0 %v456
  %562 = vmatprep.subr.bf16.mxu0 0
  %563 = vmatpush1.bf16.msra.mxu0 %v455
  %564 = vmatprep.subr.bf16.mxu0 0
  %565 = vmatpush1.bf16.msra.mxu0 %v454
  %566 = vmatprep.subr.bf16.mxu0 0
  %567 = vmatpush2.bf16.msra.mxu0 %v469
  %568 = vmatprep.subr.bf16.mxu0 0
  %569 = vmatpush2.bf16.msra.mxu0 %v468
  %570 = vmatprep.subr.bf16.mxu0 0
  %571 = vmatpush2.bf16.msra.mxu0 %v467
  %572 = vmatprep.subr.bf16.mxu0 0
  %573 = vmatpush2.bf16.msra.mxu0 %v466
  %574 = vmatprep.subr.bf16.mxu0 0
  %575 = vmatpush2.bf16.msra.mxu0 %v465
  %576 = vmatprep.subr.bf16.mxu0 0
  %577 = vmatpush2.bf16.msra.mxu0 %v464
  %578 = vmatprep.subr.bf16.mxu0 0
  %579 = vmatpush2.bf16.msra.mxu0 %v463
  %580 = vmatprep.subr.bf16.mxu0 0
  %581 = vmatpush2.bf16.msra.mxu0 %v462
  %582 = vmatprep.mubr.bf16.mxu0 %v215
  %583 = vmatmul.mubr.bf16.gmra.mxu0 %v214
  %v584 = vpop.f32.mrf.mxu0
  %v585 = vadd.f32 %v140, %v584
  %v586 = vpop.f32.mrf.mxu0
  %v587 = vpop.f32.mrf.mxu0
  %v588 = vadd.f32 %v140, %v587
  %v589 = vpop.f32.mrf.mxu0
  %590 = vmatprep.mubr.bf16.mxu0 %v221
  %591 = vmatmul.mubr.bf16.gmra.mxu0 %v220
  %v592 = vpop.f32.mrf.mxu0
  %v593 = vadd.f32 %v140, %v592
  %v594 = vpop.f32.mrf.mxu0
  %v595 = vpop.f32.mrf.mxu0
  %v596 = vadd.f32 %v140, %v595
  %v597 = vpop.f32.mrf.mxu0
  %598 = vmatprep.mubr.bf16.mxu0 %v227
  %599 = vmatmul.mubr.bf16.gmra.mxu0 %v226
  %v600 = vpop.f32.mrf.mxu0
  %v601 = vadd.f32 %v140, %v600
  %v602 = vpop.f32.mrf.mxu0
  %v603 = vpop.f32.mrf.mxu0
  %v604 = vadd.f32 %v140, %v603
  %v605 = vpop.f32.mrf.mxu0
  %606 = vmatprep.mubr.bf16.mxu0 %v233
  %607 = vmatmul.mubr.bf16.gmra.mxu0 %v232
  %v608 = vpop.f32.mrf.mxu0
  %v609 = vadd.f32 %v140, %v608
  %v610 = vpop.f32.mrf.mxu0
  %v611 = vpop.f32.mrf.mxu0
  %v612 = vadd.f32 %v140, %v611
  %v613 = vpop.f32.mrf.mxu0
  %614 = vdwg.mxu0
  %615 = vmatprep.subr.bf16.mxu0 0
  %616 = vmatpush1.bf16.msra.mxu0 %v477
  %617 = vmatprep.subr.bf16.mxu0 0
  %618 = vmatpush1.bf16.msra.mxu0 %v476
  %619 = vmatprep.subr.bf16.mxu0 0
  %620 = vmatpush1.bf16.msra.mxu0 %v475
  %621 = vmatprep.subr.bf16.mxu0 0
  %622 = vmatpush1.bf16.msra.mxu0 %v474
  %623 = vmatprep.subr.bf16.mxu0 0
  %624 = vmatpush1.bf16.msra.mxu0 %v473
  %625 = vmatprep.subr.bf16.mxu0 0
  %626 = vmatpush1.bf16.msra.mxu0 %v472
  %627 = vmatprep.subr.bf16.mxu0 0
  %628 = vmatpush1.bf16.msra.mxu0 %v471
  %629 = vmatprep.subr.bf16.mxu0 0
  %630 = vmatpush1.bf16.msra.mxu0 %v470
  %631 = vmatprep.subr.bf16.mxu0 0
  %632 = vmatpush2.bf16.msra.mxu0 %v485
  %633 = vmatprep.subr.bf16.mxu0 0
  %634 = vmatpush2.bf16.msra.mxu0 %v484
  %635 = vmatprep.subr.bf16.mxu0 0
  %636 = vmatpush2.bf16.msra.mxu0 %v483
  %637 = vmatprep.subr.bf16.mxu0 0
  %638 = vmatpush2.bf16.msra.mxu0 %v482
  %639 = vmatprep.subr.bf16.mxu0 0
  %640 = vmatpush2.bf16.msra.mxu0 %v481
  %641 = vmatprep.subr.bf16.mxu0 0
  %642 = vmatpush2.bf16.msra.mxu0 %v480
  %643 = vmatprep.subr.bf16.mxu0 0
  %644 = vmatpush2.bf16.msra.mxu0 %v479
  %645 = vmatprep.subr.bf16.mxu0 0
  %646 = vmatpush2.bf16.msra.mxu0 %v478
  %647 = vmatprep.mubr.bf16.mxu0 %v217
  %648 = vmatmul.mubr.bf16.gmra.mxu0 %v216
  %v649 = vpop.f32.mrf.mxu0
  %v650 = vadd.f32 %v585, %v649
  %v651 = vpop.f32.mrf.mxu0
  %v652 = vpop.f32.mrf.mxu0
  %v653 = vadd.f32 %v588, %v652
  %v654 = vpop.f32.mrf.mxu0
  %655 = vmatprep.mubr.bf16.mxu0 %v223
  %656 = vmatmul.mubr.bf16.gmra.mxu0 %v222
  %v657 = vpop.f32.mrf.mxu0
  %v658 = vadd.f32 %v593, %v657
  %v659 = vpop.f32.mrf.mxu0
  %v660 = vpop.f32.mrf.mxu0
  %v661 = vadd.f32 %v596, %v660
  %v662 = vpop.f32.mrf.mxu0
  %663 = vmatprep.mubr.bf16.mxu0 %v229
  %664 = vmatmul.mubr.bf16.gmra.mxu0 %v228
  %v665 = vpop.f32.mrf.mxu0
  %v666 = vadd.f32 %v601, %v665
  %v667 = vpop.f32.mrf.mxu0
  %v668 = vpop.f32.mrf.mxu0
  %v669 = vadd.f32 %v604, %v668
  %v670 = vpop.f32.mrf.mxu0
  %671 = vmatprep.mubr.bf16.mxu0 %v235
  %672 = vmatmul.mubr.bf16.gmra.mxu0 %v234
  %v673 = vpop.f32.mrf.mxu0
  %v674 = vadd.f32 %v609, %v673
  %v675 = vpop.f32.mrf.mxu0
  %v676 = vpop.f32.mrf.mxu0
  %v677 = vadd.f32 %v612, %v676
  %v678 = vpop.f32.mrf.mxu0
  %679 = vdwg.mxu0
  %680 = vmatprep.subr.bf16.mxu0 0
  %681 = vmatpush1.bf16.msra.mxu0 %v493
  %682 = vmatprep.subr.bf16.mxu0 0
  %683 = vmatpush1.bf16.msra.mxu0 %v492
  %684 = vmatprep.subr.bf16.mxu0 0
  %685 = vmatpush1.bf16.msra.mxu0 %v491
  %686 = vmatprep.subr.bf16.mxu0 0
  %687 = vmatpush1.bf16.msra.mxu0 %v490
  %688 = vmatprep.subr.bf16.mxu0 0
  %689 = vmatpush1.bf16.msra.mxu0 %v489
  %690 = vmatprep.subr.bf16.mxu0 0
  %691 = vmatpush1.bf16.msra.mxu0 %v488
  %692 = vmatprep.subr.bf16.mxu0 0
  %693 = vmatpush1.bf16.msra.mxu0 %v487
  %694 = vmatprep.subr.bf16.mxu0 0
  %695 = vmatpush1.bf16.msra.mxu0 %v486
  %696 = vmatprep.subr.bf16.mxu0 0
  %697 = vmatpush2.bf16.msra.mxu0 %v501
  %698 = vmatprep.subr.bf16.mxu0 0
  %699 = vmatpush2.bf16.msra.mxu0 %v500
  %700 = vmatprep.subr.bf16.mxu0 0
  %701 = vmatpush2.bf16.msra.mxu0 %v499
  %702 = vmatprep.subr.bf16.mxu0 0
  %703 = vmatpush2.bf16.msra.mxu0 %v498
  %704 = vmatprep.subr.bf16.mxu0 0
  %705 = vmatpush2.bf16.msra.mxu0 %v497
  %706 = vmatprep.subr.bf16.mxu0 0
  %707 = vmatpush2.bf16.msra.mxu0 %v496
  %708 = vmatprep.subr.bf16.mxu0 0
  %709 = vmatpush2.bf16.msra.mxu0 %v495
  %710 = vmatprep.subr.bf16.mxu0 0
  %711 = vmatpush2.bf16.msra.mxu0 %v494
  %712 = vmatprep.mubr.bf16.mxu0 %v219
  %713 = vmatmul.mubr.bf16.gmra.mxu0 %v218
  %v714 = vpop.f32.mrf.mxu0
  %v715 = vadd.f32 %v650, %v714
  %v716 = vpop.f32.mrf.mxu0
  %v717 = vpop.f32.mrf.mxu0
  %v718 = vadd.f32 %v653, %v717
  %v719 = vpop.f32.mrf.mxu0
  %720 = vmatprep.mubr.bf16.mxu0 %v225
  %721 = vmatmul.mubr.bf16.gmra.mxu0 %v224
  %v722 = vpop.f32.mrf.mxu0
  %v723 = vadd.f32 %v658, %v722
  %v724 = vpop.f32.mrf.mxu0
  %v725 = vpop.f32.mrf.mxu0
  %v726 = vadd.f32 %v661, %v725
  %v727 = vpop.f32.mrf.mxu0
  %728 = vmatprep.mubr.bf16.mxu0 %v231
  %729 = vmatmul.mubr.bf16.gmra.mxu0 %v230
  %v730 = vpop.f32.mrf.mxu0
  %v731 = vadd.f32 %v666, %v730
  %v732 = vpop.f32.mrf.mxu0
  %v733 = vpop.f32.mrf.mxu0
  %v734 = vadd.f32 %v669, %v733
  %v735 = vpop.f32.mrf.mxu0
  %736 = vmatprep.mubr.bf16.mxu0 %v237
  %737 = vmatmul.mubr.bf16.gmra.mxu0 %v236
  %v738 = vpop.f32.mrf.mxu0
  %v739 = vadd.f32 %v674, %v738
  %v740 = vpop.f32.mrf.mxu0
  %v741 = vpop.f32.mrf.mxu0
  %v742 = vadd.f32 %v677, %v741
  %v743 = vpop.f32.mrf.mxu0
  %744 = vdwg.mxu0
  %vm745 = vcmask 785408
  %746 = vst.msk [vmem:[%s3] sm:$0xff] %vm745, %v715
  %747 = vst.msk [vmem:[%s3 + $0x8] sm:$0xff] %vm745, %v718
  %748 = vst.msk [vmem:[%s3 + $0x10] sm:$0xff] %vm745, %v723
  %749 = vst.msk [vmem:[%s3 + $0x18] sm:$0xff] %vm745, %v726
  %750 = vst.msk [vmem:[%s3 + $0x20] sm:$0xff] %vm745, %v731
  %751 = vst.msk [vmem:[%s3 + $0x28] sm:$0xff] %vm745, %v734
  %752 = vst.msk [vmem:[%s3 + $0x30] sm:$0xff] %vm745, %v739
  %753 = vst.msk [vmem:[%s3 + $0x38] sm:$0xff] %vm745, %v742
  // Predicated region
  $region14: #{_lambda_.23} parent=0 // pred_check
    _
  $region15: #{_lambda_.23} parent=0 // pred_check_branch
    %755 = sbr.rel (0) target = $region17
  $region16: #{_lambda_.23} parent=0 // pred_region
    _
  $region17: #{_lambda_.23} parent=0 // pred_fallthru
    _
  // Predicated region
  $region18: #{_lambda_.23} parent=0 // pred_check
    _
  $region19: #{_lambda_.23} parent=0 // pred_check_branch
    %757 = sbr.rel (0) target = $region21
  $region20: #{_lambda_.23} parent=0 // pred_region
    _
  $region21: #{_lambda_.23} parent=0 // pred_fallthru
    _

// kernel: _lambda_.16
$region0: #{_lambda_.16}
  #allocation0 [shape = 'u32[]', space=smem, size = 0x4, offset = 0x4, fixed_abs, tag = 'smem constant byte address 0x4 - core index']
  #allocation1 [shape = 'u32[144,128]{1,0:T(1,128)}', space=vmem, size = 0x12000, scoped, tag = 'internal scratch']
  %s0 = inlined_call_operand.vmem [shape: bf16[512,96], index: 0, kind: input, shape index: {}]
  %s1 = inlined_call_operand.vmem [shape: bf16[96,12], index: 1, kind: input, shape index: {}]
  %s2 = inlined_call_operand.vmem [shape: f32[1,12], index: 2, kind: input, shape index: {}, may-alias: {2,4}]
  %s3 = inlined_call_operand.vmem [shape: f32[1,12], index: 3, kind: input, shape index: {}]
  %s4 = inlined_call_operand.vmem [shape: f32[1,12], index: 4, kind: input, shape index: {}, may-alias: {2,4}]
  %s5 = inlined_call_operand.vmem [shape: f32[512,12], index: 5, kind: output, shape index: {}]
  %s6 = sld [smem:[#allocation0]]
  $region30: #{_lambda_.16} parent=0
    _
  %s8 = ssub.s32 1, %s6
  %s9 = scalar_select 0, %s8, %s6
  // Predicated region
  $region2: #{_lambda_.16} parent=0 // pred_check
    _
  $region3: #{_lambda_.16} parent=0 // pred_check_branch
    %11 = sbr.rel (0) target = $region5
  $region4: #{_lambda_.16} parent=0 // pred_region
    _
  $region5: #{_lambda_.16} parent=0 // pred_fallthru
    _
  // Predicated region
  $region6: #{_lambda_.16} parent=0 // pred_check
    _
  $region7: #{_lambda_.16} parent=0 // pred_check_branch
    %13 = sbr.rel (0) target = $region9
  $region8: #{_lambda_.16} parent=0 // pred_region
    _
  $region9: #{_lambda_.16} parent=0 // pred_fallthru
    _
  // Predicated region
  $region10: #{_lambda_.16} parent=0 // pred_check
    _
  $region11: #{_lambda_.16} parent=0 // pred_check_branch
    %15 = sbr.rel (0) target = $region13
  $region12: #{_lambda_.16} parent=0 // pred_region
    _
  $region13: #{_lambda_.16} parent=0 // pred_fallthru
    _
  // Predicated region
  $region14: #{_lambda_.16} parent=0 // pred_check
    _
  $region15: #{_lambda_.16} parent=0 // pred_check_branch
    %17 = sbr.rel (0) target = $region17
  $region16: #{_lambda_.16} parent=0 // pred_region
    _
  $region17: #{_lambda_.16} parent=0 // pred_fallthru
    _
  // Predicated region
  $region18: #{_lambda_.16} parent=0 // pred_check
    _
  $region19: #{_lambda_.16} parent=0 // pred_check_branch
    %19 = sbr.rel (0) target = $region21
  $region20: #{_lambda_.16} parent=0 // pred_region
    _
  $region21: #{_lambda_.16} parent=0 // pred_fallthru
    _
  %v21 = vld [vmem:[%s0] sm:$0xf]
  %v22 = vld [vmem:[%s0 + $0x4] sm:$0xf]
  %v23 = vld [vmem:[%s0 + $0x8] sm:$0xf]
  %v24 = vld [vmem:[%s0 + $0xc] sm:$0xf]
  %v25 = vld [vmem:[%s0 + $0x10] sm:$0xf]
  %v26 = vld [vmem:[%s0 + $0x14] sm:$0xf]
  %v27 = vld [vmem:[%s0 + $0x18] sm:$0xf]
  %v28 = vld [vmem:[%s0 + $0x1c] sm:$0xf]
  %v29 = vld [vmem:[%s0 + $0x20] sm:$0xf]
  %v30 = vld [vmem:[%s0 + $0x24] sm:$0xf]
  %v31 = vld [vmem:[%s0 + $0x28] sm:$0xf]
  %v32 = vld [vmem:[%s0 + $0x2c] sm:$0xf]
  %v33 = vld [vmem:[%s0 + $0x30] sm:$0xf]
  %v34 = vld [vmem:[%s0 + $0x34] sm:$0xf]
  %v35 = vld [vmem:[%s0 + $0x38] sm:$0xf]
  %v36 = vld [vmem:[%s0 + $0x3c] sm:$0xf]
  %v37 = vld [vmem:[%s0 + $0x40] sm:$0xf]
  %v38 = vld [vmem:[%s0 + $0x44] sm:$0xf]
  %v39 = vld [vmem:[%s0 + $0x48] sm:$0xf]
  %v40 = vld [vmem:[%s0 + $0x4c] sm:$0xf]
  %v41 = vld [vmem:[%s0 + $0x50] sm:$0xf]
  %v42 = vld [vmem:[%s0 + $0x54] sm:$0xf]
  %v43 = vld [vmem:[%s0 + $0x58] sm:$0xf]
  %v44 = vld [vmem:[%s0 + $0x5c] sm:$0xf]
  %v45 = vld [vmem:[%s0 + $0x60] sm:$0xf]
  %v46 = vld [vmem:[%s0 + $0x64] sm:$0xf]
  %v47 = vld [vmem:[%s0 + $0x68] sm:$0xf]
  %v48 = vld [vmem:[%s0 + $0x6c] sm:$0xf]
  %v49 = vld [vmem:[%s0 + $0x70] sm:$0xf]
  %v50 = vld [vmem:[%s0 + $0x74] sm:$0xf]
  %v51 = vld [vmem:[%s0 + $0x78] sm:$0xf]
  %v52 = vld [vmem:[%s0 + $0x7c] sm:$0xf]
  %v53 = vld [vmem:[%s0 + $0x80] sm:$0xf]
  %v54 = vld [vmem:[%s0 + $0x84] sm:$0xf]
  %v55 = vld [vmem:[%s0 + $0x88] sm:$0xf]
  %v56 = vld [vmem:[%s0 + $0x8c] sm:$0xf]
  %v57 = vld [vmem:[%s0 + $0x90] sm:$0xf]
  %v58 = vld [vmem:[%s0 + $0x94] sm:$0xf]
  %v59 = vld [vmem:[%s0 + $0x98] sm:$0xf]
  %v60 = vld [vmem:[%s0 + $0x9c] sm:$0xf]
  %v61 = vld [vmem:[%s0 + $0xa0] sm:$0xf]
  %v62 = vld [vmem:[%s0 + $0xa4] sm:$0xf]
  %v63 = vld [vmem:[%s0 + $0xa8] sm:$0xf]
  %v64 = vld [vmem:[%s0 + $0xac] sm:$0xf]
  %v65 = vld [vmem:[%s0 + $0xb0] sm:$0xf]
  %v66 = vld [vmem:[%s0 + $0xb4] sm:$0xf]
  %v67 = vld [vmem:[%s0 + $0xb8] sm:$0xf]
  %v68 = vld [vmem:[%s0 + $0xbc] sm:$0xf]
  %v69 = vld [vmem:[%s0 + $0xc0] sm:$0xf]
  %v70 = vld [vmem:[%s0 + $0xc4] sm:$0xf]
  %v71 = vld [vmem:[%s0 + $0xc8] sm:$0xf]
  %v72 = vld [vmem:[%s0 + $0xcc] sm:$0xf]
  %v73 = vld [vmem:[%s0 + $0xd0] sm:$0xf]
  %v74 = vld [vmem:[%s0 + $0xd4] sm:$0xf]
  %v75 = vld [vmem:[%s0 + $0xd8] sm:$0xf]
  %v76 = vld [vmem:[%s0 + $0xdc] sm:$0xf]
  %v77 = vld [vmem:[%s0 + $0xe0] sm:$0xf]
  %v78 = vld [vmem:[%s0 + $0xe4] sm:$0xf]
  %v79 = vld [vmem:[%s0 + $0xe8] sm:$0xf]
  %v80 = vld [vmem:[%s0 + $0xec] sm:$0xf]
  %v81 = vld [vmem:[%s0 + $0xf0] sm:$0xf]
  %v82 = vld [vmem:[%s0 + $0xf4] sm:$0xf]
  %v83 = vld [vmem:[%s0 + $0xf8] sm:$0xf]
  %v84 = vld [vmem:[%s0 + $0xfc] sm:$0xf]
  %v85 = vld [vmem:[%s1] sm:$0xf]
  %v86 = vld [vmem:[%s1 + $0x4] sm:$0xf]
  %v87 = vld [vmem:[%s1 + $0x8] sm:$0xf]
  %v88 = vld [vmem:[%s1 + $0xc] sm:$0xf]
  %v89 = vld [vmem:[%s1 + $0x10] sm:$0xf]
  %v90 = vld [vmem:[%s1 + $0x14] sm:$0xf]
  %v91 = vld [vmem:[%s1 + $0x18] sm:$0xf]
  %v92 = vld [vmem:[%s1 + $0x1c] sm:$0xf]
  %v93 = vld [vmem:[%s1 + $0x20] sm:$0xf]
  %v94 = vld [vmem:[%s1 + $0x24] sm:$0xf]
  %v95 = vld [vmem:[%s1 + $0x28] sm:$0xf]
  %v96 = vld [vmem:[%s1 + $0x2c] sm:$0xf]
  %v97 = vld [vmem:[%s2] sm:$0x1]
  %v99 = vlaneseq
  %v100 = vshrl.u32 %v99, 7
  %v101 = vsub.s32 0, %v100
  %v102 = vrot.slane %v97, %v101
  %v168 = vunpack.c.l.b16 %v21
  %v169 = vunpack.c.l.b16 %v22
  %v170 = vunpack.c.l.b16 %v23
  %v171 = vunpack.c.l.b16 %v24
  %v172 = vunpack.c.l.b16 %v25
  %v173 = vunpack.c.l.b16 %v26
  %v174 = vunpack.c.l.b16 %v27
  %v175 = vunpack.c.l.b16 %v28
  %v176 = vunpack.c.l.b16 %v29
  %v177 = vunpack.c.l.b16 %v30
  %v178 = vunpack.c.l.b16 %v31
  %v179 = vunpack.c.l.b16 %v32
  %v180 = vunpack.c.l.b16 %v33
  %v181 = vunpack.c.l.b16 %v34
  %v182 = vunpack.c.l.b16 %v35
  %v183 = vunpack.c.l.b16 %v36
  %v184 = vunpack.c.l.b16 %v37
  %v185 = vunpack.c.l.b16 %v38
  %v186 = vunpack.c.l.b16 %v39
  %v187 = vunpack.c.l.b16 %v40
  %v188 = vunpack.c.l.b16 %v41
  %v189 = vunpack.c.l.b16 %v42
  %v190 = vunpack.c.l.b16 %v43
  %v191 = vunpack.c.l.b16 %v44
  %v192 = vunpack.c.l.b16 %v45
  %v193 = vunpack.c.l.b16 %v46
  %v194 = vunpack.c.l.b16 %v47
  %v195 = vunpack.c.l.b16 %v48
  %v196 = vunpack.c.l.b16 %v49
  %v197 = vunpack.c.l.b16 %v50
  %v198 = vunpack.c.l.b16 %v51
  %v199 = vunpack.c.l.b16 %v52
  %v200 = vunpack.c.l.b16 %v53
  %v201 = vunpack.c.l.b16 %v54
  %v202 = vunpack.c.l.b16 %v55
  %v203 = vunpack.c.l.b16 %v56
  %v204 = vunpack.c.l.b16 %v57
  %v205 = vunpack.c.l.b16 %v58
  %v206 = vunpack.c.l.b16 %v59
  %v207 = vunpack.c.l.b16 %v60
  %v208 = vunpack.c.l.b16 %v61
  %v209 = vunpack.c.l.b16 %v62
  %v210 = vunpack.c.l.b16 %v63
  %v211 = vunpack.c.l.b16 %v64
  %v212 = vunpack.c.l.b16 %v65
  %v213 = vunpack.c.l.b16 %v66
  %v214 = vunpack.c.l.b16 %v67
  %v215 = vunpack.c.l.b16 %v68
  %v216 = vunpack.c.l.b16 %v69
  %v217 = vunpack.c.l.b16 %v70
  %v218 = vunpack.c.l.b16 %v71
  %v219 = vunpack.c.l.b16 %v72
  %v220 = vunpack.c.l.b16 %v73
  %v221 = vunpack.c.l.b16 %v74
  %v222 = vunpack.c.l.b16 %v75
  %v223 = vunpack.c.l.b16 %v76
  %v224 = vunpack.c.l.b16 %v77
  %v225 = vunpack.c.l.b16 %v78
  %v226 = vunpack.c.l.b16 %v79
  %v227 = vunpack.c.l.b16 %v80
  %v228 = vunpack.c.l.b16 %v81
  %v229 = vunpack.c.l.b16 %v82
  %v230 = vunpack.c.l.b16 %v83
  %v231 = vunpack.c.l.b16 %v84
  %v232 = vpack.c.b16 %v169, %v168
  %v233 = vpack.c.b16 %v171, %v170
  %v234 = vpack.c.b16 %v173, %v172
  %v235 = vpack.c.b16 %v175, %v174
  %v236 = vpack.c.b16 %v177, %v176
  %v237 = vpack.c.b16 %v179, %v178
  %v238 = vpack.c.b16 %v181, %v180
  %v239 = vpack.c.b16 %v183, %v182
  %v240 = vpack.c.b16 %v185, %v184
  %v241 = vpack.c.b16 %v187, %v186
  %v242 = vpack.c.b16 %v189, %v188
  %v243 = vpack.c.b16 %v191, %v190
  %v244 = vpack.c.b16 %v193, %v192
  %v245 = vpack.c.b16 %v195, %v194
  %v246 = vpack.c.b16 %v197, %v196
  %v247 = vpack.c.b16 %v199, %v198
  %v248 = vpack.c.b16 %v201, %v200
  %v249 = vpack.c.b16 %v203, %v202
  %v250 = vpack.c.b16 %v205, %v204
  %v251 = vpack.c.b16 %v207, %v206
  %v252 = vpack.c.b16 %v209, %v208
  %v253 = vpack.c.b16 %v211, %v210
  %v254 = vpack.c.b16 %v213, %v212
  %v255 = vpack.c.b16 %v215, %v214
  %v256 = vpack.c.b16 %v217, %v216
  %v257 = vpack.c.b16 %v219, %v218
  %v258 = vpack.c.b16 %v221, %v220
  %v259 = vpack.c.b16 %v223, %v222
  %v260 = vpack.c.b16 %v225, %v224
  %v261 = vpack.c.b16 %v227, %v226
  %v262 = vpack.c.b16 %v229, %v228
  %v263 = vpack.c.b16 %v231, %v230
  %v276 = vunpack.c.l.b16 %v85
  %v277 = vunpack.c.l.b16 %v86
  %v278 = vunpack.c.l.b16 %v87
  %v279 = vunpack.c.l.b16 %v88
  %v280 = vunpack.c.l.b16 %v89
  %v281 = vunpack.c.l.b16 %v90
  %v282 = vunpack.c.l.b16 %v91
  %v283 = vunpack.c.l.b16 %v92
  %v284 = vunpack.c.l.b16 %v93
  %v285 = vunpack.c.l.b16 %v94
  %v286 = vunpack.c.l.b16 %v95
  %v287 = vunpack.c.l.b16 %v96
  %v288 = vpack.c.b16 %v277, %v276
  %v289 = vpack.c.b16 %v279, %v278
  %v290 = vpack.c.b16 %v281, %v280
  %v291 = vpack.c.b16 %v283, %v282
  %v292 = vpack.c.b16 %v285, %v284
  %v293 = vpack.c.b16 %v287, %v286
  %vm300 = vcmask 785408
  %v302 = vsel %vm300, %v232, 0
  %v305 = vsel %vm300, %v233, 0
  %v308 = vsel %vm300, %v234, 0
  %v311 = vsel %vm300, %v235, 0
  %v314 = vsel %vm300, %v236, 0
  %v317 = vsel %vm300, %v237, 0
  %v320 = vsel %vm300, %v238, 0
  %v323 = vsel %vm300, %v239, 0
  %v326 = vsel %vm300, %v240, 0
  %v329 = vsel %vm300, %v241, 0
  %v332 = vsel %vm300, %v242, 0
  %v335 = vsel %vm300, %v243, 0
  %v338 = vsel %vm300, %v244, 0
  %v341 = vsel %vm300, %v245, 0
  %v344 = vsel %vm300, %v246, 0
  %v347 = vsel %vm300, %v247, 0
  %v350 = vsel %vm300, %v248, 0
  %v353 = vsel %vm300, %v249, 0
  %v356 = vsel %vm300, %v250, 0
  %v359 = vsel %vm300, %v251, 0
  %v362 = vsel %vm300, %v252, 0
  %v365 = vsel %vm300, %v253, 0
  %v368 = vsel %vm300, %v254, 0
  %v371 = vsel %vm300, %v255, 0
  %v374 = vsel %vm300, %v256, 0
  %v377 = vsel %vm300, %v257, 0
  %v380 = vsel %vm300, %v258, 0
  %v383 = vsel %vm300, %v259, 0
  %v386 = vsel %vm300, %v260, 0
  %v389 = vsel %vm300, %v261, 0
  %v392 = vsel %vm300, %v262, 0
  %v395 = vsel %vm300, %v263, 0
  %397 = vmatprep.subr.bf16.mxu0 0
  %398 = vmatpush1.bf16.msra.mxu0 0
  %399 = vmatprep.subr.bf16.mxu0 0
  %400 = vmatpush1.bf16.msra.mxu0 0
  %401 = vmatprep.subr.bf16.mxu0 0
  %402 = vmatpush1.bf16.msra.mxu0 %v293
  %403 = vmatprep.subr.bf16.mxu0 0
  %404 = vmatpush1.bf16.msra.mxu0 %v292
  %405 = vmatprep.subr.bf16.mxu0 0
  %406 = vmatpush1.bf16.msra.mxu0 %v291
  %407 = vmatprep.subr.bf16.mxu0 0
  %408 = vmatpush1.bf16.msra.mxu0 %v290
  %409 = vmatprep.subr.bf16.mxu0 0
  %410 = vmatpush1.bf16.msra.mxu0 %v289
  %411 = vmatprep.subr.bf16.mxu0 0
  %412 = vmatpush1.bf16.msra.mxu0 %v288
  %413 = vmatprep.subr.bf16.mxu0 0
  %414 = vmatpush2.bf16.msra.mxu0 0
  %415 = vmatprep.subr.bf16.mxu0 0
  %416 = vmatpush2.bf16.msra.mxu0 0
  %417 = vmatprep.subr.bf16.mxu0 0
  %418 = vmatpush2.bf16.msra.mxu0 0
  %419 = vmatprep.subr.bf16.mxu0 0
  %420 = vmatpush2.bf16.msra.mxu0 0
  %421 = vmatprep.subr.bf16.mxu0 0
  %422 = vmatpush2.bf16.msra.mxu0 0
  %423 = vmatprep.subr.bf16.mxu0 0
  %424 = vmatpush2.bf16.msra.mxu0 0
  %425 = vmatprep.subr.bf16.mxu0 0
  %426 = vmatpush2.bf16.msra.mxu0 0
  %427 = vmatprep.subr.bf16.mxu0 0
  %428 = vmatpush2.bf16.msra.mxu0 0
  %429 = vmatprep.mubr.bf16.mxu0 0
  %430 = vmatmul.mubr.bf16.gmra.mxu0 %v302
  %v431 = vpop.f32.mrf.mxu0
  %v432 = vadd.f32 %v102, %v431
  %v433 = vpop.f32.mrf.mxu0
  %v434 = vpop.f32.mrf.mxu0
  %v435 = vadd.f32 %v102, %v434
  %v436 = vpop.f32.mrf.mxu0
  %437 = vmatprep.mubr.bf16.mxu0 0
  %438 = vmatmul.mubr.bf16.gmra.mxu0 %v305
  %v439 = vpop.f32.mrf.mxu0
  %v440 = vadd.f32 %v102, %v439
  %v441 = vpop.f32.mrf.mxu0
  %v442 = vpop.f32.mrf.mxu0
  %v443 = vadd.f32 %v102, %v442
  %v444 = vpop.f32.mrf.mxu0
  %445 = vmatprep.mubr.bf16.mxu0 0
  %446 = vmatmul.mubr.bf16.gmra.mxu0 %v308
  %v447 = vpop.f32.mrf.mxu0
  %v448 = vadd.f32 %v102, %v447
  %v449 = vpop.f32.mrf.mxu0
  %v450 = vpop.f32.mrf.mxu0
  %v451 = vadd.f32 %v102, %v450
  %v452 = vpop.f32.mrf.mxu0
  %453 = vmatprep.mubr.bf16.mxu0 0
  %454 = vmatmul.mubr.bf16.gmra.mxu0 %v311
  %v455 = vpop.f32.mrf.mxu0
  %v456 = vadd.f32 %v102, %v455
  %v457 = vpop.f32.mrf.mxu0
  %v458 = vpop.f32.mrf.mxu0
  %v459 = vadd.f32 %v102, %v458
  %v460 = vpop.f32.mrf.mxu0
  %461 = vmatprep.mubr.bf16.mxu0 0
  %462 = vmatmul.mubr.bf16.gmra.mxu0 %v314
  %v463 = vpop.f32.mrf.mxu0
  %v464 = vadd.f32 %v102, %v463
  %v465 = vpop.f32.mrf.mxu0
  %v466 = vpop.f32.mrf.mxu0
  %v467 = vadd.f32 %v102, %v466
  %v468 = vpop.f32.mrf.mxu0
  %469 = vmatprep.mubr.bf16.mxu0 0
  %470 = vmatmul.mubr.bf16.gmra.mxu0 %v317
  %v471 = vpop.f32.mrf.mxu0
  %v472 = vadd.f32 %v102, %v471
  %v473 = vpop.f32.mrf.mxu0
  %v474 = vpop.f32.mrf.mxu0
  %v475 = vadd.f32 %v102, %v474
  %v476 = vpop.f32.mrf.mxu0
  %477 = vmatprep.mubr.bf16.mxu0 0
  %478 = vmatmul.mubr.bf16.gmra.mxu0 %v320
  %v479 = vpop.f32.mrf.mxu0
  %v480 = vadd.f32 %v102, %v479
  %v481 = vpop.f32.mrf.mxu0
  %v482 = vpop.f32.mrf.mxu0
  %v483 = vadd.f32 %v102, %v482
  %v484 = vpop.f32.mrf.mxu0
  %485 = vmatprep.mubr.bf16.mxu0 0
  %486 = vmatmul.mubr.bf16.gmra.mxu0 %v323
  %v487 = vpop.f32.mrf.mxu0
  %v488 = vadd.f32 %v102, %v487
  %v489 = vpop.f32.mrf.mxu0
  %v490 = vpop.f32.mrf.mxu0
  %v491 = vadd.f32 %v102, %v490
  %v492 = vpop.f32.mrf.mxu0
  %493 = vmatprep.mubr.bf16.mxu0 0
  %494 = vmatmul.mubr.bf16.gmra.mxu0 %v326
  %v495 = vpop.f32.mrf.mxu0
  %v496 = vadd.f32 %v102, %v495
  %v497 = vpop.f32.mrf.mxu0
  %v498 = vpop.f32.mrf.mxu0
  %v499 = vadd.f32 %v102, %v498
  %v500 = vpop.f32.mrf.mxu0
  %501 = vmatprep.mubr.bf16.mxu0 0
  %502 = vmatmul.mubr.bf16.gmra.mxu0 %v329
  %v503 = vpop.f32.mrf.mxu0
  %v504 = vadd.f32 %v102, %v503
  %v505 = vpop.f32.mrf.mxu0
  %v506 = vpop.f32.mrf.mxu0
  %v507 = vadd.f32 %v102, %v506
  %v508 = vpop.f32.mrf.mxu0
  %509 = vmatprep.mubr.bf16.mxu0 0
  %510 = vmatmul.mubr.bf16.gmra.mxu0 %v332
  %v511 = vpop.f32.mrf.mxu0
  %v512 = vadd.f32 %v102, %v511
  %v513 = vpop.f32.mrf.mxu0
  %v514 = vpop.f32.mrf.mxu0
  %v515 = vadd.f32 %v102, %v514
  %v516 = vpop.f32.mrf.mxu0
  %517 = vmatprep.mubr.bf16.mxu0 0
  %518 = vmatmul.mubr.bf16.gmra.mxu0 %v335
  %v519 = vpop.f32.mrf.mxu0
  %v520 = vadd.f32 %v102, %v519
  %v521 = vpop.f32.mrf.mxu0
  %v522 = vpop.f32.mrf.mxu0
  %v523 = vadd.f32 %v102, %v522
  %v524 = vpop.f32.mrf.mxu0
  %525 = vmatprep.mubr.bf16.mxu0 0
  %526 = vmatmul.mubr.bf16.gmra.mxu0 %v338
  %v527 = vpop.f32.mrf.mxu0
  %v528 = vadd.f32 %v102, %v527
  %v529 = vpop.f32.mrf.mxu0
  %v530 = vpop.f32.mrf.mxu0
  %v531 = vadd.f32 %v102, %v530
  %v532 = vpop.f32.mrf.mxu0
  %533 = vmatprep.mubr.bf16.mxu0 0
  %534 = vmatmul.mubr.bf16.gmra.mxu0 %v341
  %v535 = vpop.f32.mrf.mxu0
  %v536 = vadd.f32 %v102, %v535
  %v537 = vpop.f32.mrf.mxu0
  %v538 = vpop.f32.mrf.mxu0
  %v539 = vadd.f32 %v102, %v538
  %v540 = vpop.f32.mrf.mxu0
  %541 = vmatprep.mubr.bf16.mxu0 0
  %542 = vmatmul.mubr.bf16.gmra.mxu0 %v344
  %v543 = vpop.f32.mrf.mxu0
  %v544 = vadd.f32 %v102, %v543
  %v545 = vpop.f32.mrf.mxu0
  %v546 = vpop.f32.mrf.mxu0
  %v547 = vadd.f32 %v102, %v546
  %v548 = vpop.f32.mrf.mxu0
  %549 = vmatprep.mubr.bf16.mxu0 0
  %550 = vmatmul.mubr.bf16.gmra.mxu0 %v347
  %v551 = vpop.f32.mrf.mxu0
  %v552 = vadd.f32 %v102, %v551
  %v553 = vpop.f32.mrf.mxu0
  %v554 = vpop.f32.mrf.mxu0
  %v555 = vadd.f32 %v102, %v554
  %v556 = vpop.f32.mrf.mxu0
  %557 = vmatprep.mubr.bf16.mxu0 0
  %558 = vmatmul.mubr.bf16.gmra.mxu0 %v350
  %v559 = vpop.f32.mrf.mxu0
  %v560 = vadd.f32 %v102, %v559
  %v561 = vpop.f32.mrf.mxu0
  %v562 = vpop.f32.mrf.mxu0
  %v563 = vadd.f32 %v102, %v562
  %v564 = vpop.f32.mrf.mxu0
  %565 = vmatprep.mubr.bf16.mxu0 0
  %566 = vmatmul.mubr.bf16.gmra.mxu0 %v353
  %v567 = vpop.f32.mrf.mxu0
  %v568 = vadd.f32 %v102, %v567
  %v569 = vpop.f32.mrf.mxu0
  %v570 = vpop.f32.mrf.mxu0
  %v571 = vadd.f32 %v102, %v570
  %v572 = vpop.f32.mrf.mxu0
  %573 = vmatprep.mubr.bf16.mxu0 0
  %574 = vmatmul.mubr.bf16.gmra.mxu0 %v356
  %v575 = vpop.f32.mrf.mxu0
  %v576 = vadd.f32 %v102, %v575
  %v577 = vpop.f32.mrf.mxu0
  %v578 = vpop.f32.mrf.mxu0
  %v579 = vadd.f32 %v102, %v578
  %v580 = vpop.f32.mrf.mxu0
  %581 = vmatprep.mubr.bf16.mxu0 0
  %582 = vmatmul.mubr.bf16.gmra.mxu0 %v359
  %v583 = vpop.f32.mrf.mxu0
  %v584 = vadd.f32 %v102, %v583
  %v585 = vpop.f32.mrf.mxu0
  %v586 = vpop.f32.mrf.mxu0
  %v587 = vadd.f32 %v102, %v586
  %v588 = vpop.f32.mrf.mxu0
  %589 = vmatprep.mubr.bf16.mxu0 0
  %590 = vmatmul.mubr.bf16.gmra.mxu0 %v362
  %v591 = vpop.f32.mrf.mxu0
  %v592 = vadd.f32 %v102, %v591
  %v593 = vpop.f32.mrf.mxu0
  %v594 = vpop.f32.mrf.mxu0
  %v595 = vadd.f32 %v102, %v594
  %v596 = vpop.f32.mrf.mxu0
  %597 = vmatprep.mubr.bf16.mxu0 0
  %598 = vmatmul.mubr.bf16.gmra.mxu0 %v365
  %v599 = vpop.f32.mrf.mxu0
  %v600 = vadd.f32 %v102, %v599
  %v601 = vpop.f32.mrf.mxu0
  %v602 = vpop.f32.mrf.mxu0
  %v603 = vadd.f32 %v102, %v602
  %v604 = vpop.f32.mrf.mxu0
  %605 = vmatprep.mubr.bf16.mxu0 0
  %606 = vmatmul.mubr.bf16.gmra.mxu0 %v368
  %v607 = vpop.f32.mrf.mxu0
  %v608 = vadd.f32 %v102, %v607
  %v609 = vpop.f32.mrf.mxu0
  %v610 = vpop.f32.mrf.mxu0
  %v611 = vadd.f32 %v102, %v610
  %v612 = vpop.f32.mrf.mxu0
  %613 = vmatprep.mubr.bf16.mxu0 0
  %614 = vmatmul.mubr.bf16.gmra.mxu0 %v371
  %v615 = vpop.f32.mrf.mxu0
  %v616 = vadd.f32 %v102, %v615
  %v617 = vpop.f32.mrf.mxu0
  %v618 = vpop.f32.mrf.mxu0
  %v619 = vadd.f32 %v102, %v618
  %v620 = vpop.f32.mrf.mxu0
  %621 = vmatprep.mubr.bf16.mxu0 0
  %622 = vmatmul.mubr.bf16.gmra.mxu0 %v374
  %v623 = vpop.f32.mrf.mxu0
  %v624 = vadd.f32 %v102, %v623
  %v625 = vpop.f32.mrf.mxu0
  %v626 = vpop.f32.mrf.mxu0
  %v627 = vadd.f32 %v102, %v626
  %v628 = vpop.f32.mrf.mxu0
  %629 = vmatprep.mubr.bf16.mxu0 0
  %630 = vmatmul.mubr.bf16.gmra.mxu0 %v377
  %v631 = vpop.f32.mrf.mxu0
  %v632 = vadd.f32 %v102, %v631
  %v633 = vpop.f32.mrf.mxu0
  %v634 = vpop.f32.mrf.mxu0
  %v635 = vadd.f32 %v102, %v634
  %v636 = vpop.f32.mrf.mxu0
  %637 = vmatprep.mubr.bf16.mxu0 0
  %638 = vmatmul.mubr.bf16.gmra.mxu0 %v380
  %v639 = vpop.f32.mrf.mxu0
  %v640 = vadd.f32 %v102, %v639
  %v641 = vpop.f32.mrf.mxu0
  %v642 = vpop.f32.mrf.mxu0
  %v643 = vadd.f32 %v102, %v642
  %v644 = vpop.f32.mrf.mxu0
  %645 = vmatprep.mubr.bf16.mxu0 0
  %646 = vmatmul.mubr.bf16.gmra.mxu0 %v383
  %v647 = vpop.f32.mrf.mxu0
  %v648 = vadd.f32 %v102, %v647
  %v649 = vpop.f32.mrf.mxu0
  %v650 = vpop.f32.mrf.mxu0
  %v651 = vadd.f32 %v102, %v650
  %v652 = vpop.f32.mrf.mxu0
  %653 = vmatprep.mubr.bf16.mxu0 0
  %654 = vmatmul.mubr.bf16.gmra.mxu0 %v386
  %v655 = vpop.f32.mrf.mxu0
  %v656 = vadd.f32 %v102, %v655
  %v657 = vpop.f32.mrf.mxu0
  %v658 = vpop.f32.mrf.mxu0
  %v659 = vadd.f32 %v102, %v658
  %v660 = vpop.f32.mrf.mxu0
  %661 = vmatprep.mubr.bf16.mxu0 0
  %662 = vmatmul.mubr.bf16.gmra.mxu0 %v389
  %v663 = vpop.f32.mrf.mxu0
  %v664 = vadd.f32 %v102, %v663
  %v665 = vpop.f32.mrf.mxu0
  %v666 = vpop.f32.mrf.mxu0
  %v667 = vadd.f32 %v102, %v666
  %v668 = vpop.f32.mrf.mxu0
  %669 = vmatprep.mubr.bf16.mxu0 0
  %670 = vmatmul.mubr.bf16.gmra.mxu0 %v392
  %v671 = vpop.f32.mrf.mxu0
  %v672 = vadd.f32 %v102, %v671
  %v673 = vpop.f32.mrf.mxu0
  %v674 = vpop.f32.mrf.mxu0
  %v675 = vadd.f32 %v102, %v674
  %v676 = vpop.f32.mrf.mxu0
  %677 = vmatprep.mubr.bf16.mxu0 0
  %678 = vmatmul.mubr.bf16.gmra.mxu0 %v395
  %v679 = vpop.f32.mrf.mxu0
  %v680 = vadd.f32 %v102, %v679
  %v681 = vpop.f32.mrf.mxu0
  %v682 = vpop.f32.mrf.mxu0
  %v683 = vadd.f32 %v102, %v682
  %v684 = vpop.f32.mrf.mxu0
  %685 = vdwg.mxu0
  %vm686 = vcmask 97280
  %v687 = vsel %vm686, %v432, 0.0
  %688 = vadd.xlane.f32.xlu0 %v687
  %v689 = vpop.xlane.xlu0 %688
  %v690 = vsel %vm686, %v435, 0.0
  %691 = vadd.xlane.f32.xlu0 %v690
  %v692 = vpop.xlane.xlu0 %691
  %v693 = vsel %vm686, %v440, 0.0
  %694 = vadd.xlane.f32.xlu0 %v693
  %v695 = vpop.xlane.xlu0 %694
  %v696 = vsel %vm686, %v443, 0.0
  %697 = vadd.xlane.f32.xlu0 %v696
  %v698 = vpop.xlane.xlu0 %697
  %v699 = vsel %vm686, %v448, 0.0
  %700 = vadd.xlane.f32.xlu0 %v699
  %v701 = vpop.xlane.xlu0 %700
  %v702 = vsel %vm686, %v451, 0.0
  %703 = vadd.xlane.f32.xlu0 %v702
  %v704 = vpop.xlane.xlu0 %703
  %v705 = vsel %vm686, %v456, 0.0
  %706 = vadd.xlane.f32.xlu0 %v705
  %v707 = vpop.xlane.xlu0 %706
  %v708 = vsel %vm686, %v459, 0.0
  %709 = vadd.xlane.f32.xlu0 %v708
  %v710 = vpop.xlane.xlu0 %709
  %v711 = vsel %vm686, %v464, 0.0
  %712 = vadd.xlane.f32.xlu0 %v711
  %v713 = vpop.xlane.xlu0 %712
  %v714 = vsel %vm686, %v467, 0.0
  %715 = vadd.xlane.f32.xlu0 %v714
  %v716 = vpop.xlane.xlu0 %715
  %v717 = vsel %vm686, %v472, 0.0
  %718 = vadd.xlane.f32.xlu0 %v717
  %v719 = vpop.xlane.xlu0 %718
  %v720 = vsel %vm686, %v475, 0.0
  %721 = vadd.xlane.f32.xlu0 %v720
  %v722 = vpop.xlane.xlu0 %721
  %v723 = vsel %vm686, %v480, 0.0
  %724 = vadd.xlane.f32.xlu0 %v723
  %v725 = vpop.xlane.xlu0 %724
  %v726 = vsel %vm686, %v483, 0.0
  %727 = vadd.xlane.f32.xlu0 %v726
  %v728 = vpop.xlane.xlu0 %727
  %v729 = vsel %vm686, %v488, 0.0
  %730 = vadd.xlane.f32.xlu0 %v729
  %v731 = vpop.xlane.xlu0 %730
  %v732 = vsel %vm686, %v491, 0.0
  %733 = vadd.xlane.f32.xlu0 %v732
  %v734 = vpop.xlane.xlu0 %733
  %v735 = vsel %vm686, %v496, 0.0
  %736 = vadd.xlane.f32.xlu0 %v735
  %v737 = vpop.xlane.xlu0 %736
  %v738 = vsel %vm686, %v499, 0.0
  %739 = vadd.xlane.f32.xlu0 %v738
  %v740 = vpop.xlane.xlu0 %739
  %v741 = vsel %vm686, %v504, 0.0
  %742 = vadd.xlane.f32.xlu0 %v741
  %v743 = vpop.xlane.xlu0 %742
  %v744 = vsel %vm686, %v507, 0.0
  %745 = vadd.xlane.f32.xlu0 %v744
  %v746 = vpop.xlane.xlu0 %745
  %v747 = vsel %vm686, %v512, 0.0
  %748 = vadd.xlane.f32.xlu0 %v747
  %v749 = vpop.xlane.xlu0 %748
  %v750 = vsel %vm686, %v515, 0.0
  %751 = vadd.xlane.f32.xlu0 %v750
  %v752 = vpop.xlane.xlu0 %751
  %v753 = vsel %vm686, %v520, 0.0
  %754 = vadd.xlane.f32.xlu0 %v753
  %v755 = vpop.xlane.xlu0 %754
  %v756 = vsel %vm686, %v523, 0.0
  %757 = vadd.xlane.f32.xlu0 %v756
  %v758 = vpop.xlane.xlu0 %757
  %v759 = vsel %vm686, %v528, 0.0
  %760 = vadd.xlane.f32.xlu0 %v759
  %v761 = vpop.xlane.xlu0 %760
  %v762 = vsel %vm686, %v531, 0.0
  %763 = vadd.xlane.f32.xlu0 %v762
  %v764 = vpop.xlane.xlu0 %763
  %v765 = vsel %vm686, %v536, 0.0
  %766 = vadd.xlane.f32.xlu0 %v765
  %v767 = vpop.xlane.xlu0 %766
  %v768 = vsel %vm686, %v539, 0.0
  %769 = vadd.xlane.f32.xlu0 %v768
  %v770 = vpop.xlane.xlu0 %769
  %v771 = vsel %vm686, %v544, 0.0
  %772 = vadd.xlane.f32.xlu0 %v771
  %v773 = vpop.xlane.xlu0 %772
  %v774 = vsel %vm686, %v547, 0.0
  %775 = vadd.xlane.f32.xlu0 %v774
  %v776 = vpop.xlane.xlu0 %775
  %v777 = vsel %vm686, %v552, 0.0
  %778 = vadd.xlane.f32.xlu0 %v777
  %v779 = vpop.xlane.xlu0 %778
  %v780 = vsel %vm686, %v555, 0.0
  %781 = vadd.xlane.f32.xlu0 %v780
  %v782 = vpop.xlane.xlu0 %781
  %v783 = vsel %vm686, %v560, 0.0
  %784 = vadd.xlane.f32.xlu0 %v783
  %v785 = vpop.xlane.xlu0 %784
  %v786 = vsel %vm686, %v563, 0.0
  %787 = vadd.xlane.f32.xlu0 %v786
  %v788 = vpop.xlane.xlu0 %787
  %v789 = vsel %vm686, %v568, 0.0
  %790 = vadd.xlane.f32.xlu0 %v789
  %v791 = vpop.xlane.xlu0 %790
  %v792 = vsel %vm686, %v571, 0.0
  %793 = vadd.xlane.f32.xlu0 %v792
  %v794 = vpop.xlane.xlu0 %793
  %v795 = vsel %vm686, %v576, 0.0
  %796 = vadd.xlane.f32.xlu0 %v795
  %v797 = vpop.xlane.xlu0 %796
  %v798 = vsel %vm686, %v579, 0.0
  %799 = vadd.xlane.f32.xlu0 %v798
  %v800 = vpop.xlane.xlu0 %799
  %v801 = vsel %vm686, %v584, 0.0
  %802 = vadd.xlane.f32.xlu0 %v801
  %v803 = vpop.xlane.xlu0 %802
  %v804 = vsel %vm686, %v587, 0.0
  %805 = vadd.xlane.f32.xlu0 %v804
  %v806 = vpop.xlane.xlu0 %805
  %v807 = vsel %vm686, %v592, 0.0
  %808 = vadd.xlane.f32.xlu0 %v807
  %v809 = vpop.xlane.xlu0 %808
  %v810 = vsel %vm686, %v595, 0.0
  %811 = vadd.xlane.f32.xlu0 %v810
  %v812 = vpop.xlane.xlu0 %811
  %v813 = vsel %vm686, %v600, 0.0
  %814 = vadd.xlane.f32.xlu0 %v813
  %v815 = vpop.xlane.xlu0 %814
  %v816 = vsel %vm686, %v603, 0.0
  %817 = vadd.xlane.f32.xlu0 %v816
  %v818 = vpop.xlane.xlu0 %817
  %v819 = vsel %vm686, %v608, 0.0
  %820 = vadd.xlane.f32.xlu0 %v819
  %v821 = vpop.xlane.xlu0 %820
  %v822 = vsel %vm686, %v611, 0.0
  %823 = vadd.xlane.f32.xlu0 %v822
  %v824 = vpop.xlane.xlu0 %823
  %v825 = vsel %vm686, %v616, 0.0
  %826 = vadd.xlane.f32.xlu0 %v825
  %v827 = vpop.xlane.xlu0 %826
  %v828 = vsel %vm686, %v619, 0.0
  %829 = vadd.xlane.f32.xlu0 %v828
  %v830 = vpop.xlane.xlu0 %829
  %v831 = vsel %vm686, %v624, 0.0
  %832 = vadd.xlane.f32.xlu0 %v831
  %v833 = vpop.xlane.xlu0 %832
  %v834 = vsel %vm686, %v627, 0.0
  %835 = vadd.xlane.f32.xlu0 %v834
  %v836 = vpop.xlane.xlu0 %835
  %v837 = vsel %vm686, %v632, 0.0
  %838 = vadd.xlane.f32.xlu0 %v837
  %v839 = vpop.xlane.xlu0 %838
  %v840 = vsel %vm686, %v635, 0.0
  %841 = vadd.xlane.f32.xlu0 %v840
  %v842 = vpop.xlane.xlu0 %841
  %v843 = vsel %vm686, %v640, 0.0
  %844 = vadd.xlane.f32.xlu0 %v843
  %v845 = vpop.xlane.xlu0 %844
  %v846 = vsel %vm686, %v643, 0.0
  %847 = vadd.xlane.f32.xlu0 %v846
  %v848 = vpop.xlane.xlu0 %847
  %v849 = vsel %vm686, %v648, 0.0
  %850 = vadd.xlane.f32.xlu0 %v849
  %v851 = vpop.xlane.xlu0 %850
  %v852 = vsel %vm686, %v651, 0.0
  %853 = vadd.xlane.f32.xlu0 %v852
  %v854 = vpop.xlane.xlu0 %853
  %v855 = vsel %vm686, %v656, 0.0
  %856 = vadd.xlane.f32.xlu0 %v855
  %v857 = vpop.xlane.xlu0 %856
  %v858 = vsel %vm686, %v659, 0.0
  %859 = vadd.xlane.f32.xlu0 %v858
  %v860 = vpop.xlane.xlu0 %859
  %v861 = vsel %vm686, %v664, 0.0
  %862 = vadd.xlane.f32.xlu0 %v861
  %v863 = vpop.xlane.xlu0 %862
  %v864 = vsel %vm686, %v667, 0.0
  %865 = vadd.xlane.f32.xlu0 %v864
  %v866 = vpop.xlane.xlu0 %865
  %v867 = vsel %vm686, %v672, 0.0
  %868 = vadd.xlane.f32.xlu0 %v867
  %v869 = vpop.xlane.xlu0 %868
  %v870 = vsel %vm686, %v675, 0.0
  %871 = vadd.xlane.f32.xlu0 %v870
  %v872 = vpop.xlane.xlu0 %871
  %v873 = vsel %vm686, %v680, 0.0
  %874 = vadd.xlane.f32.xlu0 %v873
  %v875 = vpop.xlane.xlu0 %874
  %v876 = vsel %vm686, %v683, 0.0
  %877 = vadd.xlane.f32.xlu0 %v876
  %v878 = vpop.xlane.xlu0 %877
  %v879 = vrcp.pop 12.0
  %v880 = vmul.f32 %v689, %v879
  %v881 = vmul.f32 %v692, %v879
  %v882 = vmul.f32 %v695, %v879
  %v883 = vmul.f32 %v698, %v879
  %v884 = vmul.f32 %v701, %v879
  %v885 = vmul.f32 %v704, %v879
  %v886 = vmul.f32 %v707, %v879
  %v887 = vmul.f32 %v710, %v879
  %v888 = vmul.f32 %v713, %v879
  %v889 = vmul.f32 %v716, %v879
  %v890 = vmul.f32 %v719, %v879
  %v891 = vmul.f32 %v722, %v879
  %v892 = vmul.f32 %v725, %v879
  %v893 = vmul.f32 %v728, %v879
  %v894 = vmul.f32 %v731, %v879
  %v895 = vmul.f32 %v734, %v879
  %v896 = vmul.f32 %v737, %v879
  %v897 = vmul.f32 %v740, %v879
  %v898 = vmul.f32 %v743, %v879
  %v899 = vmul.f32 %v746, %v879
  %v900 = vmul.f32 %v749, %v879
  %v901 = vmul.f32 %v752, %v879
  %v902 = vmul.f32 %v755, %v879
  %v903 = vmul.f32 %v758, %v879
  %v904 = vmul.f32 %v761, %v879
  %v905 = vmul.f32 %v764, %v879
  %v906 = vmul.f32 %v767, %v879
  %v907 = vmul.f32 %v770, %v879
  %v908 = vmul.f32 %v773, %v879
  %v909 = vmul.f32 %v776, %v879
  %v910 = vmul.f32 %v779, %v879
  %v911 = vmul.f32 %v782, %v879
  %v912 = vmul.f32 %v785, %v879
  %v913 = vmul.f32 %v788, %v879
  %v914 = vmul.f32 %v791, %v879
  %v915 = vmul.f32 %v794, %v879
  %v916 = vmul.f32 %v797, %v879
  %v917 = vmul.f32 %v800, %v879
  %v918 = vmul.f32 %v803, %v879
  %v919 = vmul.f32 %v806, %v879
  %v920 = vmul.f32 %v809, %v879
  %v921 = vmul.f32 %v812, %v879
  %v922 = vmul.f32 %v815, %v879
  %v923 = vmul.f32 %v818, %v879
  %v924 = vmul.f32 %v821, %v879
  %v925 = vmul.f32 %v824, %v879
  %v926 = vmul.f32 %v827, %v879
  %v927 = vmul.f32 %v830, %v879
  %v928 = vmul.f32 %v833, %v879
  %v929 = vmul.f32 %v836, %v879
  %v930 = vmul.f32 %v839, %v879
  %v931 = vmul.f32 %v842, %v879
  %v932 = vmul.f32 %v845, %v879
  %v933 = vmul.f32 %v848, %v879
  %v934 = vmul.f32 %v851, %v879
  %v935 = vmul.f32 %v854, %v879
  %v936 = vmul.f32 %v857, %v879
  %v937 = vmul.f32 %v860, %v879
  %v938 = vmul.f32 %v863, %v879
  %v939 = vmul.f32 %v866, %v879
  %v940 = vmul.f32 %v869, %v879
  %v941 = vmul.f32 %v872, %v879
  %v942 = vmul.f32 %v875, %v879
  %v943 = vmul.f32 %v878, %v879
  %v944 = vsub.f32 %v432, %v880
  %v945 = vsub.f32 %v435, %v881
  %v946 = vsub.f32 %v440, %v882
  %v947 = vsub.f32 %v443, %v883
  %v948 = vsub.f32 %v448, %v884
  %v949 = vsub.f32 %v451, %v885
  %v950 = vsub.f32 %v456, %v886
  %v951 = vsub.f32 %v459, %v887
  %v952 = vsub.f32 %v464, %v888
  %v953 = vsub.f32 %v467, %v889
  %v954 = vsub.f32 %v472, %v890
  %v955 = vsub.f32 %v475, %v891
  %v956 = vsub.f32 %v480, %v892
  %v957 = vsub.f32 %v483, %v893
  %v958 = vsub.f32 %v488, %v894
  %v959 = vsub.f32 %v491, %v895
  %v960 = vsub.f32 %v496, %v896
  %v961 = vsub.f32 %v499, %v897
  %v962 = vsub.f32 %v504, %v898
  %v963 = vsub.f32 %v507, %v899
  %v964 = vsub.f32 %v512, %v900
  %v965 = vsub.f32 %v515, %v901
  %v966 = vsub.f32 %v520, %v902
  %v967 = vsub.f32 %v523, %v903
  %v968 = vsub.f32 %v528, %v904
  %v969 = vsub.f32 %v531, %v905
  %v970 = vsub.f32 %v536, %v906
  %v971 = vsub.f32 %v539, %v907
  %v972 = vsub.f32 %v544, %v908
  %v973 = vsub.f32 %v547, %v909
  %v974 = vsub.f32 %v552, %v910
  %v975 = vsub.f32 %v555, %v911
  %v976 = vsub.f32 %v560, %v912
  %v977 = vsub.f32 %v563, %v913
  %v978 = vsub.f32 %v568, %v914
  %v979 = vsub.f32 %v571, %v915
  %v980 = vsub.f32 %v576, %v916
  %v981 = vsub.f32 %v579, %v917
  %v982 = vsub.f32 %v584, %v918
  %v983 = vsub.f32 %v587, %v919
  %v984 = vsub.f32 %v592, %v920
  %v985 = vsub.f32 %v595, %v921
  %v986 = vsub.f32 %v600, %v922
  %v987 = vsub.f32 %v603, %v923
  %v988 = vsub.f32 %v608, %v924
  %v989 = vsub.f32 %v611, %v925
  %v990 = vsub.f32 %v616, %v926
  %v991 = vsub.f32 %v619, %v927
  %v992 = vsub.f32 %v624, %v928
  %v993 = vsub.f32 %v627, %v929
  %v994 = vsub.f32 %v632, %v930
  %v995 = vsub.f32 %v635, %v931
  %v996 = vsub.f32 %v640, %v932
  %v997 = vsub.f32 %v643, %v933
  %v998 = vsub.f32 %v648, %v934
  %v999 = vsub.f32 %v651, %v935
  %v1000 = vsub.f32 %v656, %v936
  %v1001 = vsub.f32 %v659, %v937
  %v1002 = vsub.f32 %v664, %v938
  %v1003 = vsub.f32 %v667, %v939
  %v1004 = vsub.f32 %v672, %v940
  %v1005 = vsub.f32 %v675, %v941
  %v1006 = vsub.f32 %v680, %v942
  %v1007 = vsub.f32 %v683, %v943
  %v1008 = vmul.f32 %v944, %v944
  %v1009 = vmul.f32 %v945, %v945
  %v1010 = vmul.f32 %v946, %v946
  %v1011 = vmul.f32 %v947, %v947
  %v1012 = vmul.f32 %v948, %v948
  %v1013 = vmul.f32 %v949, %v949
  %v1014 = vmul.f32 %v950, %v950
  %v1015 = vmul.f32 %v951, %v951
  %v1016 = vmul.f32 %v952, %v952
  %v1017 = vmul.f32 %v953, %v953
  %v1018 = vmul.f32 %v954, %v954
  %v1019 = vmul.f32 %v955, %v955
  %v1020 = vmul.f32 %v956, %v956
  %v1021 = vmul.f32 %v957, %v957
  %v1022 = vmul.f32 %v958, %v958
  %v1023 = vmul.f32 %v959, %v959
  %v1024 = vmul.f32 %v960, %v960
  %v1025 = vmul.f32 %v961, %v961
  %v1026 = vmul.f32 %v962, %v962
  %v1027 = vmul.f32 %v963, %v963
  %v1028 = vmul.f32 %v964, %v964
  %v1029 = vmul.f32 %v965, %v965
  %v1030 = vmul.f32 %v966, %v966
  %v1031 = vmul.f32 %v967, %v967
  %v1032 = vmul.f32 %v968, %v968
  %v1033 = vmul.f32 %v969, %v969
  %v1034 = vmul.f32 %v970, %v970
  %v1035 = vmul.f32 %v971, %v971
  %v1036 = vmul.f32 %v972, %v972
  %v1037 = vmul.f32 %v973, %v973
  %v1038 = vmul.f32 %v974, %v974
  %v1039 = vmul.f32 %v975, %v975
  %v1040 = vmul.f32 %v976, %v976
  %v1041 = vmul.f32 %v977, %v977
  %v1042 = vmul.f32 %v978, %v978
  %v1043 = vmul.f32 %v979, %v979
  %v1044 = vmul.f32 %v980, %v980
  %v1045 = vmul.f32 %v981, %v981
  %v1046 = vmul.f32 %v982, %v982
  %v1047 = vmul.f32 %v983, %v983
  %v1048 = vmul.f32 %v984, %v984
  %v1049 = vmul.f32 %v985, %v985
  %v1050 = vmul.f32 %v986, %v986
  %v1051 = vmul.f32 %v987, %v987
  %v1052 = vmul.f32 %v988, %v988
  %v1053 = vmul.f32 %v989, %v989
  %v1054 = vmul.f32 %v990, %v990
  %v1055 = vmul.f32 %v991, %v991
  %v1056 = vmul.f32 %v992, %v992
  %v1057 = vmul.f32 %v993, %v993
  %v1058 = vmul.f32 %v994, %v994
  %v1059 = vmul.f32 %v995, %v995
  %v1060 = vmul.f32 %v996, %v996
  %v1061 = vmul.f32 %v997, %v997
  %v1062 = vmul.f32 %v998, %v998
  %v1063 = vmul.f32 %v999, %v999
  %v1064 = vmul.f32 %v1000, %v1000
  %v1065 = vmul.f32 %v1001, %v1001
  %v1066 = vmul.f32 %v1002, %v1002
  %v1067 = vmul.f32 %v1003, %v1003
  %v1068 = vmul.f32 %v1004, %v1004
  %v1069 = vmul.f32 %v1005, %v1005
  %v1070 = vmul.f32 %v1006, %v1006
  %v1071 = vmul.f32 %v1007, %v1007
  %v1072 = vsel %vm686, %v1008, 0.0
  %1073 = vadd.xlane.f32.xlu0 %v1072
  %v1074 = vpop.xlane.xlu0 %1073
  %v1075 = vsel %vm686, %v1009, 0.0
  %1076 = vadd.xlane.f32.xlu0 %v1075
  %v1077 = vpop.xlane.xlu0 %1076
  %v1078 = vsel %vm686, %v1010, 0.0
  %1079 = vadd.xlane.f32.xlu0 %v1078
  %v1080 = vpop.xlane.xlu0 %1079
  %v1081 = vsel %vm686, %v1011, 0.0
  %1082 = vadd.xlane.f32.xlu0 %v1081
  %v1083 = vpop.xlane.xlu0 %1082
  %v1084 = vsel %vm686, %v1012, 0.0
  %1085 = vadd.xlane.f32.xlu0 %v1084
  %v1086 = vpop.xlane.xlu0 %1085
  %v1087 = vsel %vm686, %v1013, 0.0
  %1088 = vadd.xlane.f32.xlu0 %v1087
  %v1089 = vpop.xlane.xlu0 %1088
  %v1090 = vsel %vm686, %v1014, 0.0
  %1091 = vadd.xlane.f32.xlu0 %v1090
  %v1092 = vpop.xlane.xlu0 %1091
  %v1093 = vsel %vm686, %v1015, 0.0
  %1094 = vadd.xlane.f32.xlu0 %v1093
  %v1095 = vpop.xlane.xlu0 %1094
  %v1096 = vsel %vm686, %v1016, 0.0
  %1097 = vadd.xlane.f32.xlu0 %v1096
  %v1098 = vpop.xlane.xlu0 %1097
  %v1099 = vsel %vm686, %v1017, 0.0
  %1100 = vadd.xlane.f32.xlu0 %v1099
  %v1101 = vpop.xlane.xlu0 %1100
  %v1102 = vsel %vm686, %v1018, 0.0
  %1103 = vadd.xlane.f32.xlu0 %v1102
  %v1104 = vpop.xlane.xlu0 %1103
  %v1105 = vsel %vm686, %v1019, 0.0
  %1106 = vadd.xlane.f32.xlu0 %v1105
  %v1107 = vpop.xlane.xlu0 %1106
  %v1108 = vsel %vm686, %v1020, 0.0
  %1109 = vadd.xlane.f32.xlu0 %v1108
  %v1110 = vpop.xlane.xlu0 %1109
  %v1111 = vsel %vm686, %v1021, 0.0
  %1112 = vadd.xlane.f32.xlu0 %v1111
  %v1113 = vpop.xlane.xlu0 %1112
  %v1114 = vsel %vm686, %v1022, 0.0
  %1115 = vadd.xlane.f32.xlu0 %v1114
  %v1116 = vpop.xlane.xlu0 %1115
  %v1117 = vsel %vm686, %v1023, 0.0
  %1118 = vadd.xlane.f32.xlu0 %v1117
  %v1119 = vpop.xlane.xlu0 %1118
  %v1120 = vsel %vm686, %v1024, 0.0
  %1121 = vadd.xlane.f32.xlu0 %v1120
  %v1122 = vpop.xlane.xlu0 %1121
  %v1123 = vsel %vm686, %v1025, 0.0
  %1124 = vadd.xlane.f32.xlu0 %v1123
  %v1125 = vpop.xlane.xlu0 %1124
  %v1126 = vsel %vm686, %v1026, 0.0
  %1127 = vadd.xlane.f32.xlu0 %v1126
  %v1128 = vpop.xlane.xlu0 %1127
  %v1129 = vsel %vm686, %v1027, 0.0
  %1130 = vadd.xlane.f32.xlu0 %v1129
  %v1131 = vpop.xlane.xlu0 %1130
  %v1132 = vsel %vm686, %v1028, 0.0
  %1133 = vadd.xlane.f32.xlu0 %v1132
  %v1134 = vpop.xlane.xlu0 %1133
  %v1135 = vsel %vm686, %v1029, 0.0
  %1136 = vadd.xlane.f32.xlu0 %v1135
  %v1137 = vpop.xlane.xlu0 %1136
  %v1138 = vsel %vm686, %v1030, 0.0
  %1139 = vadd.xlane.f32.xlu0 %v1138
  %v1140 = vpop.xlane.xlu0 %1139
  %v1141 = vsel %vm686, %v1031, 0.0
  %1142 = vadd.xlane.f32.xlu0 %v1141
  %v1143 = vpop.xlane.xlu0 %1142
  %v1144 = vsel %vm686, %v1032, 0.0
  %1145 = vadd.xlane.f32.xlu0 %v1144
  %v1146 = vpop.xlane.xlu0 %1145
  %v1147 = vsel %vm686, %v1033, 0.0
  %1148 = vadd.xlane.f32.xlu0 %v1147
  %v1149 = vpop.xlane.xlu0 %1148
  %v1150 = vsel %vm686, %v1034, 0.0
  %1151 = vadd.xlane.f32.xlu0 %v1150
  %v1152 = vpop.xlane.xlu0 %1151
  %v1153 = vsel %vm686, %v1035, 0.0
  %1154 = vadd.xlane.f32.xlu0 %v1153
  %v1155 = vpop.xlane.xlu0 %1154
  %v1156 = vsel %vm686, %v1036, 0.0
  %1157 = vadd.xlane.f32.xlu0 %v1156
  %v1158 = vpop.xlane.xlu0 %1157
  %v1159 = vsel %vm686, %v1037, 0.0
  %1160 = vadd.xlane.f32.xlu0 %v1159
  %v1161 = vpop.xlane.xlu0 %1160
  %v1162 = vsel %vm686, %v1038, 0.0
  %1163 = vadd.xlane.f32.xlu0 %v1162
  %v1164 = vpop.xlane.xlu0 %1163
  %v1165 = vsel %vm686, %v1039, 0.0
  %1166 = vadd.xlane.f32.xlu0 %v1165
  %v1167 = vpop.xlane.xlu0 %1166
  %v1168 = vsel %vm686, %v1040, 0.0
  %1169 = vadd.xlane.f32.xlu0 %v1168
  %v1170 = vpop.xlane.xlu0 %1169
  %v1171 = vsel %vm686, %v1041, 0.0
  %1172 = vadd.xlane.f32.xlu0 %v1171
  %v1173 = vpop.xlane.xlu0 %1172
  %v1174 = vsel %vm686, %v1042, 0.0
  %1175 = vadd.xlane.f32.xlu0 %v1174
  %v1176 = vpop.xlane.xlu0 %1175
  %v1177 = vsel %vm686, %v1043, 0.0
  %1178 = vadd.xlane.f32.xlu0 %v1177
  %v1179 = vpop.xlane.xlu0 %1178
  %v1180 = vsel %vm686, %v1044, 0.0
  %1181 = vadd.xlane.f32.xlu0 %v1180
  %v1182 = vpop.xlane.xlu0 %1181
  %v1183 = vsel %vm686, %v1045, 0.0
  %1184 = vadd.xlane.f32.xlu0 %v1183
  %v1185 = vpop.xlane.xlu0 %1184
  %v1186 = vsel %vm686, %v1046, 0.0
  %1187 = vadd.xlane.f32.xlu0 %v1186
  %v1188 = vpop.xlane.xlu0 %1187
  %v1189 = vsel %vm686, %v1047, 0.0
  %1190 = vadd.xlane.f32.xlu0 %v1189
  %v1191 = vpop.xlane.xlu0 %1190
  %v1192 = vsel %vm686, %v1048, 0.0
  %1193 = vadd.xlane.f32.xlu0 %v1192
  %v1194 = vpop.xlane.xlu0 %1193
  %v1195 = vsel %vm686, %v1049, 0.0
  %1196 = vadd.xlane.f32.xlu0 %v1195
  %v1197 = vpop.xlane.xlu0 %1196
  %v1198 = vsel %vm686, %v1050, 0.0
  %1199 = vadd.xlane.f32.xlu0 %v1198
  %v1200 = vpop.xlane.xlu0 %1199
  %v1201 = vsel %vm686, %v1051, 0.0
  %1202 = vadd.xlane.f32.xlu0 %v1201
  %v1203 = vpop.xlane.xlu0 %1202
  %v1204 = vsel %vm686, %v1052, 0.0
  %1205 = vadd.xlane.f32.xlu0 %v1204
  %v1206 = vpop.xlane.xlu0 %1205
  %v1207 = vsel %vm686, %v1053, 0.0
  %1208 = vadd.xlane.f32.xlu0 %v1207
  %v1209 = vpop.xlane.xlu0 %1208
  %v1210 = vsel %vm686, %v1054, 0.0
  %1211 = vadd.xlane.f32.xlu0 %v1210
  %v1212 = vpop.xlane.xlu0 %1211
  %v1213 = vsel %vm686, %v1055, 0.0
  %1214 = vadd.xlane.f32.xlu0 %v1213
  %v1215 = vpop.xlane.xlu0 %1214
  %v1216 = vsel %vm686, %v1056, 0.0
  %1217 = vadd.xlane.f32.xlu0 %v1216
  %v1218 = vpop.xlane.xlu0 %1217
  %v1219 = vsel %vm686, %v1057, 0.0
  %1220 = vadd.xlane.f32.xlu0 %v1219
  %v1221 = vpop.xlane.xlu0 %1220
  %v1222 = vsel %vm686, %v1058, 0.0
  %1223 = vadd.xlane.f32.xlu0 %v1222
  %v1224 = vpop.xlane.xlu0 %1223
  %v1225 = vsel %vm686, %v1059, 0.0
  %1226 = vadd.xlane.f32.xlu0 %v1225
  %v1227 = vpop.xlane.xlu0 %1226
  %v1228 = vsel %vm686, %v1060, 0.0
  %1229 = vadd.xlane.f32.xlu0 %v1228
  %v1230 = vpop.xlane.xlu0 %1229
  %v1231 = vsel %vm686, %v1061, 0.0
  %1232 = vadd.xlane.f32.xlu0 %v1231
  %v1233 = vpop.xlane.xlu0 %1232
  %v1234 = vsel %vm686, %v1062, 0.0
  %1235 = vadd.xlane.f32.xlu0 %v1234
  %v1236 = vpop.xlane.xlu0 %1235
  %v1237 = vsel %vm686, %v1063, 0.0
  %1238 = vadd.xlane.f32.xlu0 %v1237
  %v1239 = vpop.xlane.xlu0 %1238
  %v1240 = vsel %vm686, %v1064, 0.0
  %1241 = vadd.xlane.f32.xlu0 %v1240
  %v1242 = vpop.xlane.xlu0 %1241
  %v1243 = vsel %vm686, %v1065, 0.0
  %1244 = vadd.xlane.f32.xlu0 %v1243
  %v1245 = vpop.xlane.xlu0 %1244
  %v1246 = vsel %vm686, %v1066, 0.0
  %1247 = vadd.xlane.f32.xlu0 %v1246
  %v1248 = vpop.xlane.xlu0 %1247
  %v1249 = vsel %vm686, %v1067, 0.0
  %1250 = vadd.xlane.f32.xlu0 %v1249
  %v1251 = vpop.xlane.xlu0 %1250
  %v1252 = vsel %vm686, %v1068, 0.0
  %1253 = vadd.xlane.f32.xlu0 %v1252
  %v1254 = vpop.xlane.xlu0 %1253
  %v1255 = vsel %vm686, %v1069, 0.0
  %1256 = vadd.xlane.f32.xlu0 %v1255
  %v1257 = vpop.xlane.xlu0 %1256
  %v1258 = vsel %vm686, %v1070, 0.0
  %1259 = vadd.xlane.f32.xlu0 %v1258
  %v1260 = vpop.xlane.xlu0 %1259
  %v1261 = vsel %vm686, %v1071, 0.0
  %1262 = vadd.xlane.f32.xlu0 %v1261
  %v1263 = vpop.xlane.xlu0 %1262
  %v1264 = vmul.f32 %v1074, %v879
  %v1265 = vmul.f32 %v1077, %v879
  %v1266 = vmul.f32 %v1080, %v879
  %v1267 = vmul.f32 %v1083, %v879
  %v1268 = vmul.f32 %v1086, %v879
  %v1269 = vmul.f32 %v1089, %v879
  %v1270 = vmul.f32 %v1092, %v879
  %v1271 = vmul.f32 %v1095, %v879
  %v1272 = vmul.f32 %v1098, %v879
  %v1273 = vmul.f32 %v1101, %v879
  %v1274 = vmul.f32 %v1104, %v879
  %v1275 = vmul.f32 %v1107, %v879
  %v1276 = vmul.f32 %v1110, %v879
  %v1277 = vmul.f32 %v1113, %v879
  %v1278 = vmul.f32 %v1116, %v879
  %v1279 = vmul.f32 %v1119, %v879
  %v1280 = vmul.f32 %v1122, %v879
  %v1281 = vmul.f32 %v1125, %v879
  %v1282 = vmul.f32 %v1128, %v879
  %v1283 = vmul.f32 %v1131, %v879
  %v1284 = vmul.f32 %v1134, %v879
  %v1285 = vmul.f32 %v1137, %v879
  %v1286 = vmul.f32 %v1140, %v879
  %v1287 = vmul.f32 %v1143, %v879
  %v1288 = vmul.f32 %v1146, %v879
  %v1289 = vmul.f32 %v1149, %v879
  %v1290 = vmul.f32 %v1152, %v879
  %v1291 = vmul.f32 %v1155, %v879
  %v1292 = vmul.f32 %v1158, %v879
  %v1293 = vmul.f32 %v1161, %v879
  %v1294 = vmul.f32 %v1164, %v879
  %v1295 = vmul.f32 %v1167, %v879
  %v1296 = vmul.f32 %v1170, %v879
  %v1297 = vmul.f32 %v1173, %v879
  %v1298 = vmul.f32 %v1176, %v879
  %v1299 = vmul.f32 %v1179, %v879
  %v1300 = vmul.f32 %v1182, %v879
  %v1301 = vmul.f32 %v1185, %v879
  %v1302 = vmul.f32 %v1188, %v879
  %v1303 = vmul.f32 %v1191, %v879
  %v1304 = vmul.f32 %v1194, %v879
  %v1305 = vmul.f32 %v1197, %v879
  %v1306 = vmul.f32 %v1200, %v879
  %v1307 = vmul.f32 %v1203, %v879
  %v1308 = vmul.f32 %v1206, %v879
  %v1309 = vmul.f32 %v1209, %v879
  %v1310 = vmul.f32 %v1212, %v879
  %v1311 = vmul.f32 %v1215, %v879
  %v1312 = vmul.f32 %v1218, %v879
  %v1313 = vmul.f32 %v1221, %v879
  %v1314 = vmul.f32 %v1224, %v879
  %v1315 = vmul.f32 %v1227, %v879
  %v1316 = vmul.f32 %v1230, %v879
  %v1317 = vmul.f32 %v1233, %v879
  %v1318 = vmul.f32 %v1236, %v879
  %v1319 = vmul.f32 %v1239, %v879
  %v1320 = vmul.f32 %v1242, %v879
  %v1321 = vmul.f32 %v1245, %v879
  %v1322 = vmul.f32 %v1248, %v879
  %v1323 = vmul.f32 %v1251, %v879
  %v1324 = vmul.f32 %v1254, %v879
  %v1325 = vmul.f32 %v1257, %v879
  %v1326 = vmul.f32 %v1260, %v879
  %v1327 = vmul.f32 %v1263, %v879
  %v1328 = vadd.f32 %v1264, 1e-05
  %v1329 = vadd.f32 %v1265, 1e-05
  %v1330 = vadd.f32 %v1266, 1e-05
  %v1331 = vadd.f32 %v1267, 1e-05
  %v1332 = vadd.f32 %v1268, 1e-05
  %v1333 = vadd.f32 %v1269, 1e-05
  %v1334 = vadd.f32 %v1270, 1e-05
  %v1335 = vadd.f32 %v1271, 1e-05
  %v1336 = vadd.f32 %v1272, 1e-05
  %v1337 = vadd.f32 %v1273, 1e-05
  %v1338 = vadd.f32 %v1274, 1e-05
  %v1339 = vadd.f32 %v1275, 1e-05
  %v1340 = vadd.f32 %v1276, 1e-05
  %v1341 = vadd.f32 %v1277, 1e-05
  %v1342 = vadd.f32 %v1278, 1e-05
  %v1343 = vadd.f32 %v1279, 1e-05
  %v1344 = vadd.f32 %v1280, 1e-05
  %v1345 = vadd.f32 %v1281, 1e-05
  %v1346 = vadd.f32 %v1282, 1e-05
  %v1347 = vadd.f32 %v1283, 1e-05
  %v1348 = vadd.f32 %v1284, 1e-05
  %v1349 = vadd.f32 %v1285, 1e-05
  %v1350 = vadd.f32 %v1286, 1e-05
  %v1351 = vadd.f32 %v1287, 1e-05
  %v1352 = vadd.f32 %v1288, 1e-05
  %v1353 = vadd.f32 %v1289, 1e-05
  %v1354 = vadd.f32 %v1290, 1e-05
  %v1355 = vadd.f32 %v1291, 1e-05
  %v1356 = vadd.f32 %v1292, 1e-05
  %v1357 = vadd.f32 %v1293, 1e-05
  %v1358 = vadd.f32 %v1294, 1e-05
  %v1359 = vadd.f32 %v1295, 1e-05
  %v1360 = vadd.f32 %v1296, 1e-05
  %v1361 = vadd.f32 %v1297, 1e-05
  %v1362 = vadd.f32 %v1298, 1e-05
  %v1363 = vadd.f32 %v1299, 1e-05
  %v1364 = vadd.f32 %v1300, 1e-05
  %v1365 = vadd.f32 %v1301, 1e-05
  %v1366 = vadd.f32 %v1302, 1e-05
  %v1367 = vadd.f32 %v1303, 1e-05
  %v1368 = vadd.f32 %v1304, 1e-05
  %v1369 = vadd.f32 %v1305, 1e-05
  %v1370 = vadd.f32 %v1306, 1e-05
  %v1371 = vadd.f32 %v1307, 1e-05
  %v1372 = vadd.f32 %v1308, 1e-05
  %v1373 = vadd.f32 %v1309, 1e-05
  %v1374 = vadd.f32 %v1310, 1e-05
  %v1375 = vadd.f32 %v1311, 1e-05
  %v1376 = vadd.f32 %v1312, 1e-05
  %v1377 = vadd.f32 %v1313, 1e-05
  %v1378 = vadd.f32 %v1314, 1e-05
  %v1379 = vadd.f32 %v1315, 1e-05
  %v1380 = vadd.f32 %v1316, 1e-05
  %v1381 = vadd.f32 %v1317, 1e-05
  %v1382 = vadd.f32 %v1318, 1e-05
  %v1383 = vadd.f32 %v1319, 1e-05
  %v1384 = vadd.f32 %v1320, 1e-05
  %v1385 = vadd.f32 %v1321, 1e-05
  %v1386 = vadd.f32 %v1322, 1e-05
  %v1387 = vadd.f32 %v1323, 1e-05
  %v1388 = vadd.f32 %v1324, 1e-05
  %v1389 = vadd.f32 %v1325, 1e-05
  %v1390 = vadd.f32 %v1326, 1e-05
  %v1391 = vadd.f32 %v1327, 1e-05
  %v1392 = vrsqrt.pop %v1328
  %v1393 = vrsqrt.pop %v1329
  %v1394 = vrsqrt.pop %v1330
  %v1395 = vrsqrt.pop %v1331
  %v1396 = vrsqrt.pop %v1332
  %v1397 = vrsqrt.pop %v1333
  %v1398 = vrsqrt.pop %v1334
  %v1399 = vrsqrt.pop %v1335
  %v1400 = vrsqrt.pop %v1336
  %v1401 = vrsqrt.pop %v1337
  %v1402 = vrsqrt.pop %v1338
  %v1403 = vrsqrt.pop %v1339
  %v1404 = vrsqrt.pop %v1340
  %v1405 = vrsqrt.pop %v1341
  %v1406 = vrsqrt.pop %v1342
  %v1407 = vrsqrt.pop %v1343
  %v1408 = vrsqrt.pop %v1344
  %v1409 = vrsqrt.pop %v1345
  %v1410 = vrsqrt.pop %v1346
  %v1411 = vrsqrt.pop %v1347
  %v1412 = vrsqrt.pop %v1348
  %v1413 = vrsqrt.pop %v1349
  %v1414 = vrsqrt.pop %v1350
  %v1415 = vrsqrt.pop %v1351
  %v1416 = vrsqrt.pop %v1352
  %v1417 = vrsqrt.pop %v1353
  %v1418 = vrsqrt.pop %v1354
  %v1419 = vrsqrt.pop %v1355
  %v1420 = vrsqrt.pop %v1356
  %v1421 = vrsqrt.pop %v1357
  %v1422 = vrsqrt.pop %v1358
  %v1423 = vrsqrt.pop %v1359
  %v1424 = vrsqrt.pop %v1360
  %v1425 = vrsqrt.pop %v1361
  %v1426 = vrsqrt.pop %v1362
  %v1427 = vrsqrt.pop %v1363
  %v1428 = vrsqrt.pop %v1364
  %v1429 = vrsqrt.pop %v1365
  %v1430 = vrsqrt.pop %v1366
  %v1431 = vrsqrt.pop %v1367
  %v1432 = vrsqrt.pop %v1368
  %v1433 = vrsqrt.pop %v1369
  %v1434 = vrsqrt.pop %v1370
  %v1435 = vrsqrt.pop %v1371
  %v1436 = vrsqrt.pop %v1372
  %v1437 = vrsqrt.pop %v1373
  %v1438 = vrsqrt.pop %v1374
  %v1439 = vrsqrt.pop %v1375
  %v1440 = vrsqrt.pop %v1376
  %v1441 = vrsqrt.pop %v1377
  %v1442 = vrsqrt.pop %v1378
  %v1443 = vrsqrt.pop %v1379
  %v1444 = vrsqrt.pop %v1380
  %v1445 = vrsqrt.pop %v1381
  %v1446 = vrsqrt.pop %v1382
  %v1447 = vrsqrt.pop %v1383
  %v1448 = vrsqrt.pop %v1384
  %v1449 = vrsqrt.pop %v1385
  %v1450 = vrsqrt.pop %v1386
  %v1451 = vrsqrt.pop %v1387
  %v1452 = vrsqrt.pop %v1388
  %v1453 = vrsqrt.pop %v1389
  %v1454 = vrsqrt.pop %v1390
  %v1455 = vrsqrt.pop %v1391
  %v1456 = vmul.f32 %v944, %v1392
  %v1457 = vmul.f32 %v945, %v1393
  %v1458 = vmul.f32 %v946, %v1394
  %v1459 = vmul.f32 %v947, %v1395
  %v1460 = vmul.f32 %v948, %v1396
  %v1461 = vmul.f32 %v949, %v1397
  %v1462 = vmul.f32 %v950, %v1398
  %v1463 = vmul.f32 %v951, %v1399
  %v1464 = vmul.f32 %v952, %v1400
  %v1465 = vmul.f32 %v953, %v1401
  %v1466 = vmul.f32 %v954, %v1402
  %v1467 = vmul.f32 %v955, %v1403
  %v1468 = vmul.f32 %v956, %v1404
  %v1469 = vmul.f32 %v957, %v1405
  %v1470 = vmul.f32 %v958, %v1406
  %v1471 = vmul.f32 %v959, %v1407
  %v1472 = vmul.f32 %v960, %v1408
  %v1473 = vmul.f32 %v961, %v1409
  %v1474 = vmul.f32 %v962, %v1410
  %v1475 = vmul.f32 %v963, %v1411
  %v1476 = vmul.f32 %v964, %v1412
  %v1477 = vmul.f32 %v965, %v1413
  %v1478 = vmul.f32 %v966, %v1414
  %v1479 = vmul.f32 %v967, %v1415
  %v1480 = vmul.f32 %v968, %v1416
  %v1481 = vmul.f32 %v969, %v1417
  %v1482 = vmul.f32 %v970, %v1418
  %v1483 = vmul.f32 %v971, %v1419
  %v1484 = vmul.f32 %v972, %v1420
  %v1485 = vmul.f32 %v973, %v1421
  %v1486 = vmul.f32 %v974, %v1422
  %v1487 = vmul.f32 %v975, %v1423
  %v1488 = vmul.f32 %v976, %v1424
  %v1489 = vmul.f32 %v977, %v1425
  %v1490 = vmul.f32 %v978, %v1426
  %v1491 = vmul.f32 %v979, %v1427
  %v1492 = vmul.f32 %v980, %v1428
  %v1493 = vmul.f32 %v981, %v1429
  %v1494 = vmul.f32 %v982, %v1430
  %v1495 = vmul.f32 %v983, %v1431
  %v1496 = vmul.f32 %v984, %v1432
  %v1497 = vmul.f32 %v985, %v1433
  %v1498 = vmul.f32 %v986, %v1434
  %v1499 = vmul.f32 %v987, %v1435
  %v1500 = vmul.f32 %v988, %v1436
  %v1501 = vmul.f32 %v989, %v1437
  %v1502 = vmul.f32 %v990, %v1438
  %v1503 = vmul.f32 %v991, %v1439
  %v1504 = vmul.f32 %v992, %v1440
  %v1505 = vmul.f32 %v993, %v1441
  %v1506 = vmul.f32 %v994, %v1442
  %v1507 = vmul.f32 %v995, %v1443
  %v1508 = vmul.f32 %v996, %v1444
  %v1509 = vmul.f32 %v997, %v1445
  %v1510 = vmul.f32 %v998, %v1446
  %v1511 = vmul.f32 %v999, %v1447
  %v1512 = vmul.f32 %v1000, %v1448
  %v1513 = vmul.f32 %v1001, %v1449
  %v1514 = vmul.f32 %v1002, %v1450
  %v1515 = vmul.f32 %v1003, %v1451
  %v1516 = vmul.f32 %v1004, %v1452
  %v1517 = vmul.f32 %v1005, %v1453
  %v1518 = vmul.f32 %v1006, %v1454
  %v1519 = vmul.f32 %v1007, %v1455
  %v1520 = vld [vmem:[%s3] sm:$0x1]
  %v1522 = vlaneseq
  %v1523 = vshrl.u32 %v1522, 7
  %v1524 = vsub.s32 0, %v1523
  %v1525 = vrot.slane %v1520, %v1524
  %v1527 = vmul.f32 %v1456, %v1525
  %v1528 = vmul.f32 %v1457, %v1525
  %v1529 = vmul.f32 %v1458, %v1525
  %v1530 = vmul.f32 %v1459, %v1525
  %v1531 = vmul.f32 %v1460, %v1525
  %v1532 = vmul.f32 %v1461, %v1525
  %v1533 = vmul.f32 %v1462, %v1525
  %v1534 = vmul.f32 %v1463, %v1525
  %v1535 = vmul.f32 %v1464, %v1525
  %v1536 = vmul.f32 %v1465, %v1525
  %v1537 = vmul.f32 %v1466, %v1525
  %v1538 = vmul.f32 %v1467, %v1525
  %v1539 = vmul.f32 %v1468, %v1525
  %v1540 = vmul.f32 %v1469, %v1525
  %v1541 = vmul.f32 %v1470, %v1525
  %v1542 = vmul.f32 %v1471, %v1525
  %v1543 = vmul.f32 %v1472, %v1525
  %v1544 = vmul.f32 %v1473, %v1525
  %v1545 = vmul.f32 %v1474, %v1525
  %v1546 = vmul.f32 %v1475, %v1525
  %v1547 = vmul.f32 %v1476, %v1525
  %v1548 = vmul.f32 %v1477, %v1525
  %v1549 = vmul.f32 %v1478, %v1525
  %v1550 = vmul.f32 %v1479, %v1525
  %v1551 = vmul.f32 %v1480, %v1525
  %v1552 = vmul.f32 %v1481, %v1525
  %v1553 = vmul.f32 %v1482, %v1525
  %v1554 = vmul.f32 %v1483, %v1525
  %v1555 = vmul.f32 %v1484, %v1525
  %v1556 = vmul.f32 %v1485, %v1525
  %v1557 = vmul.f32 %v1486, %v1525
  %v1558 = vmul.f32 %v1487, %v1525
  %v1559 = vmul.f32 %v1488, %v1525
  %v1560 = vmul.f32 %v1489, %v1525
  %v1561 = vmul.f32 %v1490, %v1525
  %v1562 = vmul.f32 %v1491, %v1525
  %v1563 = vmul.f32 %v1492, %v1525
  %v1564 = vmul.f32 %v1493, %v1525
  %v1565 = vmul.f32 %v1494, %v1525
  %v1566 = vmul.f32 %v1495, %v1525
  %v1567 = vmul.f32 %v1496, %v1525
  %v1568 = vmul.f32 %v1497, %v1525
  %v1569 = vmul.f32 %v1498, %v1525
  %v1570 = vmul.f32 %v1499, %v1525
  %v1571 = vmul.f32 %v1500, %v1525
  %v1572 = vmul.f32 %v1501, %v1525
  %v1573 = vmul.f32 %v1502, %v1525
  %v1574 = vmul.f32 %v1503, %v1525
  %v1575 = vmul.f32 %v1504, %v1525
  %v1576 = vmul.f32 %v1505, %v1525
  %v1577 = vmul.f32 %v1506, %v1525
  %v1578 = vmul.f32 %v1507, %v1525
  %v1579 = vmul.f32 %v1508, %v1525
  %v1580 = vmul.f32 %v1509, %v1525
  %v1581 = vmul.f32 %v1510, %v1525
  %v1582 = vmul.f32 %v1511, %v1525
  %v1583 = vmul.f32 %v1512, %v1525
  %v1584 = vmul.f32 %v1513, %v1525
  %v1585 = vmul.f32 %v1514, %v1525
  %v1586 = vmul.f32 %v1515, %v1525
  %v1587 = vmul.f32 %v1516, %v1525
  %v1588 = vmul.f32 %v1517, %v1525
  %v1589 = vmul.f32 %v1518, %v1525
  %v1590 = vmul.f32 %v1519, %v1525
  %v1591 = vld [vmem:[%s4] sm:$0x1]
  %v1593 = vlaneseq
  %v1594 = vshrl.u32 %v1593, 7
  %v1595 = vsub.s32 0, %v1594
  %v1596 = vrot.slane %v1591, %v1595
  %v1598 = vadd.f32 %v1527, %v1596
  %v1599 = vadd.f32 %v1528, %v1596
  %v1600 = vadd.f32 %v1529, %v1596
  %v1601 = vadd.f32 %v1530, %v1596
  %v1602 = vadd.f32 %v1531, %v1596
  %v1603 = vadd.f32 %v1532, %v1596
  %v1604 = vadd.f32 %v1533, %v1596
  %v1605 = vadd.f32 %v1534, %v1596
  %v1606 = vadd.f32 %v1535, %v1596
  %v1607 = vadd.f32 %v1536, %v1596
  %v1608 = vadd.f32 %v1537, %v1596
  %v1609 = vadd.f32 %v1538, %v1596
  %v1610 = vadd.f32 %v1539, %v1596
  %v1611 = vadd.f32 %v1540, %v1596
  %v1612 = vadd.f32 %v1541, %v1596
  %v1613 = vadd.f32 %v1542, %v1596
  %v1614 = vadd.f32 %v1543, %v1596
  %v1615 = vadd.f32 %v1544, %v1596
  %v1616 = vadd.f32 %v1545, %v1596
  %v1617 = vadd.f32 %v1546, %v1596
  %v1618 = vadd.f32 %v1547, %v1596
  %v1619 = vadd.f32 %v1548, %v1596
  %v1620 = vadd.f32 %v1549, %v1596
  %v1621 = vadd.f32 %v1550, %v1596
  %v1622 = vadd.f32 %v1551, %v1596
  %v1623 = vadd.f32 %v1552, %v1596
  %v1624 = vadd.f32 %v1553, %v1596
  %v1625 = vadd.f32 %v1554, %v1596
  %v1626 = vadd.f32 %v1555, %v1596
  %v1627 = vadd.f32 %v1556, %v1596
  %v1628 = vadd.f32 %v1557, %v1596
  %v1629 = vadd.f32 %v1558, %v1596
  %v1630 = vadd.f32 %v1559, %v1596
  %v1631 = vadd.f32 %v1560, %v1596
  %v1632 = vadd.f32 %v1561, %v1596
  %v1633 = vadd.f32 %v1562, %v1596
  %v1634 = vadd.f32 %v1563, %v1596
  %v1635 = vadd.f32 %v1564, %v1596
  %v1636 = vadd.f32 %v1565, %v1596
  %v1637 = vadd.f32 %v1566, %v1596
  %v1638 = vadd.f32 %v1567, %v1596
  %v1639 = vadd.f32 %v1568, %v1596
  %v1640 = vadd.f32 %v1569, %v1596
  %v1641 = vadd.f32 %v1570, %v1596
  %v1642 = vadd.f32 %v1571, %v1596
  %v1643 = vadd.f32 %v1572, %v1596
  %v1644 = vadd.f32 %v1573, %v1596
  %v1645 = vadd.f32 %v1574, %v1596
  %v1646 = vadd.f32 %v1575, %v1596
  %v1647 = vadd.f32 %v1576, %v1596
  %v1648 = vadd.f32 %v1577, %v1596
  %v1649 = vadd.f32 %v1578, %v1596
  %v1650 = vadd.f32 %v1579, %v1596
  %v1651 = vadd.f32 %v1580, %v1596
  %v1652 = vadd.f32 %v1581, %v1596
  %v1653 = vadd.f32 %v1582, %v1596
  %v1654 = vadd.f32 %v1583, %v1596
  %v1655 = vadd.f32 %v1584, %v1596
  %v1656 = vadd.f32 %v1585, %v1596
  %v1657 = vadd.f32 %v1586, %v1596
  %v1658 = vadd.f32 %v1587, %v1596
  %v1659 = vadd.f32 %v1588, %v1596
  %v1660 = vadd.f32 %v1589, %v1596
  %v1661 = vadd.f32 %v1590, %v1596
  %1662 = vst.msk [vmem:[%s5] sm:$0xff] %vm686, %v1598
  %1663 = vst.msk [vmem:[%s5 + $0x8] sm:$0xff] %vm686, %v1599
  %1664 = vst.msk [vmem:[%s5 + $0x10] sm:$0xff] %vm686, %v1600
  %1665 = vst.msk [vmem:[%s5 + $0x18] sm:$0xff] %vm686, %v1601
  %1666 = vst.msk [vmem:[%s5 + $0x20] sm:$0xff] %vm686, %v1602
  %1667 = vst.msk [vmem:[%s5 + $0x28] sm:$0xff] %vm686, %v1603
  %1668 = vst.msk [vmem:[%s5 + $0x30] sm:$0xff] %vm686, %v1604
  %1669 = vst.msk [vmem:[%s5 + $0x38] sm:$0xff] %vm686, %v1605
  %1670 = vst.msk [vmem:[%s5 + $0x40] sm:$0xff] %vm686, %v1606
  %1671 = vst.msk [vmem:[%s5 + $0x48] sm:$0xff] %vm686, %v1607
  %1672 = vst.msk [vmem:[%s5 + $0x50] sm:$0xff] %vm686, %v1608
  %1673 = vst.msk [vmem:[%s5 + $0x58] sm:$0xff] %vm686, %v1609
  %1674 = vst.msk [vmem:[%s5 + $0x60] sm:$0xff] %vm686, %v1610
  %1675 = vst.msk [vmem:[%s5 + $0x68] sm:$0xff] %vm686, %v1611
  %1676 = vst.msk [vmem:[%s5 + $0x70] sm:$0xff] %vm686, %v1612
  %1677 = vst.msk [vmem:[%s5 + $0x78] sm:$0xff] %vm686, %v1613
  %1678 = vst.msk [vmem:[%s5 + $0x80] sm:$0xff] %vm686, %v1614
  %1679 = vst.msk [vmem:[%s5 + $0x88] sm:$0xff] %vm686, %v1615
  %1680 = vst.msk [vmem:[%s5 + $0x90] sm:$0xff] %vm686, %v1616
  %1681 = vst.msk [vmem:[%s5 + $0x98] sm:$0xff] %vm686, %v1617
  %1682 = vst.msk [vmem:[%s5 + $0xa0] sm:$0xff] %vm686, %v1618
  %1683 = vst.msk [vmem:[%s5 + $0xa8] sm:$0xff] %vm686, %v1619
  %1684 = vst.msk [vmem:[%s5 + $0xb0] sm:$0xff] %vm686, %v1620
  %1685 = vst.msk [vmem:[%s5 + $0xb8] sm:$0xff] %vm686, %v1621
  %1686 = vst.msk [vmem:[%s5 + $0xc0] sm:$0xff] %vm686, %v1622
  %1687 = vst.msk [vmem:[%s5 + $0xc8] sm:$0xff] %vm686, %v1623
  %1688 = vst.msk [vmem:[%s5 + $0xd0] sm:$0xff] %vm686, %v1624
  %1689 = vst.msk [vmem:[%s5 + $0xd8] sm:$0xff] %vm686, %v1625
  %1690 = vst.msk [vmem:[%s5 + $0xe0] sm:$0xff] %vm686, %v1626
  %1691 = vst.msk [vmem:[%s5 + $0xe8] sm:$0xff] %vm686, %v1627
  %1692 = vst.msk [vmem:[%s5 + $0xf0] sm:$0xff] %vm686, %v1628
  %1693 = vst.msk [vmem:[%s5 + $0xf8] sm:$0xff] %vm686, %v1629
  %1694 = vst.msk [vmem:[%s5 + $0x100] sm:$0xff] %vm686, %v1630
  %1695 = vst.msk [vmem:[%s5 + $0x108] sm:$0xff] %vm686, %v1631
  %1696 = vst.msk [vmem:[%s5 + $0x110] sm:$0xff] %vm686, %v1632
  %1697 = vst.msk [vmem:[%s5 + $0x118] sm:$0xff] %vm686, %v1633
  %1698 = vst.msk [vmem:[%s5 + $0x120] sm:$0xff] %vm686, %v1634
  %1699 = vst.msk [vmem:[%s5 + $0x128] sm:$0xff] %vm686, %v1635
  %1700 = vst.msk [vmem:[%s5 + $0x130] sm:$0xff] %vm686, %v1636
  %1701 = vst.msk [vmem:[%s5 + $0x138] sm:$0xff] %vm686, %v1637
  %1702 = vst.msk [vmem:[%s5 + $0x140] sm:$0xff] %vm686, %v1638
  %1703 = vst.msk [vmem:[%s5 + $0x148] sm:$0xff] %vm686, %v1639
  %1704 = vst.msk [vmem:[%s5 + $0x150] sm:$0xff] %vm686, %v1640
  %1705 = vst.msk [vmem:[%s5 + $0x158] sm:$0xff] %vm686, %v1641
  %1706 = vst.msk [vmem:[%s5 + $0x160] sm:$0xff] %vm686, %v1642
  %1707 = vst.msk [vmem:[%s5 + $0x168] sm:$0xff] %vm686, %v1643
  %1708 = vst.msk [vmem:[%s5 + $0x170] sm:$0xff] %vm686, %v1644
  %1709 = vst.msk [vmem:[%s5 + $0x178] sm:$0xff] %vm686, %v1645
  %1710 = vst.msk [vmem:[%s5 + $0x180] sm:$0xff] %vm686, %v1646
  %1711 = vst.msk [vmem:[%s5 + $0x188] sm:$0xff] %vm686, %v1647
  %1712 = vst.msk [vmem:[%s5 + $0x190] sm:$0xff] %vm686, %v1648
  %1713 = vst.msk [vmem:[%s5 + $0x198] sm:$0xff] %vm686, %v1649
  %1714 = vst.msk [vmem:[%s5 + $0x1a0] sm:$0xff] %vm686, %v1650
  %1715 = vst.msk [vmem:[%s5 + $0x1a8] sm:$0xff] %vm686, %v1651
  %1716 = vst.msk [vmem:[%s5 + $0x1b0] sm:$0xff] %vm686, %v1652
  %1717 = vst.msk [vmem:[%s5 + $0x1b8] sm:$0xff] %vm686, %v1653
  %1718 = vst.msk [vmem:[%s5 + $0x1c0] sm:$0xff] %vm686, %v1654
  %1719 = vst.msk [vmem:[%s5 + $0x1c8] sm:$0xff] %vm686, %v1655
  %1720 = vst.msk [vmem:[%s5 + $0x1d0] sm:$0xff] %vm686, %v1656
  %1721 = vst.msk [vmem:[%s5 + $0x1d8] sm:$0xff] %vm686, %v1657
  %1722 = vst.msk [vmem:[%s5 + $0x1e0] sm:$0xff] %vm686, %v1658
  %1723 = vst.msk [vmem:[%s5 + $0x1e8] sm:$0xff] %vm686, %v1659
  %1724 = vst.msk [vmem:[%s5 + $0x1f0] sm:$0xff] %vm686, %v1660
  %1725 = vst.msk [vmem:[%s5 + $0x1f8] sm:$0xff] %vm686, %v1661
  // Predicated region
  $region22: #{_lambda_.16} parent=0 // pred_check
    _
  $region23: #{_lambda_.16} parent=0 // pred_check_branch
    %1727 = sbr.rel (0) target = $region25
  $region24: #{_lambda_.16} parent=0 // pred_region
    _
  $region25: #{_lambda_.16} parent=0 // pred_fallthru
    _
  // Predicated region
  $region26: #{_lambda_.16} parent=0 // pred_check
    _
  $region27: #{_lambda_.16} parent=0 // pred_check_branch
    %1729 = sbr.rel (0) target = $region29
  $region28: #{_lambda_.16} parent=0 // pred_region
    _
  $region29: #{_lambda_.16} parent=0 // pred_fallthru
    _

// kernel: _lambda_.17
$region0: #{_lambda_.17}
  #allocation0 [shape = 'u32[]', space=smem, size = 0x4, offset = 0x4, fixed_abs, tag = 'smem constant byte address 0x4 - core index']
  #allocation1 [shape = 'u32[144,128]{1,0:T(1,128)}', space=vmem, size = 0x12000, scoped, tag = 'internal scratch']
  %s0 = inlined_call_operand.vmem [shape: bf16[128,12], index: 0, kind: input, shape index: {}]
  %s1 = inlined_call_operand.vmem [shape: bf16[12,24], index: 1, kind: input, shape index: {}]
  %s2 = inlined_call_operand.vmem [shape: f32[1,24], index: 2, kind: input, shape index: {}]
  %s3 = inlined_call_operand.vmem [shape: f32[128,24], index: 3, kind: output, shape index: {}]
  %s4 = sld [smem:[#allocation0]]
  $region22: #{_lambda_.17} parent=0
    _
  %s6 = ssub.s32 1, %s4
  %s7 = scalar_select 0, %s6, %s4
  // Predicated region
  $region2: #{_lambda_.17} parent=0 // pred_check
    _
  $region3: #{_lambda_.17} parent=0 // pred_check_branch
    %9 = sbr.rel (0) target = $region5
  $region4: #{_lambda_.17} parent=0 // pred_region
    _
  $region5: #{_lambda_.17} parent=0 // pred_fallthru
    _
  // Predicated region
  $region6: #{_lambda_.17} parent=0 // pred_check
    _
  $region7: #{_lambda_.17} parent=0 // pred_check_branch
    %11 = sbr.rel (0) target = $region9
  $region8: #{_lambda_.17} parent=0 // pred_region
    _
  $region9: #{_lambda_.17} parent=0 // pred_fallthru
    _
  // Predicated region
  $region10: #{_lambda_.17} parent=0 // pred_check
    _
  $region11: #{_lambda_.17} parent=0 // pred_check_branch
    %13 = sbr.rel (0) target = $region13
  $region12: #{_lambda_.17} parent=0 // pred_region
    _
  $region13: #{_lambda_.17} parent=0 // pred_fallthru
    _
  %v15 = vld [vmem:[%s0] sm:$0xf]
  %v16 = vld [vmem:[%s0 + $0x4] sm:$0xf]
  %v17 = vld [vmem:[%s0 + $0x8] sm:$0xf]
  %v18 = vld [vmem:[%s0 + $0xc] sm:$0xf]
  %v19 = vld [vmem:[%s0 + $0x10] sm:$0xf]
  %v20 = vld [vmem:[%s0 + $0x14] sm:$0xf]
  %v21 = vld [vmem:[%s0 + $0x18] sm:$0xf]
  %v22 = vld [vmem:[%s0 + $0x1c] sm:$0xf]
  %v23 = vld [vmem:[%s0 + $0x20] sm:$0xf]
  %v24 = vld [vmem:[%s0 + $0x24] sm:$0xf]
  %v25 = vld [vmem:[%s0 + $0x28] sm:$0xf]
  %v26 = vld [vmem:[%s0 + $0x2c] sm:$0xf]
  %v27 = vld [vmem:[%s0 + $0x30] sm:$0xf]
  %v28 = vld [vmem:[%s0 + $0x34] sm:$0xf]
  %v29 = vld [vmem:[%s0 + $0x38] sm:$0xf]
  %v30 = vld [vmem:[%s0 + $0x3c] sm:$0xf]
  %v31 = vld [vmem:[%s1] sm:$0xf]
  %v32 = vld [vmem:[%s1 + $0x4] sm:$0x3]
  %v33 = vld [vmem:[%s2] sm:$0x1]
  %v35 = vlaneseq
  %v36 = vshrl.u32 %v35, 7
  %v37 = vsub.s32 0, %v36
  %v38 = vrot.slane %v33, %v37
  %v56 = vunpack.c.l.b16 %v15
  %v57 = vunpack.c.l.b16 %v16
  %v58 = vunpack.c.l.b16 %v17
  %v59 = vunpack.c.l.b16 %v18
  %v60 = vunpack.c.l.b16 %v19
  %v61 = vunpack.c.l.b16 %v20
  %v62 = vunpack.c.l.b16 %v21
  %v63 = vunpack.c.l.b16 %v22
  %v64 = vunpack.c.l.b16 %v23
  %v65 = vunpack.c.l.b16 %v24
  %v66 = vunpack.c.l.b16 %v25
  %v67 = vunpack.c.l.b16 %v26
  %v68 = vunpack.c.l.b16 %v27
  %v69 = vunpack.c.l.b16 %v28
  %v70 = vunpack.c.l.b16 %v29
  %v71 = vunpack.c.l.b16 %v30
  %v72 = vpack.c.b16 %v57, %v56
  %v73 = vpack.c.b16 %v59, %v58
  %v74 = vpack.c.b16 %v61, %v60
  %v75 = vpack.c.b16 %v63, %v62
  %v76 = vpack.c.b16 %v65, %v64
  %v77 = vpack.c.b16 %v67, %v66
  %v78 = vpack.c.b16 %v69, %v68
  %v79 = vpack.c.b16 %v71, %v70
  %v82 = vunpack.c.l.b16 %v31
  %v83 = vunpack.c.l.b16 %v32
  %v84 = vpack.c.b16 %v83, %v82
  %vm85 = vcmask 97280
  %v87 = vsel %vm85, %v72, 0
  %v90 = vsel %vm85, %v73, 0
  %v93 = vsel %vm85, %v74, 0
  %v96 = vsel %vm85, %v75, 0
  %v99 = vsel %vm85, %v76, 0
  %v102 = vsel %vm85, %v77, 0
  %v105 = vsel %vm85, %v78, 0
  %v108 = vsel %vm85, %v79, 0
  %vm110 = vcmask 1045504
  %v112 = vsel %vm110, %v84, 0
  %114 = vmatprep.subr.bf16.mxu0 0
  %115 = vmatpush1.bf16.msra.mxu0 0
  %116 = vmatprep.subr.bf16.mxu0 0
  %117 = vmatpush1.bf16.msra.mxu0 0
  %118 = vmatprep.subr.bf16.mxu0 0
  %119 = vmatpush1.bf16.msra.mxu0 0
  %120 = vmatprep.subr.bf16.mxu0 0
  %121 = vmatpush1.bf16.msra.mxu0 0
  %122 = vmatprep.subr.bf16.mxu0 0
  %123 = vmatpush1.bf16.msra.mxu0 0
  %124 = vmatprep.subr.bf16.mxu0 0
  %125 = vmatpush1.bf16.msra.mxu0 0
  %126 = vmatprep.subr.bf16.mxu0 0
  %127 = vmatpush1.bf16.msra.mxu0 0
  %128 = vmatprep.subr.bf16.mxu0 0
  %129 = vmatpush1.bf16.msra.mxu0 %v112
  %130 = vmatprep.subr.bf16.mxu0 0
  %131 = vmatpush2.bf16.msra.mxu0 0
  %132 = vmatprep.subr.bf16.mxu0 0
  %133 = vmatpush2.bf16.msra.mxu0 0
  %134 = vmatprep.subr.bf16.mxu0 0
  %135 = vmatpush2.bf16.msra.mxu0 0
  %136 = vmatprep.subr.bf16.mxu0 0
  %137 = vmatpush2.bf16.msra.mxu0 0
  %138 = vmatprep.subr.bf16.mxu0 0
  %139 = vmatpush2.bf16.msra.mxu0 0
  %140 = vmatprep.subr.bf16.mxu0 0
  %141 = vmatpush2.bf16.msra.mxu0 0
  %142 = vmatprep.subr.bf16.mxu0 0
  %143 = vmatpush2.bf16.msra.mxu0 0
  %144 = vmatprep.subr.bf16.mxu0 0
  %145 = vmatpush2.bf16.msra.mxu0 0
  %146 = vmatprep.mubr.bf16.mxu0 0
  %147 = vmatmul.mubr.bf16.gmra.mxu0 %v87
  %v148 = vpop.f32.mrf.mxu0
  %v149 = vadd.f32 %v38, %v148
  %v150 = vpop.f32.mrf.mxu0
  %v151 = vpop.f32.mrf.mxu0
  %v152 = vadd.f32 %v38, %v151
  %v153 = vpop.f32.mrf.mxu0
  %154 = vmatprep.mubr.bf16.mxu0 0
  %155 = vmatmul.mubr.bf16.gmra.mxu0 %v90
  %v156 = vpop.f32.mrf.mxu0
  %v157 = vadd.f32 %v38, %v156
  %v158 = vpop.f32.mrf.mxu0
  %v159 = vpop.f32.mrf.mxu0
  %v160 = vadd.f32 %v38, %v159
  %v161 = vpop.f32.mrf.mxu0
  %162 = vmatprep.mubr.bf16.mxu0 0
  %163 = vmatmul.mubr.bf16.gmra.mxu0 %v93
  %v164 = vpop.f32.mrf.mxu0
  %v165 = vadd.f32 %v38, %v164
  %v166 = vpop.f32.mrf.mxu0
  %v167 = vpop.f32.mrf.mxu0
  %v168 = vadd.f32 %v38, %v167
  %v169 = vpop.f32.mrf.mxu0
  %170 = vmatprep.mubr.bf16.mxu0 0
  %171 = vmatmul.mubr.bf16.gmra.mxu0 %v96
  %v172 = vpop.f32.mrf.mxu0
  %v173 = vadd.f32 %v38, %v172
  %v174 = vpop.f32.mrf.mxu0
  %v175 = vpop.f32.mrf.mxu0
  %v176 = vadd.f32 %v38, %v175
  %v177 = vpop.f32.mrf.mxu0
  %178 = vmatprep.mubr.bf16.mxu0 0
  %179 = vmatmul.mubr.bf16.gmra.mxu0 %v99
  %v180 = vpop.f32.mrf.mxu0
  %v181 = vadd.f32 %v38, %v180
  %v182 = vpop.f32.mrf.mxu0
  %v183 = vpop.f32.mrf.mxu0
  %v184 = vadd.f32 %v38, %v183
  %v185 = vpop.f32.mrf.mxu0
  %186 = vmatprep.mubr.bf16.mxu0 0
  %187 = vmatmul.mubr.bf16.gmra.mxu0 %v102
  %v188 = vpop.f32.mrf.mxu0
  %v189 = vadd.f32 %v38, %v188
  %v190 = vpop.f32.mrf.mxu0
  %v191 = vpop.f32.mrf.mxu0
  %v192 = vadd.f32 %v38, %v191
  %v193 = vpop.f32.mrf.mxu0
  %194 = vmatprep.mubr.bf16.mxu0 0
  %195 = vmatmul.mubr.bf16.gmra.mxu0 %v105
  %v196 = vpop.f32.mrf.mxu0
  %v197 = vadd.f32 %v38, %v196
  %v198 = vpop.f32.mrf.mxu0
  %v199 = vpop.f32.mrf.mxu0
  %v200 = vadd.f32 %v38, %v199
  %v201 = vpop.f32.mrf.mxu0
  %202 = vmatprep.mubr.bf16.mxu0 0
  %203 = vmatmul.mubr.bf16.gmra.mxu0 %v108
  %v204 = vpop.f32.mrf.mxu0
  %v205 = vadd.f32 %v38, %v204
  %v206 = vpop.f32.mrf.mxu0
  %v207 = vpop.f32.mrf.mxu0
  %v208 = vadd.f32 %v38, %v207
  %v209 = vpop.f32.mrf.mxu0
  %210 = vdwg.mxu0
  %vm211 = vcmask 195584
  %212 = vst.msk [vmem:[%s3] sm:$0xff] %vm211, %v149
  %213 = vst.msk [vmem:[%s3 + $0x8] sm:$0xff] %vm211, %v152
  %214 = vst.msk [vmem:[%s3 + $0x10] sm:$0xff] %vm211, %v157
  %215 = vst.msk [vmem:[%s3 + $0x18] sm:$0xff] %vm211, %v160
  %216 = vst.msk [vmem:[%s3 + $0x20] sm:$0xff] %vm211, %v165
  %217 = vst.msk [vmem:[%s3 + $0x28] sm:$0xff] %vm211, %v168
  %218 = vst.msk [vmem:[%s3 + $0x30] sm:$0xff] %vm211, %v173
  %219 = vst.msk [vmem:[%s3 + $0x38] sm:$0xff] %vm211, %v176
  %220 = vst.msk [vmem:[%s3 + $0x40] sm:$0xff] %vm211, %v181
  %221 = vst.msk [vmem:[%s3 + $0x48] sm:$0xff] %vm211, %v184
  %222 = vst.msk [vmem:[%s3 + $0x50] sm:$0xff] %vm211, %v189
  %223 = vst.msk [vmem:[%s3 + $0x58] sm:$0xff] %vm211, %v192
  %224 = vst.msk [vmem:[%s3 + $0x60] sm:$0xff] %vm211, %v197
  %225 = vst.msk [vmem:[%s3 + $0x68] sm:$0xff] %vm211, %v200
  %226 = vst.msk [vmem:[%s3 + $0x70] sm:$0xff] %vm211, %v205
  %227 = vst.msk [vmem:[%s3 + $0x78] sm:$0xff] %vm211, %v208
  // Predicated region
  $region14: #{_lambda_.17} parent=0 // pred_check
    _
  $region15: #{_lambda_.17} parent=0 // pred_check_branch
    %229 = sbr.rel (0) target = $region17
  $region16: #{_lambda_.17} parent=0 // pred_region
    _
  $region17: #{_lambda_.17} parent=0 // pred_fallthru
    _
  // Predicated region
  $region18: #{_lambda_.17} parent=0 // pred_check
    _
  $region19: #{_lambda_.17} parent=0 // pred_check_branch
    %231 = sbr.rel (0) target = $region21
  $region20: #{_lambda_.17} parent=0 // pred_region
    _
  $region21: #{_lambda_.17} parent=0 // pred_fallthru
    _

// kernel: _lambda_.20
$region0: #{_lambda_.20}
  #allocation0 [shape = 'u32[]', space=smem, size = 0x4, offset = 0x4, fixed_abs, tag = 'smem constant byte address 0x4 - core index']
  #allocation1 [shape = 'u32[144,128]{1,0:T(1,128)}', space=vmem, size = 0x12000, scoped, tag = 'internal scratch']
  %s0 = inlined_call_operand.vmem [shape: bf16[128,24], index: 0, kind: input, shape index: {}]
  %s1 = inlined_call_operand.vmem [shape: bf16[24,48], index: 1, kind: input, shape index: {}]
  %s2 = inlined_call_operand.vmem [shape: f32[1,48], index: 2, kind: input, shape index: {}]
  %s3 = inlined_call_operand.vmem [shape: f32[128,48], index: 3, kind: output, shape index: {}]
  %s4 = sld [smem:[#allocation0]]
  $region22: #{_lambda_.20} parent=0
    _
  %s6 = ssub.s32 1, %s4
  %s7 = scalar_select 0, %s6, %s4
  // Predicated region
  $region2: #{_lambda_.20} parent=0 // pred_check
    _
  $region3: #{_lambda_.20} parent=0 // pred_check_branch
    %9 = sbr.rel (0) target = $region5
  $region4: #{_lambda_.20} parent=0 // pred_region
    _
  $region5: #{_lambda_.20} parent=0 // pred_fallthru
    _
  // Predicated region
  $region6: #{_lambda_.20} parent=0 // pred_check
    _
  $region7: #{_lambda_.20} parent=0 // pred_check_branch
    %11 = sbr.rel (0) target = $region9
  $region8: #{_lambda_.20} parent=0 // pred_region
    _
  $region9: #{_lambda_.20} parent=0 // pred_fallthru
    _
  // Predicated region
  $region10: #{_lambda_.20} parent=0 // pred_check
    _
  $region11: #{_lambda_.20} parent=0 // pred_check_branch
    %13 = sbr.rel (0) target = $region13
  $region12: #{_lambda_.20} parent=0 // pred_region
    _
  $region13: #{_lambda_.20} parent=0 // pred_fallthru
    _
  %v15 = vld [vmem:[%s0] sm:$0xf]
  %v16 = vld [vmem:[%s0 + $0x4] sm:$0xf]
  %v17 = vld [vmem:[%s0 + $0x8] sm:$0xf]
  %v18 = vld [vmem:[%s0 + $0xc] sm:$0xf]
  %v19 = vld [vmem:[%s0 + $0x10] sm:$0xf]
  %v20 = vld [vmem:[%s0 + $0x14] sm:$0xf]
  %v21 = vld [vmem:[%s0 + $0x18] sm:$0xf]
  %v22 = vld [vmem:[%s0 + $0x1c] sm:$0xf]
  %v23 = vld [vmem:[%s0 + $0x20] sm:$0xf]
  %v24 = vld [vmem:[%s0 + $0x24] sm:$0xf]
  %v25 = vld [vmem:[%s0 + $0x28] sm:$0xf]
  %v26 = vld [vmem:[%s0 + $0x2c] sm:$0xf]
  %v27 = vld [vmem:[%s0 + $0x30] sm:$0xf]
  %v28 = vld [vmem:[%s0 + $0x34] sm:$0xf]
  %v29 = vld [vmem:[%s0 + $0x38] sm:$0xf]
  %v30 = vld [vmem:[%s0 + $0x3c] sm:$0xf]
  %v31 = vld [vmem:[%s1] sm:$0xf]
  %v32 = vld [vmem:[%s1 + $0x4] sm:$0xf]
  %v33 = vld [vmem:[%s1 + $0x8] sm:$0xf]
  %v34 = vld [vmem:[%s2] sm:$0x1]
  %v36 = vlaneseq
  %v37 = vshrl.u32 %v36, 7
  %v38 = vsub.s32 0, %v37
  %v39 = vrot.slane %v34, %v38
  %v57 = vunpack.c.l.b16 %v15
  %v58 = vunpack.c.l.b16 %v16
  %v59 = vunpack.c.l.b16 %v17
  %v60 = vunpack.c.l.b16 %v18
  %v61 = vunpack.c.l.b16 %v19
  %v62 = vunpack.c.l.b16 %v20
  %v63 = vunpack.c.l.b16 %v21
  %v64 = vunpack.c.l.b16 %v22
  %v65 = vunpack.c.l.b16 %v23
  %v66 = vunpack.c.l.b16 %v24
  %v67 = vunpack.c.l.b16 %v25
  %v68 = vunpack.c.l.b16 %v26
  %v69 = vunpack.c.l.b16 %v27
  %v70 = vunpack.c.l.b16 %v28
  %v71 = vunpack.c.l.b16 %v29
  %v72 = vunpack.c.l.b16 %v30
  %v73 = vpack.c.b16 %v58, %v57
  %v74 = vpack.c.b16 %v60, %v59
  %v75 = vpack.c.b16 %v62, %v61
  %v76 = vpack.c.b16 %v64, %v63
  %v77 = vpack.c.b16 %v66, %v65
  %v78 = vpack.c.b16 %v68, %v67
  %v79 = vpack.c.b16 %v70, %v69
  %v80 = vpack.c.b16 %v72, %v71
  %v84 = vunpack.c.l.b16 %v31
  %v85 = vunpack.c.l.b16 %v32
  %v86 = vunpack.c.l.b16 %v33
  %v87 = vpack.c.b16 %v85, %v84
  %v88 = vpack.c.b16 %v86, %v86
  %vm90 = vcmask 195584
  %v92 = vsel %vm90, %v73, 0
  %v95 = vsel %vm90, %v74, 0
  %v98 = vsel %vm90, %v75, 0
  %v101 = vsel %vm90, %v76, 0
  %v104 = vsel %vm90, %v77, 0
  %v107 = vsel %vm90, %v78, 0
  %v110 = vsel %vm90, %v79, 0
  %v113 = vsel %vm90, %v80, 0
  %vm115 = vcmask 1043456
  %v117 = vsel %vm115, %v88, 0
  %119 = vmatprep.subr.bf16.mxu0 0
  %120 = vmatpush1.bf16.msra.mxu0 0
  %121 = vmatprep.subr.bf16.mxu0 0
  %122 = vmatpush1.bf16.msra.mxu0 0
  %123 = vmatprep.subr.bf16.mxu0 0
  %124 = vmatpush1.bf16.msra.mxu0 0
  %125 = vmatprep.subr.bf16.mxu0 0
  %126 = vmatpush1.bf16.msra.mxu0 0
  %127 = vmatprep.subr.bf16.mxu0 0
  %128 = vmatpush1.bf16.msra.mxu0 0
  %129 = vmatprep.subr.bf16.mxu0 0
  %130 = vmatpush1.bf16.msra.mxu0 0
  %131 = vmatprep.subr.bf16.mxu0 0
  %132 = vmatpush1.bf16.msra.mxu0 %v117
  %133 = vmatprep.subr.bf16.mxu0 0
  %134 = vmatpush1.bf16.msra.mxu0 %v87
  %135 = vmatprep.subr.bf16.mxu0 0
  %136 = vmatpush2.bf16.msra.mxu0 0
  %137 = vmatprep.subr.bf16.mxu0 0
  %138 = vmatpush2.bf16.msra.mxu0 0
  %139 = vmatprep.subr.bf16.mxu0 0
  %140 = vmatpush2.bf16.msra.mxu0 0
  %141 = vmatprep.subr.bf16.mxu0 0
  %142 = vmatpush2.bf16.msra.mxu0 0
  %143 = vmatprep.subr.bf16.mxu0 0
  %144 = vmatpush2.bf16.msra.mxu0 0
  %145 = vmatprep.subr.bf16.mxu0 0
  %146 = vmatpush2.bf16.msra.mxu0 0
  %147 = vmatprep.subr.bf16.mxu0 0
  %148 = vmatpush2.bf16.msra.mxu0 0
  %149 = vmatprep.subr.bf16.mxu0 0
  %150 = vmatpush2.bf16.msra.mxu0 0
  %151 = vmatprep.mubr.bf16.mxu0 0
  %152 = vmatmul.mubr.bf16.gmra.mxu0 %v92
  %v153 = vpop.f32.mrf.mxu0
  %v154 = vadd.f32 %v39, %v153
  %v155 = vpop.f32.mrf.mxu0
  %v156 = vpop.f32.mrf.mxu0
  %v157 = vadd.f32 %v39, %v156
  %v158 = vpop.f32.mrf.mxu0
  %159 = vmatprep.mubr.bf16.mxu0 0
  %160 = vmatmul.mubr.bf16.gmra.mxu0 %v95
  %v161 = vpop.f32.mrf.mxu0
  %v162 = vadd.f32 %v39, %v161
  %v163 = vpop.f32.mrf.mxu0
  %v164 = vpop.f32.mrf.mxu0
  %v165 = vadd.f32 %v39, %v164
  %v166 = vpop.f32.mrf.mxu0
  %167 = vmatprep.mubr.bf16.mxu0 0
  %168 = vmatmul.mubr.bf16.gmra.mxu0 %v98
  %v169 = vpop.f32.mrf.mxu0
  %v170 = vadd.f32 %v39, %v169
  %v171 = vpop.f32.mrf.mxu0
  %v172 = vpop.f32.mrf.mxu0
  %v173 = vadd.f32 %v39, %v172
  %v174 = vpop.f32.mrf.mxu0
  %175 = vmatprep.mubr.bf16.mxu0 0
  %176 = vmatmul.mubr.bf16.gmra.mxu0 %v101
  %v177 = vpop.f32.mrf.mxu0
  %v178 = vadd.f32 %v39, %v177
  %v179 = vpop.f32.mrf.mxu0
  %v180 = vpop.f32.mrf.mxu0
  %v181 = vadd.f32 %v39, %v180
  %v182 = vpop.f32.mrf.mxu0
  %183 = vmatprep.mubr.bf16.mxu0 0
  %184 = vmatmul.mubr.bf16.gmra.mxu0 %v104
  %v185 = vpop.f32.mrf.mxu0
  %v186 = vadd.f32 %v39, %v185
  %v187 = vpop.f32.mrf.mxu0
  %v188 = vpop.f32.mrf.mxu0
  %v189 = vadd.f32 %v39, %v188
  %v190 = vpop.f32.mrf.mxu0
  %191 = vmatprep.mubr.bf16.mxu0 0
  %192 = vmatmul.mubr.bf16.gmra.mxu0 %v107
  %v193 = vpop.f32.mrf.mxu0
  %v194 = vadd.f32 %v39, %v193
  %v195 = vpop.f32.mrf.mxu0
  %v196 = vpop.f32.mrf.mxu0
  %v197 = vadd.f32 %v39, %v196
  %v198 = vpop.f32.mrf.mxu0
  %199 = vmatprep.mubr.bf16.mxu0 0
  %200 = vmatmul.mubr.bf16.gmra.mxu0 %v110
  %v201 = vpop.f32.mrf.mxu0
  %v202 = vadd.f32 %v39, %v201
  %v203 = vpop.f32.mrf.mxu0
  %v204 = vpop.f32.mrf.mxu0
  %v205 = vadd.f32 %v39, %v204
  %v206 = vpop.f32.mrf.mxu0
  %207 = vmatprep.mubr.bf16.mxu0 0
  %208 = vmatmul.mubr.bf16.gmra.mxu0 %v113
  %v209 = vpop.f32.mrf.mxu0
  %v210 = vadd.f32 %v39, %v209
  %v211 = vpop.f32.mrf.mxu0
  %v212 = vpop.f32.mrf.mxu0
  %v213 = vadd.f32 %v39, %v212
  %v214 = vpop.f32.mrf.mxu0
  %215 = vdwg.mxu0
  %vm216 = vcmask 392192
  %217 = vst.msk [vmem:[%s3] sm:$0xff] %vm216, %v154
  %218 = vst.msk [vmem:[%s3 + $0x8] sm:$0xff] %vm216, %v157
  %219 = vst.msk [vmem:[%s3 + $0x10] sm:$0xff] %vm216, %v162
  %220 = vst.msk [vmem:[%s3 + $0x18] sm:$0xff] %vm216, %v165
  %221 = vst.msk [vmem:[%s3 + $0x20] sm:$0xff] %vm216, %v170
  %222 = vst.msk [vmem:[%s3 + $0x28] sm:$0xff] %vm216, %v173
  %223 = vst.msk [vmem:[%s3 + $0x30] sm:$0xff] %vm216, %v178
  %224 = vst.msk [vmem:[%s3 + $0x38] sm:$0xff] %vm216, %v181
  %225 = vst.msk [vmem:[%s3 + $0x40] sm:$0xff] %vm216, %v186
  %226 = vst.msk [vmem:[%s3 + $0x48] sm:$0xff] %vm216, %v189
  %227 = vst.msk [vmem:[%s3 + $0x50] sm:$0xff] %vm216, %v194
  %228 = vst.msk [vmem:[%s3 + $0x58] sm:$0xff] %vm216, %v197
  %229 = vst.msk [vmem:[%s3 + $0x60] sm:$0xff] %vm216, %v202
  %230 = vst.msk [vmem:[%s3 + $0x68] sm:$0xff] %vm216, %v205
  %231 = vst.msk [vmem:[%s3 + $0x70] sm:$0xff] %vm216, %v210
  %232 = vst.msk [vmem:[%s3 + $0x78] sm:$0xff] %vm216, %v213
  // Predicated region
  $region14: #{_lambda_.20} parent=0 // pred_check
    _
  $region15: #{_lambda_.20} parent=0 // pred_check_branch
    %234 = sbr.rel (0) target = $region17
  $region16: #{_lambda_.20} parent=0 // pred_region
    _
  $region17: #{_lambda_.20} parent=0 // pred_fallthru
    _
  // Predicated region
  $region18: #{_lambda_.20} parent=0 // pred_check
    _
  $region19: #{_lambda_.20} parent=0 // pred_check_branch
    %236 = sbr.rel (0) target = $region21
  $region20: #{_lambda_.20} parent=0 // pred_region
    _
  $region21: #{_lambda_.20} parent=0 // pred_fallthru
    _

// kernel: _lambda_.24
$region0: #{_lambda_.24}
  #allocation0 [shape = 'u32[]', space=smem, size = 0x4, offset = 0x4, fixed_abs, tag = 'smem constant byte address 0x4 - core index']
  #allocation1 [shape = 'u32[144,128]{1,0:T(1,128)}', space=vmem, size = 0x12000, scoped, tag = 'internal scratch']
  %s0 = inlined_call_operand.vmem [shape: bf16[64,672], index: 0, kind: input, shape index: {}]
  %s1 = inlined_call_operand.vmem [shape: f32[64,96], index: 1, kind: input, shape index: {}]
  %s2 = inlined_call_operand.vmem [shape: bf16[672,288], index: 2, kind: input, shape index: {}]
  %s3 = inlined_call_operand.vmem [shape: f32[1,288], index: 3, kind: input, shape index: {}]
  %s4 = inlined_call_operand.vmem [shape: bf16[288,96], index: 4, kind: input, shape index: {}]
  %s5 = inlined_call_operand.vmem [shape: f32[1,96], index: 5, kind: input, shape index: {}]
  %s6 = inlined_call_operand.vmem [shape: f32[1,96], index: 6, kind: input, shape index: {}]
  %s7 = inlined_call_operand.vmem [shape: f32[64,96], index: 7, kind: output, shape index: {}]
  %s8 = sld [smem:[#allocation0]]
  $region38: #{_lambda_.24} parent=0
    _
  %s10 = ssub.s32 1, %s8
  %s11 = scalar_select 0, %s10, %s8
  // Predicated region
  $region2: #{_lambda_.24} parent=0 // pred_check
    _
  $region3: #{_lambda_.24} parent=0 // pred_check_branch
    %13 = sbr.rel (0) target = $region5
  $region4: #{_lambda_.24} parent=0 // pred_region
    _
  $region5: #{_lambda_.24} parent=0 // pred_fallthru
    _
  // Predicated region
  $region6: #{_lambda_.24} parent=0 // pred_check
    _
  $region7: #{_lambda_.24} parent=0 // pred_check_branch
    %15 = sbr.rel (0) target = $region9
  $region8: #{_lambda_.24} parent=0 // pred_region
    _
  $region9: #{_lambda_.24} parent=0 // pred_fallthru
    _
  // Predicated region
  $region10: #{_lambda_.24} parent=0 // pred_check
    _
  $region11: #{_lambda_.24} parent=0 // pred_check_branch
    %17 = sbr.rel (0) target = $region13
  $region12: #{_lambda_.24} parent=0 // pred_region
    _
  $region13: #{_lambda_.24} parent=0 // pred_fallthru
    _
  // Predicated region
  $region14: #{_lambda_.24} parent=0 // pred_check
    _
  $region15: #{_lambda_.24} parent=0 // pred_check_branch
    %19 = sbr.rel (0) target = $region17
  $region16: #{_lambda_.24} parent=0 // pred_region
    _
  $region17: #{_lambda_.24} parent=0 // pred_fallthru
    _
  // Predicated region
  $region18: #{_lambda_.24} parent=0 // pred_check
    _
  $region19: #{_lambda_.24} parent=0 // pred_check_branch
    %21 = sbr.rel (0) target = $region21
  $region20: #{_lambda_.24} parent=0 // pred_region
    _
  $region21: #{_lambda_.24} parent=0 // pred_fallthru
    _
  // Predicated region
  $region22: #{_lambda_.24} parent=0 // pred_check
    _
  $region23: #{_lambda_.24} parent=0 // pred_check_branch
    %23 = sbr.rel (0) target = $region25
  $region24: #{_lambda_.24} parent=0 // pred_region
    _
  $region25: #{_lambda_.24} parent=0 // pred_fallthru
    _
  // Predicated region
  $region26: #{_lambda_.24} parent=0 // pred_check
    _
  $region27: #{_lambda_.24} parent=0 // pred_check_branch
    %25 = sbr.rel (0) target = $region29
  $region28: #{_lambda_.24} parent=0 // pred_region
    _
  $region29: #{_lambda_.24} parent=0 // pred_fallthru
    _
  %v27 = vld [vmem:[%s0] sm:$0xff]
  %v28 = vld [vmem:[%s0 + $0x8] sm:$0xff]
  %v29 = vld [vmem:[%s0 + $0x10] sm:$0xff]
  %v30 = vld [vmem:[%s0 + $0x18] sm:$0xff]
  %v31 = vld [vmem:[%s0 + $0x20] sm:$0xff]
  %v32 = vld [vmem:[%s0 + $0x28] sm:$0xff]
  %v33 = vld [vmem:[%s0 + $0x30] sm:$0xff]
  %v34 = vld [vmem:[%s0 + $0x38] sm:$0xff]
  %v35 = vld [vmem:[%s0 + $0x40] sm:$0xff]
  %v36 = vld [vmem:[%s0 + $0x48] sm:$0xff]
  %v37 = vld [vmem:[%s0 + $0x50] sm:$0xff]
  %v38 = vld [vmem:[%s0 + $0x58] sm:$0xff]
  %v39 = vld [vmem:[%s0 + $0x60] sm:$0xff]
  %v40 = vld [vmem:[%s0 + $0x68] sm:$0xff]
  %v41 = vld [vmem:[%s0 + $0x70] sm:$0xff]
  %v42 = vld [vmem:[%s0 + $0x78] sm:$0xff]
  %v43 = vld [vmem:[%s0 + $0x80] sm:$0xff]
  %v44 = vld [vmem:[%s0 + $0x88] sm:$0xff]
  %v45 = vld [vmem:[%s0 + $0x90] sm:$0xff]
  %v46 = vld [vmem:[%s0 + $0x98] sm:$0xff]
  %v47 = vld [vmem:[%s0 + $0xa0] sm:$0xff]
  %v48 = vld [vmem:[%s0 + $0xa8] sm:$0xff]
  %v49 = vld [vmem:[%s0 + $0xb0] sm:$0xff]
  %v50 = vld [vmem:[%s0 + $0xb8] sm:$0xff]
  %v51 = vld [vmem:[%s2] sm:$0xff]
  %v52 = vld [vmem:[%s2 + $0x8] sm:$0xf]
  %v53 = vld [vmem:[%s2 + $0xc] sm:$0xff]
  %v54 = vld [vmem:[%s2 + $0x14] sm:$0xf]
  %v55 = vld [vmem:[%s2 + $0x18] sm:$0xff]
  %v56 = vld [vmem:[%s2 + $0x20] sm:$0xf]
  %v57 = vld [vmem:[%s2 + $0x24] sm:$0xff]
  %v58 = vld [vmem:[%s2 + $0x2c] sm:$0xf]
  %v59 = vld [vmem:[%s2 + $0x30] sm:$0xff]
  %v60 = vld [vmem:[%s2 + $0x38] sm:$0xf]
  %v61 = vld [vmem:[%s2 + $0x3c] sm:$0xff]
  %v62 = vld [vmem:[%s2 + $0x44] sm:$0xf]
  %v63 = vld [vmem:[%s2 + $0x48] sm:$0xff]
  %v64 = vld [vmem:[%s2 + $0x50] sm:$0xf]
  %v65 = vld [vmem:[%s2 + $0x54] sm:$0xff]
  %v66 = vld [vmem:[%s2 + $0x5c] sm:$0xf]
  %v67 = vld [vmem:[%s2 + $0x60] sm:$0xff]
  %v68 = vld [vmem:[%s2 + $0x68] sm:$0xf]
  %v69 = vld [vmem:[%s2 + $0x6c] sm:$0xff]
  %v70 = vld [vmem:[%s2 + $0x74] sm:$0xf]
  %v71 = vld [vmem:[%s2 + $0x78] sm:$0xff]
  %v72 = vld [vmem:[%s2 + $0x80] sm:$0xf]
  %v73 = vld [vmem:[%s2 + $0x84] sm:$0xff]
  %v74 = vld [vmem:[%s2 + $0x8c] sm:$0xf]
  %v75 = vld [vmem:[%s2 + $0x90] sm:$0xff]
  %v76 = vld [vmem:[%s2 + $0x98] sm:$0xf]
  %v77 = vld [vmem:[%s2 + $0x9c] sm:$0xff]
  %v78 = vld [vmem:[%s2 + $0xa4] sm:$0xf]
  %v79 = vld [vmem:[%s2 + $0xa8] sm:$0xff]
  %v80 = vld [vmem:[%s2 + $0xb0] sm:$0xf]
  %v81 = vld [vmem:[%s2 + $0xb4] sm:$0xff]
  %v82 = vld [vmem:[%s2 + $0xbc] sm:$0xf]
  %v83 = vld [vmem:[%s2 + $0xc0] sm:$0xff]
  %v84 = vld [vmem:[%s2 + $0xc8] sm:$0xf]
  %v85 = vld [vmem:[%s2 + $0xcc] sm:$0xff]
  %v86 = vld [vmem:[%s2 + $0xd4] sm:$0xf]
  %v87 = vld [vmem:[%s2 + $0xd8] sm:$0xff]
  %v88 = vld [vmem:[%s2 + $0xe0] sm:$0xf]
  %v89 = vld [vmem:[%s2 + $0xe4] sm:$0xff]
  %v90 = vld [vmem:[%s2 + $0xec] sm:$0xf]
  %v91 = vld [vmem:[%s2 + $0xf0] sm:$0xff]
  %v92 = vld [vmem:[%s2 + $0xf8] sm:$0xf]
  %v93 = vld [vmem:[%s2 + $0xfc] sm:$0xff]
  %v94 = vld [vmem:[%s2 + $0x104] sm:$0xf]
  %v95 = vld [vmem:[%s2 + $0x108] sm:$0xff]
  %v96 = vld [vmem:[%s2 + $0x110] sm:$0xf]
  %v97 = vld [vmem:[%s2 + $0x114] sm:$0xff]
  %v98 = vld [vmem:[%s2 + $0x11c] sm:$0xf]
  %v99 = vld [vmem:[%s2 + $0x120] sm:$0xff]
  %v100 = vld [vmem:[%s2 + $0x128] sm:$0xf]
  %v101 = vld [vmem:[%s2 + $0x12c] sm:$0xff]
  %v102 = vld [vmem:[%s2 + $0x134] sm:$0xf]
  %v103 = vld [vmem:[%s2 + $0x138] sm:$0xff]
  %v104 = vld [vmem:[%s2 + $0x140] sm:$0xf]
  %v105 = vld [vmem:[%s2 + $0x144] sm:$0xff]
  %v106 = vld [vmem:[%s2 + $0x14c] sm:$0xf]
  %v107 = vld [vmem:[%s2 + $0x150] sm:$0xff]
  %v108 = vld [vmem:[%s2 + $0x158] sm:$0xf]
  %v109 = vld [vmem:[%s2 + $0x15c] sm:$0xff]
  %v110 = vld [vmem:[%s2 + $0x164] sm:$0xf]
  %v111 = vld [vmem:[%s2 + $0x168] sm:$0xff]
  %v112 = vld [vmem:[%s2 + $0x170] sm:$0xf]
  %v113 = vld [vmem:[%s2 + $0x174] sm:$0xff]
  %v114 = vld [vmem:[%s2 + $0x17c] sm:$0xf]
  %v115 = vld [vmem:[%s2 + $0x180] sm:$0xff]
  %v116 = vld [vmem:[%s2 + $0x188] sm:$0xf]
  %v117 = vld [vmem:[%s2 + $0x18c] sm:$0xff]
  %v118 = vld [vmem:[%s2 + $0x194] sm:$0xf]
  %v119 = vld [vmem:[%s2 + $0x198] sm:$0xff]
  %v120 = vld [vmem:[%s2 + $0x1a0] sm:$0xf]
  %v121 = vld [vmem:[%s2 + $0x1a4] sm:$0xff]
  %v122 = vld [vmem:[%s2 + $0x1ac] sm:$0xf]
  %v123 = vld [vmem:[%s2 + $0x1b0] sm:$0xff]
  %v124 = vld [vmem:[%s2 + $0x1b8] sm:$0xf]
  %v125 = vld [vmem:[%s2 + $0x1bc] sm:$0xff]
  %v126 = vld [vmem:[%s2 + $0x1c4] sm:$0xf]
  %v127 = vld [vmem:[%s2 + $0x1c8] sm:$0xff]
  %v128 = vld [vmem:[%s2 + $0x1d0] sm:$0xf]
  %v129 = vld [vmem:[%s2 + $0x1d4] sm:$0xff]
  %v130 = vld [vmem:[%s2 + $0x1dc] sm:$0xf]
  %v131 = vld [vmem:[%s2 + $0x1e0] sm:$0xff]
  %v132 = vld [vmem:[%s2 + $0x1e8] sm:$0xf]
  %v133 = vld [vmem:[%s2 + $0x1ec] sm:$0xff]
  %v134 = vld [vmem:[%s2 + $0x1f4] sm:$0xf]
  %v135 = vld [vmem:[%s2 + $0x1f8] sm:$0xff]
  %v136 = vld [vmem:[%s2 + $0x200] sm:$0xf]
  %v137 = vld [vmem:[%s2 + $0x204] sm:$0xff]
  %v138 = vld [vmem:[%s2 + $0x20c] sm:$0xf]
  %v139 = vld [vmem:[%s2 + $0x210] sm:$0xff]
  %v140 = vld [vmem:[%s2 + $0x218] sm:$0xf]
  %v141 = vld [vmem:[%s2 + $0x21c] sm:$0xff]
  %v142 = vld [vmem:[%s2 + $0x224] sm:$0xf]
  %v143 = vld [vmem:[%s2 + $0x228] sm:$0xff]
  %v144 = vld [vmem:[%s2 + $0x230] sm:$0xf]
  %v145 = vld [vmem:[%s2 + $0x234] sm:$0xff]
  %v146 = vld [vmem:[%s2 + $0x23c] sm:$0xf]
  %v147 = vld [vmem:[%s2 + $0x240] sm:$0xff]
  %v148 = vld [vmem:[%s2 + $0x248] sm:$0xf]
  %v149 = vld [vmem:[%s2 + $0x24c] sm:$0xff]
  %v150 = vld [vmem:[%s2 + $0x254] sm:$0xf]
  %v151 = vld [vmem:[%s2 + $0x258] sm:$0xff]
  %v152 = vld [vmem:[%s2 + $0x260] sm:$0xf]
  %v153 = vld [vmem:[%s2 + $0x264] sm:$0xff]
  %v154 = vld [vmem:[%s2 + $0x26c] sm:$0xf]
  %v155 = vld [vmem:[%s2 + $0x270] sm:$0xff]
  %v156 = vld [vmem:[%s2 + $0x278] sm:$0xf]
  %v157 = vld [vmem:[%s2 + $0x27c] sm:$0xff]
  %v158 = vld [vmem:[%s2 + $0x284] sm:$0xf]
  %v159 = vld [vmem:[%s2 + $0x288] sm:$0xff]
  %v160 = vld [vmem:[%s2 + $0x290] sm:$0xf]
  %v161 = vld [vmem:[%s2 + $0x294] sm:$0xff]
  %v162 = vld [vmem:[%s2 + $0x29c] sm:$0xf]
  %v163 = vld [vmem:[%s2 + $0x2a0] sm:$0xff]
  %v164 = vld [vmem:[%s2 + $0x2a8] sm:$0xf]
  %v165 = vld [vmem:[%s2 + $0x2ac] sm:$0xff]
  %v166 = vld [vmem:[%s2 + $0x2b4] sm:$0xf]
  %v167 = vld [vmem:[%s2 + $0x2b8] sm:$0xff]
  %v168 = vld [vmem:[%s2 + $0x2c0] sm:$0xf]
  %v169 = vld [vmem:[%s2 + $0x2c4] sm:$0xff]
  %v170 = vld [vmem:[%s2 + $0x2cc] sm:$0xf]
  %v171 = vld [vmem:[%s2 + $0x2d0] sm:$0xff]
  %v172 = vld [vmem:[%s2 + $0x2d8] sm:$0xf]
  %v173 = vld [vmem:[%s2 + $0x2dc] sm:$0xff]
  %v174 = vld [vmem:[%s2 + $0x2e4] sm:$0xf]
  %v175 = vld [vmem:[%s2 + $0x2e8] sm:$0xff]
  %v176 = vld [vmem:[%s2 + $0x2f0] sm:$0xf]
  %v177 = vld [vmem:[%s2 + $0x2f4] sm:$0xff]
  %v178 = vld [vmem:[%s2 + $0x2fc] sm:$0xf]
  %v179 = vld [vmem:[%s2 + $0x300] sm:$0xff]
  %v180 = vld [vmem:[%s2 + $0x308] sm:$0xf]
  %v181 = vld [vmem:[%s2 + $0x30c] sm:$0xff]
  %v182 = vld [vmem:[%s2 + $0x314] sm:$0xf]
  %v183 = vld [vmem:[%s2 + $0x318] sm:$0xff]
  %v184 = vld [vmem:[%s2 + $0x320] sm:$0xf]
  %v185 = vld [vmem:[%s2 + $0x324] sm:$0xff]
  %v186 = vld [vmem:[%s2 + $0x32c] sm:$0xf]
  %v187 = vld [vmem:[%s2 + $0x330] sm:$0xff]
  %v188 = vld [vmem:[%s2 + $0x338] sm:$0xf]
  %v189 = vld [vmem:[%s2 + $0x33c] sm:$0xff]
  %v190 = vld [vmem:[%s2 + $0x344] sm:$0xf]
  %v191 = vld [vmem:[%s2 + $0x348] sm:$0xff]
  %v192 = vld [vmem:[%s2 + $0x350] sm:$0xf]
  %v193 = vld [vmem:[%s2 + $0x354] sm:$0xff]
  %v194 = vld [vmem:[%s2 + $0x35c] sm:$0xf]
  %v195 = vld [vmem:[%s2 + $0x360] sm:$0xff]
  %v196 = vld [vmem:[%s2 + $0x368] sm:$0xf]
  %v197 = vld [vmem:[%s2 + $0x36c] sm:$0xff]
  %v198 = vld [vmem:[%s2 + $0x374] sm:$0xf]
  %v199 = vld [vmem:[%s2 + $0x378] sm:$0xff]
  %v200 = vld [vmem:[%s2 + $0x380] sm:$0xf]
  %v201 = vld [vmem:[%s2 + $0x384] sm:$0xff]
  %v202 = vld [vmem:[%s2 + $0x38c] sm:$0xf]
  %v203 = vld [vmem:[%s2 + $0x390] sm:$0xff]
  %v204 = vld [vmem:[%s2 + $0x398] sm:$0xf]
  %v205 = vld [vmem:[%s2 + $0x39c] sm:$0xff]
  %v206 = vld [vmem:[%s2 + $0x3a4] sm:$0xf]
  %v207 = vld [vmem:[%s2 + $0x3a8] sm:$0xff]
  %v208 = vld [vmem:[%s2 + $0x3b0] sm:$0xf]
  %v209 = vld [vmem:[%s2 + $0x3b4] sm:$0xff]
  %v210 = vld [vmem:[%s2 + $0x3bc] sm:$0xf]
  %v211 = vld [vmem:[%s2 + $0x3c0] sm:$0xff]
  %v212 = vld [vmem:[%s2 + $0x3c8] sm:$0xf]
  %v213 = vld [vmem:[%s2 + $0x3cc] sm:$0xff]
  %v214 = vld [vmem:[%s2 + $0x3d4] sm:$0xf]
  %v215 = vld [vmem:[%s2 + $0x3d8] sm:$0xff]
  %v216 = vld [vmem:[%s2 + $0x3e0] sm:$0xf]
  %v217 = vld [vmem:[%s2 + $0x3e4] sm:$0xff]
  %v218 = vld [vmem:[%s2 + $0x3ec] sm:$0xf]
  %v219 = vld [vmem:[%s3] sm:$0x7]
  %v221 = vlaneseq
  %v222 = vshrl.u32 %v221, 7
  %v223 = vsub.s32 0, %v222
  %v224 = vrot.slane %v219, %v223
  %v225 = vlaneseq
  %v226 = vshrl.u32 %v225, 7
  %v227 = vsub.s32 1, %v226
  %v228 = vrot.slane %v219, %v227
  %v229 = vlaneseq
  %v230 = vshrl.u32 %v229, 7
  %v231 = vsub.s32 2, %v230
  %v232 = vrot.slane %v219, %v231
  %v260 = vunpack.c.l.b16 %v27
  %v261 = vunpack.c.h.b16 %v27
  %v262 = vunpack.c.l.b16 %v28
  %v263 = vunpack.c.h.b16 %v28
  %v264 = vunpack.c.l.b16 %v29
  %v265 = vunpack.c.h.b16 %v29
  %v266 = vunpack.c.l.b16 %v30
  %v267 = vunpack.c.h.b16 %v30
  %v268 = vunpack.c.l.b16 %v31
  %v269 = vunpack.c.h.b16 %v31
  %v270 = vunpack.c.l.b16 %v32
  %v271 = vunpack.c.h.b16 %v32
  %v272 = vunpack.c.l.b16 %v33
  %v273 = vunpack.c.h.b16 %v33
  %v274 = vunpack.c.l.b16 %v34
  %v275 = vunpack.c.h.b16 %v34
  %v276 = vunpack.c.l.b16 %v35
  %v277 = vunpack.c.h.b16 %v35
  %v278 = vunpack.c.l.b16 %v36
  %v279 = vunpack.c.h.b16 %v36
  %v280 = vunpack.c.l.b16 %v37
  %v281 = vunpack.c.h.b16 %v37
  %v282 = vunpack.c.l.b16 %v38
  %v283 = vunpack.c.h.b16 %v38
  %v284 = vunpack.c.l.b16 %v39
  %v285 = vunpack.c.h.b16 %v39
  %v286 = vunpack.c.l.b16 %v40
  %v287 = vunpack.c.h.b16 %v40
  %v288 = vunpack.c.l.b16 %v41
  %v289 = vunpack.c.h.b16 %v41
  %v290 = vunpack.c.l.b16 %v42
  %v291 = vunpack.c.h.b16 %v42
  %v292 = vunpack.c.l.b16 %v43
  %v293 = vunpack.c.h.b16 %v43
  %v294 = vunpack.c.l.b16 %v44
  %v295 = vunpack.c.h.b16 %v44
  %v296 = vunpack.c.l.b16 %v45
  %v297 = vunpack.c.h.b16 %v45
  %v298 = vunpack.c.l.b16 %v46
  %v299 = vunpack.c.h.b16 %v46
  %v300 = vunpack.c.l.b16 %v47
  %v301 = vunpack.c.h.b16 %v47
  %v302 = vunpack.c.l.b16 %v48
  %v303 = vunpack.c.h.b16 %v48
  %v304 = vunpack.c.l.b16 %v49
  %v305 = vunpack.c.h.b16 %v49
  %v306 = vunpack.c.l.b16 %v50
  %v307 = vunpack.c.h.b16 %v50
  %v308 = vpack.c.b16 %v266, %v260
  %v309 = vpack.c.b16 %v267, %v261
  %v310 = vpack.c.b16 %v268, %v262
  %v311 = vpack.c.b16 %v269, %v263
  %v312 = vpack.c.b16 %v270, %v264
  %v313 = vpack.c.b16 %v271, %v265
  %v314 = vpack.c.b16 %v278, %v272
  %v315 = vpack.c.b16 %v279, %v273
  %v316 = vpack.c.b16 %v280, %v274
  %v317 = vpack.c.b16 %v281, %v275
  %v318 = vpack.c.b16 %v282, %v276
  %v319 = vpack.c.b16 %v283, %v277
  %v320 = vpack.c.b16 %v290, %v284
  %v321 = vpack.c.b16 %v291, %v285
  %v322 = vpack.c.b16 %v292, %v286
  %v323 = vpack.c.b16 %v293, %v287
  %v324 = vpack.c.b16 %v294, %v288
  %v325 = vpack.c.b16 %v295, %v289
  %v326 = vpack.c.b16 %v302, %v296
  %v327 = vpack.c.b16 %v303, %v297
  %v328 = vpack.c.b16 %v304, %v298
  %v329 = vpack.c.b16 %v305, %v299
  %v330 = vpack.c.b16 %v306, %v300
  %v331 = vpack.c.b16 %v307, %v301
  %v520 = vunpack.c.l.b16 %v51
  %v521 = vunpack.c.h.b16 %v51
  %v522 = vunpack.c.l.b16 %v52
  %v523 = vunpack.c.l.b16 %v53
  %v524 = vunpack.c.h.b16 %v53
  %v525 = vunpack.c.l.b16 %v54
  %v526 = vunpack.c.l.b16 %v55
  %v527 = vunpack.c.h.b16 %v55
  %v528 = vunpack.c.l.b16 %v56
  %v529 = vunpack.c.l.b16 %v57
  %v530 = vunpack.c.h.b16 %v57
  %v531 = vunpack.c.l.b16 %v58
  %v532 = vunpack.c.l.b16 %v59
  %v533 = vunpack.c.h.b16 %v59
  %v534 = vunpack.c.l.b16 %v60
  %v535 = vunpack.c.l.b16 %v61
  %v536 = vunpack.c.h.b16 %v61
  %v537 = vunpack.c.l.b16 %v62
  %v538 = vunpack.c.l.b16 %v63
  %v539 = vunpack.c.h.b16 %v63
  %v540 = vunpack.c.l.b16 %v64
  %v541 = vunpack.c.l.b16 %v65
  %v542 = vunpack.c.h.b16 %v65
  %v543 = vunpack.c.l.b16 %v66
  %v544 = vunpack.c.l.b16 %v67
  %v545 = vunpack.c.h.b16 %v67
  %v546 = vunpack.c.l.b16 %v68
  %v547 = vunpack.c.l.b16 %v69
  %v548 = vunpack.c.h.b16 %v69
  %v549 = vunpack.c.l.b16 %v70
  %v550 = vunpack.c.l.b16 %v71
  %v551 = vunpack.c.h.b16 %v71
  %v552 = vunpack.c.l.b16 %v72
  %v553 = vunpack.c.l.b16 %v73
  %v554 = vunpack.c.h.b16 %v73
  %v555 = vunpack.c.l.b16 %v74
  %v556 = vunpack.c.l.b16 %v75
  %v557 = vunpack.c.h.b16 %v75
  %v558 = vunpack.c.l.b16 %v76
  %v559 = vunpack.c.l.b16 %v77
  %v560 = vunpack.c.h.b16 %v77
  %v561 = vunpack.c.l.b16 %v78
  %v562 = vunpack.c.l.b16 %v79
  %v563 = vunpack.c.h.b16 %v79
  %v564 = vunpack.c.l.b16 %v80
  %v565 = vunpack.c.l.b16 %v81
  %v566 = vunpack.c.h.b16 %v81
  %v567 = vunpack.c.l.b16 %v82
  %v568 = vunpack.c.l.b16 %v83
  %v569 = vunpack.c.h.b16 %v83
  %v570 = vunpack.c.l.b16 %v84
  %v571 = vunpack.c.l.b16 %v85
  %v572 = vunpack.c.h.b16 %v85
  %v573 = vunpack.c.l.b16 %v86
  %v574 = vunpack.c.l.b16 %v87
  %v575 = vunpack.c.h.b16 %v87
  %v576 = vunpack.c.l.b16 %v88
  %v577 = vunpack.c.l.b16 %v89
  %v578 = vunpack.c.h.b16 %v89
  %v579 = vunpack.c.l.b16 %v90
  %v580 = vunpack.c.l.b16 %v91
  %v581 = vunpack.c.h.b16 %v91
  %v582 = vunpack.c.l.b16 %v92
  %v583 = vunpack.c.l.b16 %v93
  %v584 = vunpack.c.h.b16 %v93
  %v585 = vunpack.c.l.b16 %v94
  %v586 = vunpack.c.l.b16 %v95
  %v587 = vunpack.c.h.b16 %v95
  %v588 = vunpack.c.l.b16 %v96
  %v589 = vunpack.c.l.b16 %v97
  %v590 = vunpack.c.h.b16 %v97
  %v591 = vunpack.c.l.b16 %v98
  %v592 = vunpack.c.l.b16 %v99
  %v593 = vunpack.c.h.b16 %v99
  %v594 = vunpack.c.l.b16 %v100
  %v595 = vunpack.c.l.b16 %v101
  %v596 = vunpack.c.h.b16 %v101
  %v597 = vunpack.c.l.b16 %v102
  %v598 = vunpack.c.l.b16 %v103
  %v599 = vunpack.c.h.b16 %v103
  %v600 = vunpack.c.l.b16 %v104
  %v601 = vunpack.c.l.b16 %v105
  %v602 = vunpack.c.h.b16 %v105
  %v603 = vunpack.c.l.b16 %v106
  %v604 = vunpack.c.l.b16 %v107
  %v605 = vunpack.c.h.b16 %v107
  %v606 = vunpack.c.l.b16 %v108
  %v607 = vunpack.c.l.b16 %v109
  %v608 = vunpack.c.h.b16 %v109
  %v609 = vunpack.c.l.b16 %v110
  %v610 = vunpack.c.l.b16 %v111
  %v611 = vunpack.c.h.b16 %v111
  %v612 = vunpack.c.l.b16 %v112
  %v613 = vunpack.c.l.b16 %v113
  %v614 = vunpack.c.h.b16 %v113
  %v615 = vunpack.c.l.b16 %v114
  %v616 = vunpack.c.l.b16 %v115
  %v617 = vunpack.c.h.b16 %v115
  %v618 = vunpack.c.l.b16 %v116
  %v619 = vunpack.c.l.b16 %v117
  %v620 = vunpack.c.h.b16 %v117
  %v621 = vunpack.c.l.b16 %v118
  %v622 = vunpack.c.l.b16 %v119
  %v623 = vunpack.c.h.b16 %v119
  %v624 = vunpack.c.l.b16 %v120
  %v625 = vunpack.c.l.b16 %v121
  %v626 = vunpack.c.h.b16 %v121
  %v627 = vunpack.c.l.b16 %v122
  %v628 = vunpack.c.l.b16 %v123
  %v629 = vunpack.c.h.b16 %v123
  %v630 = vunpack.c.l.b16 %v124
  %v631 = vunpack.c.l.b16 %v125
  %v632 = vunpack.c.h.b16 %v125
  %v633 = vunpack.c.l.b16 %v126
  %v634 = vunpack.c.l.b16 %v127
  %v635 = vunpack.c.h.b16 %v127
  %v636 = vunpack.c.l.b16 %v128
  %v637 = vunpack.c.l.b16 %v129
  %v638 = vunpack.c.h.b16 %v129
  %v639 = vunpack.c.l.b16 %v130
  %v640 = vunpack.c.l.b16 %v131
  %v641 = vunpack.c.h.b16 %v131
  %v642 = vunpack.c.l.b16 %v132
  %v643 = vunpack.c.l.b16 %v133
  %v644 = vunpack.c.h.b16 %v133
  %v645 = vunpack.c.l.b16 %v134
  %v646 = vunpack.c.l.b16 %v135
  %v647 = vunpack.c.h.b16 %v135
  %v648 = vunpack.c.l.b16 %v136
  %v649 = vunpack.c.l.b16 %v137
  %v650 = vunpack.c.h.b16 %v137
  %v651 = vunpack.c.l.b16 %v138
  %v652 = vunpack.c.l.b16 %v139
  %v653 = vunpack.c.h.b16 %v139
  %v654 = vunpack.c.l.b16 %v140
  %v655 = vunpack.c.l.b16 %v141
  %v656 = vunpack.c.h.b16 %v141
  %v657 = vunpack.c.l.b16 %v142
  %v658 = vunpack.c.l.b16 %v143
  %v659 = vunpack.c.h.b16 %v143
  %v660 = vunpack.c.l.b16 %v144
  %v661 = vunpack.c.l.b16 %v145
  %v662 = vunpack.c.h.b16 %v145
  %v663 = vunpack.c.l.b16 %v146
  %v664 = vunpack.c.l.b16 %v147
  %v665 = vunpack.c.h.b16 %v147
  %v666 = vunpack.c.l.b16 %v148
  %v667 = vunpack.c.l.b16 %v149
  %v668 = vunpack.c.h.b16 %v149
  %v669 = vunpack.c.l.b16 %v150
  %v670 = vunpack.c.l.b16 %v151
  %v671 = vunpack.c.h.b16 %v151
  %v672 = vunpack.c.l.b16 %v152
  %v673 = vunpack.c.l.b16 %v153
  %v674 = vunpack.c.h.b16 %v153
  %v675 = vunpack.c.l.b16 %v154
  %v676 = vunpack.c.l.b16 %v155
  %v677 = vunpack.c.h.b16 %v155
  %v678 = vunpack.c.l.b16 %v156
  %v679 = vunpack.c.l.b16 %v157
  %v680 = vunpack.c.h.b16 %v157
  %v681 = vunpack.c.l.b16 %v158
  %v682 = vunpack.c.l.b16 %v159
  %v683 = vunpack.c.h.b16 %v159
  %v684 = vunpack.c.l.b16 %v160
  %v685 = vunpack.c.l.b16 %v161
  %v686 = vunpack.c.h.b16 %v161
  %v687 = vunpack.c.l.b16 %v162
  %v688 = vunpack.c.l.b16 %v163
  %v689 = vunpack.c.h.b16 %v163
  %v690 = vunpack.c.l.b16 %v164
  %v691 = vunpack.c.l.b16 %v165
  %v692 = vunpack.c.h.b16 %v165
  %v693 = vunpack.c.l.b16 %v166
  %v694 = vunpack.c.l.b16 %v167
  %v695 = vunpack.c.h.b16 %v167
  %v696 = vunpack.c.l.b16 %v168
  %v697 = vunpack.c.l.b16 %v169
  %v698 = vunpack.c.h.b16 %v169
  %v699 = vunpack.c.l.b16 %v170
  %v700 = vunpack.c.l.b16 %v171
  %v701 = vunpack.c.h.b16 %v171
  %v702 = vunpack.c.l.b16 %v172
  %v703 = vunpack.c.l.b16 %v173
  %v704 = vunpack.c.h.b16 %v173
  %v705 = vunpack.c.l.b16 %v174
  %v706 = vunpack.c.l.b16 %v175
  %v707 = vunpack.c.h.b16 %v175
  %v708 = vunpack.c.l.b16 %v176
  %v709 = vunpack.c.l.b16 %v177
  %v710 = vunpack.c.h.b16 %v177
  %v711 = vunpack.c.l.b16 %v178
  %v712 = vunpack.c.l.b16 %v179
  %v713 = vunpack.c.h.b16 %v179
  %v714 = vunpack.c.l.b16 %v180
  %v715 = vunpack.c.l.b16 %v181
  %v716 = vunpack.c.h.b16 %v181
  %v717 = vunpack.c.l.b16 %v182
  %v718 = vunpack.c.l.b16 %v183
  %v719 = vunpack.c.h.b16 %v183
  %v720 = vunpack.c.l.b16 %v184
  %v721 = vunpack.c.l.b16 %v185
  %v722 = vunpack.c.h.b16 %v185
  %v723 = vunpack.c.l.b16 %v186
  %v724 = vunpack.c.l.b16 %v187
  %v725 = vunpack.c.h.b16 %v187
  %v726 = vunpack.c.l.b16 %v188
  %v727 = vunpack.c.l.b16 %v189
  %v728 = vunpack.c.h.b16 %v189
  %v729 = vunpack.c.l.b16 %v190
  %v730 = vunpack.c.l.b16 %v191
  %v731 = vunpack.c.h.b16 %v191
  %v732 = vunpack.c.l.b16 %v192
  %v733 = vunpack.c.l.b16 %v193
  %v734 = vunpack.c.h.b16 %v193
  %v735 = vunpack.c.l.b16 %v194
  %v736 = vunpack.c.l.b16 %v195
  %v737 = vunpack.c.h.b16 %v195
  %v738 = vunpack.c.l.b16 %v196
  %v739 = vunpack.c.l.b16 %v197
  %v740 = vunpack.c.h.b16 %v197
  %v741 = vunpack.c.l.b16 %v198
  %v742 = vunpack.c.l.b16 %v199
  %v743 = vunpack.c.h.b16 %v199
  %v744 = vunpack.c.l.b16 %v200
  %v745 = vunpack.c.l.b16 %v201
  %v746 = vunpack.c.h.b16 %v201
  %v747 = vunpack.c.l.b16 %v202
  %v748 = vunpack.c.l.b16 %v203
  %v749 = vunpack.c.h.b16 %v203
  %v750 = vunpack.c.l.b16 %v204
  %v751 = vunpack.c.l.b16 %v205
  %v752 = vunpack.c.h.b16 %v205
  %v753 = vunpack.c.l.b16 %v206
  %v754 = vunpack.c.l.b16 %v207
  %v755 = vunpack.c.h.b16 %v207
  %v756 = vunpack.c.l.b16 %v208
  %v757 = vunpack.c.l.b16 %v209
  %v758 = vunpack.c.h.b16 %v209
  %v759 = vunpack.c.l.b16 %v210
  %v760 = vunpack.c.l.b16 %v211
  %v761 = vunpack.c.h.b16 %v211
  %v762 = vunpack.c.l.b16 %v212
  %v763 = vunpack.c.l.b16 %v213
  %v764 = vunpack.c.h.b16 %v213
  %v765 = vunpack.c.l.b16 %v214
  %v766 = vunpack.c.l.b16 %v215
  %v767 = vunpack.c.h.b16 %v215
  %v768 = vunpack.c.l.b16 %v216
  %v769 = vunpack.c.l.b16 %v217
  %v770 = vunpack.c.h.b16 %v217
  %v771 = vunpack.c.l.b16 %v218
  %v772 = vpack.c.b16 %v523, %v520
  %v773 = vpack.c.b16 %v524, %v521
  %v774 = vpack.c.b16 %v525, %v522
  %v775 = vpack.c.b16 %v529, %v526
  %v776 = vpack.c.b16 %v530, %v527
  %v777 = vpack.c.b16 %v531, %v528
  %v778 = vpack.c.b16 %v535, %v532
  %v779 = vpack.c.b16 %v536, %v533
  %v780 = vpack.c.b16 %v537, %v534
  %v781 = vpack.c.b16 %v541, %v538
  %v782 = vpack.c.b16 %v542, %v539
  %v783 = vpack.c.b16 %v543, %v540
  %v784 = vpack.c.b16 %v547, %v544
  %v785 = vpack.c.b16 %v548, %v545
  %v786 = vpack.c.b16 %v549, %v546
  %v787 = vpack.c.b16 %v553, %v550
  %v788 = vpack.c.b16 %v554, %v551
  %v789 = vpack.c.b16 %v555, %v552
  %v790 = vpack.c.b16 %v559, %v556
  %v791 = vpack.c.b16 %v560, %v557
  %v792 = vpack.c.b16 %v561, %v558
  %v793 = vpack.c.b16 %v565, %v562
  %v794 = vpack.c.b16 %v566, %v563
  %v795 = vpack.c.b16 %v567, %v564
  %v796 = vpack.c.b16 %v571, %v568
  %v797 = vpack.c.b16 %v572, %v569
  %v798 = vpack.c.b16 %v573, %v570
  %v799 = vpack.c.b16 %v577, %v574
  %v800 = vpack.c.b16 %v578, %v575
  %v801 = vpack.c.b16 %v579, %v576
  %v802 = vpack.c.b16 %v583, %v580
  %v803 = vpack.c.b16 %v584, %v581
  %v804 = vpack.c.b16 %v585, %v582
  %v805 = vpack.c.b16 %v589, %v586
  %v806 = vpack.c.b16 %v590, %v587
  %v807 = vpack.c.b16 %v591, %v588
  %v808 = vpack.c.b16 %v595, %v592
  %v809 = vpack.c.b16 %v596, %v593
  %v810 = vpack.c.b16 %v597, %v594
  %v811 = vpack.c.b16 %v601, %v598
  %v812 = vpack.c.b16 %v602, %v599
  %v813 = vpack.c.b16 %v603, %v600
  %v814 = vpack.c.b16 %v607, %v604
  %v815 = vpack.c.b16 %v608, %v605
  %v816 = vpack.c.b16 %v609, %v606
  %v817 = vpack.c.b16 %v613, %v610
  %v818 = vpack.c.b16 %v614, %v611
  %v819 = vpack.c.b16 %v615, %v612
  %v820 = vpack.c.b16 %v619, %v616
  %v821 = vpack.c.b16 %v620, %v617
  %v822 = vpack.c.b16 %v621, %v618
  %v823 = vpack.c.b16 %v625, %v622
  %v824 = vpack.c.b16 %v626, %v623
  %v825 = vpack.c.b16 %v627, %v624
  %v826 = vpack.c.b16 %v631, %v628
  %v827 = vpack.c.b16 %v632, %v629
  %v828 = vpack.c.b16 %v633, %v630
  %v829 = vpack.c.b16 %v637, %v634
  %v830 = vpack.c.b16 %v638, %v635
  %v831 = vpack.c.b16 %v639, %v636
  %v832 = vpack.c.b16 %v643, %v640
  %v833 = vpack.c.b16 %v644, %v641
  %v834 = vpack.c.b16 %v645, %v642
  %v835 = vpack.c.b16 %v649, %v646
  %v836 = vpack.c.b16 %v650, %v647
  %v837 = vpack.c.b16 %v651, %v648
  %v838 = vpack.c.b16 %v655, %v652
  %v839 = vpack.c.b16 %v656, %v653
  %v840 = vpack.c.b16 %v657, %v654
  %v841 = vpack.c.b16 %v661, %v658
  %v842 = vpack.c.b16 %v662, %v659
  %v843 = vpack.c.b16 %v663, %v660
  %v844 = vpack.c.b16 %v667, %v664
  %v845 = vpack.c.b16 %v668, %v665
  %v846 = vpack.c.b16 %v669, %v666
  %v847 = vpack.c.b16 %v673, %v670
  %v848 = vpack.c.b16 %v674, %v671
  %v849 = vpack.c.b16 %v675, %v672
  %v850 = vpack.c.b16 %v679, %v676
  %v851 = vpack.c.b16 %v680, %v677
  %v852 = vpack.c.b16 %v681, %v678
  %v853 = vpack.c.b16 %v685, %v682
  %v854 = vpack.c.b16 %v686, %v683
  %v855 = vpack.c.b16 %v687, %v684
  %v856 = vpack.c.b16 %v691, %v688
  %v857 = vpack.c.b16 %v692, %v689
  %v858 = vpack.c.b16 %v693, %v690
  %v859 = vpack.c.b16 %v697, %v694
  %v860 = vpack.c.b16 %v698, %v695
  %v861 = vpack.c.b16 %v699, %v696
  %v862 = vpack.c.b16 %v703, %v700
  %v863 = vpack.c.b16 %v704, %v701
  %v864 = vpack.c.b16 %v705, %v702
  %v865 = vpack.c.b16 %v709, %v706
  %v866 = vpack.c.b16 %v710, %v707
  %v867 = vpack.c.b16 %v711, %v708
  %v868 = vpack.c.b16 %v715, %v712
  %v869 = vpack.c.b16 %v716, %v713
  %v870 = vpack.c.b16 %v717, %v714
  %v871 = vpack.c.b16 %v721, %v718
  %v872 = vpack.c.b16 %v722, %v719
  %v873 = vpack.c.b16 %v723, %v720
  %v874 = vpack.c.b16 %v727, %v724
  %v875 = vpack.c.b16 %v728, %v725
  %v876 = vpack.c.b16 %v729, %v726
  %v877 = vpack.c.b16 %v733, %v730
  %v878 = vpack.c.b16 %v734, %v731
  %v879 = vpack.c.b16 %v735, %v732
  %v880 = vpack.c.b16 %v739, %v736
  %v881 = vpack.c.b16 %v740, %v737
  %v882 = vpack.c.b16 %v741, %v738
  %v883 = vpack.c.b16 %v745, %v742
  %v884 = vpack.c.b16 %v746, %v743
  %v885 = vpack.c.b16 %v747, %v744
  %v886 = vpack.c.b16 %v751, %v748
  %v887 = vpack.c.b16 %v752, %v749
  %v888 = vpack.c.b16 %v753, %v750
  %v889 = vpack.c.b16 %v757, %v754
  %v890 = vpack.c.b16 %v758, %v755
  %v891 = vpack.c.b16 %v759, %v756
  %v892 = vpack.c.b16 %v763, %v760
  %v893 = vpack.c.b16 %v764, %v761
  %v894 = vpack.c.b16 %v765, %v762
  %v895 = vpack.c.b16 %v769, %v766
  %v896 = vpack.c.b16 %v770, %v767
  %v897 = vpack.c.b16 %v771, %v768
  %vm1024 = vcmask 261120
  %v1026 = vsel %vm1024, %v313, 0
  %v1029 = vsel %vm1024, %v319, 0
  %v1032 = vsel %vm1024, %v325, 0
  %v1035 = vsel %vm1024, %v331, 0
  %1037 = vmatprep.subr.bf16.mxu0 %v794
  %1038 = vmatpush1.bf16.msra.mxu0 %v793
  %1039 = vmatprep.subr.bf16.mxu0 %v791
  %1040 = vmatpush1.bf16.msra.mxu0 %v790
  %1041 = vmatprep.subr.bf16.mxu0 %v788
  %1042 = vmatpush1.bf16.msra.mxu0 %v787
  %1043 = vmatprep.subr.bf16.mxu0 %v785
  %1044 = vmatpush1.bf16.msra.mxu0 %v784
  %1045 = vmatprep.subr.bf16.mxu0 %v782
  %1046 = vmatpush1.bf16.msra.mxu0 %v781
  %1047 = vmatprep.subr.bf16.mxu0 %v779
  %1048 = vmatpush1.bf16.msra.mxu0 %v778
  %1049 = vmatprep.subr.bf16.mxu0 %v776
  %1050 = vmatpush1.bf16.msra.mxu0 %v775
  %1051 = vmatprep.subr.bf16.mxu0 %v773
  %1052 = vmatpush1.bf16.msra.mxu0 %v772
  %1053 = vmatprep.subr.bf16.mxu0 %v818
  %1054 = vmatpush2.bf16.msra.mxu0 %v817
  %1055 = vmatprep.subr.bf16.mxu0 %v815
  %1056 = vmatpush2.bf16.msra.mxu0 %v814
  %1057 = vmatprep.subr.bf16.mxu0 %v812
  %1058 = vmatpush2.bf16.msra.mxu0 %v811
  %1059 = vmatprep.subr.bf16.mxu0 %v809
  %1060 = vmatpush2.bf16.msra.mxu0 %v808
  %1061 = vmatprep.subr.bf16.mxu0 %v806
  %1062 = vmatpush2.bf16.msra.mxu0 %v805
  %1063 = vmatprep.subr.bf16.mxu0 %v803
  %1064 = vmatpush2.bf16.msra.mxu0 %v802
  %1065 = vmatprep.subr.bf16.mxu0 %v800
  %1066 = vmatpush2.bf16.msra.mxu0 %v799
  %1067 = vmatprep.subr.bf16.mxu0 %v797
  %1068 = vmatpush2.bf16.msra.mxu0 %v796
  %1069 = vmatprep.mubr.bf16.mxu0 %v309
  %1070 = vmatmul.mubr.bf16.gmra.mxu0 %v308
  %v1071 = vpop.f32.mrf.mxu0
  %v1072 = vadd.f32 %v224, %v1071
  %v1073 = vpop.f32.mrf.mxu0
  %v1074 = vadd.f32 %v228, %v1073
  %v1075 = vpop.f32.mrf.mxu0
  %v1076 = vadd.f32 %v224, %v1075
  %v1077 = vpop.f32.mrf.mxu0
  %v1078 = vadd.f32 %v228, %v1077
  %1079 = vmatprep.mubr.bf16.mxu0 %v315
  %1080 = vmatmul.mubr.bf16.gmra.mxu0 %v314
  %v1081 = vpop.f32.mrf.mxu0
  %v1082 = vadd.f32 %v224, %v1081
  %v1083 = vpop.f32.mrf.mxu0
  %v1084 = vadd.f32 %v228, %v1083
  %v1085 = vpop.f32.mrf.mxu0
  %v1086 = vadd.f32 %v224, %v1085
  %v1087 = vpop.f32.mrf.mxu0
  %v1088 = vadd.f32 %v228, %v1087
  %1089 = vmatprep.mubr.bf16.mxu0 %v321
  %1090 = vmatmul.mubr.bf16.gmra.mxu0 %v320
  %v1091 = vpop.f32.mrf.mxu0
  %v1092 = vadd.f32 %v224, %v1091
  %v1093 = vpop.f32.mrf.mxu0
  %v1094 = vadd.f32 %v228, %v1093
  %v1095 = vpop.f32.mrf.mxu0
  %v1096 = vadd.f32 %v224, %v1095
  %v1097 = vpop.f32.mrf.mxu0
  %v1098 = vadd.f32 %v228, %v1097
  %1099 = vmatprep.mubr.bf16.mxu0 %v327
  %1100 = vmatmul.mubr.bf16.gmra.mxu0 %v326
  %v1101 = vpop.f32.mrf.mxu0
  %v1102 = vadd.f32 %v224, %v1101
  %v1103 = vpop.f32.mrf.mxu0
  %v1104 = vadd.f32 %v228, %v1103
  %v1105 = vpop.f32.mrf.mxu0
  %v1106 = vadd.f32 %v224, %v1105
  %v1107 = vpop.f32.mrf.mxu0
  %v1108 = vadd.f32 %v228, %v1107
  %1109 = vdwg.mxu0
  %1110 = vmatprep.subr.bf16.mxu0 %v842
  %1111 = vmatpush1.bf16.msra.mxu0 %v841
  %1112 = vmatprep.subr.bf16.mxu0 %v839
  %1113 = vmatpush1.bf16.msra.mxu0 %v838
  %1114 = vmatprep.subr.bf16.mxu0 %v836
  %1115 = vmatpush1.bf16.msra.mxu0 %v835
  %1116 = vmatprep.subr.bf16.mxu0 %v833
  %1117 = vmatpush1.bf16.msra.mxu0 %v832
  %1118 = vmatprep.subr.bf16.mxu0 %v830
  %1119 = vmatpush1.bf16.msra.mxu0 %v829
  %1120 = vmatprep.subr.bf16.mxu0 %v827
  %1121 = vmatpush1.bf16.msra.mxu0 %v826
  %1122 = vmatprep.subr.bf16.mxu0 %v824
  %1123 = vmatpush1.bf16.msra.mxu0 %v823
  %1124 = vmatprep.subr.bf16.mxu0 %v821
  %1125 = vmatpush1.bf16.msra.mxu0 %v820
  %1126 = vmatprep.subr.bf16.mxu0 %v866
  %1127 = vmatpush2.bf16.msra.mxu0 %v865
  %1128 = vmatprep.subr.bf16.mxu0 %v863
  %1129 = vmatpush2.bf16.msra.mxu0 %v862
  %1130 = vmatprep.subr.bf16.mxu0 %v860
  %1131 = vmatpush2.bf16.msra.mxu0 %v859
  %1132 = vmatprep.subr.bf16.mxu0 %v857
  %1133 = vmatpush2.bf16.msra.mxu0 %v856
  %1134 = vmatprep.subr.bf16.mxu0 %v854
  %1135 = vmatpush2.bf16.msra.mxu0 %v853
  %1136 = vmatprep.subr.bf16.mxu0 %v851
  %1137 = vmatpush2.bf16.msra.mxu0 %v850
  %1138 = vmatprep.subr.bf16.mxu0 %v848
  %1139 = vmatpush2.bf16.msra.mxu0 %v847
  %1140 = vmatprep.subr.bf16.mxu0 %v845
  %1141 = vmatpush2.bf16.msra.mxu0 %v844
  %1142 = vmatprep.mubr.bf16.mxu0 %v311
  %1143 = vmatmul.mubr.bf16.gmra.mxu0 %v310
  %v1144 = vpop.f32.mrf.mxu0
  %v1145 = vadd.f32 %v1072, %v1144
  %v1146 = vpop.f32.mrf.mxu0
  %v1147 = vadd.f32 %v1074, %v1146
  %v1148 = vpop.f32.mrf.mxu0
  %v1149 = vadd.f32 %v1076, %v1148
  %v1150 = vpop.f32.mrf.mxu0
  %v1151 = vadd.f32 %v1078, %v1150
  %1152 = vmatprep.mubr.bf16.mxu0 %v317
  %1153 = vmatmul.mubr.bf16.gmra.mxu0 %v316
  %v1154 = vpop.f32.mrf.mxu0
  %v1155 = vadd.f32 %v1082, %v1154
  %v1156 = vpop.f32.mrf.mxu0
  %v1157 = vadd.f32 %v1084, %v1156
  %v1158 = vpop.f32.mrf.mxu0
  %v1159 = vadd.f32 %v1086, %v1158
  %v1160 = vpop.f32.mrf.mxu0
  %v1161 = vadd.f32 %v1088, %v1160
  %1162 = vmatprep.mubr.bf16.mxu0 %v323
  %1163 = vmatmul.mubr.bf16.gmra.mxu0 %v322
  %v1164 = vpop.f32.mrf.mxu0
  %v1165 = vadd.f32 %v1092, %v1164
  %v1166 = vpop.f32.mrf.mxu0
  %v1167 = vadd.f32 %v1094, %v1166
  %v1168 = vpop.f32.mrf.mxu0
  %v1169 = vadd.f32 %v1096, %v1168
  %v1170 = vpop.f32.mrf.mxu0
  %v1171 = vadd.f32 %v1098, %v1170
  %1172 = vmatprep.mubr.bf16.mxu0 %v329
  %1173 = vmatmul.mubr.bf16.gmra.mxu0 %v328
  %v1174 = vpop.f32.mrf.mxu0
  %v1175 = vadd.f32 %v1102, %v1174
  %v1176 = vpop.f32.mrf.mxu0
  %v1177 = vadd.f32 %v1104, %v1176
  %v1178 = vpop.f32.mrf.mxu0
  %v1179 = vadd.f32 %v1106, %v1178
  %v1180 = vpop.f32.mrf.mxu0
  %v1181 = vadd.f32 %v1108, %v1180
  %1182 = vdwg.mxu0
  %1183 = vmatprep.subr.bf16.mxu0 %v890
  %1184 = vmatpush1.bf16.msra.mxu0 %v889
  %1185 = vmatprep.subr.bf16.mxu0 %v887
  %1186 = vmatpush1.bf16.msra.mxu0 %v886
  %1187 = vmatprep.subr.bf16.mxu0 %v884
  %1188 = vmatpush1.bf16.msra.mxu0 %v883
  %1189 = vmatprep.subr.bf16.mxu0 %v881
  %1190 = vmatpush1.bf16.msra.mxu0 %v880
  %1191 = vmatprep.subr.bf16.mxu0 %v878
  %1192 = vmatpush1.bf16.msra.mxu0 %v877
  %1193 = vmatprep.subr.bf16.mxu0 %v875
  %1194 = vmatpush1.bf16.msra.mxu0 %v874
  %1195 = vmatprep.subr.bf16.mxu0 %v872
  %1196 = vmatpush1.bf16.msra.mxu0 %v871
  %1197 = vmatprep.subr.bf16.mxu0 %v869
  %1198 = vmatpush1.bf16.msra.mxu0 %v868
  %1199 = vmatprep.subr.bf16.mxu0 0
  %1200 = vmatpush2.bf16.msra.mxu0 0
  %1201 = vmatprep.subr.bf16.mxu0 0
  %1202 = vmatpush2.bf16.msra.mxu0 0
  %1203 = vmatprep.subr.bf16.mxu0 0
  %1204 = vmatpush2.bf16.msra.mxu0 0
  %1205 = vmatprep.subr.bf16.mxu0 0
  %1206 = vmatpush2.bf16.msra.mxu0 0
  %1207 = vmatprep.subr.bf16.mxu0 0
  %1208 = vmatpush2.bf16.msra.mxu0 0
  %1209 = vmatprep.subr.bf16.mxu0 0
  %1210 = vmatpush2.bf16.msra.mxu0 0
  %1211 = vmatprep.subr.bf16.mxu0 %v896
  %1212 = vmatpush2.bf16.msra.mxu0 %v895
  %1213 = vmatprep.subr.bf16.mxu0 %v893
  %1214 = vmatpush2.bf16.msra.mxu0 %v892
  %1215 = vmatprep.mubr.bf16.mxu0 %v1026
  %1216 = vmatmul.mubr.bf16.gmra.mxu0 %v312
  %v1217 = vpop.f32.mrf.mxu0
  %v1218 = vadd.f32 %v1145, %v1217
  %v1219 = vpop.f32.mrf.mxu0
  %v1220 = vadd.f32 %v1147, %v1219
  %v1221 = vpop.f32.mrf.mxu0
  %v1222 = vadd.f32 %v1149, %v1221
  %v1223 = vpop.f32.mrf.mxu0
  %v1224 = vadd.f32 %v1151, %v1223
  %1225 = vmatprep.mubr.bf16.mxu0 %v1029
  %1226 = vmatmul.mubr.bf16.gmra.mxu0 %v318
  %v1227 = vpop.f32.mrf.mxu0
  %v1228 = vadd.f32 %v1155, %v1227
  %v1229 = vpop.f32.mrf.mxu0
  %v1230 = vadd.f32 %v1157, %v1229
  %v1231 = vpop.f32.mrf.mxu0
  %v1232 = vadd.f32 %v1159, %v1231
  %v1233 = vpop.f32.mrf.mxu0
  %v1234 = vadd.f32 %v1161, %v1233
  %1235 = vmatprep.mubr.bf16.mxu0 %v1032
  %1236 = vmatmul.mubr.bf16.gmra.mxu0 %v324
  %v1237 = vpop.f32.mrf.mxu0
  %v1238 = vadd.f32 %v1165, %v1237
  %v1239 = vpop.f32.mrf.mxu0
  %v1240 = vadd.f32 %v1167, %v1239
  %v1241 = vpop.f32.mrf.mxu0
  %v1242 = vadd.f32 %v1169, %v1241
  %v1243 = vpop.f32.mrf.mxu0
  %v1244 = vadd.f32 %v1171, %v1243
  %1245 = vmatprep.mubr.bf16.mxu0 %v1035
  %1246 = vmatmul.mubr.bf16.gmra.mxu0 %v330
  %v1247 = vpop.f32.mrf.mxu0
  %v1248 = vadd.f32 %v1175, %v1247
  %v1249 = vpop.f32.mrf.mxu0
  %v1250 = vadd.f32 %v1177, %v1249
  %v1251 = vpop.f32.mrf.mxu0
  %v1252 = vadd.f32 %v1179, %v1251
  %v1253 = vpop.f32.mrf.mxu0
  %v1254 = vadd.f32 %v1181, %v1253
  %1255 = vdwg.mxu0
  %1256 = vmatprep.subr.bf16.mxu0 0
  %1257 = vmatpush1.bf16.msra.mxu0 %v795
  %1258 = vmatprep.subr.bf16.mxu0 0
  %1259 = vmatpush1.bf16.msra.mxu0 %v792
  %1260 = vmatprep.subr.bf16.mxu0 0
  %1261 = vmatpush1.bf16.msra.mxu0 %v789
  %1262 = vmatprep.subr.bf16.mxu0 0
  %1263 = vmatpush1.bf16.msra.mxu0 %v786
  %1264 = vmatprep.subr.bf16.mxu0 0
  %1265 = vmatpush1.bf16.msra.mxu0 %v783
  %1266 = vmatprep.subr.bf16.mxu0 0
  %1267 = vmatpush1.bf16.msra.mxu0 %v780
  %1268 = vmatprep.subr.bf16.mxu0 0
  %1269 = vmatpush1.bf16.msra.mxu0 %v777
  %1270 = vmatprep.subr.bf16.mxu0 0
  %1271 = vmatpush1.bf16.msra.mxu0 %v774
  %1272 = vmatprep.subr.bf16.mxu0 0
  %1273 = vmatpush2.bf16.msra.mxu0 %v819
  %1274 = vmatprep.subr.bf16.mxu0 0
  %1275 = vmatpush2.bf16.msra.mxu0 %v816
  %1276 = vmatprep.subr.bf16.mxu0 0
  %1277 = vmatpush2.bf16.msra.mxu0 %v813
  %1278 = vmatprep.subr.bf16.mxu0 0
  %1279 = vmatpush2.bf16.msra.mxu0 %v810
  %1280 = vmatprep.subr.bf16.mxu0 0
  %1281 = vmatpush2.bf16.msra.mxu0 %v807
  %1282 = vmatprep.subr.bf16.mxu0 0
  %1283 = vmatpush2.bf16.msra.mxu0 %v804
  %1284 = vmatprep.subr.bf16.mxu0 0
  %1285 = vmatpush2.bf16.msra.mxu0 %v801
  %1286 = vmatprep.subr.bf16.mxu0 0
  %1287 = vmatpush2.bf16.msra.mxu0 %v798
  %1288 = vmatprep.mubr.bf16.mxu0 %v309
  %1289 = vmatmul.mubr.bf16.gmra.mxu0 %v308
  %v1290 = vpop.f32.mrf.mxu0
  %v1291 = vadd.f32 %v232, %v1290
  %v1292 = vpop.f32.mrf.mxu0
  %v1293 = vpop.f32.mrf.mxu0
  %v1294 = vadd.f32 %v232, %v1293
  %v1295 = vpop.f32.mrf.mxu0
  %1296 = vmatprep.mubr.bf16.mxu0 %v315
  %1297 = vmatmul.mubr.bf16.gmra.mxu0 %v314
  %v1298 = vpop.f32.mrf.mxu0
  %v1299 = vadd.f32 %v232, %v1298
  %v1300 = vpop.f32.mrf.mxu0
  %v1301 = vpop.f32.mrf.mxu0
  %v1302 = vadd.f32 %v232, %v1301
  %v1303 = vpop.f32.mrf.mxu0
  %1304 = vmatprep.mubr.bf16.mxu0 %v321
  %1305 = vmatmul.mubr.bf16.gmra.mxu0 %v320
  %v1306 = vpop.f32.mrf.mxu0
  %v1307 = vadd.f32 %v232, %v1306
  %v1308 = vpop.f32.mrf.mxu0
  %v1309 = vpop.f32.mrf.mxu0
  %v1310 = vadd.f32 %v232, %v1309
  %v1311 = vpop.f32.mrf.mxu0
  %1312 = vmatprep.mubr.bf16.mxu0 %v327
  %1313 = vmatmul.mubr.bf16.gmra.mxu0 %v326
  %v1314 = vpop.f32.mrf.mxu0
  %v1315 = vadd.f32 %v232, %v1314
  %v1316 = vpop.f32.mrf.mxu0
  %v1317 = vpop.f32.mrf.mxu0
  %v1318 = vadd.f32 %v232, %v1317
  %v1319 = vpop.f32.mrf.mxu0
  %1320 = vdwg.mxu0
  %1321 = vmatprep.subr.bf16.mxu0 0
  %1322 = vmatpush1.bf16.msra.mxu0 %v843
  %1323 = vmatprep.subr.bf16.mxu0 0
  %1324 = vmatpush1.bf16.msra.mxu0 %v840
  %1325 = vmatprep.subr.bf16.mxu0 0
  %1326 = vmatpush1.bf16.msra.mxu0 %v837
  %1327 = vmatprep.subr.bf16.mxu0 0
  %1328 = vmatpush1.bf16.msra.mxu0 %v834
  %1329 = vmatprep.subr.bf16.mxu0 0
  %1330 = vmatpush1.bf16.msra.mxu0 %v831
  %1331 = vmatprep.subr.bf16.mxu0 0
  %1332 = vmatpush1.bf16.msra.mxu0 %v828
  %1333 = vmatprep.subr.bf16.mxu0 0
  %1334 = vmatpush1.bf16.msra.mxu0 %v825
  %1335 = vmatprep.subr.bf16.mxu0 0
  %1336 = vmatpush1.bf16.msra.mxu0 %v822
  %1337 = vmatprep.subr.bf16.mxu0 0
  %1338 = vmatpush2.bf16.msra.mxu0 %v867
  %1339 = vmatprep.subr.bf16.mxu0 0
  %1340 = vmatpush2.bf16.msra.mxu0 %v864
  %1341 = vmatprep.subr.bf16.mxu0 0
  %1342 = vmatpush2.bf16.msra.mxu0 %v861
  %1343 = vmatprep.subr.bf16.mxu0 0
  %1344 = vmatpush2.bf16.msra.mxu0 %v858
  %1345 = vmatprep.subr.bf16.mxu0 0
  %1346 = vmatpush2.bf16.msra.mxu0 %v855
  %1347 = vmatprep.subr.bf16.mxu0 0
  %1348 = vmatpush2.bf16.msra.mxu0 %v852
  %1349 = vmatprep.subr.bf16.mxu0 0
  %1350 = vmatpush2.bf16.msra.mxu0 %v849
  %1351 = vmatprep.subr.bf16.mxu0 0
  %1352 = vmatpush2.bf16.msra.mxu0 %v846
  %1353 = vmatprep.mubr.bf16.mxu0 %v311
  %1354 = vmatmul.mubr.bf16.gmra.mxu0 %v310
  %v1355 = vpop.f32.mrf.mxu0
  %v1356 = vadd.f32 %v1291, %v1355
  %v1357 = vpop.f32.mrf.mxu0
  %v1358 = vpop.f32.mrf.mxu0
  %v1359 = vadd.f32 %v1294, %v1358
  %v1360 = vpop.f32.mrf.mxu0
  %1361 = vmatprep.mubr.bf16.mxu0 %v317
  %1362 = vmatmul.mubr.bf16.gmra.mxu0 %v316
  %v1363 = vpop.f32.mrf.mxu0
  %v1364 = vadd.f32 %v1299, %v1363
  %v1365 = vpop.f32.mrf.mxu0
  %v1366 = vpop.f32.mrf.mxu0
  %v1367 = vadd.f32 %v1302, %v1366
  %v1368 = vpop.f32.mrf.mxu0
  %1369 = vmatprep.mubr.bf16.mxu0 %v323
  %1370 = vmatmul.mubr.bf16.gmra.mxu0 %v322
  %v1371 = vpop.f32.mrf.mxu0
  %v1372 = vadd.f32 %v1307, %v1371
  %v1373 = vpop.f32.mrf.mxu0
  %v1374 = vpop.f32.mrf.mxu0
  %v1375 = vadd.f32 %v1310, %v1374
  %v1376 = vpop.f32.mrf.mxu0
  %1377 = vmatprep.mubr.bf16.mxu0 %v329
  %1378 = vmatmul.mubr.bf16.gmra.mxu0 %v328
  %v1379 = vpop.f32.mrf.mxu0
  %v1380 = vadd.f32 %v1315, %v1379
  %v1381 = vpop.f32.mrf.mxu0
  %v1382 = vpop.f32.mrf.mxu0
  %v1383 = vadd.f32 %v1318, %v1382
  %v1384 = vpop.f32.mrf.mxu0
  %1385 = vdwg.mxu0
  %1386 = vmatprep.subr.bf16.mxu0 0
  %1387 = vmatpush1.bf16.msra.mxu0 %v891
  %1388 = vmatprep.subr.bf16.mxu0 0
  %1389 = vmatpush1.bf16.msra.mxu0 %v888
  %1390 = vmatprep.subr.bf16.mxu0 0
  %1391 = vmatpush1.bf16.msra.mxu0 %v885
  %1392 = vmatprep.subr.bf16.mxu0 0
  %1393 = vmatpush1.bf16.msra.mxu0 %v882
  %1394 = vmatprep.subr.bf16.mxu0 0
  %1395 = vmatpush1.bf16.msra.mxu0 %v879
  %1396 = vmatprep.subr.bf16.mxu0 0
  %1397 = vmatpush1.bf16.msra.mxu0 %v876
  %1398 = vmatprep.subr.bf16.mxu0 0
  %1399 = vmatpush1.bf16.msra.mxu0 %v873
  %1400 = vmatprep.subr.bf16.mxu0 0
  %1401 = vmatpush1.bf16.msra.mxu0 %v870
  %1402 = vmatprep.subr.bf16.mxu0 0
  %1403 = vmatpush2.bf16.msra.mxu0 0
  %1404 = vmatprep.subr.bf16.mxu0 0
  %1405 = vmatpush2.bf16.msra.mxu0 0
  %1406 = vmatprep.subr.bf16.mxu0 0
  %1407 = vmatpush2.bf16.msra.mxu0 0
  %1408 = vmatprep.subr.bf16.mxu0 0
  %1409 = vmatpush2.bf16.msra.mxu0 0
  %1410 = vmatprep.subr.bf16.mxu0 0
  %1411 = vmatpush2.bf16.msra.mxu0 0
  %1412 = vmatprep.subr.bf16.mxu0 0
  %1413 = vmatpush2.bf16.msra.mxu0 0
  %1414 = vmatprep.subr.bf16.mxu0 0
  %1415 = vmatpush2.bf16.msra.mxu0 %v897
  %1416 = vmatprep.subr.bf16.mxu0 0
  %1417 = vmatpush2.bf16.msra.mxu0 %v894
  %1418 = vmatprep.mubr.bf16.mxu0 %v1026
  %1419 = vmatmul.mubr.bf16.gmra.mxu0 %v312
  %v1420 = vpop.f32.mrf.mxu0
  %v1421 = vadd.f32 %v1356, %v1420
  %v1422 = vpop.f32.mrf.mxu0
  %v1423 = vpop.f32.mrf.mxu0
  %v1424 = vadd.f32 %v1359, %v1423
  %v1425 = vpop.f32.mrf.mxu0
  %1426 = vmatprep.mubr.bf16.mxu0 %v1029
  %1427 = vmatmul.mubr.bf16.gmra.mxu0 %v318
  %v1428 = vpop.f32.mrf.mxu0
  %v1429 = vadd.f32 %v1364, %v1428
  %v1430 = vpop.f32.mrf.mxu0
  %v1431 = vpop.f32.mrf.mxu0
  %v1432 = vadd.f32 %v1367, %v1431
  %v1433 = vpop.f32.mrf.mxu0
  %1434 = vmatprep.mubr.bf16.mxu0 %v1032
  %1435 = vmatmul.mubr.bf16.gmra.mxu0 %v324
  %v1436 = vpop.f32.mrf.mxu0
  %v1437 = vadd.f32 %v1372, %v1436
  %v1438 = vpop.f32.mrf.mxu0
  %v1439 = vpop.f32.mrf.mxu0
  %v1440 = vadd.f32 %v1375, %v1439
  %v1441 = vpop.f32.mrf.mxu0
  %1442 = vmatprep.mubr.bf16.mxu0 %v1035
  %1443 = vmatmul.mubr.bf16.gmra.mxu0 %v330
  %v1444 = vpop.f32.mrf.mxu0
  %v1445 = vadd.f32 %v1380, %v1444
  %v1446 = vpop.f32.mrf.mxu0
  %v1447 = vpop.f32.mrf.mxu0
  %v1448 = vadd.f32 %v1383, %v1447
  %v1449 = vpop.f32.mrf.mxu0
  %1450 = vdwg.mxu0
  %v1451 = vpack.c.bf16 %v1222, %v1218
  %v1452 = vpack.c.bf16 %v1224, %v1220
  %v1453 = vpack.c.bf16 %v1424, %v1421
  %v1454 = vpack.c.bf16 %v1232, %v1228
  %v1455 = vpack.c.bf16 %v1234, %v1230
  %v1456 = vpack.c.bf16 %v1432, %v1429
  %v1457 = vpack.c.bf16 %v1242, %v1238
  %v1458 = vpack.c.bf16 %v1244, %v1240
  %v1459 = vpack.c.bf16 %v1440, %v1437
  %v1460 = vpack.c.bf16 %v1252, %v1248
  %v1461 = vpack.c.bf16 %v1254, %v1250
  %v1462 = vpack.c.bf16 %v1448, %v1445
  %v1463 = vld [vmem:[%s4] sm:$0xf]
  %v1464 = vld [vmem:[%s4 + $0x4] sm:$0xf]
  %v1465 = vld [vmem:[%s4 + $0x8] sm:$0xf]
  %v1466 = vld [vmem:[%s4 + $0xc] sm:$0xf]
  %v1467 = vld [vmem:[%s4 + $0x10] sm:$0xf]
  %v1468 = vld [vmem:[%s4 + $0x14] sm:$0xf]
  %v1469 = vld [vmem:[%s4 + $0x18] sm:$0xf]
  %v1470 = vld [vmem:[%s4 + $0x1c] sm:$0xf]
  %v1471 = vld [vmem:[%s4 + $0x20] sm:$0xf]
  %v1472 = vld [vmem:[%s4 + $0x24] sm:$0xf]
  %v1473 = vld [vmem:[%s4 + $0x28] sm:$0xf]
  %v1474 = vld [vmem:[%s4 + $0x2c] sm:$0xf]
  %v1475 = vld [vmem:[%s4 + $0x30] sm:$0xf]
  %v1476 = vld [vmem:[%s4 + $0x34] sm:$0xf]
  %v1477 = vld [vmem:[%s4 + $0x38] sm:$0xf]
  %v1478 = vld [vmem:[%s4 + $0x3c] sm:$0xf]
  %v1479 = vld [vmem:[%s4 + $0x40] sm:$0xf]
  %v1480 = vld [vmem:[%s4 + $0x44] sm:$0xf]
  %v1481 = vld [vmem:[%s4 + $0x48] sm:$0xf]
  %v1482 = vld [vmem:[%s4 + $0x4c] sm:$0xf]
  %v1483 = vld [vmem:[%s4 + $0x50] sm:$0xf]
  %v1484 = vld [vmem:[%s4 + $0x54] sm:$0xf]
  %v1485 = vld [vmem:[%s4 + $0x58] sm:$0xf]
  %v1486 = vld [vmem:[%s4 + $0x5c] sm:$0xf]
  %v1487 = vld [vmem:[%s4 + $0x60] sm:$0xf]
  %v1488 = vld [vmem:[%s4 + $0x64] sm:$0xf]
  %v1489 = vld [vmem:[%s4 + $0x68] sm:$0xf]
  %v1490 = vld [vmem:[%s4 + $0x6c] sm:$0xf]
  %v1491 = vld [vmem:[%s4 + $0x70] sm:$0xf]
  %v1492 = vld [vmem:[%s4 + $0x74] sm:$0xf]
  %v1493 = vld [vmem:[%s4 + $0x78] sm:$0xf]
  %v1494 = vld [vmem:[%s4 + $0x7c] sm:$0xf]
  %v1495 = vld [vmem:[%s4 + $0x80] sm:$0xf]
  %v1496 = vld [vmem:[%s4 + $0x84] sm:$0xf]
  %v1497 = vld [vmem:[%s4 + $0x88] sm:$0xf]
  %v1498 = vld [vmem:[%s4 + $0x8c] sm:$0xf]
  %v1535 = vunpack.c.l.b16 %v1463
  %v1536 = vunpack.c.l.b16 %v1464
  %v1537 = vunpack.c.l.b16 %v1465
  %v1538 = vunpack.c.l.b16 %v1466
  %v1539 = vunpack.c.l.b16 %v1467
  %v1540 = vunpack.c.l.b16 %v1468
  %v1541 = vunpack.c.l.b16 %v1469
  %v1542 = vunpack.c.l.b16 %v1470
  %v1543 = vunpack.c.l.b16 %v1471
  %v1544 = vunpack.c.l.b16 %v1472
  %v1545 = vunpack.c.l.b16 %v1473
  %v1546 = vunpack.c.l.b16 %v1474
  %v1547 = vunpack.c.l.b16 %v1475
  %v1548 = vunpack.c.l.b16 %v1476
  %v1549 = vunpack.c.l.b16 %v1477
  %v1550 = vunpack.c.l.b16 %v1478
  %v1551 = vunpack.c.l.b16 %v1479
  %v1552 = vunpack.c.l.b16 %v1480
  %v1553 = vunpack.c.l.b16 %v1481
  %v1554 = vunpack.c.l.b16 %v1482
  %v1555 = vunpack.c.l.b16 %v1483
  %v1556 = vunpack.c.l.b16 %v1484
  %v1557 = vunpack.c.l.b16 %v1485
  %v1558 = vunpack.c.l.b16 %v1486
  %v1559 = vunpack.c.l.b16 %v1487
  %v1560 = vunpack.c.l.b16 %v1488
  %v1561 = vunpack.c.l.b16 %v1489
  %v1562 = vunpack.c.l.b16 %v1490
  %v1563 = vunpack.c.l.b16 %v1491
  %v1564 = vunpack.c.l.b16 %v1492
  %v1565 = vunpack.c.l.b16 %v1493
  %v1566 = vunpack.c.l.b16 %v1494
  %v1567 = vunpack.c.l.b16 %v1495
  %v1568 = vunpack.c.l.b16 %v1496
  %v1569 = vunpack.c.l.b16 %v1497
  %v1570 = vunpack.c.l.b16 %v1498
  %v1571 = vpack.c.b16 %v1536, %v1535
  %v1572 = vpack.c.b16 %v1538, %v1537
  %v1573 = vpack.c.b16 %v1540, %v1539
  %v1574 = vpack.c.b16 %v1542, %v1541
  %v1575 = vpack.c.b16 %v1544, %v1543
  %v1576 = vpack.c.b16 %v1546, %v1545
  %v1577 = vpack.c.b16 %v1548, %v1547
  %v1578 = vpack.c.b16 %v1550, %v1549
  %v1579 = vpack.c.b16 %v1552, %v1551
  %v1580 = vpack.c.b16 %v1554, %v1553
  %v1581 = vpack.c.b16 %v1556, %v1555
  %v1582 = vpack.c.b16 %v1558, %v1557
  %v1583 = vpack.c.b16 %v1560, %v1559
  %v1584 = vpack.c.b16 %v1562, %v1561
  %v1585 = vpack.c.b16 %v1564, %v1563
  %v1586 = vpack.c.b16 %v1566, %v1565
  %v1587 = vpack.c.b16 %v1568, %v1567
  %v1588 = vpack.c.b16 %v1570, %v1569
  %v1608 = vsel %vm1024, %v1453, 0
  %v1611 = vsel %vm1024, %v1456, 0
  %v1614 = vsel %vm1024, %v1459, 0
  %v1617 = vsel %vm1024, %v1462, 0
  %1619 = vmatprep.subr.bf16.mxu0 0
  %1620 = vmatpush1.bf16.msra.mxu0 %v1578
  %1621 = vmatprep.subr.bf16.mxu0 0
  %1622 = vmatpush1.bf16.msra.mxu0 %v1577
  %1623 = vmatprep.subr.bf16.mxu0 0
  %1624 = vmatpush1.bf16.msra.mxu0 %v1576
  %1625 = vmatprep.subr.bf16.mxu0 0
  %1626 = vmatpush1.bf16.msra.mxu0 %v1575
  %1627 = vmatprep.subr.bf16.mxu0 0
  %1628 = vmatpush1.bf16.msra.mxu0 %v1574
  %1629 = vmatprep.subr.bf16.mxu0 0
  %1630 = vmatpush1.bf16.msra.mxu0 %v1573
  %1631 = vmatprep.subr.bf16.mxu0 0
  %1632 = vmatpush1.bf16.msra.mxu0 %v1572
  %1633 = vmatprep.subr.bf16.mxu0 0
  %1634 = vmatpush1.bf16.msra.mxu0 %v1571
  %1635 = vmatprep.subr.bf16.mxu0 0
  %1636 = vmatpush2.bf16.msra.mxu0 %v1586
  %1637 = vmatprep.subr.bf16.mxu0 0
  %1638 = vmatpush2.bf16.msra.mxu0 %v1585
  %1639 = vmatprep.subr.bf16.mxu0 0
  %1640 = vmatpush2.bf16.msra.mxu0 %v1584
  %1641 = vmatprep.subr.bf16.mxu0 0
  %1642 = vmatpush2.bf16.msra.mxu0 %v1583
  %1643 = vmatprep.subr.bf16.mxu0 0
  %1644 = vmatpush2.bf16.msra.mxu0 %v1582
  %1645 = vmatprep.subr.bf16.mxu0 0
  %1646 = vmatpush2.bf16.msra.mxu0 %v1581
  %1647 = vmatprep.subr.bf16.mxu0 0
  %1648 = vmatpush2.bf16.msra.mxu0 %v1580
  %1649 = vmatprep.subr.bf16.mxu0 0
  %1650 = vmatpush2.bf16.msra.mxu0 %v1579
  %1651 = vmatprep.mubr.bf16.mxu0 %v1452
  %1652 = vmatmul.mubr.bf16.gmra.mxu0 %v1451
  %v1653 = vpop.f32.mrf.mxu0
  %v1654 = vadd.f32 0.0, %v1653
  %v1655 = vpop.f32.mrf.mxu0
  %v1656 = vpop.f32.mrf.mxu0
  %v1657 = vadd.f32 0.0, %v1656
  %v1658 = vpop.f32.mrf.mxu0
  %1659 = vmatprep.mubr.bf16.mxu0 %v1455
  %1660 = vmatmul.mubr.bf16.gmra.mxu0 %v1454
  %v1661 = vpop.f32.mrf.mxu0
  %v1662 = vadd.f32 0.0, %v1661
  %v1663 = vpop.f32.mrf.mxu0
  %v1664 = vpop.f32.mrf.mxu0
  %v1665 = vadd.f32 0.0, %v1664
  %v1666 = vpop.f32.mrf.mxu0
  %1667 = vmatprep.mubr.bf16.mxu0 %v1458
  %1668 = vmatmul.mubr.bf16.gmra.mxu0 %v1457
  %v1669 = vpop.f32.mrf.mxu0
  %v1670 = vadd.f32 0.0, %v1669
  %v1671 = vpop.f32.mrf.mxu0
  %v1672 = vpop.f32.mrf.mxu0
  %v1673 = vadd.f32 0.0, %v1672
  %v1674 = vpop.f32.mrf.mxu0
  %1675 = vmatprep.mubr.bf16.mxu0 %v1461
  %1676 = vmatmul.mubr.bf16.gmra.mxu0 %v1460
  %v1677 = vpop.f32.mrf.mxu0
  %v1678 = vadd.f32 0.0, %v1677
  %v1679 = vpop.f32.mrf.mxu0
  %v1680 = vpop.f32.mrf.mxu0
  %v1681 = vadd.f32 0.0, %v1680
  %v1682 = vpop.f32.mrf.mxu0
  %1683 = vdwg.mxu0
  %1684 = vmatprep.subr.bf16.mxu0 0
  %1685 = vmatpush1.bf16.msra.mxu0 0
  %1686 = vmatprep.subr.bf16.mxu0 0
  %1687 = vmatpush1.bf16.msra.mxu0 0
  %1688 = vmatprep.subr.bf16.mxu0 0
  %1689 = vmatpush1.bf16.msra.mxu0 0
  %1690 = vmatprep.subr.bf16.mxu0 0
  %1691 = vmatpush1.bf16.msra.mxu0 0
  %1692 = vmatprep.subr.bf16.mxu0 0
  %1693 = vmatpush1.bf16.msra.mxu0 0
  %1694 = vmatprep.subr.bf16.mxu0 0
  %1695 = vmatpush1.bf16.msra.mxu0 0
  %1696 = vmatprep.subr.bf16.mxu0 0
  %1697 = vmatpush1.bf16.msra.mxu0 %v1588
  %1698 = vmatprep.subr.bf16.mxu0 0
  %1699 = vmatpush1.bf16.msra.mxu0 %v1587
  %1700 = vmatprep.subr.bf16.mxu0 0
  %1701 = vmatpush2.bf16.msra.mxu0 0
  %1702 = vmatprep.subr.bf16.mxu0 0
  %1703 = vmatpush2.bf16.msra.mxu0 0
  %1704 = vmatprep.subr.bf16.mxu0 0
  %1705 = vmatpush2.bf16.msra.mxu0 0
  %1706 = vmatprep.subr.bf16.mxu0 0
  %1707 = vmatpush2.bf16.msra.mxu0 0
  %1708 = vmatprep.subr.bf16.mxu0 0
  %1709 = vmatpush2.bf16.msra.mxu0 0
  %1710 = vmatprep.subr.bf16.mxu0 0
  %1711 = vmatpush2.bf16.msra.mxu0 0
  %1712 = vmatprep.subr.bf16.mxu0 0
  %1713 = vmatpush2.bf16.msra.mxu0 0
  %1714 = vmatprep.subr.bf16.mxu0 0
  %1715 = vmatpush2.bf16.msra.mxu0 0
  %1716 = vmatprep.mubr.bf16.mxu0 0
  %1717 = vmatmul.mubr.bf16.gmra.mxu0 %v1608
  %v1718 = vpop.f32.mrf.mxu0
  %v1719 = vadd.f32 %v1654, %v1718
  %v1720 = vpop.f32.mrf.mxu0
  %v1721 = vpop.f32.mrf.mxu0
  %v1722 = vadd.f32 %v1657, %v1721
  %v1723 = vpop.f32.mrf.mxu0
  %1724 = vmatprep.mubr.bf16.mxu0 0
  %1725 = vmatmul.mubr.bf16.gmra.mxu0 %v1611
  %v1726 = vpop.f32.mrf.mxu0
  %v1727 = vadd.f32 %v1662, %v1726
  %v1728 = vpop.f32.mrf.mxu0
  %v1729 = vpop.f32.mrf.mxu0
  %v1730 = vadd.f32 %v1665, %v1729
  %v1731 = vpop.f32.mrf.mxu0
  %1732 = vmatprep.mubr.bf16.mxu0 0
  %1733 = vmatmul.mubr.bf16.gmra.mxu0 %v1614
  %v1734 = vpop.f32.mrf.mxu0
  %v1735 = vadd.f32 %v1670, %v1734
  %v1736 = vpop.f32.mrf.mxu0
  %v1737 = vpop.f32.mrf.mxu0
  %v1738 = vadd.f32 %v1673, %v1737
  %v1739 = vpop.f32.mrf.mxu0
  %1740 = vmatprep.mubr.bf16.mxu0 0
  %1741 = vmatmul.mubr.bf16.gmra.mxu0 %v1617
  %v1742 = vpop.f32.mrf.mxu0
  %v1743 = vadd.f32 %v1678, %v1742
  %v1744 = vpop.f32.mrf.mxu0
  %v1745 = vpop.f32.mrf.mxu0
  %v1746 = vadd.f32 %v1681, %v1745
  %v1747 = vpop.f32.mrf.mxu0
  %1748 = vdwg.mxu0
  %v1749 = vmul.f32 %v1719, 0.5
  %v1750 = vmul.f32 %v1722, 0.5
  %v1751 = vmul.f32 %v1727, 0.5
  %v1752 = vmul.f32 %v1730, 0.5
  %v1753 = vmul.f32 %v1735, 0.5
  %v1754 = vmul.f32 %v1738, 0.5
  %v1755 = vmul.f32 %v1743, 0.5
  %v1756 = vmul.f32 %v1746, 0.5
  %v1757 = vmul.f32 %v1719, 0.044715
  %v1758 = vmul.f32 %v1722, 0.044715
  %v1759 = vmul.f32 %v1727, 0.044715
  %v1760 = vmul.f32 %v1730, 0.044715
  %v1761 = vmul.f32 %v1735, 0.044715
  %v1762 = vmul.f32 %v1738, 0.044715
  %v1763 = vmul.f32 %v1743, 0.044715
  %v1764 = vmul.f32 %v1746, 0.044715
  %v1765 = vmul.f32 %v1757, %v1719
  %v1766 = vmul.f32 %v1758, %v1722
  %v1767 = vmul.f32 %v1759, %v1727
  %v1768 = vmul.f32 %v1760, %v1730
  %v1769 = vmul.f32 %v1761, %v1735
  %v1770 = vmul.f32 %v1762, %v1738
  %v1771 = vmul.f32 %v1763, %v1743
  %v1772 = vmul.f32 %v1764, %v1746
  %v1773 = vmul.f32 %v1765, %v1719
  %v1774 = vmul.f32 %v1766, %v1722
  %v1775 = vmul.f32 %v1767, %v1727
  %v1776 = vmul.f32 %v1768, %v1730
  %v1777 = vmul.f32 %v1769, %v1735
  %v1778 = vmul.f32 %v1770, %v1738
  %v1779 = vmul.f32 %v1771, %v1743
  %v1780 = vmul.f32 %v1772, %v1746
  %v1781 = vadd.f32 %v1719, %v1773
  %v1782 = vadd.f32 %v1722, %v1774
  %v1783 = vadd.f32 %v1727, %v1775
  %v1784 = vadd.f32 %v1730, %v1776
  %v1785 = vadd.f32 %v1735, %v1777
  %v1786 = vadd.f32 %v1738, %v1778
  %v1787 = vadd.f32 %v1743, %v1779
  %v1788 = vadd.f32 %v1746, %v1780
  %v1789 = vmul.f32 %v1781, 0.7978846
  %v1790 = vmul.f32 %v1782, 0.7978846
  %v1791 = vmul.f32 %v1783, 0.7978846
  %v1792 = vmul.f32 %v1784, 0.7978846
  %v1793 = vmul.f32 %v1785, 0.7978846
  %v1794 = vmul.f32 %v1786, 0.7978846
  %v1795 = vmul.f32 %v1787, 0.7978846
  %v1796 = vmul.f32 %v1788, 0.7978846
  %v1797 = vtanh.pop %v1789
  %v1798 = vtanh.pop %v1790
  %v1799 = vtanh.pop %v1791
  %v1800 = vtanh.pop %v1792
  %v1801 = vtanh.pop %v1793
  %v1802 = vtanh.pop %v1794
  %v1803 = vtanh.pop %v1795
  %v1804 = vtanh.pop %v1796
  %v1805 = vadd.f32 %v1797, 1.0
  %v1806 = vadd.f32 %v1798, 1.0
  %v1807 = vadd.f32 %v1799, 1.0
  %v1808 = vadd.f32 %v1800, 1.0
  %v1809 = vadd.f32 %v1801, 1.0
  %v1810 = vadd.f32 %v1802, 1.0
  %v1811 = vadd.f32 %v1803, 1.0
  %v1812 = vadd.f32 %v1804, 1.0
  %v1813 = vmul.f32 %v1749, %v1805
  %v1814 = vmul.f32 %v1750, %v1806
  %v1815 = vmul.f32 %v1751, %v1807
  %v1816 = vmul.f32 %v1752, %v1808
  %v1817 = vmul.f32 %v1753, %v1809
  %v1818 = vmul.f32 %v1754, %v1810
  %v1819 = vmul.f32 %v1755, %v1811
  %v1820 = vmul.f32 %v1756, %v1812
  %vm1821 = vcmask 785408
  %v1822 = vsel %vm1821, %v1813, 0.0
  %1823 = vadd.xlane.f32.xlu0 %v1822
  %v1824 = vpop.xlane.xlu0 %1823
  %v1825 = vsel %vm1821, %v1814, 0.0
  %1826 = vadd.xlane.f32.xlu0 %v1825
  %v1827 = vpop.xlane.xlu0 %1826
  %v1828 = vsel %vm1821, %v1815, 0.0
  %1829 = vadd.xlane.f32.xlu0 %v1828
  %v1830 = vpop.xlane.xlu0 %1829
  %v1831 = vsel %vm1821, %v1816, 0.0
  %1832 = vadd.xlane.f32.xlu0 %v1831
  %v1833 = vpop.xlane.xlu0 %1832
  %v1834 = vsel %vm1821, %v1817, 0.0
  %1835 = vadd.xlane.f32.xlu0 %v1834
  %v1836 = vpop.xlane.xlu0 %1835
  %v1837 = vsel %vm1821, %v1818, 0.0
  %1838 = vadd.xlane.f32.xlu0 %v1837
  %v1839 = vpop.xlane.xlu0 %1838
  %v1840 = vsel %vm1821, %v1819, 0.0
  %1841 = vadd.xlane.f32.xlu0 %v1840
  %v1842 = vpop.xlane.xlu0 %1841
  %v1843 = vsel %vm1821, %v1820, 0.0
  %1844 = vadd.xlane.f32.xlu0 %v1843
  %v1845 = vpop.xlane.xlu0 %1844
  %v1846 = vrcp.pop 96.0
  %v1847 = vmul.f32 %v1824, %v1846
  %v1848 = vmul.f32 %v1827, %v1846
  %v1849 = vmul.f32 %v1830, %v1846
  %v1850 = vmul.f32 %v1833, %v1846
  %v1851 = vmul.f32 %v1836, %v1846
  %v1852 = vmul.f32 %v1839, %v1846
  %v1853 = vmul.f32 %v1842, %v1846
  %v1854 = vmul.f32 %v1845, %v1846
  %v1855 = vsub.f32 %v1813, %v1847
  %v1856 = vsub.f32 %v1814, %v1848
  %v1857 = vsub.f32 %v1815, %v1849
  %v1858 = vsub.f32 %v1816, %v1850
  %v1859 = vsub.f32 %v1817, %v1851
  %v1860 = vsub.f32 %v1818, %v1852
  %v1861 = vsub.f32 %v1819, %v1853
  %v1862 = vsub.f32 %v1820, %v1854
  %v1863 = vmul.f32 %v1855, %v1855
  %v1864 = vmul.f32 %v1856, %v1856
  %v1865 = vmul.f32 %v1857, %v1857
  %v1866 = vmul.f32 %v1858, %v1858
  %v1867 = vmul.f32 %v1859, %v1859
  %v1868 = vmul.f32 %v1860, %v1860
  %v1869 = vmul.f32 %v1861, %v1861
  %v1870 = vmul.f32 %v1862, %v1862
  %v1871 = vsel %vm1821, %v1863, 0.0
  %1872 = vadd.xlane.f32.xlu0 %v1871
  %v1873 = vpop.xlane.xlu0 %1872
  %v1874 = vsel %vm1821, %v1864, 0.0
  %1875 = vadd.xlane.f32.xlu0 %v1874
  %v1876 = vpop.xlane.xlu0 %1875
  %v1877 = vsel %vm1821, %v1865, 0.0
  %1878 = vadd.xlane.f32.xlu0 %v1877
  %v1879 = vpop.xlane.xlu0 %1878
  %v1880 = vsel %vm1821, %v1866, 0.0
  %1881 = vadd.xlane.f32.xlu0 %v1880
  %v1882 = vpop.xlane.xlu0 %1881
  %v1883 = vsel %vm1821, %v1867, 0.0
  %1884 = vadd.xlane.f32.xlu0 %v1883
  %v1885 = vpop.xlane.xlu0 %1884
  %v1886 = vsel %vm1821, %v1868, 0.0
  %1887 = vadd.xlane.f32.xlu0 %v1886
  %v1888 = vpop.xlane.xlu0 %1887
  %v1889 = vsel %vm1821, %v1869, 0.0
  %1890 = vadd.xlane.f32.xlu0 %v1889
  %v1891 = vpop.xlane.xlu0 %1890
  %v1892 = vsel %vm1821, %v1870, 0.0
  %1893 = vadd.xlane.f32.xlu0 %v1892
  %v1894 = vpop.xlane.xlu0 %1893
  %v1895 = vmul.f32 %v1873, %v1846
  %v1896 = vmul.f32 %v1876, %v1846
  %v1897 = vmul.f32 %v1879, %v1846
  %v1898 = vmul.f32 %v1882, %v1846
  %v1899 = vmul.f32 %v1885, %v1846
  %v1900 = vmul.f32 %v1888, %v1846
  %v1901 = vmul.f32 %v1891, %v1846
  %v1902 = vmul.f32 %v1894, %v1846
  %v1903 = vadd.f32 %v1895, 1e-05
  %v1904 = vadd.f32 %v1896, 1e-05
  %v1905 = vadd.f32 %v1897, 1e-05
  %v1906 = vadd.f32 %v1898, 1e-05
  %v1907 = vadd.f32 %v1899, 1e-05
  %v1908 = vadd.f32 %v1900, 1e-05
  %v1909 = vadd.f32 %v1901, 1e-05
  %v1910 = vadd.f32 %v1902, 1e-05
  %v1911 = vrsqrt.pop %v1903
  %v1912 = vrsqrt.pop %v1904
  %v1913 = vrsqrt.pop %v1905
  %v1914 = vrsqrt.pop %v1906
  %v1915 = vrsqrt.pop %v1907
  %v1916 = vrsqrt.pop %v1908
  %v1917 = vrsqrt.pop %v1909
  %v1918 = vrsqrt.pop %v1910
  %v1919 = vmul.f32 %v1855, %v1911
  %v1920 = vmul.f32 %v1856, %v1912
  %v1921 = vmul.f32 %v1857, %v1913
  %v1922 = vmul.f32 %v1858, %v1914
  %v1923 = vmul.f32 %v1859, %v1915
  %v1924 = vmul.f32 %v1860, %v1916
  %v1925 = vmul.f32 %v1861, %v1917
  %v1926 = vmul.f32 %v1862, %v1918
  %v1927 = vld [vmem:[%s5] sm:$0x1]
  %v1929 = vlaneseq
  %v1930 = vshrl.u32 %v1929, 7
  %v1931 = vsub.s32 0, %v1930
  %v1932 = vrot.slane %v1927, %v1931
  %v1934 = vmul.f32 %v1919, %v1932
  %v1935 = vmul.f32 %v1920, %v1932
  %v1936 = vmul.f32 %v1921, %v1932
  %v1937 = vmul.f32 %v1922, %v1932
  %v1938 = vmul.f32 %v1923, %v1932
  %v1939 = vmul.f32 %v1924, %v1932
  %v1940 = vmul.f32 %v1925, %v1932
  %v1941 = vmul.f32 %v1926, %v1932
  %v1942 = vld [vmem:[%s6] sm:$0x1]
  %v1944 = vlaneseq
  %v1945 = vshrl.u32 %v1944, 7
  %v1946 = vsub.s32 0, %v1945
  %v1947 = vrot.slane %v1942, %v1946
  %v1949 = vadd.f32 %v1934, %v1947
  %v1950 = vadd.f32 %v1935, %v1947
  %v1951 = vadd.f32 %v1936, %v1947
  %v1952 = vadd.f32 %v1937, %v1947
  %v1953 = vadd.f32 %v1938, %v1947
  %v1954 = vadd.f32 %v1939, %v1947
  %v1955 = vadd.f32 %v1940, %v1947
  %v1956 = vadd.f32 %v1941, %v1947
  %v1957 = vld [vmem:[%s1] sm:$0xff]
  %v1958 = vld [vmem:[%s1 + $0x8] sm:$0xff]
  %v1959 = vld [vmem:[%s1 + $0x10] sm:$0xff]
  %v1960 = vld [vmem:[%s1 + $0x18] sm:$0xff]
  %v1961 = vld [vmem:[%s1 + $0x20] sm:$0xff]
  %v1962 = vld [vmem:[%s1 + $0x28] sm:$0xff]
  %v1963 = vld [vmem:[%s1 + $0x30] sm:$0xff]
  %v1964 = vld [vmem:[%s1 + $0x38] sm:$0xff]
  %v1965 = vadd.f32 %v1949, %v1957
  %v1966 = vadd.f32 %v1950, %v1958
  %v1967 = vadd.f32 %v1951, %v1959
  %v1968 = vadd.f32 %v1952, %v1960
  %v1969 = vadd.f32 %v1953, %v1961
  %v1970 = vadd.f32 %v1954, %v1962
  %v1971 = vadd.f32 %v1955, %v1963
  %v1972 = vadd.f32 %v1956, %v1964
  %1973 = vst.msk [vmem:[%s7] sm:$0xff] %vm1821, %v1965
  %1974 = vst.msk [vmem:[%s7 + $0x8] sm:$0xff] %vm1821, %v1966
  %1975 = vst.msk [vmem:[%s7 + $0x10] sm:$0xff] %vm1821, %v1967
  %1976 = vst.msk [vmem:[%s7 + $0x18] sm:$0xff] %vm1821, %v1968
  %1977 = vst.msk [vmem:[%s7 + $0x20] sm:$0xff] %vm1821, %v1969
  %1978 = vst.msk [vmem:[%s7 + $0x28] sm:$0xff] %vm1821, %v1970
  %1979 = vst.msk [vmem:[%s7 + $0x30] sm:$0xff] %vm1821, %v1971
  %1980 = vst.msk [vmem:[%s7 + $0x38] sm:$0xff] %vm1821, %v1972
  // Predicated region
  $region30: #{_lambda_.24} parent=0 // pred_check
    _
  $region31: #{_lambda_.24} parent=0 // pred_check_branch
    %1982 = sbr.rel (0) target = $region33
  $region32: #{_lambda_.24} parent=0 // pred_region
    _
  $region33: #{_lambda_.24} parent=0 // pred_fallthru
    _
  // Predicated region
  $region34: #{_lambda_.24} parent=0 // pred_check
    _
  $region35: #{_lambda_.24} parent=0 // pred_check_branch
    %1984 = sbr.rel (0) target = $region37
  $region36: #{_lambda_.24} parent=0 // pred_region
    _
  $region37: #{_lambda_.24} parent=0 // pred_fallthru
    _

// kernel: _lambda_.25
$region0: #{_lambda_.25}
  #allocation0 [shape = 'u32[]', space=smem, size = 0x4, offset = 0x4, fixed_abs, tag = 'smem constant byte address 0x4 - core index']
  #allocation1 [shape = 'u32[144,128]{1,0:T(1,128)}', space=vmem, size = 0x12000, scoped, tag = 'internal scratch']
  %s0 = inlined_call_operand.vmem [shape: bf16[64,864], index: 0, kind: input, shape index: {}]
  %s1 = inlined_call_operand.vmem [shape: bf16[864,72], index: 1, kind: input, shape index: {}]
  %s2 = inlined_call_operand.vmem [shape: f32[1,72], index: 2, kind: input, shape index: {}]
  %s3 = inlined_call_operand.vmem [shape: f32[64,72], index: 3, kind: output, shape index: {}]
  %s4 = sld [smem:[#allocation0]]
  $region22: #{_lambda_.25} parent=0
    _
  %s6 = ssub.s32 1, %s4
  %s7 = scalar_select 0, %s6, %s4
  // Predicated region
  $region2: #{_lambda_.25} parent=0 // pred_check
    _
  $region3: #{_lambda_.25} parent=0 // pred_check_branch
    %9 = sbr.rel (0) target = $region5
  $region4: #{_lambda_.25} parent=0 // pred_region
    _
  $region5: #{_lambda_.25} parent=0 // pred_fallthru
    _
  // Predicated region
  $region6: #{_lambda_.25} parent=0 // pred_check
    _
  $region7: #{_lambda_.25} parent=0 // pred_check_branch
    %11 = sbr.rel (0) target = $region9
  $region8: #{_lambda_.25} parent=0 // pred_region
    _
  $region9: #{_lambda_.25} parent=0 // pred_fallthru
    _
  // Predicated region
  $region10: #{_lambda_.25} parent=0 // pred_check
    _
  $region11: #{_lambda_.25} parent=0 // pred_check_branch
    %13 = sbr.rel (0) target = $region13
  $region12: #{_lambda_.25} parent=0 // pred_region
    _
  $region13: #{_lambda_.25} parent=0 // pred_fallthru
    _
  %v15 = vld [vmem:[%s0] sm:$0xff]
  %v16 = vld [vmem:[%s0 + $0x8] sm:$0xff]
  %v17 = vld [vmem:[%s0 + $0x10] sm:$0xff]
  %v18 = vld [vmem:[%s0 + $0x18] sm:$0xf]
  %v19 = vld [vmem:[%s0 + $0x1c] sm:$0xff]
  %v20 = vld [vmem:[%s0 + $0x24] sm:$0xff]
  %v21 = vld [vmem:[%s0 + $0x2c] sm:$0xff]
  %v22 = vld [vmem:[%s0 + $0x34] sm:$0xf]
  %v23 = vld [vmem:[%s0 + $0x38] sm:$0xff]
  %v24 = vld [vmem:[%s0 + $0x40] sm:$0xff]
  %v25 = vld [vmem:[%s0 + $0x48] sm:$0xff]
  %v26 = vld [vmem:[%s0 + $0x50] sm:$0xf]
  %v27 = vld [vmem:[%s0 + $0x54] sm:$0xff]
  %v28 = vld [vmem:[%s0 + $0x5c] sm:$0xff]
  %v29 = vld [vmem:[%s0 + $0x64] sm:$0xff]
  %v30 = vld [vmem:[%s0 + $0x6c] sm:$0xf]
  %v31 = vld [vmem:[%s0 + $0x70] sm:$0xff]
  %v32 = vld [vmem:[%s0 + $0x78] sm:$0xff]
  %v33 = vld [vmem:[%s0 + $0x80] sm:$0xff]
  %v34 = vld [vmem:[%s0 + $0x88] sm:$0xf]
  %v35 = vld [vmem:[%s0 + $0x8c] sm:$0xff]
  %v36 = vld [vmem:[%s0 + $0x94] sm:$0xff]
  %v37 = vld [vmem:[%s0 + $0x9c] sm:$0xff]
  %v38 = vld [vmem:[%s0 + $0xa4] sm:$0xf]
  %v39 = vld [vmem:[%s0 + $0xa8] sm:$0xff]
  %v40 = vld [vmem:[%s0 + $0xb0] sm:$0xff]
  %v41 = vld [vmem:[%s0 + $0xb8] sm:$0xff]
  %v42 = vld [vmem:[%s0 + $0xc0] sm:$0xf]
  %v43 = vld [vmem:[%s0 + $0xc4] sm:$0xff]
  %v44 = vld [vmem:[%s0 + $0xcc] sm:$0xff]
  %v45 = vld [vmem:[%s0 + $0xd4] sm:$0xff]
  %v46 = vld [vmem:[%s0 + $0xdc] sm:$0xf]
  %v47 = vld [vmem:[%s1] sm:$0xf]
  %v48 = vld [vmem:[%s1 + $0x4] sm:$0xf]
  %v49 = vld [vmem:[%s1 + $0x8] sm:$0xf]
  %v50 = vld [vmem:[%s1 + $0xc] sm:$0xf]
  %v51 = vld [vmem:[%s1 + $0x10] sm:$0xf]
  %v52 = vld [vmem:[%s1 + $0x14] sm:$0xf]
  %v53 = vld [vmem:[%s1 + $0x18] sm:$0xf]
  %v54 = vld [vmem:[%s1 + $0x1c] sm:$0xf]
  %v55 = vld [vmem:[%s1 + $0x20] sm:$0xf]
  %v56 = vld [vmem:[%s1 + $0x24] sm:$0xf]
  %v57 = vld [vmem:[%s1 + $0x28] sm:$0xf]
  %v58 = vld [vmem:[%s1 + $0x2c] sm:$0xf]
  %v59 = vld [vmem:[%s1 + $0x30] sm:$0xf]
  %v60 = vld [vmem:[%s1 + $0x34] sm:$0xf]
  %v61 = vld [vmem:[%s1 + $0x38] sm:$0xf]
  %v62 = vld [vmem:[%s1 + $0x3c] sm:$0xf]
  %v63 = vld [vmem:[%s1 + $0x40] sm:$0xf]
  %v64 = vld [vmem:[%s1 + $0x44] sm:$0xf]
  %v65 = vld [vmem:[%s1 + $0x48] sm:$0xf]
  %v66 = vld [vmem:[%s1 + $0x4c] sm:$0xf]
  %v67 = vld [vmem:[%s1 + $0x50] sm:$0xf]
  %v68 = vld [vmem:[%s1 + $0x54] sm:$0xf]
  %v69 = vld [vmem:[%s1 + $0x58] sm:$0xf]
  %v70 = vld [vmem:[%s1 + $0x5c] sm:$0xf]
  %v71 = vld [vmem:[%s1 + $0x60] sm:$0xf]
  %v72 = vld [vmem:[%s1 + $0x64] sm:$0xf]
  %v73 = vld [vmem:[%s1 + $0x68] sm:$0xf]
  %v74 = vld [vmem:[%s1 + $0x6c] sm:$0xf]
  %v75 = vld [vmem:[%s1 + $0x70] sm:$0xf]
  %v76 = vld [vmem:[%s1 + $0x74] sm:$0xf]
  %v77 = vld [vmem:[%s1 + $0x78] sm:$0xf]
  %v78 = vld [vmem:[%s1 + $0x7c] sm:$0xf]
  %v79 = vld [vmem:[%s1 + $0x80] sm:$0xf]
  %v80 = vld [vmem:[%s1 + $0x84] sm:$0xf]
  %v81 = vld [vmem:[%s1 + $0x88] sm:$0xf]
  %v82 = vld [vmem:[%s1 + $0x8c] sm:$0xf]
  %v83 = vld [vmem:[%s1 + $0x90] sm:$0xf]
  %v84 = vld [vmem:[%s1 + $0x94] sm:$0xf]
  %v85 = vld [vmem:[%s1 + $0x98] sm:$0xf]
  %v86 = vld [vmem:[%s1 + $0x9c] sm:$0xf]
  %v87 = vld [vmem:[%s1 + $0xa0] sm:$0xf]
  %v88 = vld [vmem:[%s1 + $0xa4] sm:$0xf]
  %v89 = vld [vmem:[%s1 + $0xa8] sm:$0xf]
  %v90 = vld [vmem:[%s1 + $0xac] sm:$0xf]
  %v91 = vld [vmem:[%s1 + $0xb0] sm:$0xf]
  %v92 = vld [vmem:[%s1 + $0xb4] sm:$0xf]
  %v93 = vld [vmem:[%s1 + $0xb8] sm:$0xf]
  %v94 = vld [vmem:[%s1 + $0xbc] sm:$0xf]
  %v95 = vld [vmem:[%s1 + $0xc0] sm:$0xf]
  %v96 = vld [vmem:[%s1 + $0xc4] sm:$0xf]
  %v97 = vld [vmem:[%s1 + $0xc8] sm:$0xf]
  %v98 = vld [vmem:[%s1 + $0xcc] sm:$0xf]
  %v99 = vld [vmem:[%s1 + $0xd0] sm:$0xf]
  %v100 = vld [vmem:[%s1 + $0xd4] sm:$0xf]
  %v101 = vld [vmem:[%s1 + $0xd8] sm:$0xf]
  %v102 = vld [vmem:[%s1 + $0xdc] sm:$0xf]
  %v103 = vld [vmem:[%s1 + $0xe0] sm:$0xf]
  %v104 = vld [vmem:[%s1 + $0xe4] sm:$0xf]
  %v105 = vld [vmem:[%s1 + $0xe8] sm:$0xf]
  %v106 = vld [vmem:[%s1 + $0xec] sm:$0xf]
  %v107 = vld [vmem:[%s1 + $0xf0] sm:$0xf]
  %v108 = vld [vmem:[%s1 + $0xf4] sm:$0xf]
  %v109 = vld [vmem:[%s1 + $0xf8] sm:$0xf]
  %v110 = vld [vmem:[%s1 + $0xfc] sm:$0xf]
  %v111 = vld [vmem:[%s1 + $0x100] sm:$0xf]
  %v112 = vld [vmem:[%s1 + $0x104] sm:$0xf]
  %v113 = vld [vmem:[%s1 + $0x108] sm:$0xf]
  %v114 = vld [vmem:[%s1 + $0x10c] sm:$0xf]
  %v115 = vld [vmem:[%s1 + $0x110] sm:$0xf]
  %v116 = vld [vmem:[%s1 + $0x114] sm:$0xf]
  %v117 = vld [vmem:[%s1 + $0x118] sm:$0xf]
  %v118 = vld [vmem:[%s1 + $0x11c] sm:$0xf]
  %v119 = vld [vmem:[%s1 + $0x120] sm:$0xf]
  %v120 = vld [vmem:[%s1 + $0x124] sm:$0xf]
  %v121 = vld [vmem:[%s1 + $0x128] sm:$0xf]
  %v122 = vld [vmem:[%s1 + $0x12c] sm:$0xf]
  %v123 = vld [vmem:[%s1 + $0x130] sm:$0xf]
  %v124 = vld [vmem:[%s1 + $0x134] sm:$0xf]
  %v125 = vld [vmem:[%s1 + $0x138] sm:$0xf]
  %v126 = vld [vmem:[%s1 + $0x13c] sm:$0xf]
  %v127 = vld [vmem:[%s1 + $0x140] sm:$0xf]
  %v128 = vld [vmem:[%s1 + $0x144] sm:$0xf]
  %v129 = vld [vmem:[%s1 + $0x148] sm:$0xf]
  %v130 = vld [vmem:[%s1 + $0x14c] sm:$0xf]
  %v131 = vld [vmem:[%s1 + $0x150] sm:$0xf]
  %v132 = vld [vmem:[%s1 + $0x154] sm:$0xf]
  %v133 = vld [vmem:[%s1 + $0x158] sm:$0xf]
  %v134 = vld [vmem:[%s1 + $0x15c] sm:$0xf]
  %v135 = vld [vmem:[%s1 + $0x160] sm:$0xf]
  %v136 = vld [vmem:[%s1 + $0x164] sm:$0xf]
  %v137 = vld [vmem:[%s1 + $0x168] sm:$0xf]
  %v138 = vld [vmem:[%s1 + $0x16c] sm:$0xf]
  %v139 = vld [vmem:[%s1 + $0x170] sm:$0xf]
  %v140 = vld [vmem:[%s1 + $0x174] sm:$0xf]
  %v141 = vld [vmem:[%s1 + $0x178] sm:$0xf]
  %v142 = vld [vmem:[%s1 + $0x17c] sm:$0xf]
  %v143 = vld [vmem:[%s1 + $0x180] sm:$0xf]
  %v144 = vld [vmem:[%s1 + $0x184] sm:$0xf]
  %v145 = vld [vmem:[%s1 + $0x188] sm:$0xf]
  %v146 = vld [vmem:[%s1 + $0x18c] sm:$0xf]
  %v147 = vld [vmem:[%s1 + $0x190] sm:$0xf]
  %v148 = vld [vmem:[%s1 + $0x194] sm:$0xf]
  %v149 = vld [vmem:[%s1 + $0x198] sm:$0xf]
  %v150 = vld [vmem:[%s1 + $0x19c] sm:$0xf]
  %v151 = vld [vmem:[%s1 + $0x1a0] sm:$0xf]
  %v152 = vld [vmem:[%s1 + $0x1a4] sm:$0xf]
  %v153 = vld [vmem:[%s1 + $0x1a8] sm:$0xf]
  %v154 = vld [vmem:[%s1 + $0x1ac] sm:$0xf]
  %v155 = vld [vmem:[%s2] sm:$0x1]
  %v157 = vlaneseq
  %v158 = vshrl.u32 %v157, 7
  %v159 = vsub.s32 0, %v158
  %v160 = vrot.slane %v155, %v159
  %v194 = vunpack.c.l.b16 %v15
  %v195 = vunpack.c.h.b16 %v15
  %v196 = vunpack.c.l.b16 %v16
  %v197 = vunpack.c.h.b16 %v16
  %v198 = vunpack.c.l.b16 %v17
  %v199 = vunpack.c.h.b16 %v17
  %v200 = vunpack.c.l.b16 %v18
  %v201 = vunpack.c.l.b16 %v19
  %v202 = vunpack.c.h.b16 %v19
  %v203 = vunpack.c.l.b16 %v20
  %v204 = vunpack.c.h.b16 %v20
  %v205 = vunpack.c.l.b16 %v21
  %v206 = vunpack.c.h.b16 %v21
  %v207 = vunpack.c.l.b16 %v22
  %v208 = vunpack.c.l.b16 %v23
  %v209 = vunpack.c.h.b16 %v23
  %v210 = vunpack.c.l.b16 %v24
  %v211 = vunpack.c.h.b16 %v24
  %v212 = vunpack.c.l.b16 %v25
  %v213 = vunpack.c.h.b16 %v25
  %v214 = vunpack.c.l.b16 %v26
  %v215 = vunpack.c.l.b16 %v27
  %v216 = vunpack.c.h.b16 %v27
  %v217 = vunpack.c.l.b16 %v28
  %v218 = vunpack.c.h.b16 %v28
  %v219 = vunpack.c.l.b16 %v29
  %v220 = vunpack.c.h.b16 %v29
  %v221 = vunpack.c.l.b16 %v30
  %v222 = vunpack.c.l.b16 %v31
  %v223 = vunpack.c.h.b16 %v31
  %v224 = vunpack.c.l.b16 %v32
  %v225 = vunpack.c.h.b16 %v32
  %v226 = vunpack.c.l.b16 %v33
  %v227 = vunpack.c.h.b16 %v33
  %v228 = vunpack.c.l.b16 %v34
  %v229 = vunpack.c.l.b16 %v35
  %v230 = vunpack.c.h.b16 %v35
  %v231 = vunpack.c.l.b16 %v36
  %v232 = vunpack.c.h.b16 %v36
  %v233 = vunpack.c.l.b16 %v37
  %v234 = vunpack.c.h.b16 %v37
  %v235 = vunpack.c.l.b16 %v38
  %v236 = vunpack.c.l.b16 %v39
  %v237 = vunpack.c.h.b16 %v39
  %v238 = vunpack.c.l.b16 %v40
  %v239 = vunpack.c.h.b16 %v40
  %v240 = vunpack.c.l.b16 %v41
  %v241 = vunpack.c.h.b16 %v41
  %v242 = vunpack.c.l.b16 %v42
  %v243 = vunpack.c.l.b16 %v43
  %v244 = vunpack.c.h.b16 %v43
  %v245 = vunpack.c.l.b16 %v44
  %v246 = vunpack.c.h.b16 %v44
  %v247 = vunpack.c.l.b16 %v45
  %v248 = vunpack.c.h.b16 %v45
  %v249 = vunpack.c.l.b16 %v46
  %v250 = vpack.c.b16 %v201, %v194
  %v251 = vpack.c.b16 %v202, %v195
  %v252 = vpack.c.b16 %v203, %v196
  %v253 = vpack.c.b16 %v204, %v197
  %v254 = vpack.c.b16 %v205, %v198
  %v255 = vpack.c.b16 %v206, %v199
  %v256 = vpack.c.b16 %v207, %v200
  %v257 = vpack.c.b16 %v215, %v208
  %v258 = vpack.c.b16 %v216, %v209
  %v259 = vpack.c.b16 %v217, %v210
  %v260 = vpack.c.b16 %v218, %v211
  %v261 = vpack.c.b16 %v219, %v212
  %v262 = vpack.c.b16 %v220, %v213
  %v263 = vpack.c.b16 %v221, %v214
  %v264 = vpack.c.b16 %v229, %v222
  %v265 = vpack.c.b16 %v230, %v223
  %v266 = vpack.c.b16 %v231, %v224
  %v267 = vpack.c.b16 %v232, %v225
  %v268 = vpack.c.b16 %v233, %v226
  %v269 = vpack.c.b16 %v234, %v227
  %v270 = vpack.c.b16 %v235, %v228
  %v271 = vpack.c.b16 %v243, %v236
  %v272 = vpack.c.b16 %v244, %v237
  %v273 = vpack.c.b16 %v245, %v238
  %v274 = vpack.c.b16 %v246, %v239
  %v275 = vpack.c.b16 %v247, %v240
  %v276 = vpack.c.b16 %v248, %v241
  %v277 = vpack.c.b16 %v249, %v242
  %v410 = vunpack.c.l.b16 %v47
  %v411 = vunpack.c.l.b16 %v48
  %v412 = vunpack.c.l.b16 %v49
  %v413 = vunpack.c.l.b16 %v50
  %v414 = vunpack.c.l.b16 %v51
  %v415 = vunpack.c.l.b16 %v52
  %v416 = vunpack.c.l.b16 %v53
  %v417 = vunpack.c.l.b16 %v54
  %v418 = vunpack.c.l.b16 %v55
  %v419 = vunpack.c.l.b16 %v56
  %v420 = vunpack.c.l.b16 %v57
  %v421 = vunpack.c.l.b16 %v58
  %v422 = vunpack.c.l.b16 %v59
  %v423 = vunpack.c.l.b16 %v60
  %v424 = vunpack.c.l.b16 %v61
  %v425 = vunpack.c.l.b16 %v62
  %v426 = vunpack.c.l.b16 %v63
  %v427 = vunpack.c.l.b16 %v64
  %v428 = vunpack.c.l.b16 %v65
  %v429 = vunpack.c.l.b16 %v66
  %v430 = vunpack.c.l.b16 %v67
  %v431 = vunpack.c.l.b16 %v68
  %v432 = vunpack.c.l.b16 %v69
  %v433 = vunpack.c.l.b16 %v70
  %v434 = vunpack.c.l.b16 %v71
  %v435 = vunpack.c.l.b16 %v72
  %v436 = vunpack.c.l.b16 %v73
  %v437 = vunpack.c.l.b16 %v74
  %v438 = vunpack.c.l.b16 %v75
  %v439 = vunpack.c.l.b16 %v76
  %v440 = vunpack.c.l.b16 %v77
  %v441 = vunpack.c.l.b16 %v78
  %v442 = vunpack.c.l.b16 %v79
  %v443 = vunpack.c.l.b16 %v80
  %v444 = vunpack.c.l.b16 %v81
  %v445 = vunpack.c.l.b16 %v82
  %v446 = vunpack.c.l.b16 %v83
  %v447 = vunpack.c.l.b16 %v84
  %v448 = vunpack.c.l.b16 %v85
  %v449 = vunpack.c.l.b16 %v86
  %v450 = vunpack.c.l.b16 %v87
  %v451 = vunpack.c.l.b16 %v88
  %v452 = vunpack.c.l.b16 %v89
  %v453 = vunpack.c.l.b16 %v90
  %v454 = vunpack.c.l.b16 %v91
  %v455 = vunpack.c.l.b16 %v92
  %v456 = vunpack.c.l.b16 %v93
  %v457 = vunpack.c.l.b16 %v94
  %v458 = vunpack.c.l.b16 %v95
  %v459 = vunpack.c.l.b16 %v96
  %v460 = vunpack.c.l.b16 %v97
  %v461 = vunpack.c.l.b16 %v98
  %v462 = vunpack.c.l.b16 %v99
  %v463 = vunpack.c.l.b16 %v100
  %v464 = vunpack.c.l.b16 %v101
  %v465 = vunpack.c.l.b16 %v102
  %v466 = vunpack.c.l.b16 %v103
  %v467 = vunpack.c.l.b16 %v104
  %v468 = vunpack.c.l.b16 %v105
  %v469 = vunpack.c.l.b16 %v106
  %v470 = vunpack.c.l.b16 %v107
  %v471 = vunpack.c.l.b16 %v108
  %v472 = vunpack.c.l.b16 %v109
  %v473 = vunpack.c.l.b16 %v110
  %v474 = vunpack.c.l.b16 %v111
  %v475 = vunpack.c.l.b16 %v112
  %v476 = vunpack.c.l.b16 %v113
  %v477 = vunpack.c.l.b16 %v114
  %v478 = vunpack.c.l.b16 %v115
  %v479 = vunpack.c.l.b16 %v116
  %v480 = vunpack.c.l.b16 %v117
  %v481 = vunpack.c.l.b16 %v118
  %v482 = vunpack.c.l.b16 %v119
  %v483 = vunpack.c.l.b16 %v120
  %v484 = vunpack.c.l.b16 %v121
  %v485 = vunpack.c.l.b16 %v122
  %v486 = vunpack.c.l.b16 %v123
  %v487 = vunpack.c.l.b16 %v124
  %v488 = vunpack.c.l.b16 %v125
  %v489 = vunpack.c.l.b16 %v126
  %v490 = vunpack.c.l.b16 %v127
  %v491 = vunpack.c.l.b16 %v128
  %v492 = vunpack.c.l.b16 %v129
  %v493 = vunpack.c.l.b16 %v130
  %v494 = vunpack.c.l.b16 %v131
  %v495 = vunpack.c.l.b16 %v132
  %v496 = vunpack.c.l.b16 %v133
  %v497 = vunpack.c.l.b16 %v134
  %v498 = vunpack.c.l.b16 %v135
  %v499 = vunpack.c.l.b16 %v136
  %v500 = vunpack.c.l.b16 %v137
  %v501 = vunpack.c.l.b16 %v138
  %v502 = vunpack.c.l.b16 %v139
  %v503 = vunpack.c.l.b16 %v140
  %v504 = vunpack.c.l.b16 %v141
  %v505 = vunpack.c.l.b16 %v142
  %v506 = vunpack.c.l.b16 %v143
  %v507 = vunpack.c.l.b16 %v144
  %v508 = vunpack.c.l.b16 %v145
  %v509 = vunpack.c.l.b16 %v146
  %v510 = vunpack.c.l.b16 %v147
  %v511 = vunpack.c.l.b16 %v148
  %v512 = vunpack.c.l.b16 %v149
  %v513 = vunpack.c.l.b16 %v150
  %v514 = vunpack.c.l.b16 %v151
  %v515 = vunpack.c.l.b16 %v152
  %v516 = vunpack.c.l.b16 %v153
  %v517 = vunpack.c.l.b16 %v154
  %v518 = vpack.c.b16 %v411, %v410
  %v519 = vpack.c.b16 %v413, %v412
  %v520 = vpack.c.b16 %v415, %v414
  %v521 = vpack.c.b16 %v417, %v416
  %v522 = vpack.c.b16 %v419, %v418
  %v523 = vpack.c.b16 %v421, %v420
  %v524 = vpack.c.b16 %v423, %v422
  %v525 = vpack.c.b16 %v425, %v424
  %v526 = vpack.c.b16 %v427, %v426
  %v527 = vpack.c.b16 %v429, %v428
  %v528 = vpack.c.b16 %v431, %v430
  %v529 = vpack.c.b16 %v433, %v432
  %v530 = vpack.c.b16 %v435, %v434
  %v531 = vpack.c.b16 %v437, %v436
  %v532 = vpack.c.b16 %v439, %v438
  %v533 = vpack.c.b16 %v441, %v440
  %v534 = vpack.c.b16 %v443, %v442
  %v535 = vpack.c.b16 %v445, %v444
  %v536 = vpack.c.b16 %v447, %v446
  %v537 = vpack.c.b16 %v449, %v448
  %v538 = vpack.c.b16 %v451, %v450
  %v539 = vpack.c.b16 %v453, %v452
  %v540 = vpack.c.b16 %v455, %v454
  %v541 = vpack.c.b16 %v457, %v456
  %v542 = vpack.c.b16 %v459, %v458
  %v543 = vpack.c.b16 %v461, %v460
  %v544 = vpack.c.b16 %v463, %v462
  %v545 = vpack.c.b16 %v465, %v464
  %v546 = vpack.c.b16 %v467, %v466
  %v547 = vpack.c.b16 %v469, %v468
  %v548 = vpack.c.b16 %v471, %v470
  %v549 = vpack.c.b16 %v473, %v472
  %v550 = vpack.c.b16 %v475, %v474
  %v551 = vpack.c.b16 %v477, %v476
  %v552 = vpack.c.b16 %v479, %v478
  %v553 = vpack.c.b16 %v481, %v480
  %v554 = vpack.c.b16 %v483, %v482
  %v555 = vpack.c.b16 %v485, %v484
  %v556 = vpack.c.b16 %v487, %v486
  %v557 = vpack.c.b16 %v489, %v488
  %v558 = vpack.c.b16 %v491, %v490
  %v559 = vpack.c.b16 %v493, %v492
  %v560 = vpack.c.b16 %v495, %v494
  %v561 = vpack.c.b16 %v497, %v496
  %v562 = vpack.c.b16 %v499, %v498
  %v563 = vpack.c.b16 %v501, %v500
  %v564 = vpack.c.b16 %v503, %v502
  %v565 = vpack.c.b16 %v505, %v504
  %v566 = vpack.c.b16 %v507, %v506
  %v567 = vpack.c.b16 %v509, %v508
  %v568 = vpack.c.b16 %v511, %v510
  %v569 = vpack.c.b16 %v513, %v512
  %v570 = vpack.c.b16 %v515, %v514
  %v571 = vpack.c.b16 %v517, %v516
  %vm626 = vcmask 785408
  %v628 = vsel %vm626, %v256, 0
  %v631 = vsel %vm626, %v263, 0
  %v634 = vsel %vm626, %v270, 0
  %v637 = vsel %vm626, %v277, 0
  %639 = vmatprep.subr.bf16.mxu0 0
  %640 = vmatpush1.bf16.msra.mxu0 %v525
  %641 = vmatprep.subr.bf16.mxu0 0
  %642 = vmatpush1.bf16.msra.mxu0 %v524
  %643 = vmatprep.subr.bf16.mxu0 0
  %644 = vmatpush1.bf16.msra.mxu0 %v523
  %645 = vmatprep.subr.bf16.mxu0 0
  %646 = vmatpush1.bf16.msra.mxu0 %v522
  %647 = vmatprep.subr.bf16.mxu0 0
  %648 = vmatpush1.bf16.msra.mxu0 %v521
  %649 = vmatprep.subr.bf16.mxu0 0
  %650 = vmatpush1.bf16.msra.mxu0 %v520
  %651 = vmatprep.subr.bf16.mxu0 0
  %652 = vmatpush1.bf16.msra.mxu0 %v519
  %653 = vmatprep.subr.bf16.mxu0 0
  %654 = vmatpush1.bf16.msra.mxu0 %v518
  %655 = vmatprep.subr.bf16.mxu0 0
  %656 = vmatpush2.bf16.msra.mxu0 %v533
  %657 = vmatprep.subr.bf16.mxu0 0
  %658 = vmatpush2.bf16.msra.mxu0 %v532
  %659 = vmatprep.subr.bf16.mxu0 0
  %660 = vmatpush2.bf16.msra.mxu0 %v531
  %661 = vmatprep.subr.bf16.mxu0 0
  %662 = vmatpush2.bf16.msra.mxu0 %v530
  %663 = vmatprep.subr.bf16.mxu0 0
  %664 = vmatpush2.bf16.msra.mxu0 %v529
  %665 = vmatprep.subr.bf16.mxu0 0
  %666 = vmatpush2.bf16.msra.mxu0 %v528
  %667 = vmatprep.subr.bf16.mxu0 0
  %668 = vmatpush2.bf16.msra.mxu0 %v527
  %669 = vmatprep.subr.bf16.mxu0 0
  %670 = vmatpush2.bf16.msra.mxu0 %v526
  %671 = vmatprep.mubr.bf16.mxu0 %v251
  %672 = vmatmul.mubr.bf16.gmra.mxu0 %v250
  %v673 = vpop.f32.mrf.mxu0
  %v674 = vadd.f32 %v160, %v673
  %v675 = vpop.f32.mrf.mxu0
  %v676 = vpop.f32.mrf.mxu0
  %v677 = vadd.f32 %v160, %v676
  %v678 = vpop.f32.mrf.mxu0
  %679 = vmatprep.mubr.bf16.mxu0 %v258
  %680 = vmatmul.mubr.bf16.gmra.mxu0 %v257
  %v681 = vpop.f32.mrf.mxu0
  %v682 = vadd.f32 %v160, %v681
  %v683 = vpop.f32.mrf.mxu0
  %v684 = vpop.f32.mrf.mxu0
  %v685 = vadd.f32 %v160, %v684
  %v686 = vpop.f32.mrf.mxu0
  %687 = vmatprep.mubr.bf16.mxu0 %v265
  %688 = vmatmul.mubr.bf16.gmra.mxu0 %v264
  %v689 = vpop.f32.mrf.mxu0
  %v690 = vadd.f32 %v160, %v689
  %v691 = vpop.f32.mrf.mxu0
  %v692 = vpop.f32.mrf.mxu0
  %v693 = vadd.f32 %v160, %v692
  %v694 = vpop.f32.mrf.mxu0
  %695 = vmatprep.mubr.bf16.mxu0 %v272
  %696 = vmatmul.mubr.bf16.gmra.mxu0 %v271
  %v697 = vpop.f32.mrf.mxu0
  %v698 = vadd.f32 %v160, %v697
  %v699 = vpop.f32.mrf.mxu0
  %v700 = vpop.f32.mrf.mxu0
  %v701 = vadd.f32 %v160, %v700
  %v702 = vpop.f32.mrf.mxu0
  %703 = vdwg.mxu0
  %704 = vmatprep.subr.bf16.mxu0 0
  %705 = vmatpush1.bf16.msra.mxu0 %v541
  %706 = vmatprep.subr.bf16.mxu0 0
  %707 = vmatpush1.bf16.msra.mxu0 %v540
  %708 = vmatprep.subr.bf16.mxu0 0
  %709 = vmatpush1.bf16.msra.mxu0 %v539
  %710 = vmatprep.subr.bf16.mxu0 0
  %711 = vmatpush1.bf16.msra.mxu0 %v538
  %712 = vmatprep.subr.bf16.mxu0 0
  %713 = vmatpush1.bf16.msra.mxu0 %v537
  %714 = vmatprep.subr.bf16.mxu0 0
  %715 = vmatpush1.bf16.msra.mxu0 %v536
  %716 = vmatprep.subr.bf16.mxu0 0
  %717 = vmatpush1.bf16.msra.mxu0 %v535
  %718 = vmatprep.subr.bf16.mxu0 0
  %719 = vmatpush1.bf16.msra.mxu0 %v534
  %720 = vmatprep.subr.bf16.mxu0 0
  %721 = vmatpush2.bf16.msra.mxu0 %v549
  %722 = vmatprep.subr.bf16.mxu0 0
  %723 = vmatpush2.bf16.msra.mxu0 %v548
  %724 = vmatprep.subr.bf16.mxu0 0
  %725 = vmatpush2.bf16.msra.mxu0 %v547
  %726 = vmatprep.subr.bf16.mxu0 0
  %727 = vmatpush2.bf16.msra.mxu0 %v546
  %728 = vmatprep.subr.bf16.mxu0 0
  %729 = vmatpush2.bf16.msra.mxu0 %v545
  %730 = vmatprep.subr.bf16.mxu0 0
  %731 = vmatpush2.bf16.msra.mxu0 %v544
  %732 = vmatprep.subr.bf16.mxu0 0
  %733 = vmatpush2.bf16.msra.mxu0 %v543
  %734 = vmatprep.subr.bf16.mxu0 0
  %735 = vmatpush2.bf16.msra.mxu0 %v542
  %736 = vmatprep.mubr.bf16.mxu0 %v253
  %737 = vmatmul.mubr.bf16.gmra.mxu0 %v252
  %v738 = vpop.f32.mrf.mxu0
  %v739 = vadd.f32 %v674, %v738
  %v740 = vpop.f32.mrf.mxu0
  %v741 = vpop.f32.mrf.mxu0
  %v742 = vadd.f32 %v677, %v741
  %v743 = vpop.f32.mrf.mxu0
  %744 = vmatprep.mubr.bf16.mxu0 %v260
  %745 = vmatmul.mubr.bf16.gmra.mxu0 %v259
  %v746 = vpop.f32.mrf.mxu0
  %v747 = vadd.f32 %v682, %v746
  %v748 = vpop.f32.mrf.mxu0
  %v749 = vpop.f32.mrf.mxu0
  %v750 = vadd.f32 %v685, %v749
  %v751 = vpop.f32.mrf.mxu0
  %752 = vmatprep.mubr.bf16.mxu0 %v267
  %753 = vmatmul.mubr.bf16.gmra.mxu0 %v266
  %v754 = vpop.f32.mrf.mxu0
  %v755 = vadd.f32 %v690, %v754
  %v756 = vpop.f32.mrf.mxu0
  %v757 = vpop.f32.mrf.mxu0
  %v758 = vadd.f32 %v693, %v757
  %v759 = vpop.f32.mrf.mxu0
  %760 = vmatprep.mubr.bf16.mxu0 %v274
  %761 = vmatmul.mubr.bf16.gmra.mxu0 %v273
  %v762 = vpop.f32.mrf.mxu0
  %v763 = vadd.f32 %v698, %v762
  %v764 = vpop.f32.mrf.mxu0
  %v765 = vpop.f32.mrf.mxu0
  %v766 = vadd.f32 %v701, %v765
  %v767 = vpop.f32.mrf.mxu0
  %768 = vdwg.mxu0
  %769 = vmatprep.subr.bf16.mxu0 0
  %770 = vmatpush1.bf16.msra.mxu0 %v557
  %771 = vmatprep.subr.bf16.mxu0 0
  %772 = vmatpush1.bf16.msra.mxu0 %v556
  %773 = vmatprep.subr.bf16.mxu0 0
  %774 = vmatpush1.bf16.msra.mxu0 %v555
  %775 = vmatprep.subr.bf16.mxu0 0
  %776 = vmatpush1.bf16.msra.mxu0 %v554
  %777 = vmatprep.subr.bf16.mxu0 0
  %778 = vmatpush1.bf16.msra.mxu0 %v553
  %779 = vmatprep.subr.bf16.mxu0 0
  %780 = vmatpush1.bf16.msra.mxu0 %v552
  %781 = vmatprep.subr.bf16.mxu0 0
  %782 = vmatpush1.bf16.msra.mxu0 %v551
  %783 = vmatprep.subr.bf16.mxu0 0
  %784 = vmatpush1.bf16.msra.mxu0 %v550
  %785 = vmatprep.subr.bf16.mxu0 0
  %786 = vmatpush2.bf16.msra.mxu0 %v565
  %787 = vmatprep.subr.bf16.mxu0 0
  %788 = vmatpush2.bf16.msra.mxu0 %v564
  %789 = vmatprep.subr.bf16.mxu0 0
  %790 = vmatpush2.bf16.msra.mxu0 %v563
  %791 = vmatprep.subr.bf16.mxu0 0
  %792 = vmatpush2.bf16.msra.mxu0 %v562
  %793 = vmatprep.subr.bf16.mxu0 0
  %794 = vmatpush2.bf16.msra.mxu0 %v561
  %795 = vmatprep.subr.bf16.mxu0 0
  %796 = vmatpush2.bf16.msra.mxu0 %v560
  %797 = vmatprep.subr.bf16.mxu0 0
  %798 = vmatpush2.bf16.msra.mxu0 %v559
  %799 = vmatprep.subr.bf16.mxu0 0
  %800 = vmatpush2.bf16.msra.mxu0 %v558
  %801 = vmatprep.mubr.bf16.mxu0 %v255
  %802 = vmatmul.mubr.bf16.gmra.mxu0 %v254
  %v803 = vpop.f32.mrf.mxu0
  %v804 = vadd.f32 %v739, %v803
  %v805 = vpop.f32.mrf.mxu0
  %v806 = vpop.f32.mrf.mxu0
  %v807 = vadd.f32 %v742, %v806
  %v808 = vpop.f32.mrf.mxu0
  %809 = vmatprep.mubr.bf16.mxu0 %v262
  %810 = vmatmul.mubr.bf16.gmra.mxu0 %v261
  %v811 = vpop.f32.mrf.mxu0
  %v812 = vadd.f32 %v747, %v811
  %v813 = vpop.f32.mrf.mxu0
  %v814 = vpop.f32.mrf.mxu0
  %v815 = vadd.f32 %v750, %v814
  %v816 = vpop.f32.mrf.mxu0
  %817 = vmatprep.mubr.bf16.mxu0 %v269
  %818 = vmatmul.mubr.bf16.gmra.mxu0 %v268
  %v819 = vpop.f32.mrf.mxu0
  %v820 = vadd.f32 %v755, %v819
  %v821 = vpop.f32.mrf.mxu0
  %v822 = vpop.f32.mrf.mxu0
  %v823 = vadd.f32 %v758, %v822
  %v824 = vpop.f32.mrf.mxu0
  %825 = vmatprep.mubr.bf16.mxu0 %v276
  %826 = vmatmul.mubr.bf16.gmra.mxu0 %v275
  %v827 = vpop.f32.mrf.mxu0
  %v828 = vadd.f32 %v763, %v827
  %v829 = vpop.f32.mrf.mxu0
  %v830 = vpop.f32.mrf.mxu0
  %v831 = vadd.f32 %v766, %v830
  %v832 = vpop.f32.mrf.mxu0
  %833 = vdwg.mxu0
  %834 = vmatprep.subr.bf16.mxu0 0
  %835 = vmatpush1.bf16.msra.mxu0 0
  %836 = vmatprep.subr.bf16.mxu0 0
  %837 = vmatpush1.bf16.msra.mxu0 0
  %838 = vmatprep.subr.bf16.mxu0 0
  %839 = vmatpush1.bf16.msra.mxu0 %v571
  %840 = vmatprep.subr.bf16.mxu0 0
  %841 = vmatpush1.bf16.msra.mxu0 %v570
  %842 = vmatprep.subr.bf16.mxu0 0
  %843 = vmatpush1.bf16.msra.mxu0 %v569
  %844 = vmatprep.subr.bf16.mxu0 0
  %845 = vmatpush1.bf16.msra.mxu0 %v568
  %846 = vmatprep.subr.bf16.mxu0 0
  %847 = vmatpush1.bf16.msra.mxu0 %v567
  %848 = vmatprep.subr.bf16.mxu0 0
  %849 = vmatpush1.bf16.msra.mxu0 %v566
  %850 = vmatprep.subr.bf16.mxu0 0
  %851 = vmatpush2.bf16.msra.mxu0 0
  %852 = vmatprep.subr.bf16.mxu0 0
  %853 = vmatpush2.bf16.msra.mxu0 0
  %854 = vmatprep.subr.bf16.mxu0 0
  %855 = vmatpush2.bf16.msra.mxu0 0
  %856 = vmatprep.subr.bf16.mxu0 0
  %857 = vmatpush2.bf16.msra.mxu0 0
  %858 = vmatprep.subr.bf16.mxu0 0
  %859 = vmatpush2.bf16.msra.mxu0 0
  %860 = vmatprep.subr.bf16.mxu0 0
  %861 = vmatpush2.bf16.msra.mxu0 0
  %862 = vmatprep.subr.bf16.mxu0 0
  %863 = vmatpush2.bf16.msra.mxu0 0
  %864 = vmatprep.subr.bf16.mxu0 0
  %865 = vmatpush2.bf16.msra.mxu0 0
  %866 = vmatprep.mubr.bf16.mxu0 0
  %867 = vmatmul.mubr.bf16.gmra.mxu0 %v628
  %v868 = vpop.f32.mrf.mxu0
  %v869 = vadd.f32 %v804, %v868
  %v870 = vpop.f32.mrf.mxu0
  %v871 = vpop.f32.mrf.mxu0
  %v872 = vadd.f32 %v807, %v871
  %v873 = vpop.f32.mrf.mxu0
  %874 = vmatprep.mubr.bf16.mxu0 0
  %875 = vmatmul.mubr.bf16.gmra.mxu0 %v631
  %v876 = vpop.f32.mrf.mxu0
  %v877 = vadd.f32 %v812, %v876
  %v878 = vpop.f32.mrf.mxu0
  %v879 = vpop.f32.mrf.mxu0
  %v880 = vadd.f32 %v815, %v879
  %v881 = vpop.f32.mrf.mxu0
  %882 = vmatprep.mubr.bf16.mxu0 0
  %883 = vmatmul.mubr.bf16.gmra.mxu0 %v634
  %v884 = vpop.f32.mrf.mxu0
  %v885 = vadd.f32 %v820, %v884
  %v886 = vpop.f32.mrf.mxu0
  %v887 = vpop.f32.mrf.mxu0
  %v888 = vadd.f32 %v823, %v887
  %v889 = vpop.f32.mrf.mxu0
  %890 = vmatprep.mubr.bf16.mxu0 0
  %891 = vmatmul.mubr.bf16.gmra.mxu0 %v637
  %v892 = vpop.f32.mrf.mxu0
  %v893 = vadd.f32 %v828, %v892
  %v894 = vpop.f32.mrf.mxu0
  %v895 = vpop.f32.mrf.mxu0
  %v896 = vadd.f32 %v831, %v895
  %v897 = vpop.f32.mrf.mxu0
  %898 = vdwg.mxu0
  %vm899 = vcmask 588800
  %900 = vst.msk [vmem:[%s3] sm:$0xff] %vm899, %v869
  %901 = vst.msk [vmem:[%s3 + $0x8] sm:$0xff] %vm899, %v872
  %902 = vst.msk [vmem:[%s3 + $0x10] sm:$0xff] %vm899, %v877
  %903 = vst.msk [vmem:[%s3 + $0x18] sm:$0xff] %vm899, %v880
  %904 = vst.msk [vmem:[%s3 + $0x20] sm:$0xff] %vm899, %v885
  %905 = vst.msk [vmem:[%s3 + $0x28] sm:$0xff] %vm899, %v888
  %906 = vst.msk [vmem:[%s3 + $0x30] sm:$0xff] %vm899, %v893
  %907 = vst.msk [vmem:[%s3 + $0x38] sm:$0xff] %vm899, %v896
  // Predicated region
  $region14: #{_lambda_.25} parent=0 // pred_check
    _
  $region15: #{_lambda_.25} parent=0 // pred_check_branch
    %909 = sbr.rel (0) target = $region17
  $region16: #{_lambda_.25} parent=0 // pred_region
    _
  $region17: #{_lambda_.25} parent=0 // pred_fallthru
    _
  // Predicated region
  $region18: #{_lambda_.25} parent=0 // pred_check
    _
  $region19: #{_lambda_.25} parent=0 // pred_check_branch
    %911 = sbr.rel (0) target = $region21
  $region20: #{_lambda_.25} parent=0 // pred_region
    _
  $region21: #{_lambda_.25} parent=0 // pred_fallthru
    _

// kernel: _lambda_.26
$region0: #{_lambda_.26}
  #allocation0 [shape = 'u32[]', space=smem, size = 0x4, offset = 0x4, fixed_abs, tag = 'smem constant byte address 0x4 - core index']
  #allocation1 [shape = 'u32[144,128]{1,0:T(1,128)}', space=vmem, size = 0x12000, scoped, tag = 'internal scratch']
  %s0 = inlined_call_operand.vmem [shape: bf16[256,48], index: 0, kind: input, shape index: {}]
  %s1 = inlined_call_operand.vmem [shape: bf16[48,16], index: 1, kind: input, shape index: {}]
  %s2 = inlined_call_operand.vmem [shape: f32[1,16], index: 2, kind: input, shape index: {}]
  %s3 = inlined_call_operand.vmem [shape: f32[256,16], index: 3, kind: output, shape index: {}]
  %s4 = sld [smem:[#allocation0]]
  $region22: #{_lambda_.26} parent=0
    _
  %s6 = ssub.s32 1, %s4
  %s7 = scalar_select 0, %s6, %s4
  // Predicated region
  $region2: #{_lambda_.26} parent=0 // pred_check
    _
  $region3: #{_lambda_.26} parent=0 // pred_check_branch
    %9 = sbr.rel (0) target = $region5
  $region4: #{_lambda_.26} parent=0 // pred_region
    _
  $region5: #{_lambda_.26} parent=0 // pred_fallthru
    _
  // Predicated region
  $region6: #{_lambda_.26} parent=0 // pred_check
    _
  $region7: #{_lambda_.26} parent=0 // pred_check_branch
    %11 = sbr.rel (0) target = $region9
  $region8: #{_lambda_.26} parent=0 // pred_region
    _
  $region9: #{_lambda_.26} parent=0 // pred_fallthru
    _
  // Predicated region
  $region10: #{_lambda_.26} parent=0 // pred_check
    _
  $region11: #{_lambda_.26} parent=0 // pred_check_branch
    %13 = sbr.rel (0) target = $region13
  $region12: #{_lambda_.26} parent=0 // pred_region
    _
  $region13: #{_lambda_.26} parent=0 // pred_fallthru
    _
  %v15 = vld [vmem:[%s0] sm:$0xf]
  %v16 = vld [vmem:[%s0 + $0x4] sm:$0xf]
  %v17 = vld [vmem:[%s0 + $0x8] sm:$0xf]
  %v18 = vld [vmem:[%s0 + $0xc] sm:$0xf]
  %v19 = vld [vmem:[%s0 + $0x10] sm:$0xf]
  %v20 = vld [vmem:[%s0 + $0x14] sm:$0xf]
  %v21 = vld [vmem:[%s0 + $0x18] sm:$0xf]
  %v22 = vld [vmem:[%s0 + $0x1c] sm:$0xf]
  %v23 = vld [vmem:[%s0 + $0x20] sm:$0xf]
  %v24 = vld [vmem:[%s0 + $0x24] sm:$0xf]
  %v25 = vld [vmem:[%s0 + $0x28] sm:$0xf]
  %v26 = vld [vmem:[%s0 + $0x2c] sm:$0xf]
  %v27 = vld [vmem:[%s0 + $0x30] sm:$0xf]
  %v28 = vld [vmem:[%s0 + $0x34] sm:$0xf]
  %v29 = vld [vmem:[%s0 + $0x38] sm:$0xf]
  %v30 = vld [vmem:[%s0 + $0x3c] sm:$0xf]
  %v31 = vld [vmem:[%s0 + $0x40] sm:$0xf]
  %v32 = vld [vmem:[%s0 + $0x44] sm:$0xf]
  %v33 = vld [vmem:[%s0 + $0x48] sm:$0xf]
  %v34 = vld [vmem:[%s0 + $0x4c] sm:$0xf]
  %v35 = vld [vmem:[%s0 + $0x50] sm:$0xf]
  %v36 = vld [vmem:[%s0 + $0x54] sm:$0xf]
  %v37 = vld [vmem:[%s0 + $0x58] sm:$0xf]
  %v38 = vld [vmem:[%s0 + $0x5c] sm:$0xf]
  %v39 = vld [vmem:[%s0 + $0x60] sm:$0xf]
  %v40 = vld [vmem:[%s0 + $0x64] sm:$0xf]
  %v41 = vld [vmem:[%s0 + $0x68] sm:$0xf]
  %v42 = vld [vmem:[%s0 + $0x6c] sm:$0xf]
  %v43 = vld [vmem:[%s0 + $0x70] sm:$0xf]
  %v44 = vld [vmem:[%s0 + $0x74] sm:$0xf]
  %v45 = vld [vmem:[%s0 + $0x78] sm:$0xf]
  %v46 = vld [vmem:[%s0 + $0x7c] sm:$0xf]
  %v47 = vld [vmem:[%s1] sm:$0xf]
  %v48 = vld [vmem:[%s1 + $0x4] sm:$0xf]
  %v49 = vld [vmem:[%s1 + $0x8] sm:$0xf]
  %v50 = vld [vmem:[%s1 + $0xc] sm:$0xf]
  %v51 = vld [vmem:[%s1 + $0x10] sm:$0xf]
  %v52 = vld [vmem:[%s1 + $0x14] sm:$0xf]
  %v53 = vld [vmem:[%s2] sm:$0x1]
  %v55 = vlaneseq
  %v56 = vshrl.u32 %v55, 7
  %v57 = vsub.s32 0, %v56
  %v58 = vrot.slane %v53, %v57
  %v92 = vunpack.c.l.b16 %v15
  %v93 = vunpack.c.l.b16 %v16
  %v94 = vunpack.c.l.b16 %v17
  %v95 = vunpack.c.l.b16 %v18
  %v96 = vunpack.c.l.b16 %v19
  %v97 = vunpack.c.l.b16 %v20
  %v98 = vunpack.c.l.b16 %v21
  %v99 = vunpack.c.l.b16 %v22
  %v100 = vunpack.c.l.b16 %v23
  %v101 = vunpack.c.l.b16 %v24
  %v102 = vunpack.c.l.b16 %v25
  %v103 = vunpack.c.l.b16 %v26
  %v104 = vunpack.c.l.b16 %v27
  %v105 = vunpack.c.l.b16 %v28
  %v106 = vunpack.c.l.b16 %v29
  %v107 = vunpack.c.l.b16 %v30
  %v108 = vunpack.c.l.b16 %v31
  %v109 = vunpack.c.l.b16 %v32
  %v110 = vunpack.c.l.b16 %v33
  %v111 = vunpack.c.l.b16 %v34
  %v112 = vunpack.c.l.b16 %v35
  %v113 = vunpack.c.l.b16 %v36
  %v114 = vunpack.c.l.b16 %v37
  %v115 = vunpack.c.l.b16 %v38
  %v116 = vunpack.c.l.b16 %v39
  %v117 = vunpack.c.l.b16 %v40
  %v118 = vunpack.c.l.b16 %v41
  %v119 = vunpack.c.l.b16 %v42
  %v120 = vunpack.c.l.b16 %v43
  %v121 = vunpack.c.l.b16 %v44
  %v122 = vunpack.c.l.b16 %v45
  %v123 = vunpack.c.l.b16 %v46
  %v124 = vpack.c.b16 %v93, %v92
  %v125 = vpack.c.b16 %v95, %v94
  %v126 = vpack.c.b16 %v97, %v96
  %v127 = vpack.c.b16 %v99, %v98
  %v128 = vpack.c.b16 %v101, %v100
  %v129 = vpack.c.b16 %v103, %v102
  %v130 = vpack.c.b16 %v105, %v104
  %v131 = vpack.c.b16 %v107, %v106
  %v132 = vpack.c.b16 %v109, %v108
  %v133 = vpack.c.b16 %v111, %v110
  %v134 = vpack.c.b16 %v113, %v112
  %v135 = vpack.c.b16 %v115, %v114
  %v136 = vpack.c.b16 %v117, %v116
  %v137 = vpack.c.b16 %v119, %v118
  %v138 = vpack.c.b16 %v121, %v120
  %v139 = vpack.c.b16 %v123, %v122
  %v146 = vunpack.c.l.b16 %v47
  %v147 = vunpack.c.l.b16 %v48
  %v148 = vunpack.c.l.b16 %v49
  %v149 = vunpack.c.l.b16 %v50
  %v150 = vunpack.c.l.b16 %v51
  %v151 = vunpack.c.l.b16 %v52
  %v152 = vpack.c.b16 %v147, %v146
  %v153 = vpack.c.b16 %v149, %v148
  %v154 = vpack.c.b16 %v151, %v150
  %vm158 = vcmask 392192
  %v160 = vsel %vm158, %v124, 0
  %v163 = vsel %vm158, %v125, 0
  %v166 = vsel %vm158, %v126, 0
  %v169 = vsel %vm158, %v127, 0
  %v172 = vsel %vm158, %v128, 0
  %v175 = vsel %vm158, %v129, 0
  %v178 = vsel %vm158, %v130, 0
  %v181 = vsel %vm158, %v131, 0
  %v184 = vsel %vm158, %v132, 0
  %v187 = vsel %vm158, %v133, 0
  %v190 = vsel %vm158, %v134, 0
  %v193 = vsel %vm158, %v135, 0
  %v196 = vsel %vm158, %v136, 0
  %v199 = vsel %vm158, %v137, 0
  %v202 = vsel %vm158, %v138, 0
  %v205 = vsel %vm158, %v139, 0
  %207 = vmatprep.subr.bf16.mxu0 0
  %208 = vmatpush1.bf16.msra.mxu0 0
  %209 = vmatprep.subr.bf16.mxu0 0
  %210 = vmatpush1.bf16.msra.mxu0 0
  %211 = vmatprep.subr.bf16.mxu0 0
  %212 = vmatpush1.bf16.msra.mxu0 0
  %213 = vmatprep.subr.bf16.mxu0 0
  %214 = vmatpush1.bf16.msra.mxu0 0
  %215 = vmatprep.subr.bf16.mxu0 0
  %216 = vmatpush1.bf16.msra.mxu0 0
  %217 = vmatprep.subr.bf16.mxu0 0
  %218 = vmatpush1.bf16.msra.mxu0 %v154
  %219 = vmatprep.subr.bf16.mxu0 0
  %220 = vmatpush1.bf16.msra.mxu0 %v153
  %221 = vmatprep.subr.bf16.mxu0 0
  %222 = vmatpush1.bf16.msra.mxu0 %v152
  %223 = vmatprep.subr.bf16.mxu0 0
  %224 = vmatpush2.bf16.msra.mxu0 0
  %225 = vmatprep.subr.bf16.mxu0 0
  %226 = vmatpush2.bf16.msra.mxu0 0
  %227 = vmatprep.subr.bf16.mxu0 0
  %228 = vmatpush2.bf16.msra.mxu0 0
  %229 = vmatprep.subr.bf16.mxu0 0
  %230 = vmatpush2.bf16.msra.mxu0 0
  %231 = vmatprep.subr.bf16.mxu0 0
  %232 = vmatpush2.bf16.msra.mxu0 0
  %233 = vmatprep.subr.bf16.mxu0 0
  %234 = vmatpush2.bf16.msra.mxu0 0
  %235 = vmatprep.subr.bf16.mxu0 0
  %236 = vmatpush2.bf16.msra.mxu0 0
  %237 = vmatprep.subr.bf16.mxu0 0
  %238 = vmatpush2.bf16.msra.mxu0 0
  %239 = vmatprep.mubr.bf16.mxu0 0
  %240 = vmatmul.mubr.bf16.gmra.mxu0 %v160
  %v241 = vpop.f32.mrf.mxu0
  %v242 = vadd.f32 %v58, %v241
  %v243 = vpop.f32.mrf.mxu0
  %v244 = vpop.f32.mrf.mxu0
  %v245 = vadd.f32 %v58, %v244
  %v246 = vpop.f32.mrf.mxu0
  %247 = vmatprep.mubr.bf16.mxu0 0
  %248 = vmatmul.mubr.bf16.gmra.mxu0 %v163
  %v249 = vpop.f32.mrf.mxu0
  %v250 = vadd.f32 %v58, %v249
  %v251 = vpop.f32.mrf.mxu0
  %v252 = vpop.f32.mrf.mxu0
  %v253 = vadd.f32 %v58, %v252
  %v254 = vpop.f32.mrf.mxu0
  %255 = vmatprep.mubr.bf16.mxu0 0
  %256 = vmatmul.mubr.bf16.gmra.mxu0 %v166
  %v257 = vpop.f32.mrf.mxu0
  %v258 = vadd.f32 %v58, %v257
  %v259 = vpop.f32.mrf.mxu0
  %v260 = vpop.f32.mrf.mxu0
  %v261 = vadd.f32 %v58, %v260
  %v262 = vpop.f32.mrf.mxu0
  %263 = vmatprep.mubr.bf16.mxu0 0
  %264 = vmatmul.mubr.bf16.gmra.mxu0 %v169
  %v265 = vpop.f32.mrf.mxu0
  %v266 = vadd.f32 %v58, %v265
  %v267 = vpop.f32.mrf.mxu0
  %v268 = vpop.f32.mrf.mxu0
  %v269 = vadd.f32 %v58, %v268
  %v270 = vpop.f32.mrf.mxu0
  %271 = vmatprep.mubr.bf16.mxu0 0
  %272 = vmatmul.mubr.bf16.gmra.mxu0 %v172
  %v273 = vpop.f32.mrf.mxu0
  %v274 = vadd.f32 %v58, %v273
  %v275 = vpop.f32.mrf.mxu0
  %v276 = vpop.f32.mrf.mxu0
  %v277 = vadd.f32 %v58, %v276
  %v278 = vpop.f32.mrf.mxu0
  %279 = vmatprep.mubr.bf16.mxu0 0
  %280 = vmatmul.mubr.bf16.gmra.mxu0 %v175
  %v281 = vpop.f32.mrf.mxu0
  %v282 = vadd.f32 %v58, %v281
  %v283 = vpop.f32.mrf.mxu0
  %v284 = vpop.f32.mrf.mxu0
  %v285 = vadd.f32 %v58, %v284
  %v286 = vpop.f32.mrf.mxu0
  %287 = vmatprep.mubr.bf16.mxu0 0
  %288 = vmatmul.mubr.bf16.gmra.mxu0 %v178
  %v289 = vpop.f32.mrf.mxu0
  %v290 = vadd.f32 %v58, %v289
  %v291 = vpop.f32.mrf.mxu0
  %v292 = vpop.f32.mrf.mxu0
  %v293 = vadd.f32 %v58, %v292
  %v294 = vpop.f32.mrf.mxu0
  %295 = vmatprep.mubr.bf16.mxu0 0
  %296 = vmatmul.mubr.bf16.gmra.mxu0 %v181
  %v297 = vpop.f32.mrf.mxu0
  %v298 = vadd.f32 %v58, %v297
  %v299 = vpop.f32.mrf.mxu0
  %v300 = vpop.f32.mrf.mxu0
  %v301 = vadd.f32 %v58, %v300
  %v302 = vpop.f32.mrf.mxu0
  %303 = vmatprep.mubr.bf16.mxu0 0
  %304 = vmatmul.mubr.bf16.gmra.mxu0 %v184
  %v305 = vpop.f32.mrf.mxu0
  %v306 = vadd.f32 %v58, %v305
  %v307 = vpop.f32.mrf.mxu0
  %v308 = vpop.f32.mrf.mxu0
  %v309 = vadd.f32 %v58, %v308
  %v310 = vpop.f32.mrf.mxu0
  %311 = vmatprep.mubr.bf16.mxu0 0
  %312 = vmatmul.mubr.bf16.gmra.mxu0 %v187
  %v313 = vpop.f32.mrf.mxu0
  %v314 = vadd.f32 %v58, %v313
  %v315 = vpop.f32.mrf.mxu0
  %v316 = vpop.f32.mrf.mxu0
  %v317 = vadd.f32 %v58, %v316
  %v318 = vpop.f32.mrf.mxu0
  %319 = vmatprep.mubr.bf16.mxu0 0
  %320 = vmatmul.mubr.bf16.gmra.mxu0 %v190
  %v321 = vpop.f32.mrf.mxu0
  %v322 = vadd.f32 %v58, %v321
  %v323 = vpop.f32.mrf.mxu0
  %v324 = vpop.f32.mrf.mxu0
  %v325 = vadd.f32 %v58, %v324
  %v326 = vpop.f32.mrf.mxu0
  %327 = vmatprep.mubr.bf16.mxu0 0
  %328 = vmatmul.mubr.bf16.gmra.mxu0 %v193
  %v329 = vpop.f32.mrf.mxu0
  %v330 = vadd.f32 %v58, %v329
  %v331 = vpop.f32.mrf.mxu0
  %v332 = vpop.f32.mrf.mxu0
  %v333 = vadd.f32 %v58, %v332
  %v334 = vpop.f32.mrf.mxu0
  %335 = vmatprep.mubr.bf16.mxu0 0
  %336 = vmatmul.mubr.bf16.gmra.mxu0 %v196
  %v337 = vpop.f32.mrf.mxu0
  %v338 = vadd.f32 %v58, %v337
  %v339 = vpop.f32.mrf.mxu0
  %v340 = vpop.f32.mrf.mxu0
  %v341 = vadd.f32 %v58, %v340
  %v342 = vpop.f32.mrf.mxu0
  %343 = vmatprep.mubr.bf16.mxu0 0
  %344 = vmatmul.mubr.bf16.gmra.mxu0 %v199
  %v345 = vpop.f32.mrf.mxu0
  %v346 = vadd.f32 %v58, %v345
  %v347 = vpop.f32.mrf.mxu0
  %v348 = vpop.f32.mrf.mxu0
  %v349 = vadd.f32 %v58, %v348
  %v350 = vpop.f32.mrf.mxu0
  %351 = vmatprep.mubr.bf16.mxu0 0
  %352 = vmatmul.mubr.bf16.gmra.mxu0 %v202
  %v353 = vpop.f32.mrf.mxu0
  %v354 = vadd.f32 %v58, %v353
  %v355 = vpop.f32.mrf.mxu0
  %v356 = vpop.f32.mrf.mxu0
  %v357 = vadd.f32 %v58, %v356
  %v358 = vpop.f32.mrf.mxu0
  %359 = vmatprep.mubr.bf16.mxu0 0
  %360 = vmatmul.mubr.bf16.gmra.mxu0 %v205
  %v361 = vpop.f32.mrf.mxu0
  %v362 = vadd.f32 %v58, %v361
  %v363 = vpop.f32.mrf.mxu0
  %v364 = vpop.f32.mrf.mxu0
  %v365 = vadd.f32 %v58, %v364
  %v366 = vpop.f32.mrf.mxu0
  %367 = vdwg.mxu0
  %vm368 = vcmask 130048
  %369 = vst.msk [vmem:[%s3] sm:$0xff] %vm368, %v242
  %370 = vst.msk [vmem:[%s3 + $0x8] sm:$0xff] %vm368, %v245
  %371 = vst.msk [vmem:[%s3 + $0x10] sm:$0xff] %vm368, %v250
  %372 = vst.msk [vmem:[%s3 + $0x18] sm:$0xff] %vm368, %v253
  %373 = vst.msk [vmem:[%s3 + $0x20] sm:$0xff] %vm368, %v258
  %374 = vst.msk [vmem:[%s3 + $0x28] sm:$0xff] %vm368, %v261
  %375 = vst.msk [vmem:[%s3 + $0x30] sm:$0xff] %vm368, %v266
  %376 = vst.msk [vmem:[%s3 + $0x38] sm:$0xff] %vm368, %v269
  %377 = vst.msk [vmem:[%s3 + $0x40] sm:$0xff] %vm368, %v274
  %378 = vst.msk [vmem:[%s3 + $0x48] sm:$0xff] %vm368, %v277
  %379 = vst.msk [vmem:[%s3 + $0x50] sm:$0xff] %vm368, %v282
  %380 = vst.msk [vmem:[%s3 + $0x58] sm:$0xff] %vm368, %v285
  %381 = vst.msk [vmem:[%s3 + $0x60] sm:$0xff] %vm368, %v290
  %382 = vst.msk [vmem:[%s3 + $0x68] sm:$0xff] %vm368, %v293
  %383 = vst.msk [vmem:[%s3 + $0x70] sm:$0xff] %vm368, %v298
  %384 = vst.msk [vmem:[%s3 + $0x78] sm:$0xff] %vm368, %v301
  %385 = vst.msk [vmem:[%s3 + $0x80] sm:$0xff] %vm368, %v306
  %386 = vst.msk [vmem:[%s3 + $0x88] sm:$0xff] %vm368, %v309
  %387 = vst.msk [vmem:[%s3 + $0x90] sm:$0xff] %vm368, %v314
  %388 = vst.msk [vmem:[%s3 + $0x98] sm:$0xff] %vm368, %v317
  %389 = vst.msk [vmem:[%s3 + $0xa0] sm:$0xff] %vm368, %v322
  %390 = vst.msk [vmem:[%s3 + $0xa8] sm:$0xff] %vm368, %v325
  %391 = vst.msk [vmem:[%s3 + $0xb0] sm:$0xff] %vm368, %v330
  %392 = vst.msk [vmem:[%s3 + $0xb8] sm:$0xff] %vm368, %v333
  %393 = vst.msk [vmem:[%s3 + $0xc0] sm:$0xff] %vm368, %v338
  %394 = vst.msk [vmem:[%s3 + $0xc8] sm:$0xff] %vm368, %v341
  %395 = vst.msk [vmem:[%s3 + $0xd0] sm:$0xff] %vm368, %v346
  %396 = vst.msk [vmem:[%s3 + $0xd8] sm:$0xff] %vm368, %v349
  %397 = vst.msk [vmem:[%s3 + $0xe0] sm:$0xff] %vm368, %v354
  %398 = vst.msk [vmem:[%s3 + $0xe8] sm:$0xff] %vm368, %v357
  %399 = vst.msk [vmem:[%s3 + $0xf0] sm:$0xff] %vm368, %v362
  %400 = vst.msk [vmem:[%s3 + $0xf8] sm:$0xff] %vm368, %v365
  // Predicated region
  $region14: #{_lambda_.26} parent=0 // pred_check
    _
  $region15: #{_lambda_.26} parent=0 // pred_check_branch
    %402 = sbr.rel (0) target = $region17
  $region16: #{_lambda_.26} parent=0 // pred_region
    _
  $region17: #{_lambda_.26} parent=0 // pred_fallthru
    _
  // Predicated region
  $region18: #{_lambda_.26} parent=0 // pred_check
    _
  $region19: #{_lambda_.26} parent=0 // pred_check_branch
    %404 = sbr.rel (0) target = $region21
  $region20: #{_lambda_.26} parent=0 // pred_region
    _
  $region21: #{_lambda_.26} parent=0 // pred_fallthru
    _

// kernel: _lambda_.29
$region0: #{_lambda_.29}
  #allocation0 [shape = 'u32[]', space=smem, size = 0x4, offset = 0x4, fixed_abs, tag = 'smem constant byte address 0x4 - core index']
  #allocation1 [shape = 'u32[144,128]{1,0:T(1,128)}', space=vmem, size = 0x12000, scoped, tag = 'internal scratch']
  %s0 = inlined_call_operand.vmem [shape: bf16[256,112], index: 0, kind: input, shape index: {}]
  %s1 = inlined_call_operand.vmem [shape: f32[256,16], index: 1, kind: input, shape index: {}]
  %s2 = inlined_call_operand.vmem [shape: bf16[112,48], index: 2, kind: input, shape index: {}]
  %s3 = inlined_call_operand.vmem [shape: f32[1,48], index: 3, kind: input, shape index: {}]
  %s4 = inlined_call_operand.vmem [shape: bf16[48,16], index: 4, kind: input, shape index: {}]
  %s5 = inlined_call_operand.vmem [shape: f32[1,16], index: 5, kind: input, shape index: {}]
  %s6 = inlined_call_operand.vmem [shape: f32[1,16], index: 6, kind: input, shape index: {}]
  %s7 = inlined_call_operand.hbm [shape: f32[256,16], index: 7, kind: output, shape index: {}]
  %s8 = sld [smem:[#allocation0]]
  $region38: #{_lambda_.29} parent=0
    _
  %s10 = ssub.s32 1, %s8
  %s11 = scalar_select 0, %s10, %s8
  $region1: #{_lambda_.29} parent=0
    #allocation2 [shape = 'u8[131072]{0}', space=vmem, size = 0x20000, scoped, tag = 'output window, operand 0, single buffered']
    #allocation3 [shape = 's32[1]{0}', space=sflag, size = 0x4, scoped, tag = 'scoped memory for _lambda_.29']
    %12 = vsyncpa [#allocation3], 0
    // Predicated region
    $region2: #{_lambda_.29} parent=1 // pred_check
      _
    $region3: #{_lambda_.29} parent=1 // pred_check_branch
      %14 = sbr.rel (0) target = $region5
    $region4: #{_lambda_.29} parent=1 // pred_region
      _
    $region5: #{_lambda_.29} parent=1 // pred_fallthru
      _
    // Predicated region
    $region6: #{_lambda_.29} parent=1 // pred_check
      _
    $region7: #{_lambda_.29} parent=1 // pred_check_branch
      %16 = sbr.rel (0) target = $region9
    $region8: #{_lambda_.29} parent=1 // pred_region
      _
    $region9: #{_lambda_.29} parent=1 // pred_fallthru
      _
    // Predicated region
    $region10: #{_lambda_.29} parent=1 // pred_check
      _
    $region11: #{_lambda_.29} parent=1 // pred_check_branch
      %18 = sbr.rel (0) target = $region13
    $region12: #{_lambda_.29} parent=1 // pred_region
      _
    $region13: #{_lambda_.29} parent=1 // pred_fallthru
      _
    // Predicated region
    $region14: #{_lambda_.29} parent=1 // pred_check
      _
    $region15: #{_lambda_.29} parent=1 // pred_check_branch
      %20 = sbr.rel (0) target = $region17
    $region16: #{_lambda_.29} parent=1 // pred_region
      _
    $region17: #{_lambda_.29} parent=1 // pred_fallthru
      _
    // Predicated region
    $region18: #{_lambda_.29} parent=1 // pred_check
      _
    $region19: #{_lambda_.29} parent=1 // pred_check_branch
      %22 = sbr.rel (0) target = $region21
    $region20: #{_lambda_.29} parent=1 // pred_region
      _
    $region21: #{_lambda_.29} parent=1 // pred_fallthru
      _
    // Predicated region
    $region22: #{_lambda_.29} parent=1 // pred_check
      _
    $region23: #{_lambda_.29} parent=1 // pred_check_branch
      %24 = sbr.rel (0) target = $region25
    $region24: #{_lambda_.29} parent=1 // pred_region
      _
    $region25: #{_lambda_.29} parent=1 // pred_fallthru
      _
    // Predicated region
    $region26: #{_lambda_.29} parent=1 // pred_check
      _
    $region27: #{_lambda_.29} parent=1 // pred_check_branch
      %26 = sbr.rel (0) target = $region29
    $region28: #{_lambda_.29} parent=1 // pred_region
      _
    $region29: #{_lambda_.29} parent=1 // pred_fallthru
      _
    %v28 = vld [vmem:[%s0] sm:$0xf]
    %v29 = vld [vmem:[%s0 + $0x4] sm:$0xf]
    %v30 = vld [vmem:[%s0 + $0x8] sm:$0xf]
    %v31 = vld [vmem:[%s0 + $0xc] sm:$0xf]
    %v32 = vld [vmem:[%s0 + $0x10] sm:$0xf]
    %v33 = vld [vmem:[%s0 + $0x14] sm:$0xf]
    %v34 = vld [vmem:[%s0 + $0x18] sm:$0xf]
    %v35 = vld [vmem:[%s0 + $0x1c] sm:$0xf]
    %v36 = vld [vmem:[%s0 + $0x20] sm:$0xf]
    %v37 = vld [vmem:[%s0 + $0x24] sm:$0xf]
    %v38 = vld [vmem:[%s0 + $0x28] sm:$0xf]
    %v39 = vld [vmem:[%s0 + $0x2c] sm:$0xf]
    %v40 = vld [vmem:[%s0 + $0x30] sm:$0xf]
    %v41 = vld [vmem:[%s0 + $0x34] sm:$0xf]
    %v42 = vld [vmem:[%s0 + $0x38] sm:$0xf]
    %v43 = vld [vmem:[%s0 + $0x3c] sm:$0xf]
    %v44 = vld [vmem:[%s0 + $0x40] sm:$0xf]
    %v45 = vld [vmem:[%s0 + $0x44] sm:$0xf]
    %v46 = vld [vmem:[%s0 + $0x48] sm:$0xf]
    %v47 = vld [vmem:[%s0 + $0x4c] sm:$0xf]
    %v48 = vld [vmem:[%s0 + $0x50] sm:$0xf]
    %v49 = vld [vmem:[%s0 + $0x54] sm:$0xf]
    %v50 = vld [vmem:[%s0 + $0x58] sm:$0xf]
    %v51 = vld [vmem:[%s0 + $0x5c] sm:$0xf]
    %v52 = vld [vmem:[%s0 + $0x60] sm:$0xf]
    %v53 = vld [vmem:[%s0 + $0x64] sm:$0xf]
    %v54 = vld [vmem:[%s0 + $0x68] sm:$0xf]
    %v55 = vld [vmem:[%s0 + $0x6c] sm:$0xf]
    %v56 = vld [vmem:[%s0 + $0x70] sm:$0xf]
    %v57 = vld [vmem:[%s0 + $0x74] sm:$0xf]
    %v58 = vld [vmem:[%s0 + $0x78] sm:$0xf]
    %v59 = vld [vmem:[%s0 + $0x7c] sm:$0xf]
    %v60 = vld [vmem:[%s2] sm:$0xf]
    %v61 = vld [vmem:[%s2 + $0x4] sm:$0xf]
    %v62 = vld [vmem:[%s2 + $0x8] sm:$0xf]
    %v63 = vld [vmem:[%s2 + $0xc] sm:$0xf]
    %v64 = vld [vmem:[%s2 + $0x10] sm:$0xf]
    %v65 = vld [vmem:[%s2 + $0x14] sm:$0xf]
    %v66 = vld [vmem:[%s2 + $0x18] sm:$0xf]
    %v67 = vld [vmem:[%s2 + $0x1c] sm:$0xf]
    %v68 = vld [vmem:[%s2 + $0x20] sm:$0xf]
    %v69 = vld [vmem:[%s2 + $0x24] sm:$0xf]
    %v70 = vld [vmem:[%s2 + $0x28] sm:$0xf]
    %v71 = vld [vmem:[%s2 + $0x2c] sm:$0xf]
    %v72 = vld [vmem:[%s2 + $0x30] sm:$0xf]
    %v73 = vld [vmem:[%s2 + $0x34] sm:$0xf]
    %v74 = vld [vmem:[%s3] sm:$0x1]
    %v76 = vlaneseq
    %v77 = vshrl.u32 %v76, 7
    %v78 = vsub.s32 0, %v77
    %v79 = vrot.slane %v74, %v78
    %v113 = vunpack.c.l.b16 %v28
    %v114 = vunpack.c.l.b16 %v29
    %v115 = vunpack.c.l.b16 %v30
    %v116 = vunpack.c.l.b16 %v31
    %v117 = vunpack.c.l.b16 %v32
    %v118 = vunpack.c.l.b16 %v33
    %v119 = vunpack.c.l.b16 %v34
    %v120 = vunpack.c.l.b16 %v35
    %v121 = vunpack.c.l.b16 %v36
    %v122 = vunpack.c.l.b16 %v37
    %v123 = vunpack.c.l.b16 %v38
    %v124 = vunpack.c.l.b16 %v39
    %v125 = vunpack.c.l.b16 %v40
    %v126 = vunpack.c.l.b16 %v41
    %v127 = vunpack.c.l.b16 %v42
    %v128 = vunpack.c.l.b16 %v43
    %v129 = vunpack.c.l.b16 %v44
    %v130 = vunpack.c.l.b16 %v45
    %v131 = vunpack.c.l.b16 %v46
    %v132 = vunpack.c.l.b16 %v47
    %v133 = vunpack.c.l.b16 %v48
    %v134 = vunpack.c.l.b16 %v49
    %v135 = vunpack.c.l.b16 %v50
    %v136 = vunpack.c.l.b16 %v51
    %v137 = vunpack.c.l.b16 %v52
    %v138 = vunpack.c.l.b16 %v53
    %v139 = vunpack.c.l.b16 %v54
    %v140 = vunpack.c.l.b16 %v55
    %v141 = vunpack.c.l.b16 %v56
    %v142 = vunpack.c.l.b16 %v57
    %v143 = vunpack.c.l.b16 %v58
    %v144 = vunpack.c.l.b16 %v59
    %v145 = vpack.c.b16 %v114, %v113
    %v146 = vpack.c.b16 %v116, %v115
    %v147 = vpack.c.b16 %v118, %v117
    %v148 = vpack.c.b16 %v120, %v119
    %v149 = vpack.c.b16 %v122, %v121
    %v150 = vpack.c.b16 %v124, %v123
    %v151 = vpack.c.b16 %v126, %v125
    %v152 = vpack.c.b16 %v128, %v127
    %v153 = vpack.c.b16 %v130, %v129
    %v154 = vpack.c.b16 %v132, %v131
    %v155 = vpack.c.b16 %v134, %v133
    %v156 = vpack.c.b16 %v136, %v135
    %v157 = vpack.c.b16 %v138, %v137
    %v158 = vpack.c.b16 %v140, %v139
    %v159 = vpack.c.b16 %v142, %v141
    %v160 = vpack.c.b16 %v144, %v143
    %v175 = vunpack.c.l.b16 %v60
    %v176 = vunpack.c.l.b16 %v61
    %v177 = vunpack.c.l.b16 %v62
    %v178 = vunpack.c.l.b16 %v63
    %v179 = vunpack.c.l.b16 %v64
    %v180 = vunpack.c.l.b16 %v65
    %v181 = vunpack.c.l.b16 %v66
    %v182 = vunpack.c.l.b16 %v67
    %v183 = vunpack.c.l.b16 %v68
    %v184 = vunpack.c.l.b16 %v69
    %v185 = vunpack.c.l.b16 %v70
    %v186 = vunpack.c.l.b16 %v71
    %v187 = vunpack.c.l.b16 %v72
    %v188 = vunpack.c.l.b16 %v73
    %v189 = vpack.c.b16 %v176, %v175
    %v190 = vpack.c.b16 %v178, %v177
    %v191 = vpack.c.b16 %v180, %v179
    %v192 = vpack.c.b16 %v182, %v181
    %v193 = vpack.c.b16 %v184, %v183
    %v194 = vpack.c.b16 %v186, %v185
    %v195 = vpack.c.b16 %v188, %v187
    %vm203 = vcmask 916480
    %v205 = vsel %vm203, %v145, 0
    %v208 = vsel %vm203, %v146, 0
    %v211 = vsel %vm203, %v147, 0
    %v214 = vsel %vm203, %v148, 0
    %v217 = vsel %vm203, %v149, 0
    %v220 = vsel %vm203, %v150, 0
    %v223 = vsel %vm203, %v151, 0
    %v226 = vsel %vm203, %v152, 0
    %v229 = vsel %vm203, %v153, 0
    %v232 = vsel %vm203, %v154, 0
    %v235 = vsel %vm203, %v155, 0
    %v238 = vsel %vm203, %v156, 0
    %v241 = vsel %vm203, %v157, 0
    %v244 = vsel %vm203, %v158, 0
    %v247 = vsel %vm203, %v159, 0
    %v250 = vsel %vm203, %v160, 0
    %252 = vmatprep.subr.bf16.mxu0 0
    %253 = vmatpush1.bf16.msra.mxu0 0
    %254 = vmatprep.subr.bf16.mxu0 0
    %255 = vmatpush1.bf16.msra.mxu0 %v195
    %256 = vmatprep.subr.bf16.mxu0 0
    %257 = vmatpush1.bf16.msra.mxu0 %v194
    %258 = vmatprep.subr.bf16.mxu0 0
    %259 = vmatpush1.bf16.msra.mxu0 %v193
    %260 = vmatprep.subr.bf16.mxu0 0
    %261 = vmatpush1.bf16.msra.mxu0 %v192
    %262 = vmatprep.subr.bf16.mxu0 0
    %263 = vmatpush1.bf16.msra.mxu0 %v191
    %264 = vmatprep.subr.bf16.mxu0 0
    %265 = vmatpush1.bf16.msra.mxu0 %v190
    %266 = vmatprep.subr.bf16.mxu0 0
    %267 = vmatpush1.bf16.msra.mxu0 %v189
    %268 = vmatprep.subr.bf16.mxu0 0
    %269 = vmatpush2.bf16.msra.mxu0 0
    %270 = vmatprep.subr.bf16.mxu0 0
    %271 = vmatpush2.bf16.msra.mxu0 0
    %272 = vmatprep.subr.bf16.mxu0 0
    %273 = vmatpush2.bf16.msra.mxu0 0
    %274 = vmatprep.subr.bf16.mxu0 0
    %275 = vmatpush2.bf16.msra.mxu0 0
    %276 = vmatprep.subr.bf16.mxu0 0
    %277 = vmatpush2.bf16.msra.mxu0 0
    %278 = vmatprep.subr.bf16.mxu0 0
    %279 = vmatpush2.bf16.msra.mxu0 0
    %280 = vmatprep.subr.bf16.mxu0 0
    %281 = vmatpush2.bf16.msra.mxu0 0
    %282 = vmatprep.subr.bf16.mxu0 0
    %283 = vmatpush2.bf16.msra.mxu0 0
    %284 = vmatprep.mubr.bf16.mxu0 0
    %285 = vmatmul.mubr.bf16.gmra.mxu0 %v205
    %v286 = vpop.f32.mrf.mxu0
    %v287 = vadd.f32 %v79, %v286
    %v288 = vpop.f32.mrf.mxu0
    %v289 = vpop.f32.mrf.mxu0
    %v290 = vadd.f32 %v79, %v289
    %v291 = vpop.f32.mrf.mxu0
    %292 = vmatprep.mubr.bf16.mxu0 0
    %293 = vmatmul.mubr.bf16.gmra.mxu0 %v208
    %v294 = vpop.f32.mrf.mxu0
    %v295 = vadd.f32 %v79, %v294
    %v296 = vpop.f32.mrf.mxu0
    %v297 = vpop.f32.mrf.mxu0
    %v298 = vadd.f32 %v79, %v297
    %v299 = vpop.f32.mrf.mxu0
    %300 = vmatprep.mubr.bf16.mxu0 0
    %301 = vmatmul.mubr.bf16.gmra.mxu0 %v211
    %v302 = vpop.f32.mrf.mxu0
    %v303 = vadd.f32 %v79, %v302
    %v304 = vpop.f32.mrf.mxu0
    %v305 = vpop.f32.mrf.mxu0
    %v306 = vadd.f32 %v79, %v305
    %v307 = vpop.f32.mrf.mxu0
    %308 = vmatprep.mubr.bf16.mxu0 0
    %309 = vmatmul.mubr.bf16.gmra.mxu0 %v214
    %v310 = vpop.f32.mrf.mxu0
    %v311 = vadd.f32 %v79, %v310
    %v312 = vpop.f32.mrf.mxu0
    %v313 = vpop.f32.mrf.mxu0
    %v314 = vadd.f32 %v79, %v313
    %v315 = vpop.f32.mrf.mxu0
    %316 = vmatprep.mubr.bf16.mxu0 0
    %317 = vmatmul.mubr.bf16.gmra.mxu0 %v217
    %v318 = vpop.f32.mrf.mxu0
    %v319 = vadd.f32 %v79, %v318
    %v320 = vpop.f32.mrf.mxu0
    %v321 = vpop.f32.mrf.mxu0
    %v322 = vadd.f32 %v79, %v321
    %v323 = vpop.f32.mrf.mxu0
    %324 = vmatprep.mubr.bf16.mxu0 0
    %325 = vmatmul.mubr.bf16.gmra.mxu0 %v220
    %v326 = vpop.f32.mrf.mxu0
    %v327 = vadd.f32 %v79, %v326
    %v328 = vpop.f32.mrf.mxu0
    %v329 = vpop.f32.mrf.mxu0
    %v330 = vadd.f32 %v79, %v329
    %v331 = vpop.f32.mrf.mxu0
    %332 = vmatprep.mubr.bf16.mxu0 0
    %333 = vmatmul.mubr.bf16.gmra.mxu0 %v223
    %v334 = vpop.f32.mrf.mxu0
    %v335 = vadd.f32 %v79, %v334
    %v336 = vpop.f32.mrf.mxu0
    %v337 = vpop.f32.mrf.mxu0
    %v338 = vadd.f32 %v79, %v337
    %v339 = vpop.f32.mrf.mxu0
    %340 = vmatprep.mubr.bf16.mxu0 0
    %341 = vmatmul.mubr.bf16.gmra.mxu0 %v226
    %v342 = vpop.f32.mrf.mxu0
    %v343 = vadd.f32 %v79, %v342
    %v344 = vpop.f32.mrf.mxu0
    %v345 = vpop.f32.mrf.mxu0
    %v346 = vadd.f32 %v79, %v345
    %v347 = vpop.f32.mrf.mxu0
    %348 = vmatprep.mubr.bf16.mxu0 0
    %349 = vmatmul.mubr.bf16.gmra.mxu0 %v229
    %v350 = vpop.f32.mrf.mxu0
    %v351 = vadd.f32 %v79, %v350
    %v352 = vpop.f32.mrf.mxu0
    %v353 = vpop.f32.mrf.mxu0
    %v354 = vadd.f32 %v79, %v353
    %v355 = vpop.f32.mrf.mxu0
    %356 = vmatprep.mubr.bf16.mxu0 0
    %357 = vmatmul.mubr.bf16.gmra.mxu0 %v232
    %v358 = vpop.f32.mrf.mxu0
    %v359 = vadd.f32 %v79, %v358
    %v360 = vpop.f32.mrf.mxu0
    %v361 = vpop.f32.mrf.mxu0
    %v362 = vadd.f32 %v79, %v361
    %v363 = vpop.f32.mrf.mxu0
    %364 = vmatprep.mubr.bf16.mxu0 0
    %365 = vmatmul.mubr.bf16.gmra.mxu0 %v235
    %v366 = vpop.f32.mrf.mxu0
    %v367 = vadd.f32 %v79, %v366
    %v368 = vpop.f32.mrf.mxu0
    %v369 = vpop.f32.mrf.mxu0
    %v370 = vadd.f32 %v79, %v369
    %v371 = vpop.f32.mrf.mxu0
    %372 = vmatprep.mubr.bf16.mxu0 0
    %373 = vmatmul.mubr.bf16.gmra.mxu0 %v238
    %v374 = vpop.f32.mrf.mxu0
    %v375 = vadd.f32 %v79, %v374
    %v376 = vpop.f32.mrf.mxu0
    %v377 = vpop.f32.mrf.mxu0
    %v378 = vadd.f32 %v79, %v377
    %v379 = vpop.f32.mrf.mxu0
    %380 = vmatprep.mubr.bf16.mxu0 0
    %381 = vmatmul.mubr.bf16.gmra.mxu0 %v241
    %v382 = vpop.f32.mrf.mxu0
    %v383 = vadd.f32 %v79, %v382
    %v384 = vpop.f32.mrf.mxu0
    %v385 = vpop.f32.mrf.mxu0
    %v386 = vadd.f32 %v79, %v385
    %v387 = vpop.f32.mrf.mxu0
    %388 = vmatprep.mubr.bf16.mxu0 0
    %389 = vmatmul.mubr.bf16.gmra.mxu0 %v244
    %v390 = vpop.f32.mrf.mxu0
    %v391 = vadd.f32 %v79, %v390
    %v392 = vpop.f32.mrf.mxu0
    %v393 = vpop.f32.mrf.mxu0
    %v394 = vadd.f32 %v79, %v393
    %v395 = vpop.f32.mrf.mxu0
    %396 = vmatprep.mubr.bf16.mxu0 0
    %397 = vmatmul.mubr.bf16.gmra.mxu0 %v247
    %v398 = vpop.f32.mrf.mxu0
    %v399 = vadd.f32 %v79, %v398
    %v400 = vpop.f32.mrf.mxu0
    %v401 = vpop.f32.mrf.mxu0
    %v402 = vadd.f32 %v79, %v401
    %v403 = vpop.f32.mrf.mxu0
    %404 = vmatprep.mubr.bf16.mxu0 0
    %405 = vmatmul.mubr.bf16.gmra.mxu0 %v250
    %v406 = vpop.f32.mrf.mxu0
    %v407 = vadd.f32 %v79, %v406
    %v408 = vpop.f32.mrf.mxu0
    %v409 = vpop.f32.mrf.mxu0
    %v410 = vadd.f32 %v79, %v409
    %v411 = vpop.f32.mrf.mxu0
    %412 = vdwg.mxu0
    %v413 = vpack.c.bf16 %v290, %v287
    %v414 = vpack.c.bf16 %v298, %v295
    %v415 = vpack.c.bf16 %v306, %v303
    %v416 = vpack.c.bf16 %v314, %v311
    %v417 = vpack.c.bf16 %v322, %v319
    %v418 = vpack.c.bf16 %v330, %v327
    %v419 = vpack.c.bf16 %v338, %v335
    %v420 = vpack.c.bf16 %v346, %v343
    %v421 = vpack.c.bf16 %v354, %v351
    %v422 = vpack.c.bf16 %v362, %v359
    %v423 = vpack.c.bf16 %v370, %v367
    %v424 = vpack.c.bf16 %v378, %v375
    %v425 = vpack.c.bf16 %v386, %v383
    %v426 = vpack.c.bf16 %v394, %v391
    %v427 = vpack.c.bf16 %v402, %v399
    %v428 = vpack.c.bf16 %v410, %v407
    %v429 = vld [vmem:[%s4] sm:$0xf]
    %v430 = vld [vmem:[%s4 + $0x4] sm:$0xf]
    %v431 = vld [vmem:[%s4 + $0x8] sm:$0xf]
    %v432 = vld [vmem:[%s4 + $0xc] sm:$0xf]
    %v433 = vld [vmem:[%s4 + $0x10] sm:$0xf]
    %v434 = vld [vmem:[%s4 + $0x14] sm:$0xf]
    %v441 = vunpack.c.l.b16 %v429
    %v442 = vunpack.c.l.b16 %v430
    %v443 = vunpack.c.l.b16 %v431
    %v444 = vunpack.c.l.b16 %v432
    %v445 = vunpack.c.l.b16 %v433
    %v446 = vunpack.c.l.b16 %v434
    %v447 = vpack.c.b16 %v442, %v441
    %v448 = vpack.c.b16 %v444, %v443
    %v449 = vpack.c.b16 %v446, %v445
    %vm453 = vcmask 392192
    %v455 = vsel %vm453, %v413, 0
    %v458 = vsel %vm453, %v414, 0
    %v461 = vsel %vm453, %v415, 0
    %v464 = vsel %vm453, %v416, 0
    %v467 = vsel %vm453, %v417, 0
    %v470 = vsel %vm453, %v418, 0
    %v473 = vsel %vm453, %v419, 0
    %v476 = vsel %vm453, %v420, 0
    %v479 = vsel %vm453, %v421, 0
    %v482 = vsel %vm453, %v422, 0
    %v485 = vsel %vm453, %v423, 0
    %v488 = vsel %vm453, %v424, 0
    %v491 = vsel %vm453, %v425, 0
    %v494 = vsel %vm453, %v426, 0
    %v497 = vsel %vm453, %v427, 0
    %v500 = vsel %vm453, %v428, 0
    %502 = vmatprep.subr.bf16.mxu0 0
    %503 = vmatpush1.bf16.msra.mxu0 0
    %504 = vmatprep.subr.bf16.mxu0 0
    %505 = vmatpush1.bf16.msra.mxu0 0
    %506 = vmatprep.subr.bf16.mxu0 0
    %507 = vmatpush1.bf16.msra.mxu0 0
    %508 = vmatprep.subr.bf16.mxu0 0
    %509 = vmatpush1.bf16.msra.mxu0 0
    %510 = vmatprep.subr.bf16.mxu0 0
    %511 = vmatpush1.bf16.msra.mxu0 0
    %512 = vmatprep.subr.bf16.mxu0 0
    %513 = vmatpush1.bf16.msra.mxu0 %v449
    %514 = vmatprep.subr.bf16.mxu0 0
    %515 = vmatpush1.bf16.msra.mxu0 %v448
    %516 = vmatprep.subr.bf16.mxu0 0
    %517 = vmatpush1.bf16.msra.mxu0 %v447
    %518 = vmatprep.subr.bf16.mxu0 0
    %519 = vmatpush2.bf16.msra.mxu0 0
    %520 = vmatprep.subr.bf16.mxu0 0
    %521 = vmatpush2.bf16.msra.mxu0 0
    %522 = vmatprep.subr.bf16.mxu0 0
    %523 = vmatpush2.bf16.msra.mxu0 0
    %524 = vmatprep.subr.bf16.mxu0 0
    %525 = vmatpush2.bf16.msra.mxu0 0
    %526 = vmatprep.subr.bf16.mxu0 0
    %527 = vmatpush2.bf16.msra.mxu0 0
    %528 = vmatprep.subr.bf16.mxu0 0
    %529 = vmatpush2.bf16.msra.mxu0 0
    %530 = vmatprep.subr.bf16.mxu0 0
    %531 = vmatpush2.bf16.msra.mxu0 0
    %532 = vmatprep.subr.bf16.mxu0 0
    %533 = vmatpush2.bf16.msra.mxu0 0
    %534 = vmatprep.mubr.bf16.mxu0 0
    %535 = vmatmul.mubr.bf16.gmra.mxu0 %v455
    %v536 = vpop.f32.mrf.mxu0
    %v537 = vadd.f32 0.0, %v536
    %v538 = vpop.f32.mrf.mxu0
    %v539 = vpop.f32.mrf.mxu0
    %v540 = vadd.f32 0.0, %v539
    %v541 = vpop.f32.mrf.mxu0
    %542 = vmatprep.mubr.bf16.mxu0 0
    %543 = vmatmul.mubr.bf16.gmra.mxu0 %v458
    %v544 = vpop.f32.mrf.mxu0
    %v545 = vadd.f32 0.0, %v544
    %v546 = vpop.f32.mrf.mxu0
    %v547 = vpop.f32.mrf.mxu0
    %v548 = vadd.f32 0.0, %v547
    %v549 = vpop.f32.mrf.mxu0
    %550 = vmatprep.mubr.bf16.mxu0 0
    %551 = vmatmul.mubr.bf16.gmra.mxu0 %v461
    %v552 = vpop.f32.mrf.mxu0
    %v553 = vadd.f32 0.0, %v552
    %v554 = vpop.f32.mrf.mxu0
    %v555 = vpop.f32.mrf.mxu0
    %v556 = vadd.f32 0.0, %v555
    %v557 = vpop.f32.mrf.mxu0
    %558 = vmatprep.mubr.bf16.mxu0 0
    %559 = vmatmul.mubr.bf16.gmra.mxu0 %v464
    %v560 = vpop.f32.mrf.mxu0
    %v561 = vadd.f32 0.0, %v560
    %v562 = vpop.f32.mrf.mxu0
    %v563 = vpop.f32.mrf.mxu0
    %v564 = vadd.f32 0.0, %v563
    %v565 = vpop.f32.mrf.mxu0
    %566 = vmatprep.mubr.bf16.mxu0 0
    %567 = vmatmul.mubr.bf16.gmra.mxu0 %v467
    %v568 = vpop.f32.mrf.mxu0
    %v569 = vadd.f32 0.0, %v568
    %v570 = vpop.f32.mrf.mxu0
    %v571 = vpop.f32.mrf.mxu0
    %v572 = vadd.f32 0.0, %v571
    %v573 = vpop.f32.mrf.mxu0
    %574 = vmatprep.mubr.bf16.mxu0 0
    %575 = vmatmul.mubr.bf16.gmra.mxu0 %v470
    %v576 = vpop.f32.mrf.mxu0
    %v577 = vadd.f32 0.0, %v576
    %v578 = vpop.f32.mrf.mxu0
    %v579 = vpop.f32.mrf.mxu0
    %v580 = vadd.f32 0.0, %v579
    %v581 = vpop.f32.mrf.mxu0
    %582 = vmatprep.mubr.bf16.mxu0 0
    %583 = vmatmul.mubr.bf16.gmra.mxu0 %v473
    %v584 = vpop.f32.mrf.mxu0
    %v585 = vadd.f32 0.0, %v584
    %v586 = vpop.f32.mrf.mxu0
    %v587 = vpop.f32.mrf.mxu0
    %v588 = vadd.f32 0.0, %v587
    %v589 = vpop.f32.mrf.mxu0
    %590 = vmatprep.mubr.bf16.mxu0 0
    %591 = vmatmul.mubr.bf16.gmra.mxu0 %v476
    %v592 = vpop.f32.mrf.mxu0
    %v593 = vadd.f32 0.0, %v592
    %v594 = vpop.f32.mrf.mxu0
    %v595 = vpop.f32.mrf.mxu0
    %v596 = vadd.f32 0.0, %v595
    %v597 = vpop.f32.mrf.mxu0
    %598 = vmatprep.mubr.bf16.mxu0 0
    %599 = vmatmul.mubr.bf16.gmra.mxu0 %v479
    %v600 = vpop.f32.mrf.mxu0
    %v601 = vadd.f32 0.0, %v600
    %v602 = vpop.f32.mrf.mxu0
    %v603 = vpop.f32.mrf.mxu0
    %v604 = vadd.f32 0.0, %v603
    %v605 = vpop.f32.mrf.mxu0
    %606 = vmatprep.mubr.bf16.mxu0 0
    %607 = vmatmul.mubr.bf16.gmra.mxu0 %v482
    %v608 = vpop.f32.mrf.mxu0
    %v609 = vadd.f32 0.0, %v608
    %v610 = vpop.f32.mrf.mxu0
    %v611 = vpop.f32.mrf.mxu0
    %v612 = vadd.f32 0.0, %v611
    %v613 = vpop.f32.mrf.mxu0
    %614 = vmatprep.mubr.bf16.mxu0 0
    %615 = vmatmul.mubr.bf16.gmra.mxu0 %v485
    %v616 = vpop.f32.mrf.mxu0
    %v617 = vadd.f32 0.0, %v616
    %v618 = vpop.f32.mrf.mxu0
    %v619 = vpop.f32.mrf.mxu0
    %v620 = vadd.f32 0.0, %v619
    %v621 = vpop.f32.mrf.mxu0
    %622 = vmatprep.mubr.bf16.mxu0 0
    %623 = vmatmul.mubr.bf16.gmra.mxu0 %v488
    %v624 = vpop.f32.mrf.mxu0
    %v625 = vadd.f32 0.0, %v624
    %v626 = vpop.f32.mrf.mxu0
    %v627 = vpop.f32.mrf.mxu0
    %v628 = vadd.f32 0.0, %v627
    %v629 = vpop.f32.mrf.mxu0
    %630 = vmatprep.mubr.bf16.mxu0 0
    %631 = vmatmul.mubr.bf16.gmra.mxu0 %v491
    %v632 = vpop.f32.mrf.mxu0
    %v633 = vadd.f32 0.0, %v632
    %v634 = vpop.f32.mrf.mxu0
    %v635 = vpop.f32.mrf.mxu0
    %v636 = vadd.f32 0.0, %v635
    %v637 = vpop.f32.mrf.mxu0
    %638 = vmatprep.mubr.bf16.mxu0 0
    %639 = vmatmul.mubr.bf16.gmra.mxu0 %v494
    %v640 = vpop.f32.mrf.mxu0
    %v641 = vadd.f32 0.0, %v640
    %v642 = vpop.f32.mrf.mxu0
    %v643 = vpop.f32.mrf.mxu0
    %v644 = vadd.f32 0.0, %v643
    %v645 = vpop.f32.mrf.mxu0
    %646 = vmatprep.mubr.bf16.mxu0 0
    %647 = vmatmul.mubr.bf16.gmra.mxu0 %v497
    %v648 = vpop.f32.mrf.mxu0
    %v649 = vadd.f32 0.0, %v648
    %v650 = vpop.f32.mrf.mxu0
    %v651 = vpop.f32.mrf.mxu0
    %v652 = vadd.f32 0.0, %v651
    %v653 = vpop.f32.mrf.mxu0
    %654 = vmatprep.mubr.bf16.mxu0 0
    %655 = vmatmul.mubr.bf16.gmra.mxu0 %v500
    %v656 = vpop.f32.mrf.mxu0
    %v657 = vadd.f32 0.0, %v656
    %v658 = vpop.f32.mrf.mxu0
    %v659 = vpop.f32.mrf.mxu0
    %v660 = vadd.f32 0.0, %v659
    %v661 = vpop.f32.mrf.mxu0
    %662 = vdwg.mxu0
    %v663 = vmul.f32 %v537, 0.5
    %v664 = vmul.f32 %v540, 0.5
    %v665 = vmul.f32 %v545, 0.5
    %v666 = vmul.f32 %v548, 0.5
    %v667 = vmul.f32 %v553, 0.5
    %v668 = vmul.f32 %v556, 0.5
    %v669 = vmul.f32 %v561, 0.5
    %v670 = vmul.f32 %v564, 0.5
    %v671 = vmul.f32 %v569, 0.5
    %v672 = vmul.f32 %v572, 0.5
    %v673 = vmul.f32 %v577, 0.5
    %v674 = vmul.f32 %v580, 0.5
    %v675 = vmul.f32 %v585, 0.5
    %v676 = vmul.f32 %v588, 0.5
    %v677 = vmul.f32 %v593, 0.5
    %v678 = vmul.f32 %v596, 0.5
    %v679 = vmul.f32 %v601, 0.5
    %v680 = vmul.f32 %v604, 0.5
    %v681 = vmul.f32 %v609, 0.5
    %v682 = vmul.f32 %v612, 0.5
    %v683 = vmul.f32 %v617, 0.5
    %v684 = vmul.f32 %v620, 0.5
    %v685 = vmul.f32 %v625, 0.5
    %v686 = vmul.f32 %v628, 0.5
    %v687 = vmul.f32 %v633, 0.5
    %v688 = vmul.f32 %v636, 0.5
    %v689 = vmul.f32 %v641, 0.5
    %v690 = vmul.f32 %v644, 0.5
    %v691 = vmul.f32 %v649, 0.5
    %v692 = vmul.f32 %v652, 0.5
    %v693 = vmul.f32 %v657, 0.5
    %v694 = vmul.f32 %v660, 0.5
    %v695 = vmul.f32 %v537, 0.044715
    %v696 = vmul.f32 %v540, 0.044715
    %v697 = vmul.f32 %v545, 0.044715
    %v698 = vmul.f32 %v548, 0.044715
    %v699 = vmul.f32 %v553, 0.044715
    %v700 = vmul.f32 %v556, 0.044715
    %v701 = vmul.f32 %v561, 0.044715
    %v702 = vmul.f32 %v564, 0.044715
    %v703 = vmul.f32 %v569, 0.044715
    %v704 = vmul.f32 %v572, 0.044715
    %v705 = vmul.f32 %v577, 0.044715
    %v706 = vmul.f32 %v580, 0.044715
    %v707 = vmul.f32 %v585, 0.044715
    %v708 = vmul.f32 %v588, 0.044715
    %v709 = vmul.f32 %v593, 0.044715
    %v710 = vmul.f32 %v596, 0.044715
    %v711 = vmul.f32 %v601, 0.044715
    %v712 = vmul.f32 %v604, 0.044715
    %v713 = vmul.f32 %v609, 0.044715
    %v714 = vmul.f32 %v612, 0.044715
    %v715 = vmul.f32 %v617, 0.044715
    %v716 = vmul.f32 %v620, 0.044715
    %v717 = vmul.f32 %v625, 0.044715
    %v718 = vmul.f32 %v628, 0.044715
    %v719 = vmul.f32 %v633, 0.044715
    %v720 = vmul.f32 %v636, 0.044715
    %v721 = vmul.f32 %v641, 0.044715
    %v722 = vmul.f32 %v644, 0.044715
    %v723 = vmul.f32 %v649, 0.044715
    %v724 = vmul.f32 %v652, 0.044715
    %v725 = vmul.f32 %v657, 0.044715
    %v726 = vmul.f32 %v660, 0.044715
    %v727 = vmul.f32 %v695, %v537
    %v728 = vmul.f32 %v696, %v540
    %v729 = vmul.f32 %v697, %v545
    %v730 = vmul.f32 %v698, %v548
    %v731 = vmul.f32 %v699, %v553
    %v732 = vmul.f32 %v700, %v556
    %v733 = vmul.f32 %v701, %v561
    %v734 = vmul.f32 %v702, %v564
    %v735 = vmul.f32 %v703, %v569
    %v736 = vmul.f32 %v704, %v572
    %v737 = vmul.f32 %v705, %v577
    %v738 = vmul.f32 %v706, %v580
    %v739 = vmul.f32 %v707, %v585
    %v740 = vmul.f32 %v708, %v588
    %v741 = vmul.f32 %v709, %v593
    %v742 = vmul.f32 %v710, %v596
    %v743 = vmul.f32 %v711, %v601
    %v744 = vmul.f32 %v712, %v604
    %v745 = vmul.f32 %v713, %v609
    %v746 = vmul.f32 %v714, %v612
    %v747 = vmul.f32 %v715, %v617
    %v748 = vmul.f32 %v716, %v620
    %v749 = vmul.f32 %v717, %v625
    %v750 = vmul.f32 %v718, %v628
    %v751 = vmul.f32 %v719, %v633
    %v752 = vmul.f32 %v720, %v636
    %v753 = vmul.f32 %v721, %v641
    %v754 = vmul.f32 %v722, %v644
    %v755 = vmul.f32 %v723, %v649
    %v756 = vmul.f32 %v724, %v652
    %v757 = vmul.f32 %v725, %v657
    %v758 = vmul.f32 %v726, %v660
    %v759 = vmul.f32 %v727, %v537
    %v760 = vmul.f32 %v728, %v540
    %v761 = vmul.f32 %v729, %v545
    %v762 = vmul.f32 %v730, %v548
    %v763 = vmul.f32 %v731, %v553
    %v764 = vmul.f32 %v732, %v556
    %v765 = vmul.f32 %v733, %v561
    %v766 = vmul.f32 %v734, %v564
    %v767 = vmul.f32 %v735, %v569
    %v768 = vmul.f32 %v736, %v572
    %v769 = vmul.f32 %v737, %v577
    %v770 = vmul.f32 %v738, %v580
    %v771 = vmul.f32 %v739, %v585
    %v772 = vmul.f32 %v740, %v588
    %v773 = vmul.f32 %v741, %v593
    %v774 = vmul.f32 %v742, %v596
    %v775 = vmul.f32 %v743, %v601
    %v776 = vmul.f32 %v744, %v604
    %v777 = vmul.f32 %v745, %v609
    %v778 = vmul.f32 %v746, %v612
    %v779 = vmul.f32 %v747, %v617
    %v780 = vmul.f32 %v748, %v620
    %v781 = vmul.f32 %v749, %v625
    %v782 = vmul.f32 %v750, %v628
    %v783 = vmul.f32 %v751, %v633
    %v784 = vmul.f32 %v752, %v636
    %v785 = vmul.f32 %v753, %v641
    %v786 = vmul.f32 %v754, %v644
    %v787 = vmul.f32 %v755, %v649
    %v788 = vmul.f32 %v756, %v652
    %v789 = vmul.f32 %v757, %v657
    %v790 = vmul.f32 %v758, %v660
    %v791 = vadd.f32 %v537, %v759
    %v792 = vadd.f32 %v540, %v760
    %v793 = vadd.f32 %v545, %v761
    %v794 = vadd.f32 %v548, %v762
    %v795 = vadd.f32 %v553, %v763
    %v796 = vadd.f32 %v556, %v764
    %v797 = vadd.f32 %v561, %v765
    %v798 = vadd.f32 %v564, %v766
    %v799 = vadd.f32 %v569, %v767
    %v800 = vadd.f32 %v572, %v768
    %v801 = vadd.f32 %v577, %v769
    %v802 = vadd.f32 %v580, %v770
    %v803 = vadd.f32 %v585, %v771
    %v804 = vadd.f32 %v588, %v772
    %v805 = vadd.f32 %v593, %v773
    %v806 = vadd.f32 %v596, %v774
    %v807 = vadd.f32 %v601, %v775
    %v808 = vadd.f32 %v604, %v776
    %v809 = vadd.f32 %v609, %v777
    %v810 = vadd.f32 %v612, %v778
    %v811 = vadd.f32 %v617, %v779
    %v812 = vadd.f32 %v620, %v780
    %v813 = vadd.f32 %v625, %v781
    %v814 = vadd.f32 %v628, %v782
    %v815 = vadd.f32 %v633, %v783
    %v816 = vadd.f32 %v636, %v784
    %v817 = vadd.f32 %v641, %v785
    %v818 = vadd.f32 %v644, %v786
    %v819 = vadd.f32 %v649, %v787
    %v820 = vadd.f32 %v652, %v788
    %v821 = vadd.f32 %v657, %v789
    %v822 = vadd.f32 %v660, %v790
    %v823 = vmul.f32 %v791, 0.7978846
    %v824 = vmul.f32 %v792, 0.7978846
    %v825 = vmul.f32 %v793, 0.7978846
    %v826 = vmul.f32 %v794, 0.7978846
    %v827 = vmul.f32 %v795, 0.7978846
    %v828 = vmul.f32 %v796, 0.7978846
    %v829 = vmul.f32 %v797, 0.7978846
    %v830 = vmul.f32 %v798, 0.7978846
    %v831 = vmul.f32 %v799, 0.7978846
    %v832 = vmul.f32 %v800, 0.7978846
    %v833 = vmul.f32 %v801, 0.7978846
    %v834 = vmul.f32 %v802, 0.7978846
    %v835 = vmul.f32 %v803, 0.7978846
    %v836 = vmul.f32 %v804, 0.7978846
    %v837 = vmul.f32 %v805, 0.7978846
    %v838 = vmul.f32 %v806, 0.7978846
    %v839 = vmul.f32 %v807, 0.7978846
    %v840 = vmul.f32 %v808, 0.7978846
    %v841 = vmul.f32 %v809, 0.7978846
    %v842 = vmul.f32 %v810, 0.7978846
    %v843 = vmul.f32 %v811, 0.7978846
    %v844 = vmul.f32 %v812, 0.7978846
    %v845 = vmul.f32 %v813, 0.7978846
    %v846 = vmul.f32 %v814, 0.7978846
    %v847 = vmul.f32 %v815, 0.7978846
    %v848 = vmul.f32 %v816, 0.7978846
    %v849 = vmul.f32 %v817, 0.7978846
    %v850 = vmul.f32 %v818, 0.7978846
    %v851 = vmul.f32 %v819, 0.7978846
    %v852 = vmul.f32 %v820, 0.7978846
    %v853 = vmul.f32 %v821, 0.7978846
    %v854 = vmul.f32 %v822, 0.7978846
    %v855 = vtanh.pop %v823
    %v856 = vtanh.pop %v824
    %v857 = vtanh.pop %v825
    %v858 = vtanh.pop %v826
    %v859 = vtanh.pop %v827
    %v860 = vtanh.pop %v828
    %v861 = vtanh.pop %v829
    %v862 = vtanh.pop %v830
    %v863 = vtanh.pop %v831
    %v864 = vtanh.pop %v832
    %v865 = vtanh.pop %v833
    %v866 = vtanh.pop %v834
    %v867 = vtanh.pop %v835
    %v868 = vtanh.pop %v836
    %v869 = vtanh.pop %v837
    %v870 = vtanh.pop %v838
    %v871 = vtanh.pop %v839
    %v872 = vtanh.pop %v840
    %v873 = vtanh.pop %v841
    %v874 = vtanh.pop %v842
    %v875 = vtanh.pop %v843
    %v876 = vtanh.pop %v844
    %v877 = vtanh.pop %v845
    %v878 = vtanh.pop %v846
    %v879 = vtanh.pop %v847
    %v880 = vtanh.pop %v848
    %v881 = vtanh.pop %v849
    %v882 = vtanh.pop %v850
    %v883 = vtanh.pop %v851
    %v884 = vtanh.pop %v852
    %v885 = vtanh.pop %v853
    %v886 = vtanh.pop %v854
    %v887 = vadd.f32 %v855, 1.0
    %v888 = vadd.f32 %v856, 1.0
    %v889 = vadd.f32 %v857, 1.0
    %v890 = vadd.f32 %v858, 1.0
    %v891 = vadd.f32 %v859, 1.0
    %v892 = vadd.f32 %v860, 1.0
    %v893 = vadd.f32 %v861, 1.0
    %v894 = vadd.f32 %v862, 1.0
    %v895 = vadd.f32 %v863, 1.0
    %v896 = vadd.f32 %v864, 1.0
    %v897 = vadd.f32 %v865, 1.0
    %v898 = vadd.f32 %v866, 1.0
    %v899 = vadd.f32 %v867, 1.0
    %v900 = vadd.f32 %v868, 1.0
    %v901 = vadd.f32 %v869, 1.0
    %v902 = vadd.f32 %v870, 1.0
    %v903 = vadd.f32 %v871, 1.0
    %v904 = vadd.f32 %v872, 1.0
    %v905 = vadd.f32 %v873, 1.0
    %v906 = vadd.f32 %v874, 1.0
    %v907 = vadd.f32 %v875, 1.0
    %v908 = vadd.f32 %v876, 1.0
    %v909 = vadd.f32 %v877, 1.0
    %v910 = vadd.f32 %v878, 1.0
    %v911 = vadd.f32 %v879, 1.0
    %v912 = vadd.f32 %v880, 1.0
    %v913 = vadd.f32 %v881, 1.0
    %v914 = vadd.f32 %v882, 1.0
    %v915 = vadd.f32 %v883, 1.0
    %v916 = vadd.f32 %v884, 1.0
    %v917 = vadd.f32 %v885, 1.0
    %v918 = vadd.f32 %v886, 1.0
    %v919 = vmul.f32 %v663, %v887
    %v920 = vmul.f32 %v664, %v888
    %v921 = vmul.f32 %v665, %v889
    %v922 = vmul.f32 %v666, %v890
    %v923 = vmul.f32 %v667, %v891
    %v924 = vmul.f32 %v668, %v892
    %v925 = vmul.f32 %v669, %v893
    %v926 = vmul.f32 %v670, %v894
    %v927 = vmul.f32 %v671, %v895
    %v928 = vmul.f32 %v672, %v896
    %v929 = vmul.f32 %v673, %v897
    %v930 = vmul.f32 %v674, %v898
    %v931 = vmul.f32 %v675, %v899
    %v932 = vmul.f32 %v676, %v900
    %v933 = vmul.f32 %v677, %v901
    %v934 = vmul.f32 %v678, %v902
    %v935 = vmul.f32 %v679, %v903
    %v936 = vmul.f32 %v680, %v904
    %v937 = vmul.f32 %v681, %v905
    %v938 = vmul.f32 %v682, %v906
    %v939 = vmul.f32 %v683, %v907
    %v940 = vmul.f32 %v684, %v908
    %v941 = vmul.f32 %v685, %v909
    %v942 = vmul.f32 %v686, %v910
    %v943 = vmul.f32 %v687, %v911
    %v944 = vmul.f32 %v688, %v912
    %v945 = vmul.f32 %v689, %v913
    %v946 = vmul.f32 %v690, %v914
    %v947 = vmul.f32 %v691, %v915
    %v948 = vmul.f32 %v692, %v916
    %v949 = vmul.f32 %v693, %v917
    %v950 = vmul.f32 %v694, %v918
    %vm951 = vcmask 130048
    %v952 = vsel %vm951, %v919, 0.0
    %953 = vadd.xlane.f32.xlu0 %v952
    %v954 = vpop.xlane.xlu0 %953
    %v955 = vsel %vm951, %v920, 0.0
    %956 = vadd.xlane.f32.xlu0 %v955
    %v957 = vpop.xlane.xlu0 %956
    %v958 = vsel %vm951, %v921, 0.0
    %959 = vadd.xlane.f32.xlu0 %v958
    %v960 = vpop.xlane.xlu0 %959
    %v961 = vsel %vm951, %v922, 0.0
    %962 = vadd.xlane.f32.xlu0 %v961
    %v963 = vpop.xlane.xlu0 %962
    %v964 = vsel %vm951, %v923, 0.0
    %965 = vadd.xlane.f32.xlu0 %v964
    %v966 = vpop.xlane.xlu0 %965
    %v967 = vsel %vm951, %v924, 0.0
    %968 = vadd.xlane.f32.xlu0 %v967
    %v969 = vpop.xlane.xlu0 %968
    %v970 = vsel %vm951, %v925, 0.0
    %971 = vadd.xlane.f32.xlu0 %v970
    %v972 = vpop.xlane.xlu0 %971
    %v973 = vsel %vm951, %v926, 0.0
    %974 = vadd.xlane.f32.xlu0 %v973
    %v975 = vpop.xlane.xlu0 %974
    %v976 = vsel %vm951, %v927, 0.0
    %977 = vadd.xlane.f32.xlu0 %v976
    %v978 = vpop.xlane.xlu0 %977
    %v979 = vsel %vm951, %v928, 0.0
    %980 = vadd.xlane.f32.xlu0 %v979
    %v981 = vpop.xlane.xlu0 %980
    %v982 = vsel %vm951, %v929, 0.0
    %983 = vadd.xlane.f32.xlu0 %v982
    %v984 = vpop.xlane.xlu0 %983
    %v985 = vsel %vm951, %v930, 0.0
    %986 = vadd.xlane.f32.xlu0 %v985
    %v987 = vpop.xlane.xlu0 %986
    %v988 = vsel %vm951, %v931, 0.0
    %989 = vadd.xlane.f32.xlu0 %v988
    %v990 = vpop.xlane.xlu0 %989
    %v991 = vsel %vm951, %v932, 0.0
    %992 = vadd.xlane.f32.xlu0 %v991
    %v993 = vpop.xlane.xlu0 %992
    %v994 = vsel %vm951, %v933, 0.0
    %995 = vadd.xlane.f32.xlu0 %v994
    %v996 = vpop.xlane.xlu0 %995
    %v997 = vsel %vm951, %v934, 0.0
    %998 = vadd.xlane.f32.xlu0 %v997
    %v999 = vpop.xlane.xlu0 %998
    %v1000 = vsel %vm951, %v935, 0.0
    %1001 = vadd.xlane.f32.xlu0 %v1000
    %v1002 = vpop.xlane.xlu0 %1001
    %v1003 = vsel %vm951, %v936, 0.0
    %1004 = vadd.xlane.f32.xlu0 %v1003
    %v1005 = vpop.xlane.xlu0 %1004
    %v1006 = vsel %vm951, %v937, 0.0
    %1007 = vadd.xlane.f32.xlu0 %v1006
    %v1008 = vpop.xlane.xlu0 %1007
    %v1009 = vsel %vm951, %v938, 0.0
    %1010 = vadd.xlane.f32.xlu0 %v1009
    %v1011 = vpop.xlane.xlu0 %1010
    %v1012 = vsel %vm951, %v939, 0.0
    %1013 = vadd.xlane.f32.xlu0 %v1012
    %v1014 = vpop.xlane.xlu0 %1013
    %v1015 = vsel %vm951, %v940, 0.0
    %1016 = vadd.xlane.f32.xlu0 %v1015
    %v1017 = vpop.xlane.xlu0 %1016
    %v1018 = vsel %vm951, %v941, 0.0
    %1019 = vadd.xlane.f32.xlu0 %v1018
    %v1020 = vpop.xlane.xlu0 %1019
    %v1021 = vsel %vm951, %v942, 0.0
    %1022 = vadd.xlane.f32.xlu0 %v1021
    %v1023 = vpop.xlane.xlu0 %1022
    %v1024 = vsel %vm951, %v943, 0.0
    %1025 = vadd.xlane.f32.xlu0 %v1024
    %v1026 = vpop.xlane.xlu0 %1025
    %v1027 = vsel %vm951, %v944, 0.0
    %1028 = vadd.xlane.f32.xlu0 %v1027
    %v1029 = vpop.xlane.xlu0 %1028
    %v1030 = vsel %vm951, %v945, 0.0
    %1031 = vadd.xlane.f32.xlu0 %v1030
    %v1032 = vpop.xlane.xlu0 %1031
    %v1033 = vsel %vm951, %v946, 0.0
    %1034 = vadd.xlane.f32.xlu0 %v1033
    %v1035 = vpop.xlane.xlu0 %1034
    %v1036 = vsel %vm951, %v947, 0.0
    %1037 = vadd.xlane.f32.xlu0 %v1036
    %v1038 = vpop.xlane.xlu0 %1037
    %v1039 = vsel %vm951, %v948, 0.0
    %1040 = vadd.xlane.f32.xlu0 %v1039
    %v1041 = vpop.xlane.xlu0 %1040
    %v1042 = vsel %vm951, %v949, 0.0
    %1043 = vadd.xlane.f32.xlu0 %v1042
    %v1044 = vpop.xlane.xlu0 %1043
    %v1045 = vsel %vm951, %v950, 0.0
    %1046 = vadd.xlane.f32.xlu0 %v1045
    %v1047 = vpop.xlane.xlu0 %1046
    %v1048 = vrcp.pop 16.0
    %v1049 = vmul.f32 %v954, %v1048
    %v1050 = vmul.f32 %v957, %v1048
    %v1051 = vmul.f32 %v960, %v1048
    %v1052 = vmul.f32 %v963, %v1048
    %v1053 = vmul.f32 %v966, %v1048
    %v1054 = vmul.f32 %v969, %v1048
    %v1055 = vmul.f32 %v972, %v1048
    %v1056 = vmul.f32 %v975, %v1048
    %v1057 = vmul.f32 %v978, %v1048
    %v1058 = vmul.f32 %v981, %v1048
    %v1059 = vmul.f32 %v984, %v1048
    %v1060 = vmul.f32 %v987, %v1048
    %v1061 = vmul.f32 %v990, %v1048
    %v1062 = vmul.f32 %v993, %v1048
    %v1063 = vmul.f32 %v996, %v1048
    %v1064 = vmul.f32 %v999, %v1048
    %v1065 = vmul.f32 %v1002, %v1048
    %v1066 = vmul.f32 %v1005, %v1048
    %v1067 = vmul.f32 %v1008, %v1048
    %v1068 = vmul.f32 %v1011, %v1048
    %v1069 = vmul.f32 %v1014, %v1048
    %v1070 = vmul.f32 %v1017, %v1048
    %v1071 = vmul.f32 %v1020, %v1048
    %v1072 = vmul.f32 %v1023, %v1048
    %v1073 = vmul.f32 %v1026, %v1048
    %v1074 = vmul.f32 %v1029, %v1048
    %v1075 = vmul.f32 %v1032, %v1048
    %v1076 = vmul.f32 %v1035, %v1048
    %v1077 = vmul.f32 %v1038, %v1048
    %v1078 = vmul.f32 %v1041, %v1048
    %v1079 = vmul.f32 %v1044, %v1048
    %v1080 = vmul.f32 %v1047, %v1048
    %v1081 = vsub.f32 %v919, %v1049
    %v1082 = vsub.f32 %v920, %v1050
    %v1083 = vsub.f32 %v921, %v1051
    %v1084 = vsub.f32 %v922, %v1052
    %v1085 = vsub.f32 %v923, %v1053
    %v1086 = vsub.f32 %v924, %v1054
    %v1087 = vsub.f32 %v925, %v1055
    %v1088 = vsub.f32 %v926, %v1056
    %v1089 = vsub.f32 %v927, %v1057
    %v1090 = vsub.f32 %v928, %v1058
    %v1091 = vsub.f32 %v929, %v1059
    %v1092 = vsub.f32 %v930, %v1060
    %v1093 = vsub.f32 %v931, %v1061
    %v1094 = vsub.f32 %v932, %v1062
    %v1095 = vsub.f32 %v933, %v1063
    %v1096 = vsub.f32 %v934, %v1064
    %v1097 = vsub.f32 %v935, %v1065
    %v1098 = vsub.f32 %v936, %v1066
    %v1099 = vsub.f32 %v937, %v1067
    %v1100 = vsub.f32 %v938, %v1068
    %v1101 = vsub.f32 %v939, %v1069
    %v1102 = vsub.f32 %v940, %v1070
    %v1103 = vsub.f32 %v941, %v1071
    %v1104 = vsub.f32 %v942, %v1072
    %v1105 = vsub.f32 %v943, %v1073
    %v1106 = vsub.f32 %v944, %v1074
    %v1107 = vsub.f32 %v945, %v1075
    %v1108 = vsub.f32 %v946, %v1076
    %v1109 = vsub.f32 %v947, %v1077
    %v1110 = vsub.f32 %v948, %v1078
    %v1111 = vsub.f32 %v949, %v1079
    %v1112 = vsub.f32 %v950, %v1080
    %v1113 = vmul.f32 %v1081, %v1081
    %v1114 = vmul.f32 %v1082, %v1082
    %v1115 = vmul.f32 %v1083, %v1083
    %v1116 = vmul.f32 %v1084, %v1084
    %v1117 = vmul.f32 %v1085, %v1085
    %v1118 = vmul.f32 %v1086, %v1086
    %v1119 = vmul.f32 %v1087, %v1087
    %v1120 = vmul.f32 %v1088, %v1088
    %v1121 = vmul.f32 %v1089, %v1089
    %v1122 = vmul.f32 %v1090, %v1090
    %v1123 = vmul.f32 %v1091, %v1091
    %v1124 = vmul.f32 %v1092, %v1092
    %v1125 = vmul.f32 %v1093, %v1093
    %v1126 = vmul.f32 %v1094, %v1094
    %v1127 = vmul.f32 %v1095, %v1095
    %v1128 = vmul.f32 %v1096, %v1096
    %v1129 = vmul.f32 %v1097, %v1097
    %v1130 = vmul.f32 %v1098, %v1098
    %v1131 = vmul.f32 %v1099, %v1099
    %v1132 = vmul.f32 %v1100, %v1100
    %v1133 = vmul.f32 %v1101, %v1101
    %v1134 = vmul.f32 %v1102, %v1102
    %v1135 = vmul.f32 %v1103, %v1103
    %v1136 = vmul.f32 %v1104, %v1104
    %v1137 = vmul.f32 %v1105, %v1105
    %v1138 = vmul.f32 %v1106, %v1106
    %v1139 = vmul.f32 %v1107, %v1107
    %v1140 = vmul.f32 %v1108, %v1108
    %v1141 = vmul.f32 %v1109, %v1109
    %v1142 = vmul.f32 %v1110, %v1110
    %v1143 = vmul.f32 %v1111, %v1111
    %v1144 = vmul.f32 %v1112, %v1112
    %v1145 = vsel %vm951, %v1113, 0.0
    %1146 = vadd.xlane.f32.xlu0 %v1145
    %v1147 = vpop.xlane.xlu0 %1146
    %v1148 = vsel %vm951, %v1114, 0.0
    %1149 = vadd.xlane.f32.xlu0 %v1148
    %v1150 = vpop.xlane.xlu0 %1149
    %v1151 = vsel %vm951, %v1115, 0.0
    %1152 = vadd.xlane.f32.xlu0 %v1151
    %v1153 = vpop.xlane.xlu0 %1152
    %v1154 = vsel %vm951, %v1116, 0.0
    %1155 = vadd.xlane.f32.xlu0 %v1154
    %v1156 = vpop.xlane.xlu0 %1155
    %v1157 = vsel %vm951, %v1117, 0.0
    %1158 = vadd.xlane.f32.xlu0 %v1157
    %v1159 = vpop.xlane.xlu0 %1158
    %v1160 = vsel %vm951, %v1118, 0.0
    %1161 = vadd.xlane.f32.xlu0 %v1160
    %v1162 = vpop.xlane.xlu0 %1161
    %v1163 = vsel %vm951, %v1119, 0.0
    %1164 = vadd.xlane.f32.xlu0 %v1163
    %v1165 = vpop.xlane.xlu0 %1164
    %v1166 = vsel %vm951, %v1120, 0.0
    %1167 = vadd.xlane.f32.xlu0 %v1166
    %v1168 = vpop.xlane.xlu0 %1167
    %v1169 = vsel %vm951, %v1121, 0.0
    %1170 = vadd.xlane.f32.xlu0 %v1169
    %v1171 = vpop.xlane.xlu0 %1170
    %v1172 = vsel %vm951, %v1122, 0.0
    %1173 = vadd.xlane.f32.xlu0 %v1172
    %v1174 = vpop.xlane.xlu0 %1173
    %v1175 = vsel %vm951, %v1123, 0.0
    %1176 = vadd.xlane.f32.xlu0 %v1175
    %v1177 = vpop.xlane.xlu0 %1176
    %v1178 = vsel %vm951, %v1124, 0.0
    %1179 = vadd.xlane.f32.xlu0 %v1178
    %v1180 = vpop.xlane.xlu0 %1179
    %v1181 = vsel %vm951, %v1125, 0.0
    %1182 = vadd.xlane.f32.xlu0 %v1181
    %v1183 = vpop.xlane.xlu0 %1182
    %v1184 = vsel %vm951, %v1126, 0.0
    %1185 = vadd.xlane.f32.xlu0 %v1184
    %v1186 = vpop.xlane.xlu0 %1185
    %v1187 = vsel %vm951, %v1127, 0.0
    %1188 = vadd.xlane.f32.xlu0 %v1187
    %v1189 = vpop.xlane.xlu0 %1188
    %v1190 = vsel %vm951, %v1128, 0.0
    %1191 = vadd.xlane.f32.xlu0 %v1190
    %v1192 = vpop.xlane.xlu0 %1191
    %v1193 = vsel %vm951, %v1129, 0.0
    %1194 = vadd.xlane.f32.xlu0 %v1193
    %v1195 = vpop.xlane.xlu0 %1194
    %v1196 = vsel %vm951, %v1130, 0.0
    %1197 = vadd.xlane.f32.xlu0 %v1196
    %v1198 = vpop.xlane.xlu0 %1197
    %v1199 = vsel %vm951, %v1131, 0.0
    %1200 = vadd.xlane.f32.xlu0 %v1199
    %v1201 = vpop.xlane.xlu0 %1200
    %v1202 = vsel %vm951, %v1132, 0.0
    %1203 = vadd.xlane.f32.xlu0 %v1202
    %v1204 = vpop.xlane.xlu0 %1203
    %v1205 = vsel %vm951, %v1133, 0.0
    %1206 = vadd.xlane.f32.xlu0 %v1205
    %v1207 = vpop.xlane.xlu0 %1206
    %v1208 = vsel %vm951, %v1134, 0.0
    %1209 = vadd.xlane.f32.xlu0 %v1208
    %v1210 = vpop.xlane.xlu0 %1209
    %v1211 = vsel %vm951, %v1135, 0.0
    %1212 = vadd.xlane.f32.xlu0 %v1211
    %v1213 = vpop.xlane.xlu0 %1212
    %v1214 = vsel %vm951, %v1136, 0.0
    %1215 = vadd.xlane.f32.xlu0 %v1214
    %v1216 = vpop.xlane.xlu0 %1215
    %v1217 = vsel %vm951, %v1137, 0.0
    %1218 = vadd.xlane.f32.xlu0 %v1217
    %v1219 = vpop.xlane.xlu0 %1218
    %v1220 = vsel %vm951, %v1138, 0.0
    %1221 = vadd.xlane.f32.xlu0 %v1220
    %v1222 = vpop.xlane.xlu0 %1221
    %v1223 = vsel %vm951, %v1139, 0.0
    %1224 = vadd.xlane.f32.xlu0 %v1223
    %v1225 = vpop.xlane.xlu0 %1224
    %v1226 = vsel %vm951, %v1140, 0.0
    %1227 = vadd.xlane.f32.xlu0 %v1226
    %v1228 = vpop.xlane.xlu0 %1227
    %v1229 = vsel %vm951, %v1141, 0.0
    %1230 = vadd.xlane.f32.xlu0 %v1229
    %v1231 = vpop.xlane.xlu0 %1230
    %v1232 = vsel %vm951, %v1142, 0.0
    %1233 = vadd.xlane.f32.xlu0 %v1232
    %v1234 = vpop.xlane.xlu0 %1233
    %v1235 = vsel %vm951, %v1143, 0.0
    %1236 = vadd.xlane.f32.xlu0 %v1235
    %v1237 = vpop.xlane.xlu0 %1236
    %v1238 = vsel %vm951, %v1144, 0.0
    %1239 = vadd.xlane.f32.xlu0 %v1238
    %v1240 = vpop.xlane.xlu0 %1239
    %v1241 = vmul.f32 %v1147, %v1048
    %v1242 = vmul.f32 %v1150, %v1048
    %v1243 = vmul.f32 %v1153, %v1048
    %v1244 = vmul.f32 %v1156, %v1048
    %v1245 = vmul.f32 %v1159, %v1048
    %v1246 = vmul.f32 %v1162, %v1048
    %v1247 = vmul.f32 %v1165, %v1048
    %v1248 = vmul.f32 %v1168, %v1048
    %v1249 = vmul.f32 %v1171, %v1048
    %v1250 = vmul.f32 %v1174, %v1048
    %v1251 = vmul.f32 %v1177, %v1048
    %v1252 = vmul.f32 %v1180, %v1048
    %v1253 = vmul.f32 %v1183, %v1048
    %v1254 = vmul.f32 %v1186, %v1048
    %v1255 = vmul.f32 %v1189, %v1048
    %v1256 = vmul.f32 %v1192, %v1048
    %v1257 = vmul.f32 %v1195, %v1048
    %v1258 = vmul.f32 %v1198, %v1048
    %v1259 = vmul.f32 %v1201, %v1048
    %v1260 = vmul.f32 %v1204, %v1048
    %v1261 = vmul.f32 %v1207, %v1048
    %v1262 = vmul.f32 %v1210, %v1048
    %v1263 = vmul.f32 %v1213, %v1048
    %v1264 = vmul.f32 %v1216, %v1048
    %v1265 = vmul.f32 %v1219, %v1048
    %v1266 = vmul.f32 %v1222, %v1048
    %v1267 = vmul.f32 %v1225, %v1048
    %v1268 = vmul.f32 %v1228, %v1048
    %v1269 = vmul.f32 %v1231, %v1048
    %v1270 = vmul.f32 %v1234, %v1048
    %v1271 = vmul.f32 %v1237, %v1048
    %v1272 = vmul.f32 %v1240, %v1048
    %v1273 = vadd.f32 %v1241, 1e-05
    %v1274 = vadd.f32 %v1242, 1e-05
    %v1275 = vadd.f32 %v1243, 1e-05
    %v1276 = vadd.f32 %v1244, 1e-05
    %v1277 = vadd.f32 %v1245, 1e-05
    %v1278 = vadd.f32 %v1246, 1e-05
    %v1279 = vadd.f32 %v1247, 1e-05
    %v1280 = vadd.f32 %v1248, 1e-05
    %v1281 = vadd.f32 %v1249, 1e-05
    %v1282 = vadd.f32 %v1250, 1e-05
    %v1283 = vadd.f32 %v1251, 1e-05
    %v1284 = vadd.f32 %v1252, 1e-05
    %v1285 = vadd.f32 %v1253, 1e-05
    %v1286 = vadd.f32 %v1254, 1e-05
    %v1287 = vadd.f32 %v1255, 1e-05
    %v1288 = vadd.f32 %v1256, 1e-05
    %v1289 = vadd.f32 %v1257, 1e-05
    %v1290 = vadd.f32 %v1258, 1e-05
    %v1291 = vadd.f32 %v1259, 1e-05
    %v1292 = vadd.f32 %v1260, 1e-05
    %v1293 = vadd.f32 %v1261, 1e-05
    %v1294 = vadd.f32 %v1262, 1e-05
    %v1295 = vadd.f32 %v1263, 1e-05
    %v1296 = vadd.f32 %v1264, 1e-05
    %v1297 = vadd.f32 %v1265, 1e-05
    %v1298 = vadd.f32 %v1266, 1e-05
    %v1299 = vadd.f32 %v1267, 1e-05
    %v1300 = vadd.f32 %v1268, 1e-05
    %v1301 = vadd.f32 %v1269, 1e-05
    %v1302 = vadd.f32 %v1270, 1e-05
    %v1303 = vadd.f32 %v1271, 1e-05
    %v1304 = vadd.f32 %v1272, 1e-05
    %v1305 = vrsqrt.pop %v1273
    %v1306 = vrsqrt.pop %v1274
    %v1307 = vrsqrt.pop %v1275
    %v1308 = vrsqrt.pop %v1276
    %v1309 = vrsqrt.pop %v1277
    %v1310 = vrsqrt.pop %v1278
    %v1311 = vrsqrt.pop %v1279
    %v1312 = vrsqrt.pop %v1280
    %v1313 = vrsqrt.pop %v1281
    %v1314 = vrsqrt.pop %v1282
    %v1315 = vrsqrt.pop %v1283
    %v1316 = vrsqrt.pop %v1284
    %v1317 = vrsqrt.pop %v1285
    %v1318 = vrsqrt.pop %v1286
    %v1319 = vrsqrt.pop %v1287
    %v1320 = vrsqrt.pop %v1288
    %v1321 = vrsqrt.pop %v1289
    %v1322 = vrsqrt.pop %v1290
    %v1323 = vrsqrt.pop %v1291
    %v1324 = vrsqrt.pop %v1292
    %v1325 = vrsqrt.pop %v1293
    %v1326 = vrsqrt.pop %v1294
    %v1327 = vrsqrt.pop %v1295
    %v1328 = vrsqrt.pop %v1296
    %v1329 = vrsqrt.pop %v1297
    %v1330 = vrsqrt.pop %v1298
    %v1331 = vrsqrt.pop %v1299
    %v1332 = vrsqrt.pop %v1300
    %v1333 = vrsqrt.pop %v1301
    %v1334 = vrsqrt.pop %v1302
    %v1335 = vrsqrt.pop %v1303
    %v1336 = vrsqrt.pop %v1304
    %v1337 = vmul.f32 %v1081, %v1305
    %v1338 = vmul.f32 %v1082, %v1306
    %v1339 = vmul.f32 %v1083, %v1307
    %v1340 = vmul.f32 %v1084, %v1308
    %v1341 = vmul.f32 %v1085, %v1309
    %v1342 = vmul.f32 %v1086, %v1310
    %v1343 = vmul.f32 %v1087, %v1311
    %v1344 = vmul.f32 %v1088, %v1312
    %v1345 = vmul.f32 %v1089, %v1313
    %v1346 = vmul.f32 %v1090, %v1314
    %v1347 = vmul.f32 %v1091, %v1315
    %v1348 = vmul.f32 %v1092, %v1316
    %v1349 = vmul.f32 %v1093, %v1317
    %v1350 = vmul.f32 %v1094, %v1318
    %v1351 = vmul.f32 %v1095, %v1319
    %v1352 = vmul.f32 %v1096, %v1320
    %v1353 = vmul.f32 %v1097, %v1321
    %v1354 = vmul.f32 %v1098, %v1322
    %v1355 = vmul.f32 %v1099, %v1323
    %v1356 = vmul.f32 %v1100, %v1324
    %v1357 = vmul.f32 %v1101, %v1325
    %v1358 = vmul.f32 %v1102, %v1326
    %v1359 = vmul.f32 %v1103, %v1327
    %v1360 = vmul.f32 %v1104, %v1328
    %v1361 = vmul.f32 %v1105, %v1329
    %v1362 = vmul.f32 %v1106, %v1330
    %v1363 = vmul.f32 %v1107, %v1331
    %v1364 = vmul.f32 %v1108, %v1332
    %v1365 = vmul.f32 %v1109, %v1333
    %v1366 = vmul.f32 %v1110, %v1334
    %v1367 = vmul.f32 %v1111, %v1335
    %v1368 = vmul.f32 %v1112, %v1336
    %v1369 = vld [vmem:[%s5] sm:$0x1]
    %v1371 = vlaneseq
    %v1372 = vshrl.u32 %v1371, 7
    %v1373 = vsub.s32 0, %v1372
    %v1374 = vrot.slane %v1369, %v1373
    %v1376 = vmul.f32 %v1337, %v1374
    %v1377 = vmul.f32 %v1338, %v1374
    %v1378 = vmul.f32 %v1339, %v1374
    %v1379 = vmul.f32 %v1340, %v1374
    %v1380 = vmul.f32 %v1341, %v1374
    %v1381 = vmul.f32 %v1342, %v1374
    %v1382 = vmul.f32 %v1343, %v1374
    %v1383 = vmul.f32 %v1344, %v1374
    %v1384 = vmul.f32 %v1345, %v1374
    %v1385 = vmul.f32 %v1346, %v1374
    %v1386 = vmul.f32 %v1347, %v1374
    %v1387 = vmul.f32 %v1348, %v1374
    %v1388 = vmul.f32 %v1349, %v1374
    %v1389 = vmul.f32 %v1350, %v1374
    %v1390 = vmul.f32 %v1351, %v1374
    %v1391 = vmul.f32 %v1352, %v1374
    %v1392 = vmul.f32 %v1353, %v1374
    %v1393 = vmul.f32 %v1354, %v1374
    %v1394 = vmul.f32 %v1355, %v1374
    %v1395 = vmul.f32 %v1356, %v1374
    %v1396 = vmul.f32 %v1357, %v1374
    %v1397 = vmul.f32 %v1358, %v1374
    %v1398 = vmul.f32 %v1359, %v1374
    %v1399 = vmul.f32 %v1360, %v1374
    %v1400 = vmul.f32 %v1361, %v1374
    %v1401 = vmul.f32 %v1362, %v1374
    %v1402 = vmul.f32 %v1363, %v1374
    %v1403 = vmul.f32 %v1364, %v1374
    %v1404 = vmul.f32 %v1365, %v1374
    %v1405 = vmul.f32 %v1366, %v1374
    %v1406 = vmul.f32 %v1367, %v1374
    %v1407 = vmul.f32 %v1368, %v1374
    %v1408 = vld [vmem:[%s6] sm:$0x1]
    %v1410 = vlaneseq
    %v1411 = vshrl.u32 %v1410, 7
    %v1412 = vsub.s32 0, %v1411
    %v1413 = vrot.slane %v1408, %v1412
    %v1415 = vadd.f32 %v1376, %v1413
    %v1416 = vadd.f32 %v1377, %v1413
    %v1417 = vadd.f32 %v1378, %v1413
    %v1418 = vadd.f32 %v1379, %v1413
    %v1419 = vadd.f32 %v1380, %v1413
    %v1420 = vadd.f32 %v1381, %v1413
    %v1421 = vadd.f32 %v1382, %v1413
    %v1422 = vadd.f32 %v1383, %v1413
    %v1423 = vadd.f32 %v1384, %v1413
    %v1424 = vadd.f32 %v1385, %v1413
    %v1425 = vadd.f32 %v1386, %v1413
    %v1426 = vadd.f32 %v1387, %v1413
    %v1427 = vadd.f32 %v1388, %v1413
    %v1428 = vadd.f32 %v1389, %v1413
    %v1429 = vadd.f32 %v1390, %v1413
    %v1430 = vadd.f32 %v1391, %v1413
    %v1431 = vadd.f32 %v1392, %v1413
    %v1432 = vadd.f32 %v1393, %v1413
    %v1433 = vadd.f32 %v1394, %v1413
    %v1434 = vadd.f32 %v1395, %v1413
    %v1435 = vadd.f32 %v1396, %v1413
    %v1436 = vadd.f32 %v1397, %v1413
    %v1437 = vadd.f32 %v1398, %v1413
    %v1438 = vadd.f32 %v1399, %v1413
    %v1439 = vadd.f32 %v1400, %v1413
    %v1440 = vadd.f32 %v1401, %v1413
    %v1441 = vadd.f32 %v1402, %v1413
    %v1442 = vadd.f32 %v1403, %v1413
    %v1443 = vadd.f32 %v1404, %v1413
    %v1444 = vadd.f32 %v1405, %v1413
    %v1445 = vadd.f32 %v1406, %v1413
    %v1446 = vadd.f32 %v1407, %v1413
    %v1447 = vld [vmem:[%s1] sm:$0xff]
    %v1448 = vld [vmem:[%s1 + $0x8] sm:$0xff]
    %v1449 = vld [vmem:[%s1 + $0x10] sm:$0xff]
    %v1450 = vld [vmem:[%s1 + $0x18] sm:$0xff]
    %v1451 = vld [vmem:[%s1 + $0x20] sm:$0xff]
    %v1452 = vld [vmem:[%s1 + $0x28] sm:$0xff]
    %v1453 = vld [vmem:[%s1 + $0x30] sm:$0xff]
    %v1454 = vld [vmem:[%s1 + $0x38] sm:$0xff]
    %v1455 = vld [vmem:[%s1 + $0x40] sm:$0xff]
    %v1456 = vld [vmem:[%s1 + $0x48] sm:$0xff]
    %v1457 = vld [vmem:[%s1 + $0x50] sm:$0xff]
    %v1458 = vld [vmem:[%s1 + $0x58] sm:$0xff]
    %v1459 = vld [vmem:[%s1 + $0x60] sm:$0xff]
    %v1460 = vld [vmem:[%s1 + $0x68] sm:$0xff]
    %v1461 = vld [vmem:[%s1 + $0x70] sm:$0xff]
    %v1462 = vld [vmem:[%s1 + $0x78] sm:$0xff]
    %v1463 = vld [vmem:[%s1 + $0x80] sm:$0xff]
    %v1464 = vld [vmem:[%s1 + $0x88] sm:$0xff]
    %v1465 = vld [vmem:[%s1 + $0x90] sm:$0xff]
    %v1466 = vld [vmem:[%s1 + $0x98] sm:$0xff]
    %v1467 = vld [vmem:[%s1 + $0xa0] sm:$0xff]
    %v1468 = vld [vmem:[%s1 + $0xa8] sm:$0xff]
    %v1469 = vld [vmem:[%s1 + $0xb0] sm:$0xff]
    %v1470 = vld [vmem:[%s1 + $0xb8] sm:$0xff]
    %v1471 = vld [vmem:[%s1 + $0xc0] sm:$0xff]
    %v1472 = vld [vmem:[%s1 + $0xc8] sm:$0xff]
    %v1473 = vld [vmem:[%s1 + $0xd0] sm:$0xff]
    %v1474 = vld [vmem:[%s1 + $0xd8] sm:$0xff]
    %v1475 = vld [vmem:[%s1 + $0xe0] sm:$0xff]
    %v1476 = vld [vmem:[%s1 + $0xe8] sm:$0xff]
    %v1477 = vld [vmem:[%s1 + $0xf0] sm:$0xff]
    %v1478 = vld [vmem:[%s1 + $0xf8] sm:$0xff]
    %v1479 = vadd.f32 %v1415, %v1447
    %v1480 = vadd.f32 %v1416, %v1448
    %v1481 = vadd.f32 %v1417, %v1449
    %v1482 = vadd.f32 %v1418, %v1450
    %v1483 = vadd.f32 %v1419, %v1451
    %v1484 = vadd.f32 %v1420, %v1452
    %v1485 = vadd.f32 %v1421, %v1453
    %v1486 = vadd.f32 %v1422, %v1454
    %v1487 = vadd.f32 %v1423, %v1455
    %v1488 = vadd.f32 %v1424, %v1456
    %v1489 = vadd.f32 %v1425, %v1457
    %v1490 = vadd.f32 %v1426, %v1458
    %v1491 = vadd.f32 %v1427, %v1459
    %v1492 = vadd.f32 %v1428, %v1460
    %v1493 = vadd.f32 %v1429, %v1461
    %v1494 = vadd.f32 %v1430, %v1462
    %v1495 = vadd.f32 %v1431, %v1463
    %v1496 = vadd.f32 %v1432, %v1464
    %v1497 = vadd.f32 %v1433, %v1465
    %v1498 = vadd.f32 %v1434, %v1466
    %v1499 = vadd.f32 %v1435, %v1467
    %v1500 = vadd.f32 %v1436, %v1468
    %v1501 = vadd.f32 %v1437, %v1469
    %v1502 = vadd.f32 %v1438, %v1470
    %v1503 = vadd.f32 %v1439, %v1471
    %v1504 = vadd.f32 %v1440, %v1472
    %v1505 = vadd.f32 %v1441, %v1473
    %v1506 = vadd.f32 %v1442, %v1474
    %v1507 = vadd.f32 %v1443, %v1475
    %v1508 = vadd.f32 %v1444, %v1476
    %v1509 = vadd.f32 %v1445, %v1477
    %v1510 = vadd.f32 %v1446, %v1478
    %1511 = vst.msk [vmem:[#allocation2] sm:$0xff] %vm951, %v1479
    %1512 = vst.msk [vmem:[#allocation2 + $0x8] sm:$0xff] %vm951, %v1480
    %1513 = vst.msk [vmem:[#allocation2 + $0x10] sm:$0xff] %vm951, %v1481
    %1514 = vst.msk [vmem:[#allocation2 + $0x18] sm:$0xff] %vm951, %v1482
    %1515 = vst.msk [vmem:[#allocation2 + $0x20] sm:$0xff] %vm951, %v1483
    %1516 = vst.msk [vmem:[#allocation2 + $0x28] sm:$0xff] %vm951, %v1484
    %1517 = vst.msk [vmem:[#allocation2 + $0x30] sm:$0xff] %vm951, %v1485
    %1518 = vst.msk [vmem:[#allocation2 + $0x38] sm:$0xff] %vm951, %v1486
    %1519 = vst.msk [vmem:[#allocation2 + $0x40] sm:$0xff] %vm951, %v1487
    %1520 = vst.msk [vmem:[#allocation2 + $0x48] sm:$0xff] %vm951, %v1488
    %1521 = vst.msk [vmem:[#allocation2 + $0x50] sm:$0xff] %vm951, %v1489
    %1522 = vst.msk [vmem:[#allocation2 + $0x58] sm:$0xff] %vm951, %v1490
    %1523 = vst.msk [vmem:[#allocation2 + $0x60] sm:$0xff] %vm951, %v1491
    %1524 = vst.msk [vmem:[#allocation2 + $0x68] sm:$0xff] %vm951, %v1492
    %1525 = vst.msk [vmem:[#allocation2 + $0x70] sm:$0xff] %vm951, %v1493
    %1526 = vst.msk [vmem:[#allocation2 + $0x78] sm:$0xff] %vm951, %v1494
    %1527 = vst.msk [vmem:[#allocation2 + $0x80] sm:$0xff] %vm951, %v1495
    %1528 = vst.msk [vmem:[#allocation2 + $0x88] sm:$0xff] %vm951, %v1496
    %1529 = vst.msk [vmem:[#allocation2 + $0x90] sm:$0xff] %vm951, %v1497
    %1530 = vst.msk [vmem:[#allocation2 + $0x98] sm:$0xff] %vm951, %v1498
    %1531 = vst.msk [vmem:[#allocation2 + $0xa0] sm:$0xff] %vm951, %v1499
    %1532 = vst.msk [vmem:[#allocation2 + $0xa8] sm:$0xff] %vm951, %v1500
    %1533 = vst.msk [vmem:[#allocation2 + $0xb0] sm:$0xff] %vm951, %v1501
    %1534 = vst.msk [vmem:[#allocation2 + $0xb8] sm:$0xff] %vm951, %v1502
    %1535 = vst.msk [vmem:[#allocation2 + $0xc0] sm:$0xff] %vm951, %v1503
    %1536 = vst.msk [vmem:[#allocation2 + $0xc8] sm:$0xff] %vm951, %v1504
    %1537 = vst.msk [vmem:[#allocation2 + $0xd0] sm:$0xff] %vm951, %v1505
    %1538 = vst.msk [vmem:[#allocation2 + $0xd8] sm:$0xff] %vm951, %v1506
    %1539 = vst.msk [vmem:[#allocation2 + $0xe0] sm:$0xff] %vm951, %v1507
    %1540 = vst.msk [vmem:[#allocation2 + $0xe8] sm:$0xff] %vm951, %v1508
    %1541 = vst.msk [vmem:[#allocation2 + $0xf0] sm:$0xff] %vm951, %v1509
    %1542 = vst.msk [vmem:[#allocation2 + $0xf8] sm:$0xff] %vm951, %v1510
    // Predicated region
    $region30: #{_lambda_.29} parent=1 // pred_check
      _
    $region31: #{_lambda_.29} parent=1 // pred_check_branch
      %1544 = sbr.rel (0) target = $region33
    $region32: #{_lambda_.29} parent=1 // pred_region
      %s1546 = ssub.s32 4096, 4096
      %1547 = vsyncadd [#allocation3], %s1546
      %s1548 = sshll.u32 [#allocation2], 4
      %s1549 = int_to_ptr.vmem [resolvable:$true] %s1548
      %1554 = dma.vmem_to_hbm [thread:$0]  %s1549, 4096, %s7, [#allocation3], 128, 128, 8
    $region33: #{_lambda_.29} parent=1 // pred_fallthru
      _
    // Predicated region
    $region34: #{_lambda_.29} parent=1 // pred_check
      _
    $region35: #{_lambda_.29} parent=1 // pred_check_branch
      %1556 = sbr.rel (0) target = $region37
    $region36: #{_lambda_.29} parent=1 // pred_region
      %1557 = dma.done [#allocation3], 4096
    $region37: #{_lambda_.29} parent=1 // pred_fallthru
      _
    %1558 = vsyncpa [#allocation3], 1

// kernel: _lambda_.18
$region0: #{_lambda_.18}
  #allocation0 [shape = 'u32[]', space=smem, size = 0x4, offset = 0x4, fixed_abs, tag = 'smem constant byte address 0x4 - core index']
  #allocation1 [shape = 'u32[144,128]{1,0:T(1,128)}', space=vmem, size = 0x12000, scoped, tag = 'internal scratch']
  %s0 = inlined_call_operand.vmem [shape: bf16[32,12], index: 0, kind: input, shape index: {}]
  %s1 = inlined_call_operand.vmem [shape: bf16[12,48], index: 1, kind: input, shape index: {}]
  %s2 = inlined_call_operand.vmem [shape: f32[1,48], index: 2, kind: input, shape index: {}]
  %s3 = inlined_call_operand.vmem [shape: f32[32,48], index: 3, kind: output, shape index: {}]
  %s4 = sld [smem:[#allocation0]]
  $region22: #{_lambda_.18} parent=0
    _
  %s6 = ssub.s32 1, %s4
  %s7 = scalar_select 0, %s6, %s4
  // Predicated region
  $region2: #{_lambda_.18} parent=0 // pred_check
    _
  $region3: #{_lambda_.18} parent=0 // pred_check_branch
    %9 = sbr.rel (0) target = $region5
  $region4: #{_lambda_.18} parent=0 // pred_region
    _
  $region5: #{_lambda_.18} parent=0 // pred_fallthru
    _
  // Predicated region
  $region6: #{_lambda_.18} parent=0 // pred_check
    _
  $region7: #{_lambda_.18} parent=0 // pred_check_branch
    %11 = sbr.rel (0) target = $region9
  $region8: #{_lambda_.18} parent=0 // pred_region
    _
  $region9: #{_lambda_.18} parent=0 // pred_fallthru
    _
  // Predicated region
  $region10: #{_lambda_.18} parent=0 // pred_check
    _
  $region11: #{_lambda_.18} parent=0 // pred_check_branch
    %13 = sbr.rel (0) target = $region13
  $region12: #{_lambda_.18} parent=0 // pred_region
    _
  $region13: #{_lambda_.18} parent=0 // pred_fallthru
    _
  %v15 = vld [vmem:[%s0] sm:$0xf]
  %v16 = vld [vmem:[%s0 + $0x4] sm:$0xf]
  %v17 = vld [vmem:[%s0 + $0x8] sm:$0xf]
  %v18 = vld [vmem:[%s0 + $0xc] sm:$0xf]
  %v19 = vld [vmem:[%s1] sm:$0xf]
  %v20 = vld [vmem:[%s1 + $0x4] sm:$0x3]
  %v21 = vld [vmem:[%s2] sm:$0x1]
  %v23 = vlaneseq
  %v24 = vshrl.u32 %v23, 7
  %v25 = vsub.s32 0, %v24
  %v26 = vrot.slane %v21, %v25
  %v32 = vunpack.c.l.b16 %v15
  %v33 = vunpack.c.l.b16 %v16
  %v34 = vunpack.c.l.b16 %v17
  %v35 = vunpack.c.l.b16 %v18
  %v36 = vpack.c.b16 %v33, %v32
  %v37 = vpack.c.b16 %v35, %v34
  %v40 = vunpack.c.l.b16 %v19
  %v41 = vunpack.c.l.b16 %v20
  %v42 = vpack.c.b16 %v41, %v40
  %vm43 = vcmask 97280
  %v45 = vsel %vm43, %v36, 0
  %v48 = vsel %vm43, %v37, 0
  %vm50 = vcmask 1045504
  %v52 = vsel %vm50, %v42, 0
  %54 = vmatprep.subr.bf16.mxu0 0
  %55 = vmatpush1.bf16.msra.mxu0 0
  %56 = vmatprep.subr.bf16.mxu0 0
  %57 = vmatpush1.bf16.msra.mxu0 0
  %58 = vmatprep.subr.bf16.mxu0 0
  %59 = vmatpush1.bf16.msra.mxu0 0
  %60 = vmatprep.subr.bf16.mxu0 0
  %61 = vmatpush1.bf16.msra.mxu0 0
  %62 = vmatprep.subr.bf16.mxu0 0
  %63 = vmatpush1.bf16.msra.mxu0 0
  %64 = vmatprep.subr.bf16.mxu0 0
  %65 = vmatpush1.bf16.msra.mxu0 0
  %66 = vmatprep.subr.bf16.mxu0 0
  %67 = vmatpush1.bf16.msra.mxu0 0
  %68 = vmatprep.subr.bf16.mxu0 0
  %69 = vmatpush1.bf16.msra.mxu0 %v52
  %70 = vmatprep.subr.bf16.mxu0 0
  %71 = vmatpush2.bf16.msra.mxu0 0
  %72 = vmatprep.subr.bf16.mxu0 0
  %73 = vmatpush2.bf16.msra.mxu0 0
  %74 = vmatprep.subr.bf16.mxu0 0
  %75 = vmatpush2.bf16.msra.mxu0 0
  %76 = vmatprep.subr.bf16.mxu0 0
  %77 = vmatpush2.bf16.msra.mxu0 0
  %78 = vmatprep.subr.bf16.mxu0 0
  %79 = vmatpush2.bf16.msra.mxu0 0
  %80 = vmatprep.subr.bf16.mxu0 0
  %81 = vmatpush2.bf16.msra.mxu0 0
  %82 = vmatprep.subr.bf16.mxu0 0
  %83 = vmatpush2.bf16.msra.mxu0 0
  %84 = vmatprep.subr.bf16.mxu0 0
  %85 = vmatpush2.bf16.msra.mxu0 0
  %86 = vmatprep.mubr.bf16.mxu0 0
  %87 = vmatmul.mubr.bf16.gmra.mxu0 %v45
  %v88 = vpop.f32.mrf.mxu0
  %v89 = vadd.f32 %v26, %v88
  %v90 = vpop.f32.mrf.mxu0
  %v91 = vpop.f32.mrf.mxu0
  %v92 = vadd.f32 %v26, %v91
  %v93 = vpop.f32.mrf.mxu0
  %94 = vmatprep.mubr.bf16.mxu0 0
  %95 = vmatmul.mubr.bf16.gmra.mxu0 %v48
  %v96 = vpop.f32.mrf.mxu0
  %v97 = vadd.f32 %v26, %v96
  %v98 = vpop.f32.mrf.mxu0
  %v99 = vpop.f32.mrf.mxu0
  %v100 = vadd.f32 %v26, %v99
  %v101 = vpop.f32.mrf.mxu0
  %102 = vdwg.mxu0
  %vm103 = vcmask 392192
  %104 = vst.msk [vmem:[%s3] sm:$0xff] %vm103, %v89
  %105 = vst.msk [vmem:[%s3 + $0x8] sm:$0xff] %vm103, %v92
  %106 = vst.msk [vmem:[%s3 + $0x10] sm:$0xff] %vm103, %v97
  %107 = vst.msk [vmem:[%s3 + $0x18] sm:$0xff] %vm103, %v100
  // Predicated region
  $region14: #{_lambda_.18} parent=0 // pred_check
    _
  $region15: #{_lambda_.18} parent=0 // pred_check_branch
    %109 = sbr.rel (0) target = $region17
  $region16: #{_lambda_.18} parent=0 // pred_region
    _
  $region17: #{_lambda_.18} parent=0 // pred_fallthru
    _
  // Predicated region
  $region18: #{_lambda_.18} parent=0 // pred_check
    _
  $region19: #{_lambda_.18} parent=0 // pred_check_branch
    %111 = sbr.rel (0) target = $region21
  $region20: #{_lambda_.18} parent=0 // pred_region
    _
  $region21: #{_lambda_.18} parent=0 // pred_fallthru
    _

// kernel: _lambda_.21
$region0: #{_lambda_.21}
  #allocation0 [shape = 'u32[]', space=smem, size = 0x4, offset = 0x4, fixed_abs, tag = 'smem constant byte address 0x4 - core index']
  #allocation1 [shape = 'u32[144,128]{1,0:T(1,128)}', space=vmem, size = 0x12000, scoped, tag = 'internal scratch']
  %s0 = inlined_call_operand.vmem [shape: bf16[32,48], index: 0, kind: input, shape index: {}]
  %s1 = inlined_call_operand.vmem [shape: bf16[48,96], index: 1, kind: input, shape index: {}]
  %s2 = inlined_call_operand.vmem [shape: f32[1,96], index: 2, kind: input, shape index: {}]
  %s3 = inlined_call_operand.vmem [shape: f32[32,96], index: 3, kind: output, shape index: {}]
  %s4 = sld [smem:[#allocation0]]
  $region22: #{_lambda_.21} parent=0
    _
  %s6 = ssub.s32 1, %s4
  %s7 = scalar_select 0, %s6, %s4
  // Predicated region
  $region2: #{_lambda_.21} parent=0 // pred_check
    _
  $region3: #{_lambda_.21} parent=0 // pred_check_branch
    %9 = sbr.rel (0) target = $region5
  $region4: #{_lambda_.21} parent=0 // pred_region
    _
  $region5: #{_lambda_.21} parent=0 // pred_fallthru
    _
  // Predicated region
  $region6: #{_lambda_.21} parent=0 // pred_check
    _
  $region7: #{_lambda_.21} parent=0 // pred_check_branch
    %11 = sbr.rel (0) target = $region9
  $region8: #{_lambda_.21} parent=0 // pred_region
    _
  $region9: #{_lambda_.21} parent=0 // pred_fallthru
    _
  // Predicated region
  $region10: #{_lambda_.21} parent=0 // pred_check
    _
  $region11: #{_lambda_.21} parent=0 // pred_check_branch
    %13 = sbr.rel (0) target = $region13
  $region12: #{_lambda_.21} parent=0 // pred_region
    _
  $region13: #{_lambda_.21} parent=0 // pred_fallthru
    _
  %v15 = vld [vmem:[%s0] sm:$0xf]
  %v16 = vld [vmem:[%s0 + $0x4] sm:$0xf]
  %v17 = vld [vmem:[%s0 + $0x8] sm:$0xf]
  %v18 = vld [vmem:[%s0 + $0xc] sm:$0xf]
  %v19 = vld [vmem:[%s1] sm:$0xf]
  %v20 = vld [vmem:[%s1 + $0x4] sm:$0xf]
  %v21 = vld [vmem:[%s1 + $0x8] sm:$0xf]
  %v22 = vld [vmem:[%s1 + $0xc] sm:$0xf]
  %v23 = vld [vmem:[%s1 + $0x10] sm:$0xf]
  %v24 = vld [vmem:[%s1 + $0x14] sm:$0xf]
  %v25 = vld [vmem:[%s2] sm:$0x1]
  %v27 = vlaneseq
  %v28 = vshrl.u32 %v27, 7
  %v29 = vsub.s32 0, %v28
  %v30 = vrot.slane %v25, %v29
  %v36 = vunpack.c.l.b16 %v15
  %v37 = vunpack.c.l.b16 %v16
  %v38 = vunpack.c.l.b16 %v17
  %v39 = vunpack.c.l.b16 %v18
  %v40 = vpack.c.b16 %v37, %v36
  %v41 = vpack.c.b16 %v39, %v38
  %v48 = vunpack.c.l.b16 %v19
  %v49 = vunpack.c.l.b16 %v20
  %v50 = vunpack.c.l.b16 %v21
  %v51 = vunpack.c.l.b16 %v22
  %v52 = vunpack.c.l.b16 %v23
  %v53 = vunpack.c.l.b16 %v24
  %v54 = vpack.c.b16 %v49, %v48
  %v55 = vpack.c.b16 %v51, %v50
  %v56 = vpack.c.b16 %v53, %v52
  %vm60 = vcmask 392192
  %v62 = vsel %vm60, %v40, 0
  %v65 = vsel %vm60, %v41, 0
  %67 = vmatprep.subr.bf16.mxu0 0
  %68 = vmatpush1.bf16.msra.mxu0 0
  %69 = vmatprep.subr.bf16.mxu0 0
  %70 = vmatpush1.bf16.msra.mxu0 0
  %71 = vmatprep.subr.bf16.mxu0 0
  %72 = vmatpush1.bf16.msra.mxu0 0
  %73 = vmatprep.subr.bf16.mxu0 0
  %74 = vmatpush1.bf16.msra.mxu0 0
  %75 = vmatprep.subr.bf16.mxu0 0
  %76 = vmatpush1.bf16.msra.mxu0 0
  %77 = vmatprep.subr.bf16.mxu0 0
  %78 = vmatpush1.bf16.msra.mxu0 %v56
  %79 = vmatprep.subr.bf16.mxu0 0
  %80 = vmatpush1.bf16.msra.mxu0 %v55
  %81 = vmatprep.subr.bf16.mxu0 0
  %82 = vmatpush1.bf16.msra.mxu0 %v54
  %83 = vmatprep.subr.bf16.mxu0 0
  %84 = vmatpush2.bf16.msra.mxu0 0
  %85 = vmatprep.subr.bf16.mxu0 0
  %86 = vmatpush2.bf16.msra.mxu0 0
  %87 = vmatprep.subr.bf16.mxu0 0
  %88 = vmatpush2.bf16.msra.mxu0 0
  %89 = vmatprep.subr.bf16.mxu0 0
  %90 = vmatpush2.bf16.msra.mxu0 0
  %91 = vmatprep.subr.bf16.mxu0 0
  %92 = vmatpush2.bf16.msra.mxu0 0
  %93 = vmatprep.subr.bf16.mxu0 0
  %94 = vmatpush2.bf16.msra.mxu0 0
  %95 = vmatprep.subr.bf16.mxu0 0
  %96 = vmatpush2.bf16.msra.mxu0 0
  %97 = vmatprep.subr.bf16.mxu0 0
  %98 = vmatpush2.bf16.msra.mxu0 0
  %99 = vmatprep.mubr.bf16.mxu0 0
  %100 = vmatmul.mubr.bf16.gmra.mxu0 %v62
  %v101 = vpop.f32.mrf.mxu0
  %v102 = vadd.f32 %v30, %v101
  %v103 = vpop.f32.mrf.mxu0
  %v104 = vpop.f32.mrf.mxu0
  %v105 = vadd.f32 %v30, %v104
  %v106 = vpop.f32.mrf.mxu0
  %107 = vmatprep.mubr.bf16.mxu0 0
  %108 = vmatmul.mubr.bf16.gmra.mxu0 %v65
  %v109 = vpop.f32.mrf.mxu0
  %v110 = vadd.f32 %v30, %v109
  %v111 = vpop.f32.mrf.mxu0
  %v112 = vpop.f32.mrf.mxu0
  %v113 = vadd.f32 %v30, %v112
  %v114 = vpop.f32.mrf.mxu0
  %115 = vdwg.mxu0
  %vm116 = vcmask 785408
  %117 = vst.msk [vmem:[%s3] sm:$0xff] %vm116, %v102
  %118 = vst.msk [vmem:[%s3 + $0x8] sm:$0xff] %vm116, %v105
  %119 = vst.msk [vmem:[%s3 + $0x10] sm:$0xff] %vm116, %v110
  %120 = vst.msk [vmem:[%s3 + $0x18] sm:$0xff] %vm116, %v113
  // Predicated region
  $region14: #{_lambda_.21} parent=0 // pred_check
    _
  $region15: #{_lambda_.21} parent=0 // pred_check_branch
    %122 = sbr.rel (0) target = $region17
  $region16: #{_lambda_.21} parent=0 // pred_region
    _
  $region17: #{_lambda_.21} parent=0 // pred_fallthru
    _
  // Predicated region
  $region18: #{_lambda_.21} parent=0 // pred_check
    _
  $region19: #{_lambda_.21} parent=0 // pred_check_branch
    %124 = sbr.rel (0) target = $region21
  $region20: #{_lambda_.21} parent=0 // pred_region
    _
  $region21: #{_lambda_.21} parent=0 // pred_fallthru
    _

// kernel: _lambda_.27
$region0: #{_lambda_.27}
  #allocation0 [shape = 'u32[]', space=smem, size = 0x4, offset = 0x4, fixed_abs, tag = 'smem constant byte address 0x4 - core index']
  #allocation1 [shape = 'u32[144,128]{1,0:T(1,128)}', space=vmem, size = 0x12000, scoped, tag = 'internal scratch']
  %s0 = inlined_call_operand.vmem [shape: bf16[64,96], index: 0, kind: input, shape index: {}]
  %s1 = inlined_call_operand.vmem [shape: bf16[96,32], index: 1, kind: input, shape index: {}]
  %s2 = inlined_call_operand.vmem [shape: f32[1,32], index: 2, kind: input, shape index: {}]
  %s3 = inlined_call_operand.vmem [shape: f32[64,32], index: 3, kind: output, shape index: {}]
  %s4 = sld [smem:[#allocation0]]
  $region22: #{_lambda_.27} parent=0
    _
  %s6 = ssub.s32 1, %s4
  %s7 = scalar_select 0, %s6, %s4
  // Predicated region
  $region2: #{_lambda_.27} parent=0 // pred_check
    _
  $region3: #{_lambda_.27} parent=0 // pred_check_branch
    %9 = sbr.rel (0) target = $region5
  $region4: #{_lambda_.27} parent=0 // pred_region
    _
  $region5: #{_lambda_.27} parent=0 // pred_fallthru
    _
  // Predicated region
  $region6: #{_lambda_.27} parent=0 // pred_check
    _
  $region7: #{_lambda_.27} parent=0 // pred_check_branch
    %11 = sbr.rel (0) target = $region9
  $region8: #{_lambda_.27} parent=0 // pred_region
    _
  $region9: #{_lambda_.27} parent=0 // pred_fallthru
    _
  // Predicated region
  $region10: #{_lambda_.27} parent=0 // pred_check
    _
  $region11: #{_lambda_.27} parent=0 // pred_check_branch
    %13 = sbr.rel (0) target = $region13
  $region12: #{_lambda_.27} parent=0 // pred_region
    _
  $region13: #{_lambda_.27} parent=0 // pred_fallthru
    _
  %v15 = vld [vmem:[%s0] sm:$0xf]
  %v16 = vld [vmem:[%s0 + $0x4] sm:$0xf]
  %v17 = vld [vmem:[%s0 + $0x8] sm:$0xf]
  %v18 = vld [vmem:[%s0 + $0xc] sm:$0xf]
  %v19 = vld [vmem:[%s0 + $0x10] sm:$0xf]
  %v20 = vld [vmem:[%s0 + $0x14] sm:$0xf]
  %v21 = vld [vmem:[%s0 + $0x18] sm:$0xf]
  %v22 = vld [vmem:[%s0 + $0x1c] sm:$0xf]
  %v23 = vld [vmem:[%s1] sm:$0xf]
  %v24 = vld [vmem:[%s1 + $0x4] sm:$0xf]
  %v25 = vld [vmem:[%s1 + $0x8] sm:$0xf]
  %v26 = vld [vmem:[%s1 + $0xc] sm:$0xf]
  %v27 = vld [vmem:[%s1 + $0x10] sm:$0xf]
  %v28 = vld [vmem:[%s1 + $0x14] sm:$0xf]
  %v29 = vld [vmem:[%s1 + $0x18] sm:$0xf]
  %v30 = vld [vmem:[%s1 + $0x1c] sm:$0xf]
  %v31 = vld [vmem:[%s1 + $0x20] sm:$0xf]
  %v32 = vld [vmem:[%s1 + $0x24] sm:$0xf]
  %v33 = vld [vmem:[%s1 + $0x28] sm:$0xf]
  %v34 = vld [vmem:[%s1 + $0x2c] sm:$0xf]
  %v35 = vld [vmem:[%s2] sm:$0x1]
  %v37 = vlaneseq
  %v38 = vshrl.u32 %v37, 7
  %v39 = vsub.s32 0, %v38
  %v40 = vrot.slane %v35, %v39
  %v50 = vunpack.c.l.b16 %v15
  %v51 = vunpack.c.l.b16 %v16
  %v52 = vunpack.c.l.b16 %v17
  %v53 = vunpack.c.l.b16 %v18
  %v54 = vunpack.c.l.b16 %v19
  %v55 = vunpack.c.l.b16 %v20
  %v56 = vunpack.c.l.b16 %v21
  %v57 = vunpack.c.l.b16 %v22
  %v58 = vpack.c.b16 %v51, %v50
  %v59 = vpack.c.b16 %v53, %v52
  %v60 = vpack.c.b16 %v55, %v54
  %v61 = vpack.c.b16 %v57, %v56
  %v74 = vunpack.c.l.b16 %v23
  %v75 = vunpack.c.l.b16 %v24
  %v76 = vunpack.c.l.b16 %v25
  %v77 = vunpack.c.l.b16 %v26
  %v78 = vunpack.c.l.b16 %v27
  %v79 = vunpack.c.l.b16 %v28
  %v80 = vunpack.c.l.b16 %v29
  %v81 = vunpack.c.l.b16 %v30
  %v82 = vunpack.c.l.b16 %v31
  %v83 = vunpack.c.l.b16 %v32
  %v84 = vunpack.c.l.b16 %v33
  %v85 = vunpack.c.l.b16 %v34
  %v86 = vpack.c.b16 %v75, %v74
  %v87 = vpack.c.b16 %v77, %v76
  %v88 = vpack.c.b16 %v79, %v78
  %v89 = vpack.c.b16 %v81, %v80
  %v90 = vpack.c.b16 %v83, %v82
  %v91 = vpack.c.b16 %v85, %v84
  %vm98 = vcmask 785408
  %v100 = vsel %vm98, %v58, 0
  %v103 = vsel %vm98, %v59, 0
  %v106 = vsel %vm98, %v60, 0
  %v109 = vsel %vm98, %v61, 0
  %111 = vmatprep.subr.bf16.mxu0 0
  %112 = vmatpush1.bf16.msra.mxu0 0
  %113 = vmatprep.subr.bf16.mxu0 0
  %114 = vmatpush1.bf16.msra.mxu0 0
  %115 = vmatprep.subr.bf16.mxu0 0
  %116 = vmatpush1.bf16.msra.mxu0 %v91
  %117 = vmatprep.subr.bf16.mxu0 0
  %118 = vmatpush1.bf16.msra.mxu0 %v90
  %119 = vmatprep.subr.bf16.mxu0 0
  %120 = vmatpush1.bf16.msra.mxu0 %v89
  %121 = vmatprep.subr.bf16.mxu0 0
  %122 = vmatpush1.bf16.msra.mxu0 %v88
  %123 = vmatprep.subr.bf16.mxu0 0
  %124 = vmatpush1.bf16.msra.mxu0 %v87
  %125 = vmatprep.subr.bf16.mxu0 0
  %126 = vmatpush1.bf16.msra.mxu0 %v86
  %127 = vmatprep.subr.bf16.mxu0 0
  %128 = vmatpush2.bf16.msra.mxu0 0
  %129 = vmatprep.subr.bf16.mxu0 0
  %130 = vmatpush2.bf16.msra.mxu0 0
  %131 = vmatprep.subr.bf16.mxu0 0
  %132 = vmatpush2.bf16.msra.mxu0 0
  %133 = vmatprep.subr.bf16.mxu0 0
  %134 = vmatpush2.bf16.msra.mxu0 0
  %135 = vmatprep.subr.bf16.mxu0 0
  %136 = vmatpush2.bf16.msra.mxu0 0
  %137 = vmatprep.subr.bf16.mxu0 0
  %138 = vmatpush2.bf16.msra.mxu0 0
  %139 = vmatprep.subr.bf16.mxu0 0
  %140 = vmatpush2.bf16.msra.mxu0 0
  %141 = vmatprep.subr.bf16.mxu0 0
  %142 = vmatpush2.bf16.msra.mxu0 0
  %143 = vmatprep.mubr.bf16.mxu0 0
  %144 = vmatmul.mubr.bf16.gmra.mxu0 %v100
  %v145 = vpop.f32.mrf.mxu0
  %v146 = vadd.f32 %v40, %v145
  %v147 = vpop.f32.mrf.mxu0
  %v148 = vpop.f32.mrf.mxu0
  %v149 = vadd.f32 %v40, %v148
  %v150 = vpop.f32.mrf.mxu0
  %151 = vmatprep.mubr.bf16.mxu0 0
  %152 = vmatmul.mubr.bf16.gmra.mxu0 %v103
  %v153 = vpop.f32.mrf.mxu0
  %v154 = vadd.f32 %v40, %v153
  %v155 = vpop.f32.mrf.mxu0
  %v156 = vpop.f32.mrf.mxu0
  %v157 = vadd.f32 %v40, %v156
  %v158 = vpop.f32.mrf.mxu0
  %159 = vmatprep.mubr.bf16.mxu0 0
  %160 = vmatmul.mubr.bf16.gmra.mxu0 %v106
  %v161 = vpop.f32.mrf.mxu0
  %v162 = vadd.f32 %v40, %v161
  %v163 = vpop.f32.mrf.mxu0
  %v164 = vpop.f32.mrf.mxu0
  %v165 = vadd.f32 %v40, %v164
  %v166 = vpop.f32.mrf.mxu0
  %167 = vmatprep.mubr.bf16.mxu0 0
  %168 = vmatmul.mubr.bf16.gmra.mxu0 %v109
  %v169 = vpop.f32.mrf.mxu0
  %v170 = vadd.f32 %v40, %v169
  %v171 = vpop.f32.mrf.mxu0
  %v172 = vpop.f32.mrf.mxu0
  %v173 = vadd.f32 %v40, %v172
  %v174 = vpop.f32.mrf.mxu0
  %175 = vdwg.mxu0
  %vm176 = vcmask 261120
  %177 = vst.msk [vmem:[%s3] sm:$0xff] %vm176, %v146
  %178 = vst.msk [vmem:[%s3 + $0x8] sm:$0xff] %vm176, %v149
  %179 = vst.msk [vmem:[%s3 + $0x10] sm:$0xff] %vm176, %v154
  %180 = vst.msk [vmem:[%s3 + $0x18] sm:$0xff] %vm176, %v157
  %181 = vst.msk [vmem:[%s3 + $0x20] sm:$0xff] %vm176, %v162
  %182 = vst.msk [vmem:[%s3 + $0x28] sm:$0xff] %vm176, %v165
  %183 = vst.msk [vmem:[%s3 + $0x30] sm:$0xff] %vm176, %v170
  %184 = vst.msk [vmem:[%s3 + $0x38] sm:$0xff] %vm176, %v173
  // Predicated region
  $region14: #{_lambda_.27} parent=0 // pred_check
    _
  $region15: #{_lambda_.27} parent=0 // pred_check_branch
    %186 = sbr.rel (0) target = $region17
  $region16: #{_lambda_.27} parent=0 // pred_region
    _
  $region17: #{_lambda_.27} parent=0 // pred_fallthru
    _
  // Predicated region
  $region18: #{_lambda_.27} parent=0 // pred_check
    _
  $region19: #{_lambda_.27} parent=0 // pred_check_branch
    %188 = sbr.rel (0) target = $region21
  $region20: #{_lambda_.27} parent=0 // pred_region
    _
  $region21: #{_lambda_.27} parent=0 // pred_fallthru
    _

// kernel: _lambda_.30
$region0: #{_lambda_.30}
  #allocation0 [shape = 'u32[]', space=smem, size = 0x4, offset = 0x4, fixed_abs, tag = 'smem constant byte address 0x4 - core index']
  #allocation1 [shape = 'u32[144,128]{1,0:T(1,128)}', space=vmem, size = 0x12000, scoped, tag = 'internal scratch']
  %s0 = inlined_call_operand.vmem [shape: bf16[64,224], index: 0, kind: input, shape index: {}]
  %s1 = inlined_call_operand.vmem [shape: f32[64,32], index: 1, kind: input, shape index: {}]
  %s2 = inlined_call_operand.vmem [shape: bf16[224,96], index: 2, kind: input, shape index: {}]
  %s3 = inlined_call_operand.vmem [shape: f32[1,96], index: 3, kind: input, shape index: {}]
  %s4 = inlined_call_operand.vmem [shape: bf16[96,32], index: 4, kind: input, shape index: {}]
  %s5 = inlined_call_operand.vmem [shape: f32[1,32], index: 5, kind: input, shape index: {}]
  %s6 = inlined_call_operand.vmem [shape: f32[1,32], index: 6, kind: input, shape index: {}]
  %s7 = inlined_call_operand.hbm [shape: f32[64,32], index: 7, kind: output, shape index: {}]
  %s8 = sld [smem:[#allocation0]]
  $region38: #{_lambda_.30} parent=0
    _
  %s10 = ssub.s32 1, %s8
  %s11 = scalar_select 0, %s10, %s8
  $region1: #{_lambda_.30} parent=0
    #allocation2 [shape = 'u8[32768]{0}', space=vmem, size = 0x8000, scoped, tag = 'output window, operand 0, single buffered']
    #allocation3 [shape = 's32[1]{0}', space=sflag, size = 0x4, scoped, tag = 'scoped memory for _lambda_.30']
    %12 = vsyncpa [#allocation3], 0
    // Predicated region
    $region2: #{_lambda_.30} parent=1 // pred_check
      _
    $region3: #{_lambda_.30} parent=1 // pred_check_branch
      %14 = sbr.rel (0) target = $region5
    $region4: #{_lambda_.30} parent=1 // pred_region
      _
    $region5: #{_lambda_.30} parent=1 // pred_fallthru
      _
    // Predicated region
    $region6: #{_lambda_.30} parent=1 // pred_check
      _
    $region7: #{_lambda_.30} parent=1 // pred_check_branch
      %16 = sbr.rel (0) target = $region9
    $region8: #{_lambda_.30} parent=1 // pred_region
      _
    $region9: #{_lambda_.30} parent=1 // pred_fallthru
      _
    // Predicated region
    $region10: #{_lambda_.30} parent=1 // pred_check
      _
    $region11: #{_lambda_.30} parent=1 // pred_check_branch
      %18 = sbr.rel (0) target = $region13
    $region12: #{_lambda_.30} parent=1 // pred_region
      _
    $region13: #{_lambda_.30} parent=1 // pred_fallthru
      _
    // Predicated region
    $region14: #{_lambda_.30} parent=1 // pred_check
      _
    $region15: #{_lambda_.30} parent=1 // pred_check_branch
      %20 = sbr.rel (0) target = $region17
    $region16: #{_lambda_.30} parent=1 // pred_region
      _
    $region17: #{_lambda_.30} parent=1 // pred_fallthru
      _
    // Predicated region
    $region18: #{_lambda_.30} parent=1 // pred_check
      _
    $region19: #{_lambda_.30} parent=1 // pred_check_branch
      %22 = sbr.rel (0) target = $region21
    $region20: #{_lambda_.30} parent=1 // pred_region
      _
    $region21: #{_lambda_.30} parent=1 // pred_fallthru
      _
    // Predicated region
    $region22: #{_lambda_.30} parent=1 // pred_check
      _
    $region23: #{_lambda_.30} parent=1 // pred_check_branch
      %24 = sbr.rel (0) target = $region25
    $region24: #{_lambda_.30} parent=1 // pred_region
      _
    $region25: #{_lambda_.30} parent=1 // pred_fallthru
      _
    // Predicated region
    $region26: #{_lambda_.30} parent=1 // pred_check
      _
    $region27: #{_lambda_.30} parent=1 // pred_check_branch
      %26 = sbr.rel (0) target = $region29
    $region28: #{_lambda_.30} parent=1 // pred_region
      _
    $region29: #{_lambda_.30} parent=1 // pred_fallthru
      _
    %v28 = vld [vmem:[%s0] sm:$0xff]
    %v29 = vld [vmem:[%s0 + $0x8] sm:$0xff]
    %v30 = vld [vmem:[%s0 + $0x10] sm:$0xff]
    %v31 = vld [vmem:[%s0 + $0x18] sm:$0xff]
    %v32 = vld [vmem:[%s0 + $0x20] sm:$0xff]
    %v33 = vld [vmem:[%s0 + $0x28] sm:$0xff]
    %v34 = vld [vmem:[%s0 + $0x30] sm:$0xff]
    %v35 = vld [vmem:[%s0 + $0x38] sm:$0xff]
    %v36 = vld [vmem:[%s2] sm:$0xf]
    %v37 = vld [vmem:[%s2 + $0x4] sm:$0xf]
    %v38 = vld [vmem:[%s2 + $0x8] sm:$0xf]
    %v39 = vld [vmem:[%s2 + $0xc] sm:$0xf]
    %v40 = vld [vmem:[%s2 + $0x10] sm:$0xf]
    %v41 = vld [vmem:[%s2 + $0x14] sm:$0xf]
    %v42 = vld [vmem:[%s2 + $0x18] sm:$0xf]
    %v43 = vld [vmem:[%s2 + $0x1c] sm:$0xf]
    %v44 = vld [vmem:[%s2 + $0x20] sm:$0xf]
    %v45 = vld [vmem:[%s2 + $0x24] sm:$0xf]
    %v46 = vld [vmem:[%s2 + $0x28] sm:$0xf]
    %v47 = vld [vmem:[%s2 + $0x2c] sm:$0xf]
    %v48 = vld [vmem:[%s2 + $0x30] sm:$0xf]
    %v49 = vld [vmem:[%s2 + $0x34] sm:$0xf]
    %v50 = vld [vmem:[%s2 + $0x38] sm:$0xf]
    %v51 = vld [vmem:[%s2 + $0x3c] sm:$0xf]
    %v52 = vld [vmem:[%s2 + $0x40] sm:$0xf]
    %v53 = vld [vmem:[%s2 + $0x44] sm:$0xf]
    %v54 = vld [vmem:[%s2 + $0x48] sm:$0xf]
    %v55 = vld [vmem:[%s2 + $0x4c] sm:$0xf]
    %v56 = vld [vmem:[%s2 + $0x50] sm:$0xf]
    %v57 = vld [vmem:[%s2 + $0x54] sm:$0xf]
    %v58 = vld [vmem:[%s2 + $0x58] sm:$0xf]
    %v59 = vld [vmem:[%s2 + $0x5c] sm:$0xf]
    %v60 = vld [vmem:[%s2 + $0x60] sm:$0xf]
    %v61 = vld [vmem:[%s2 + $0x64] sm:$0xf]
    %v62 = vld [vmem:[%s2 + $0x68] sm:$0xf]
    %v63 = vld [vmem:[%s2 + $0x6c] sm:$0xf]
    %v64 = vld [vmem:[%s3] sm:$0x1]
    %v66 = vlaneseq
    %v67 = vshrl.u32 %v66, 7
    %v68 = vsub.s32 0, %v67
    %v69 = vrot.slane %v64, %v68
    %v79 = vunpack.c.l.b16 %v28
    %v80 = vunpack.c.h.b16 %v28
    %v81 = vunpack.c.l.b16 %v29
    %v82 = vunpack.c.h.b16 %v29
    %v83 = vunpack.c.l.b16 %v30
    %v84 = vunpack.c.h.b16 %v30
    %v85 = vunpack.c.l.b16 %v31
    %v86 = vunpack.c.h.b16 %v31
    %v87 = vunpack.c.l.b16 %v32
    %v88 = vunpack.c.h.b16 %v32
    %v89 = vunpack.c.l.b16 %v33
    %v90 = vunpack.c.h.b16 %v33
    %v91 = vunpack.c.l.b16 %v34
    %v92 = vunpack.c.h.b16 %v34
    %v93 = vunpack.c.l.b16 %v35
    %v94 = vunpack.c.h.b16 %v35
    %v95 = vpack.c.b16 %v81, %v79
    %v96 = vpack.c.b16 %v82, %v80
    %v97 = vpack.c.b16 %v85, %v83
    %v98 = vpack.c.b16 %v86, %v84
    %v99 = vpack.c.b16 %v89, %v87
    %v100 = vpack.c.b16 %v90, %v88
    %v101 = vpack.c.b16 %v93, %v91
    %v102 = vpack.c.b16 %v94, %v92
    %v135 = vunpack.c.l.b16 %v36
    %v136 = vunpack.c.l.b16 %v37
    %v137 = vunpack.c.l.b16 %v38
    %v138 = vunpack.c.l.b16 %v39
    %v139 = vunpack.c.l.b16 %v40
    %v140 = vunpack.c.l.b16 %v41
    %v141 = vunpack.c.l.b16 %v42
    %v142 = vunpack.c.l.b16 %v43
    %v143 = vunpack.c.l.b16 %v44
    %v144 = vunpack.c.l.b16 %v45
    %v145 = vunpack.c.l.b16 %v46
    %v146 = vunpack.c.l.b16 %v47
    %v147 = vunpack.c.l.b16 %v48
    %v148 = vunpack.c.l.b16 %v49
    %v149 = vunpack.c.l.b16 %v50
    %v150 = vunpack.c.l.b16 %v51
    %v151 = vunpack.c.l.b16 %v52
    %v152 = vunpack.c.l.b16 %v53
    %v153 = vunpack.c.l.b16 %v54
    %v154 = vunpack.c.l.b16 %v55
    %v155 = vunpack.c.l.b16 %v56
    %v156 = vunpack.c.l.b16 %v57
    %v157 = vunpack.c.l.b16 %v58
    %v158 = vunpack.c.l.b16 %v59
    %v159 = vunpack.c.l.b16 %v60
    %v160 = vunpack.c.l.b16 %v61
    %v161 = vunpack.c.l.b16 %v62
    %v162 = vunpack.c.l.b16 %v63
    %v163 = vpack.c.b16 %v136, %v135
    %v164 = vpack.c.b16 %v138, %v137
    %v165 = vpack.c.b16 %v140, %v139
    %v166 = vpack.c.b16 %v142, %v141
    %v167 = vpack.c.b16 %v144, %v143
    %v168 = vpack.c.b16 %v146, %v145
    %v169 = vpack.c.b16 %v148, %v147
    %v170 = vpack.c.b16 %v150, %v149
    %v171 = vpack.c.b16 %v152, %v151
    %v172 = vpack.c.b16 %v154, %v153
    %v173 = vpack.c.b16 %v156, %v155
    %v174 = vpack.c.b16 %v158, %v157
    %v175 = vpack.c.b16 %v160, %v159
    %v176 = vpack.c.b16 %v162, %v161
    %vm191 = vcmask 785408
    %v193 = vsel %vm191, %v96, 0
    %v196 = vsel %vm191, %v98, 0
    %v199 = vsel %vm191, %v100, 0
    %v202 = vsel %vm191, %v102, 0
    %204 = vmatprep.subr.bf16.mxu0 0
    %205 = vmatpush1.bf16.msra.mxu0 %v170
    %206 = vmatprep.subr.bf16.mxu0 0
    %207 = vmatpush1.bf16.msra.mxu0 %v169
    %208 = vmatprep.subr.bf16.mxu0 0
    %209 = vmatpush1.bf16.msra.mxu0 %v168
    %210 = vmatprep.subr.bf16.mxu0 0
    %211 = vmatpush1.bf16.msra.mxu0 %v167
    %212 = vmatprep.subr.bf16.mxu0 0
    %213 = vmatpush1.bf16.msra.mxu0 %v166
    %214 = vmatprep.subr.bf16.mxu0 0
    %215 = vmatpush1.bf16.msra.mxu0 %v165
    %216 = vmatprep.subr.bf16.mxu0 0
    %217 = vmatpush1.bf16.msra.mxu0 %v164
    %218 = vmatprep.subr.bf16.mxu0 0
    %219 = vmatpush1.bf16.msra.mxu0 %v163
    %220 = vmatprep.subr.bf16.mxu0 0
    %221 = vmatpush2.bf16.msra.mxu0 0
    %222 = vmatprep.subr.bf16.mxu0 0
    %223 = vmatpush2.bf16.msra.mxu0 0
    %224 = vmatprep.subr.bf16.mxu0 0
    %225 = vmatpush2.bf16.msra.mxu0 %v176
    %226 = vmatprep.subr.bf16.mxu0 0
    %227 = vmatpush2.bf16.msra.mxu0 %v175
    %228 = vmatprep.subr.bf16.mxu0 0
    %229 = vmatpush2.bf16.msra.mxu0 %v174
    %230 = vmatprep.subr.bf16.mxu0 0
    %231 = vmatpush2.bf16.msra.mxu0 %v173
    %232 = vmatprep.subr.bf16.mxu0 0
    %233 = vmatpush2.bf16.msra.mxu0 %v172
    %234 = vmatprep.subr.bf16.mxu0 0
    %235 = vmatpush2.bf16.msra.mxu0 %v171
    %236 = vmatprep.mubr.bf16.mxu0 %v193
    %237 = vmatmul.mubr.bf16.gmra.mxu0 %v95
    %v238 = vpop.f32.mrf.mxu0
    %v239 = vadd.f32 %v69, %v238
    %v240 = vpop.f32.mrf.mxu0
    %v241 = vpop.f32.mrf.mxu0
    %v242 = vadd.f32 %v69, %v241
    %v243 = vpop.f32.mrf.mxu0
    %244 = vmatprep.mubr.bf16.mxu0 %v196
    %245 = vmatmul.mubr.bf16.gmra.mxu0 %v97
    %v246 = vpop.f32.mrf.mxu0
    %v247 = vadd.f32 %v69, %v246
    %v248 = vpop.f32.mrf.mxu0
    %v249 = vpop.f32.mrf.mxu0
    %v250 = vadd.f32 %v69, %v249
    %v251 = vpop.f32.mrf.mxu0
    %252 = vmatprep.mubr.bf16.mxu0 %v199
    %253 = vmatmul.mubr.bf16.gmra.mxu0 %v99
    %v254 = vpop.f32.mrf.mxu0
    %v255 = vadd.f32 %v69, %v254
    %v256 = vpop.f32.mrf.mxu0
    %v257 = vpop.f32.mrf.mxu0
    %v258 = vadd.f32 %v69, %v257
    %v259 = vpop.f32.mrf.mxu0
    %260 = vmatprep.mubr.bf16.mxu0 %v202
    %261 = vmatmul.mubr.bf16.gmra.mxu0 %v101
    %v262 = vpop.f32.mrf.mxu0
    %v263 = vadd.f32 %v69, %v262
    %v264 = vpop.f32.mrf.mxu0
    %v265 = vpop.f32.mrf.mxu0
    %v266 = vadd.f32 %v69, %v265
    %v267 = vpop.f32.mrf.mxu0
    %268 = vdwg.mxu0
    %v269 = vpack.c.bf16 %v242, %v239
    %v270 = vpack.c.bf16 %v250, %v247
    %v271 = vpack.c.bf16 %v258, %v255
    %v272 = vpack.c.bf16 %v266, %v263
    %v273 = vld [vmem:[%s4] sm:$0xf]
    %v274 = vld [vmem:[%s4 + $0x4] sm:$0xf]
    %v275 = vld [vmem:[%s4 + $0x8] sm:$0xf]
    %v276 = vld [vmem:[%s4 + $0xc] sm:$0xf]
    %v277 = vld [vmem:[%s4 + $0x10] sm:$0xf]
    %v278 = vld [vmem:[%s4 + $0x14] sm:$0xf]
    %v279 = vld [vmem:[%s4 + $0x18] sm:$0xf]
    %v280 = vld [vmem:[%s4 + $0x1c] sm:$0xf]
    %v281 = vld [vmem:[%s4 + $0x20] sm:$0xf]
    %v282 = vld [vmem:[%s4 + $0x24] sm:$0xf]
    %v283 = vld [vmem:[%s4 + $0x28] sm:$0xf]
    %v284 = vld [vmem:[%s4 + $0x2c] sm:$0xf]
    %v297 = vunpack.c.l.b16 %v273
    %v298 = vunpack.c.l.b16 %v274
    %v299 = vunpack.c.l.b16 %v275
    %v300 = vunpack.c.l.b16 %v276
    %v301 = vunpack.c.l.b16 %v277
    %v302 = vunpack.c.l.b16 %v278
    %v303 = vunpack.c.l.b16 %v279
    %v304 = vunpack.c.l.b16 %v280
    %v305 = vunpack.c.l.b16 %v281
    %v306 = vunpack.c.l.b16 %v282
    %v307 = vunpack.c.l.b16 %v283
    %v308 = vunpack.c.l.b16 %v284
    %v309 = vpack.c.b16 %v298, %v297
    %v310 = vpack.c.b16 %v300, %v299
    %v311 = vpack.c.b16 %v302, %v301
    %v312 = vpack.c.b16 %v304, %v303
    %v313 = vpack.c.b16 %v306, %v305
    %v314 = vpack.c.b16 %v308, %v307
    %v322 = vsel %vm191, %v269, 0
    %v325 = vsel %vm191, %v270, 0
    %v328 = vsel %vm191, %v271, 0
    %v331 = vsel %vm191, %v272, 0
    %333 = vmatprep.subr.bf16.mxu0 0
    %334 = vmatpush1.bf16.msra.mxu0 0
    %335 = vmatprep.subr.bf16.mxu0 0
    %336 = vmatpush1.bf16.msra.mxu0 0
    %337 = vmatprep.subr.bf16.mxu0 0
    %338 = vmatpush1.bf16.msra.mxu0 %v314
    %339 = vmatprep.subr.bf16.mxu0 0
    %340 = vmatpush1.bf16.msra.mxu0 %v313
    %341 = vmatprep.subr.bf16.mxu0 0
    %342 = vmatpush1.bf16.msra.mxu0 %v312
    %343 = vmatprep.subr.bf16.mxu0 0
    %344 = vmatpush1.bf16.msra.mxu0 %v311
    %345 = vmatprep.subr.bf16.mxu0 0
    %346 = vmatpush1.bf16.msra.mxu0 %v310
    %347 = vmatprep.subr.bf16.mxu0 0
    %348 = vmatpush1.bf16.msra.mxu0 %v309
    %349 = vmatprep.subr.bf16.mxu0 0
    %350 = vmatpush2.bf16.msra.mxu0 0
    %351 = vmatprep.subr.bf16.mxu0 0
    %352 = vmatpush2.bf16.msra.mxu0 0
    %353 = vmatprep.subr.bf16.mxu0 0
    %354 = vmatpush2.bf16.msra.mxu0 0
    %355 = vmatprep.subr.bf16.mxu0 0
    %356 = vmatpush2.bf16.msra.mxu0 0
    %357 = vmatprep.subr.bf16.mxu0 0
    %358 = vmatpush2.bf16.msra.mxu0 0
    %359 = vmatprep.subr.bf16.mxu0 0
    %360 = vmatpush2.bf16.msra.mxu0 0
    %361 = vmatprep.subr.bf16.mxu0 0
    %362 = vmatpush2.bf16.msra.mxu0 0
    %363 = vmatprep.subr.bf16.mxu0 0
    %364 = vmatpush2.bf16.msra.mxu0 0
    %365 = vmatprep.mubr.bf16.mxu0 0
    %366 = vmatmul.mubr.bf16.gmra.mxu0 %v322
    %v367 = vpop.f32.mrf.mxu0
    %v368 = vadd.f32 0.0, %v367
    %v369 = vpop.f32.mrf.mxu0
    %v370 = vpop.f32.mrf.mxu0
    %v371 = vadd.f32 0.0, %v370
    %v372 = vpop.f32.mrf.mxu0
    %373 = vmatprep.mubr.bf16.mxu0 0
    %374 = vmatmul.mubr.bf16.gmra.mxu0 %v325
    %v375 = vpop.f32.mrf.mxu0
    %v376 = vadd.f32 0.0, %v375
    %v377 = vpop.f32.mrf.mxu0
    %v378 = vpop.f32.mrf.mxu0
    %v379 = vadd.f32 0.0, %v378
    %v380 = vpop.f32.mrf.mxu0
    %381 = vmatprep.mubr.bf16.mxu0 0
    %382 = vmatmul.mubr.bf16.gmra.mxu0 %v328
    %v383 = vpop.f32.mrf.mxu0
    %v384 = vadd.f32 0.0, %v383
    %v385 = vpop.f32.mrf.mxu0
    %v386 = vpop.f32.mrf.mxu0
    %v387 = vadd.f32 0.0, %v386
    %v388 = vpop.f32.mrf.mxu0
    %389 = vmatprep.mubr.bf16.mxu0 0
    %390 = vmatmul.mubr.bf16.gmra.mxu0 %v331
    %v391 = vpop.f32.mrf.mxu0
    %v392 = vadd.f32 0.0, %v391
    %v393 = vpop.f32.mrf.mxu0
    %v394 = vpop.f32.mrf.mxu0
    %v395 = vadd.f32 0.0, %v394
    %v396 = vpop.f32.mrf.mxu0
    %397 = vdwg.mxu0
    %v398 = vmul.f32 %v368, 0.5
    %v399 = vmul.f32 %v371, 0.5
    %v400 = vmul.f32 %v376, 0.5
    %v401 = vmul.f32 %v379, 0.5
    %v402 = vmul.f32 %v384, 0.5
    %v403 = vmul.f32 %v387, 0.5
    %v404 = vmul.f32 %v392, 0.5
    %v405 = vmul.f32 %v395, 0.5
    %v406 = vmul.f32 %v368, 0.044715
    %v407 = vmul.f32 %v371, 0.044715
    %v408 = vmul.f32 %v376, 0.044715
    %v409 = vmul.f32 %v379, 0.044715
    %v410 = vmul.f32 %v384, 0.044715
    %v411 = vmul.f32 %v387, 0.044715
    %v412 = vmul.f32 %v392, 0.044715
    %v413 = vmul.f32 %v395, 0.044715
    %v414 = vmul.f32 %v406, %v368
    %v415 = vmul.f32 %v407, %v371
    %v416 = vmul.f32 %v408, %v376
    %v417 = vmul.f32 %v409, %v379
    %v418 = vmul.f32 %v410, %v384
    %v419 = vmul.f32 %v411, %v387
    %v420 = vmul.f32 %v412, %v392
    %v421 = vmul.f32 %v413, %v395
    %v422 = vmul.f32 %v414, %v368
    %v423 = vmul.f32 %v415, %v371
    %v424 = vmul.f32 %v416, %v376
    %v425 = vmul.f32 %v417, %v379
    %v426 = vmul.f32 %v418, %v384
    %v427 = vmul.f32 %v419, %v387
    %v428 = vmul.f32 %v420, %v392
    %v429 = vmul.f32 %v421, %v395
    %v430 = vadd.f32 %v368, %v422
    %v431 = vadd.f32 %v371, %v423
    %v432 = vadd.f32 %v376, %v424
    %v433 = vadd.f32 %v379, %v425
    %v434 = vadd.f32 %v384, %v426
    %v435 = vadd.f32 %v387, %v427
    %v436 = vadd.f32 %v392, %v428
    %v437 = vadd.f32 %v395, %v429
    %v438 = vmul.f32 %v430, 0.7978846
    %v439 = vmul.f32 %v431, 0.7978846
    %v440 = vmul.f32 %v432, 0.7978846
    %v441 = vmul.f32 %v433, 0.7978846
    %v442 = vmul.f32 %v434, 0.7978846
    %v443 = vmul.f32 %v435, 0.7978846
    %v444 = vmul.f32 %v436, 0.7978846
    %v445 = vmul.f32 %v437, 0.7978846
    %v446 = vtanh.pop %v438
    %v447 = vtanh.pop %v439
    %v448 = vtanh.pop %v440
    %v449 = vtanh.pop %v441
    %v450 = vtanh.pop %v442
    %v451 = vtanh.pop %v443
    %v452 = vtanh.pop %v444
    %v453 = vtanh.pop %v445
    %v454 = vadd.f32 %v446, 1.0
    %v455 = vadd.f32 %v447, 1.0
    %v456 = vadd.f32 %v448, 1.0
    %v457 = vadd.f32 %v449, 1.0
    %v458 = vadd.f32 %v450, 1.0
    %v459 = vadd.f32 %v451, 1.0
    %v460 = vadd.f32 %v452, 1.0
    %v461 = vadd.f32 %v453, 1.0
    %v462 = vmul.f32 %v398, %v454
    %v463 = vmul.f32 %v399, %v455
    %v464 = vmul.f32 %v400, %v456
    %v465 = vmul.f32 %v401, %v457
    %v466 = vmul.f32 %v402, %v458
    %v467 = vmul.f32 %v403, %v459
    %v468 = vmul.f32 %v404, %v460
    %v469 = vmul.f32 %v405, %v461
    %vm470 = vcmask 261120
    %v471 = vsel %vm470, %v462, 0.0
    %472 = vadd.xlane.f32.xlu0 %v471
    %v473 = vpop.xlane.xlu0 %472
    %v474 = vsel %vm470, %v463, 0.0
    %475 = vadd.xlane.f32.xlu0 %v474
    %v476 = vpop.xlane.xlu0 %475
    %v477 = vsel %vm470, %v464, 0.0
    %478 = vadd.xlane.f32.xlu0 %v477
    %v479 = vpop.xlane.xlu0 %478
    %v480 = vsel %vm470, %v465, 0.0
    %481 = vadd.xlane.f32.xlu0 %v480
    %v482 = vpop.xlane.xlu0 %481
    %v483 = vsel %vm470, %v466, 0.0
    %484 = vadd.xlane.f32.xlu0 %v483
    %v485 = vpop.xlane.xlu0 %484
    %v486 = vsel %vm470, %v467, 0.0
    %487 = vadd.xlane.f32.xlu0 %v486
    %v488 = vpop.xlane.xlu0 %487
    %v489 = vsel %vm470, %v468, 0.0
    %490 = vadd.xlane.f32.xlu0 %v489
    %v491 = vpop.xlane.xlu0 %490
    %v492 = vsel %vm470, %v469, 0.0
    %493 = vadd.xlane.f32.xlu0 %v492
    %v494 = vpop.xlane.xlu0 %493
    %v495 = vrcp.pop 32.0
    %v496 = vmul.f32 %v473, %v495
    %v497 = vmul.f32 %v476, %v495
    %v498 = vmul.f32 %v479, %v495
    %v499 = vmul.f32 %v482, %v495
    %v500 = vmul.f32 %v485, %v495
    %v501 = vmul.f32 %v488, %v495
    %v502 = vmul.f32 %v491, %v495
    %v503 = vmul.f32 %v494, %v495
    %v504 = vsub.f32 %v462, %v496
    %v505 = vsub.f32 %v463, %v497
    %v506 = vsub.f32 %v464, %v498
    %v507 = vsub.f32 %v465, %v499
    %v508 = vsub.f32 %v466, %v500
    %v509 = vsub.f32 %v467, %v501
    %v510 = vsub.f32 %v468, %v502
    %v511 = vsub.f32 %v469, %v503
    %v512 = vmul.f32 %v504, %v504
    %v513 = vmul.f32 %v505, %v505
    %v514 = vmul.f32 %v506, %v506
    %v515 = vmul.f32 %v507, %v507
    %v516 = vmul.f32 %v508, %v508
    %v517 = vmul.f32 %v509, %v509
    %v518 = vmul.f32 %v510, %v510
    %v519 = vmul.f32 %v511, %v511
    %v520 = vsel %vm470, %v512, 0.0
    %521 = vadd.xlane.f32.xlu0 %v520
    %v522 = vpop.xlane.xlu0 %521
    %v523 = vsel %vm470, %v513, 0.0
    %524 = vadd.xlane.f32.xlu0 %v523
    %v525 = vpop.xlane.xlu0 %524
    %v526 = vsel %vm470, %v514, 0.0
    %527 = vadd.xlane.f32.xlu0 %v526
    %v528 = vpop.xlane.xlu0 %527
    %v529 = vsel %vm470, %v515, 0.0
    %530 = vadd.xlane.f32.xlu0 %v529
    %v531 = vpop.xlane.xlu0 %530
    %v532 = vsel %vm470, %v516, 0.0
    %533 = vadd.xlane.f32.xlu0 %v532
    %v534 = vpop.xlane.xlu0 %533
    %v535 = vsel %vm470, %v517, 0.0
    %536 = vadd.xlane.f32.xlu0 %v535
    %v537 = vpop.xlane.xlu0 %536
    %v538 = vsel %vm470, %v518, 0.0
    %539 = vadd.xlane.f32.xlu0 %v538
    %v540 = vpop.xlane.xlu0 %539
    %v541 = vsel %vm470, %v519, 0.0
    %542 = vadd.xlane.f32.xlu0 %v541
    %v543 = vpop.xlane.xlu0 %542
    %v544 = vmul.f32 %v522, %v495
    %v545 = vmul.f32 %v525, %v495
    %v546 = vmul.f32 %v528, %v495
    %v547 = vmul.f32 %v531, %v495
    %v548 = vmul.f32 %v534, %v495
    %v549 = vmul.f32 %v537, %v495
    %v550 = vmul.f32 %v540, %v495
    %v551 = vmul.f32 %v543, %v495
    %v552 = vadd.f32 %v544, 1e-05
    %v553 = vadd.f32 %v545, 1e-05
    %v554 = vadd.f32 %v546, 1e-05
    %v555 = vadd.f32 %v547, 1e-05
    %v556 = vadd.f32 %v548, 1e-05
    %v557 = vadd.f32 %v549, 1e-05
    %v558 = vadd.f32 %v550, 1e-05
    %v559 = vadd.f32 %v551, 1e-05
    %v560 = vrsqrt.pop %v552
    %v561 = vrsqrt.pop %v553
    %v562 = vrsqrt.pop %v554
    %v563 = vrsqrt.pop %v555
    %v564 = vrsqrt.pop %v556
    %v565 = vrsqrt.pop %v557
    %v566 = vrsqrt.pop %v558
    %v567 = vrsqrt.pop %v559
    %v568 = vmul.f32 %v504, %v560
    %v569 = vmul.f32 %v505, %v561
    %v570 = vmul.f32 %v506, %v562
    %v571 = vmul.f32 %v507, %v563
    %v572 = vmul.f32 %v508, %v564
    %v573 = vmul.f32 %v509, %v565
    %v574 = vmul.f32 %v510, %v566
    %v575 = vmul.f32 %v511, %v567
    %v576 = vld [vmem:[%s5] sm:$0x1]
    %v578 = vlaneseq
    %v579 = vshrl.u32 %v578, 7
    %v580 = vsub.s32 0, %v579
    %v581 = vrot.slane %v576, %v580
    %v583 = vmul.f32 %v568, %v581
    %v584 = vmul.f32 %v569, %v581
    %v585 = vmul.f32 %v570, %v581
    %v586 = vmul.f32 %v571, %v581
    %v587 = vmul.f32 %v572, %v581
    %v588 = vmul.f32 %v573, %v581
    %v589 = vmul.f32 %v574, %v581
    %v590 = vmul.f32 %v575, %v581
    %v591 = vld [vmem:[%s6] sm:$0x1]
    %v593 = vlaneseq
    %v594 = vshrl.u32 %v593, 7
    %v595 = vsub.s32 0, %v594
    %v596 = vrot.slane %v591, %v595
    %v598 = vadd.f32 %v583, %v596
    %v599 = vadd.f32 %v584, %v596
    %v600 = vadd.f32 %v585, %v596
    %v601 = vadd.f32 %v586, %v596
    %v602 = vadd.f32 %v587, %v596
    %v603 = vadd.f32 %v588, %v596
    %v604 = vadd.f32 %v589, %v596
    %v605 = vadd.f32 %v590, %v596
    %v606 = vld [vmem:[%s1] sm:$0xff]
    %v607 = vld [vmem:[%s1 + $0x8] sm:$0xff]
    %v608 = vld [vmem:[%s1 + $0x10] sm:$0xff]
    %v609 = vld [vmem:[%s1 + $0x18] sm:$0xff]
    %v610 = vld [vmem:[%s1 + $0x20] sm:$0xff]
    %v611 = vld [vmem:[%s1 + $0x28] sm:$0xff]
    %v612 = vld [vmem:[%s1 + $0x30] sm:$0xff]
    %v613 = vld [vmem:[%s1 + $0x38] sm:$0xff]
    %v614 = vadd.f32 %v598, %v606
    %v615 = vadd.f32 %v599, %v607
    %v616 = vadd.f32 %v600, %v608
    %v617 = vadd.f32 %v601, %v609
    %v618 = vadd.f32 %v602, %v610
    %v619 = vadd.f32 %v603, %v611
    %v620 = vadd.f32 %v604, %v612
    %v621 = vadd.f32 %v605, %v613
    %622 = vst.msk [vmem:[#allocation2] sm:$0xff] %vm470, %v614
    %623 = vst.msk [vmem:[#allocation2 + $0x8] sm:$0xff] %vm470, %v615
    %624 = vst.msk [vmem:[#allocation2 + $0x10] sm:$0xff] %vm470, %v616
    %625 = vst.msk [vmem:[#allocation2 + $0x18] sm:$0xff] %vm470, %v617
    %626 = vst.msk [vmem:[#allocation2 + $0x20] sm:$0xff] %vm470, %v618
    %627 = vst.msk [vmem:[#allocation2 + $0x28] sm:$0xff] %vm470, %v619
    %628 = vst.msk [vmem:[#allocation2 + $0x30] sm:$0xff] %vm470, %v620
    %629 = vst.msk [vmem:[#allocation2 + $0x38] sm:$0xff] %vm470, %v621
    // Predicated region
    $region30: #{_lambda_.30} parent=1 // pred_check
      _
    $region31: #{_lambda_.30} parent=1 // pred_check_branch
      %631 = sbr.rel (0) target = $region33
    $region32: #{_lambda_.30} parent=1 // pred_region
      %s633 = ssub.s32 1024, 1024
      %634 = vsyncadd [#allocation3], %s633
      %s635 = sshll.u32 [#allocation2], 4
      %s636 = int_to_ptr.vmem [resolvable:$true] %s635
      %641 = dma.vmem_to_hbm [thread:$0]  %s636, 1024, %s7, [#allocation3], 128, 128, 8
    $region33: #{_lambda_.30} parent=1 // pred_fallthru
      _
    // Predicated region
    $region34: #{_lambda_.30} parent=1 // pred_check
      _
    $region35: #{_lambda_.30} parent=1 // pred_check_branch
      %643 = sbr.rel (0) target = $region37
    $region36: #{_lambda_.30} parent=1 // pred_region
      %644 = dma.done [#allocation3], 1024
    $region37: #{_lambda_.30} parent=1 // pred_fallthru
      _
    %645 = vsyncpa [#allocation3], 1

// kernel: _lambda_.19
$region0: #{_lambda_.19}
  #allocation0 [shape = 'u32[]', space=smem, size = 0x4, offset = 0x4, fixed_abs, tag = 'smem constant byte address 0x4 - core index']
  #allocation1 [shape = 'u32[144,128]{1,0:T(1,128)}', space=vmem, size = 0x12000, scoped, tag = 'internal scratch']
  %s0 = inlined_call_operand.vmem [shape: bf16[8,12], index: 0, kind: input, shape index: {}]
  %s1 = inlined_call_operand.vmem [shape: bf16[12,96], index: 1, kind: input, shape index: {}]
  %s2 = inlined_call_operand.vmem [shape: f32[1,96], index: 2, kind: input, shape index: {}, may-alias: {2,4}]
  %s3 = inlined_call_operand.vmem [shape: f32[1,96], index: 3, kind: input, shape index: {}]
  %s4 = inlined_call_operand.vmem [shape: f32[1,96], index: 4, kind: input, shape index: {}, may-alias: {2,4}]
  %s5 = inlined_call_operand.vmem [shape: f32[8,96], index: 5, kind: output, shape index: {}]
  %s6 = sld [smem:[#allocation0]]
  $region30: #{_lambda_.19} parent=0
    _
  %s8 = ssub.s32 1, %s6
  %s9 = scalar_select 0, %s8, %s6
  // Predicated region
  $region2: #{_lambda_.19} parent=0 // pred_check
    _
  $region3: #{_lambda_.19} parent=0 // pred_check_branch
    %11 = sbr.rel (0) target = $region5
  $region4: #{_lambda_.19} parent=0 // pred_region
    _
  $region5: #{_lambda_.19} parent=0 // pred_fallthru
    _
  // Predicated region
  $region6: #{_lambda_.19} parent=0 // pred_check
    _
  $region7: #{_lambda_.19} parent=0 // pred_check_branch
    %13 = sbr.rel (0) target = $region9
  $region8: #{_lambda_.19} parent=0 // pred_region
    _
  $region9: #{_lambda_.19} parent=0 // pred_fallthru
    _
  // Predicated region
  $region10: #{_lambda_.19} parent=0 // pred_check
    _
  $region11: #{_lambda_.19} parent=0 // pred_check_branch
    %15 = sbr.rel (0) target = $region13
  $region12: #{_lambda_.19} parent=0 // pred_region
    _
  $region13: #{_lambda_.19} parent=0 // pred_fallthru
    _
  // Predicated region
  $region14: #{_lambda_.19} parent=0 // pred_check
    _
  $region15: #{_lambda_.19} parent=0 // pred_check_branch
    %17 = sbr.rel (0) target = $region17
  $region16: #{_lambda_.19} parent=0 // pred_region
    _
  $region17: #{_lambda_.19} parent=0 // pred_fallthru
    _
  // Predicated region
  $region18: #{_lambda_.19} parent=0 // pred_check
    _
  $region19: #{_lambda_.19} parent=0 // pred_check_branch
    %19 = sbr.rel (0) target = $region21
  $region20: #{_lambda_.19} parent=0 // pred_region
    _
  $region21: #{_lambda_.19} parent=0 // pred_fallthru
    _
  %v21 = vld [vmem:[%s0] sm:$0xf]
  %v22 = vld [vmem:[%s1] sm:$0xf]
  %v23 = vld [vmem:[%s1 + $0x4] sm:$0x3]
  %v24 = vld [vmem:[%s2] sm:$0x1]
  %v26 = vlaneseq
  %v27 = vshrl.u32 %v26, 7
  %v28 = vsub.s32 0, %v27
  %v29 = vrot.slane %v24, %v28
  %v33 = vunpack.c.l.b16 %v22
  %v34 = vunpack.c.l.b16 %v23
  %v35 = vpack.c.b16 %v34, %v33
  %vm36 = vcmask 97280
  %v38 = vsel %vm36, %v21, 0
  %vm40 = vcmask 1045504
  %v42 = vsel %vm40, %v35, 0
  %44 = vmatprep.subr.bf16.mxu0 0
  %45 = vmatpush1.bf16.msra.mxu0 0
  %46 = vmatprep.subr.bf16.mxu0 0
  %47 = vmatpush1.bf16.msra.mxu0 0
  %48 = vmatprep.subr.bf16.mxu0 0
  %49 = vmatpush1.bf16.msra.mxu0 0
  %50 = vmatprep.subr.bf16.mxu0 0
  %51 = vmatpush1.bf16.msra.mxu0 0
  %52 = vmatprep.subr.bf16.mxu0 0
  %53 = vmatpush1.bf16.msra.mxu0 0
  %54 = vmatprep.subr.bf16.mxu0 0
  %55 = vmatpush1.bf16.msra.mxu0 0
  %56 = vmatprep.subr.bf16.mxu0 0
  %57 = vmatpush1.bf16.msra.mxu0 0
  %58 = vmatprep.subr.bf16.mxu0 0
  %59 = vmatpush1.bf16.msra.mxu0 %v42
  %60 = vmatprep.subr.bf16.mxu0 0
  %61 = vmatpush2.bf16.msra.mxu0 0
  %62 = vmatprep.subr.bf16.mxu0 0
  %63 = vmatpush2.bf16.msra.mxu0 0
  %64 = vmatprep.subr.bf16.mxu0 0
  %65 = vmatpush2.bf16.msra.mxu0 0
  %66 = vmatprep.subr.bf16.mxu0 0
  %67 = vmatpush2.bf16.msra.mxu0 0
  %68 = vmatprep.subr.bf16.mxu0 0
  %69 = vmatpush2.bf16.msra.mxu0 0
  %70 = vmatprep.subr.bf16.mxu0 0
  %71 = vmatpush2.bf16.msra.mxu0 0
  %72 = vmatprep.subr.bf16.mxu0 0
  %73 = vmatpush2.bf16.msra.mxu0 0
  %74 = vmatprep.subr.bf16.mxu0 0
  %75 = vmatpush2.bf16.msra.mxu0 0
  %76 = vmatprep.mubr.bf16.mxu0 0
  %77 = vmatmul.mubr.bf16.gmra.mxu0 %v38
  %v78 = vpop.f32.mrf.mxu0
  %v79 = vadd.f32 %v29, %v78
  %v80 = vpop.f32.mrf.mxu0
  %v81 = vpop.f32.mrf.mxu0
  %v82 = vpop.f32.mrf.mxu0
  %83 = vdwg.mxu0
  %vm84 = vcmask 785408
  %v85 = vsel %vm84, %v79, 0.0
  %86 = vadd.xlane.f32.xlu0 %v85
  %v87 = vpop.xlane.xlu0 %86
  %v88 = vrcp.pop 96.0
  %v89 = vmul.f32 %v87, %v88
  %v90 = vsub.f32 %v79, %v89
  %v91 = vmul.f32 %v90, %v90
  %v92 = vsel %vm84, %v91, 0.0
  %93 = vadd.xlane.f32.xlu0 %v92
  %v94 = vpop.xlane.xlu0 %93
  %v95 = vmul.f32 %v94, %v88
  %v96 = vadd.f32 %v95, 1e-05
  %v97 = vrsqrt.pop %v96
  %v98 = vmul.f32 %v90, %v97
  %v99 = vld [vmem:[%s3] sm:$0x1]
  %v101 = vlaneseq
  %v102 = vshrl.u32 %v101, 7
  %v103 = vsub.s32 0, %v102
  %v104 = vrot.slane %v99, %v103
  %v106 = vmul.f32 %v98, %v104
  %v107 = vld [vmem:[%s4] sm:$0x1]
  %v109 = vlaneseq
  %v110 = vshrl.u32 %v109, 7
  %v111 = vsub.s32 0, %v110
  %v112 = vrot.slane %v107, %v111
  %v114 = vadd.f32 %v106, %v112
  %115 = vst.msk [vmem:[%s5] sm:$0xff] %vm84, %v114
  // Predicated region
  $region22: #{_lambda_.19} parent=0 // pred_check
    _
  $region23: #{_lambda_.19} parent=0 // pred_check_branch
    %117 = sbr.rel (0) target = $region25
  $region24: #{_lambda_.19} parent=0 // pred_region
    _
  $region25: #{_lambda_.19} parent=0 // pred_fallthru
    _
  // Predicated region
  $region26: #{_lambda_.19} parent=0 // pred_check
    _
  $region27: #{_lambda_.19} parent=0 // pred_check_branch
    %119 = sbr.rel (0) target = $region29
  $region28: #{_lambda_.19} parent=0 // pred_region
    _
  $region29: #{_lambda_.19} parent=0 // pred_fallthru
    _

// kernel: _lambda_.22
$region0: #{_lambda_.22}
  #allocation0 [shape = 'u32[]', space=smem, size = 0x4, offset = 0x4, fixed_abs, tag = 'smem constant byte address 0x4 - core index']
  #allocation1 [shape = 'u32[144,128]{1,0:T(1,128)}', space=vmem, size = 0x12000, scoped, tag = 'internal scratch']
  %s0 = inlined_call_operand.vmem [shape: bf16[8,96], index: 0, kind: input, shape index: {}]
  %s1 = inlined_call_operand.vmem [shape: bf16[96,192], index: 1, kind: input, shape index: {}]
  %s2 = inlined_call_operand.vmem [shape: f32[1,192], index: 2, kind: input, shape index: {}]
  %s3 = inlined_call_operand.vmem [shape: f32[8,192], index: 3, kind: output, shape index: {}]
  %s4 = sld [smem:[#allocation0]]
  $region22: #{_lambda_.22} parent=0
    _
  %s6 = ssub.s32 1, %s4
  %s7 = scalar_select 0, %s6, %s4
  // Predicated region
  $region2: #{_lambda_.22} parent=0 // pred_check
    _
  $region3: #{_lambda_.22} parent=0 // pred_check_branch
    %9 = sbr.rel (0) target = $region5
  $region4: #{_lambda_.22} parent=0 // pred_region
    _
  $region5: #{_lambda_.22} parent=0 // pred_fallthru
    _
  // Predicated region
  $region6: #{_lambda_.22} parent=0 // pred_check
    _
  $region7: #{_lambda_.22} parent=0 // pred_check_branch
    %11 = sbr.rel (0) target = $region9
  $region8: #{_lambda_.22} parent=0 // pred_region
    _
  $region9: #{_lambda_.22} parent=0 // pred_fallthru
    _
  // Predicated region
  $region10: #{_lambda_.22} parent=0 // pred_check
    _
  $region11: #{_lambda_.22} parent=0 // pred_check_branch
    %13 = sbr.rel (0) target = $region13
  $region12: #{_lambda_.22} parent=0 // pred_region
    _
  $region13: #{_lambda_.22} parent=0 // pred_fallthru
    _
  %v15 = vld [vmem:[%s0] sm:$0xf]
  %v16 = vld [vmem:[%s1] sm:$0xff]
  %v17 = vld [vmem:[%s1 + $0x8] sm:$0xff]
  %v18 = vld [vmem:[%s1 + $0x10] sm:$0xff]
  %v19 = vld [vmem:[%s1 + $0x18] sm:$0xff]
  %v20 = vld [vmem:[%s1 + $0x20] sm:$0xff]
  %v21 = vld [vmem:[%s1 + $0x28] sm:$0xff]
  %v22 = vld [vmem:[%s1 + $0x30] sm:$0xff]
  %v23 = vld [vmem:[%s1 + $0x38] sm:$0xff]
  %v24 = vld [vmem:[%s1 + $0x40] sm:$0xff]
  %v25 = vld [vmem:[%s1 + $0x48] sm:$0xff]
  %v26 = vld [vmem:[%s1 + $0x50] sm:$0xff]
  %v27 = vld [vmem:[%s1 + $0x58] sm:$0xff]
  %v28 = vld [vmem:[%s2] sm:$0x3]
  %v30 = vlaneseq
  %v31 = vshrl.u32 %v30, 7
  %v32 = vsub.s32 0, %v31
  %v33 = vrot.slane %v28, %v32
  %v34 = vlaneseq
  %v35 = vshrl.u32 %v34, 7
  %v36 = vsub.s32 1, %v35
  %v37 = vrot.slane %v28, %v36
  %v52 = vunpack.c.l.b16 %v16
  %v53 = vunpack.c.h.b16 %v16
  %v54 = vunpack.c.l.b16 %v17
  %v55 = vunpack.c.h.b16 %v17
  %v56 = vunpack.c.l.b16 %v18
  %v57 = vunpack.c.h.b16 %v18
  %v58 = vunpack.c.l.b16 %v19
  %v59 = vunpack.c.h.b16 %v19
  %v60 = vunpack.c.l.b16 %v20
  %v61 = vunpack.c.h.b16 %v20
  %v62 = vunpack.c.l.b16 %v21
  %v63 = vunpack.c.h.b16 %v21
  %v64 = vunpack.c.l.b16 %v22
  %v65 = vunpack.c.h.b16 %v22
  %v66 = vunpack.c.l.b16 %v23
  %v67 = vunpack.c.h.b16 %v23
  %v68 = vunpack.c.l.b16 %v24
  %v69 = vunpack.c.h.b16 %v24
  %v70 = vunpack.c.l.b16 %v25
  %v71 = vunpack.c.h.b16 %v25
  %v72 = vunpack.c.l.b16 %v26
  %v73 = vunpack.c.h.b16 %v26
  %v74 = vunpack.c.l.b16 %v27
  %v75 = vunpack.c.h.b16 %v27
  %v76 = vpack.c.b16 %v54, %v52
  %v77 = vpack.c.b16 %v55, %v53
  %v78 = vpack.c.b16 %v58, %v56
  %v79 = vpack.c.b16 %v59, %v57
  %v80 = vpack.c.b16 %v62, %v60
  %v81 = vpack.c.b16 %v63, %v61
  %v82 = vpack.c.b16 %v66, %v64
  %v83 = vpack.c.b16 %v67, %v65
  %v84 = vpack.c.b16 %v70, %v68
  %v85 = vpack.c.b16 %v71, %v69
  %v86 = vpack.c.b16 %v74, %v72
  %v87 = vpack.c.b16 %v75, %v73
  %vm100 = vcmask 785408
  %v102 = vsel %vm100, %v15, 0
  %104 = vmatprep.subr.bf16.mxu0 0
  %105 = vmatpush1.bf16.msra.mxu0 0
  %106 = vmatprep.subr.bf16.mxu0 0
  %107 = vmatpush1.bf16.msra.mxu0 0
  %108 = vmatprep.subr.bf16.mxu0 %v87
  %109 = vmatpush1.bf16.msra.mxu0 %v86
  %110 = vmatprep.subr.bf16.mxu0 %v85
  %111 = vmatpush1.bf16.msra.mxu0 %v84
  %112 = vmatprep.subr.bf16.mxu0 %v83
  %113 = vmatpush1.bf16.msra.mxu0 %v82
  %114 = vmatprep.subr.bf16.mxu0 %v81
  %115 = vmatpush1.bf16.msra.mxu0 %v80
  %116 = vmatprep.subr.bf16.mxu0 %v79
  %117 = vmatpush1.bf16.msra.mxu0 %v78
  %118 = vmatprep.subr.bf16.mxu0 %v77
  %119 = vmatpush1.bf16.msra.mxu0 %v76
  %120 = vmatprep.subr.bf16.mxu0 0
  %121 = vmatpush2.bf16.msra.mxu0 0
  %122 = vmatprep.subr.bf16.mxu0 0
  %123 = vmatpush2.bf16.msra.mxu0 0
  %124 = vmatprep.subr.bf16.mxu0 0
  %125 = vmatpush2.bf16.msra.mxu0 0
  %126 = vmatprep.subr.bf16.mxu0 0
  %127 = vmatpush2.bf16.msra.mxu0 0
  %128 = vmatprep.subr.bf16.mxu0 0
  %129 = vmatpush2.bf16.msra.mxu0 0
  %130 = vmatprep.subr.bf16.mxu0 0
  %131 = vmatpush2.bf16.msra.mxu0 0
  %132 = vmatprep.subr.bf16.mxu0 0
  %133 = vmatpush2.bf16.msra.mxu0 0
  %134 = vmatprep.subr.bf16.mxu0 0
  %135 = vmatpush2.bf16.msra.mxu0 0
  %136 = vmatprep.mubr.bf16.mxu0 0
  %137 = vmatmul.mubr.bf16.gmra.mxu0 %v102
  %v138 = vpop.f32.mrf.mxu0
  %v139 = vadd.f32 %v33, %v138
  %v140 = vpop.f32.mrf.mxu0
  %v141 = vadd.f32 %v37, %v140
  %v142 = vpop.f32.mrf.mxu0
  %v143 = vpop.f32.mrf.mxu0
  %144 = vdwg.mxu0
  %145 = vst [vmem:[%s3] sm:$0xff] %v139
  %vm146 = vcmask 523264
  %147 = vst.msk [vmem:[%s3 + $0x8] sm:$0xff] %vm146, %v141
  // Predicated region
  $region14: #{_lambda_.22} parent=0 // pred_check
    _
  $region15: #{_lambda_.22} parent=0 // pred_check_branch
    %149 = sbr.rel (0) target = $region17
  $region16: #{_lambda_.22} parent=0 // pred_region
    _
  $region17: #{_lambda_.22} parent=0 // pred_fallthru
    _
  // Predicated region
  $region18: #{_lambda_.22} parent=0 // pred_check
    _
  $region19: #{_lambda_.22} parent=0 // pred_check_branch
    %151 = sbr.rel (0) target = $region21
  $region20: #{_lambda_.22} parent=0 // pred_region
    _
  $region21: #{_lambda_.22} parent=0 // pred_fallthru
    _

// kernel: _lambda_.28
$region0: #{_lambda_.28}
  #allocation0 [shape = 'u32[]', space=smem, size = 0x4, offset = 0x4, fixed_abs, tag = 'smem constant byte address 0x4 - core index']
  #allocation1 [shape = 'u32[144,128]{1,0:T(1,128)}', space=vmem, size = 0x12000, scoped, tag = 'internal scratch']
  %s0 = inlined_call_operand.vmem [shape: bf16[16,192], index: 0, kind: input, shape index: {}]
  %s1 = inlined_call_operand.vmem [shape: bf16[192,64], index: 1, kind: input, shape index: {}]
  %s2 = inlined_call_operand.vmem [shape: f32[1,64], index: 2, kind: input, shape index: {}]
  %s3 = inlined_call_operand.vmem [shape: f32[16,64], index: 3, kind: output, shape index: {}]
  %s4 = sld [smem:[#allocation0]]
  $region22: #{_lambda_.28} parent=0
    _
  %s6 = ssub.s32 1, %s4
  %s7 = scalar_select 0, %s6, %s4
  // Predicated region
  $region2: #{_lambda_.28} parent=0 // pred_check
    _
  $region3: #{_lambda_.28} parent=0 // pred_check_branch
    %9 = sbr.rel (0) target = $region5
  $region4: #{_lambda_.28} parent=0 // pred_region
    _
  $region5: #{_lambda_.28} parent=0 // pred_fallthru
    _
  // Predicated region
  $region6: #{_lambda_.28} parent=0 // pred_check
    _
  $region7: #{_lambda_.28} parent=0 // pred_check_branch
    %11 = sbr.rel (0) target = $region9
  $region8: #{_lambda_.28} parent=0 // pred_region
    _
  $region9: #{_lambda_.28} parent=0 // pred_fallthru
    _
  // Predicated region
  $region10: #{_lambda_.28} parent=0 // pred_check
    _
  $region11: #{_lambda_.28} parent=0 // pred_check_branch
    %13 = sbr.rel (0) target = $region13
  $region12: #{_lambda_.28} parent=0 // pred_region
    _
  $region13: #{_lambda_.28} parent=0 // pred_fallthru
    _
  %v15 = vld [vmem:[%s0] sm:$0xff]
  %v16 = vld [vmem:[%s0 + $0x8] sm:$0xff]
  %v17 = vld [vmem:[%s1] sm:$0xf]
  %v18 = vld [vmem:[%s1 + $0x4] sm:$0xf]
  %v19 = vld [vmem:[%s1 + $0x8] sm:$0xf]
  %v20 = vld [vmem:[%s1 + $0xc] sm:$0xf]
  %v21 = vld [vmem:[%s1 + $0x10] sm:$0xf]
  %v22 = vld [vmem:[%s1 + $0x14] sm:$0xf]
  %v23 = vld [vmem:[%s1 + $0x18] sm:$0xf]
  %v24 = vld [vmem:[%s1 + $0x1c] sm:$0xf]
  %v25 = vld [vmem:[%s1 + $0x20] sm:$0xf]
  %v26 = vld [vmem:[%s1 + $0x24] sm:$0xf]
  %v27 = vld [vmem:[%s1 + $0x28] sm:$0xf]
  %v28 = vld [vmem:[%s1 + $0x2c] sm:$0xf]
  %v29 = vld [vmem:[%s1 + $0x30] sm:$0xf]
  %v30 = vld [vmem:[%s1 + $0x34] sm:$0xf]
  %v31 = vld [vmem:[%s1 + $0x38] sm:$0xf]
  %v32 = vld [vmem:[%s1 + $0x3c] sm:$0xf]
  %v33 = vld [vmem:[%s1 + $0x40] sm:$0xf]
  %v34 = vld [vmem:[%s1 + $0x44] sm:$0xf]
  %v35 = vld [vmem:[%s1 + $0x48] sm:$0xf]
  %v36 = vld [vmem:[%s1 + $0x4c] sm:$0xf]
  %v37 = vld [vmem:[%s1 + $0x50] sm:$0xf]
  %v38 = vld [vmem:[%s1 + $0x54] sm:$0xf]
  %v39 = vld [vmem:[%s1 + $0x58] sm:$0xf]
  %v40 = vld [vmem:[%s1 + $0x5c] sm:$0xf]
  %v41 = vld [vmem:[%s2] sm:$0x1]
  %v43 = vlaneseq
  %v44 = vshrl.u32 %v43, 7
  %v45 = vsub.s32 0, %v44
  %v46 = vrot.slane %v41, %v45
  %v50 = vunpack.c.l.b16 %v15
  %v51 = vunpack.c.h.b16 %v15
  %v52 = vunpack.c.l.b16 %v16
  %v53 = vunpack.c.h.b16 %v16
  %v54 = vpack.c.b16 %v52, %v50
  %v55 = vpack.c.b16 %v53, %v51
  %v81 = vunpack.c.l.b16 %v17
  %v82 = vunpack.c.l.b16 %v18
  %v83 = vunpack.c.l.b16 %v19
  %v84 = vunpack.c.l.b16 %v20
  %v85 = vunpack.c.l.b16 %v21
  %v86 = vunpack.c.l.b16 %v22
  %v87 = vunpack.c.l.b16 %v23
  %v88 = vunpack.c.l.b16 %v24
  %v89 = vunpack.c.l.b16 %v25
  %v90 = vunpack.c.l.b16 %v26
  %v91 = vunpack.c.l.b16 %v27
  %v92 = vunpack.c.l.b16 %v28
  %v93 = vunpack.c.l.b16 %v29
  %v94 = vunpack.c.l.b16 %v30
  %v95 = vunpack.c.l.b16 %v31
  %v96 = vunpack.c.l.b16 %v32
  %v97 = vunpack.c.l.b16 %v33
  %v98 = vunpack.c.l.b16 %v34
  %v99 = vunpack.c.l.b16 %v35
  %v100 = vunpack.c.l.b16 %v36
  %v101 = vunpack.c.l.b16 %v37
  %v102 = vunpack.c.l.b16 %v38
  %v103 = vunpack.c.l.b16 %v39
  %v104 = vunpack.c.l.b16 %v40
  %v105 = vpack.c.b16 %v82, %v81
  %v106 = vpack.c.b16 %v84, %v83
  %v107 = vpack.c.b16 %v86, %v85
  %v108 = vpack.c.b16 %v88, %v87
  %v109 = vpack.c.b16 %v90, %v89
  %v110 = vpack.c.b16 %v92, %v91
  %v111 = vpack.c.b16 %v94, %v93
  %v112 = vpack.c.b16 %v96, %v95
  %v113 = vpack.c.b16 %v98, %v97
  %v114 = vpack.c.b16 %v100, %v99
  %v115 = vpack.c.b16 %v102, %v101
  %v116 = vpack.c.b16 %v104, %v103
  %vm129 = vcmask 523264
  %v131 = vsel %vm129, %v55, 0
  %133 = vmatprep.subr.bf16.mxu0 0
  %134 = vmatpush1.bf16.msra.mxu0 %v112
  %135 = vmatprep.subr.bf16.mxu0 0
  %136 = vmatpush1.bf16.msra.mxu0 %v111
  %137 = vmatprep.subr.bf16.mxu0 0
  %138 = vmatpush1.bf16.msra.mxu0 %v110
  %139 = vmatprep.subr.bf16.mxu0 0
  %140 = vmatpush1.bf16.msra.mxu0 %v109
  %141 = vmatprep.subr.bf16.mxu0 0
  %142 = vmatpush1.bf16.msra.mxu0 %v108
  %143 = vmatprep.subr.bf16.mxu0 0
  %144 = vmatpush1.bf16.msra.mxu0 %v107
  %145 = vmatprep.subr.bf16.mxu0 0
  %146 = vmatpush1.bf16.msra.mxu0 %v106
  %147 = vmatprep.subr.bf16.mxu0 0
  %148 = vmatpush1.bf16.msra.mxu0 %v105
  %149 = vmatprep.subr.bf16.mxu0 0
  %150 = vmatpush2.bf16.msra.mxu0 0
  %151 = vmatprep.subr.bf16.mxu0 0
  %152 = vmatpush2.bf16.msra.mxu0 0
  %153 = vmatprep.subr.bf16.mxu0 0
  %154 = vmatpush2.bf16.msra.mxu0 0
  %155 = vmatprep.subr.bf16.mxu0 0
  %156 = vmatpush2.bf16.msra.mxu0 0
  %157 = vmatprep.subr.bf16.mxu0 0
  %158 = vmatpush2.bf16.msra.mxu0 %v116
  %159 = vmatprep.subr.bf16.mxu0 0
  %160 = vmatpush2.bf16.msra.mxu0 %v115
  %161 = vmatprep.subr.bf16.mxu0 0
  %162 = vmatpush2.bf16.msra.mxu0 %v114
  %163 = vmatprep.subr.bf16.mxu0 0
  %164 = vmatpush2.bf16.msra.mxu0 %v113
  %165 = vmatprep.mubr.bf16.mxu0 %v131
  %166 = vmatmul.mubr.bf16.gmra.mxu0 %v54
  %v167 = vpop.f32.mrf.mxu0
  %v168 = vadd.f32 %v46, %v167
  %v169 = vpop.f32.mrf.mxu0
  %v170 = vpop.f32.mrf.mxu0
  %v171 = vadd.f32 %v46, %v170
  %v172 = vpop.f32.mrf.mxu0
  %173 = vdwg.mxu0
  %174 = vst.msk [vmem:[%s3] sm:$0xff] %vm129, %v168
  %175 = vst.msk [vmem:[%s3 + $0x8] sm:$0xff] %vm129, %v171
  // Predicated region
  $region14: #{_lambda_.28} parent=0 // pred_check
    _
  $region15: #{_lambda_.28} parent=0 // pred_check_branch
    %177 = sbr.rel (0) target = $region17
  $region16: #{_lambda_.28} parent=0 // pred_region
    _
  $region17: #{_lambda_.28} parent=0 // pred_fallthru
    _
  // Predicated region
  $region18: #{_lambda_.28} parent=0 // pred_check
    _
  $region19: #{_lambda_.28} parent=0 // pred_check_branch
    %179 = sbr.rel (0) target = $region21
  $region20: #{_lambda_.28} parent=0 // pred_region
    _
  $region21: #{_lambda_.28} parent=0 // pred_fallthru
    _

// kernel: _lambda_.31
$region0: #{_lambda_.31}
  #allocation0 [shape = 'u32[]', space=smem, size = 0x4, offset = 0x4, fixed_abs, tag = 'smem constant byte address 0x4 - core index']
  #allocation1 [shape = 'u32[144,128]{1,0:T(1,128)}', space=vmem, size = 0x12000, scoped, tag = 'internal scratch']
  %s0 = inlined_call_operand.vmem [shape: bf16[16,448], index: 0, kind: input, shape index: {}]
  %s1 = inlined_call_operand.vmem [shape: f32[16,64], index: 1, kind: input, shape index: {}]
  %s2 = inlined_call_operand.vmem [shape: bf16[448,192], index: 2, kind: input, shape index: {}]
  %s3 = inlined_call_operand.vmem [shape: f32[1,192], index: 3, kind: input, shape index: {}]
  %s4 = inlined_call_operand.vmem [shape: bf16[192,64], index: 4, kind: input, shape index: {}]
  %s5 = inlined_call_operand.vmem [shape: f32[1,64], index: 5, kind: input, shape index: {}]
  %s6 = inlined_call_operand.vmem [shape: f32[1,64], index: 6, kind: input, shape index: {}]
  %s7 = inlined_call_operand.hbm [shape: f32[16,64], index: 7, kind: output, shape index: {}]
  %s8 = sld [smem:[#allocation0]]
  $region38: #{_lambda_.31} parent=0
    _
  %s10 = ssub.s32 1, %s8
  %s11 = scalar_select 0, %s10, %s8
  $region1: #{_lambda_.31} parent=0
    #allocation2 [shape = 'u8[8192]{0}', space=vmem, size = 0x2000, scoped, tag = 'output window, operand 0, single buffered']
    #allocation3 [shape = 's32[1]{0}', space=sflag, size = 0x4, scoped, tag = 'scoped memory for _lambda_.31']
    %12 = vsyncpa [#allocation3], 0
    // Predicated region
    $region2: #{_lambda_.31} parent=1 // pred_check
      _
    $region3: #{_lambda_.31} parent=1 // pred_check_branch
      %14 = sbr.rel (0) target = $region5
    $region4: #{_lambda_.31} parent=1 // pred_region
      _
    $region5: #{_lambda_.31} parent=1 // pred_fallthru
      _
    // Predicated region
    $region6: #{_lambda_.31} parent=1 // pred_check
      _
    $region7: #{_lambda_.31} parent=1 // pred_check_branch
      %16 = sbr.rel (0) target = $region9
    $region8: #{_lambda_.31} parent=1 // pred_region
      _
    $region9: #{_lambda_.31} parent=1 // pred_fallthru
      _
    // Predicated region
    $region10: #{_lambda_.31} parent=1 // pred_check
      _
    $region11: #{_lambda_.31} parent=1 // pred_check_branch
      %18 = sbr.rel (0) target = $region13
    $region12: #{_lambda_.31} parent=1 // pred_region
      _
    $region13: #{_lambda_.31} parent=1 // pred_fallthru
      _
    // Predicated region
    $region14: #{_lambda_.31} parent=1 // pred_check
      _
    $region15: #{_lambda_.31} parent=1 // pred_check_branch
      %20 = sbr.rel (0) target = $region17
    $region16: #{_lambda_.31} parent=1 // pred_region
      _
    $region17: #{_lambda_.31} parent=1 // pred_fallthru
      _
    // Predicated region
    $region18: #{_lambda_.31} parent=1 // pred_check
      _
    $region19: #{_lambda_.31} parent=1 // pred_check_branch
      %22 = sbr.rel (0) target = $region21
    $region20: #{_lambda_.31} parent=1 // pred_region
      _
    $region21: #{_lambda_.31} parent=1 // pred_fallthru
      _
    // Predicated region
    $region22: #{_lambda_.31} parent=1 // pred_check
      _
    $region23: #{_lambda_.31} parent=1 // pred_check_branch
      %24 = sbr.rel (0) target = $region25
    $region24: #{_lambda_.31} parent=1 // pred_region
      _
    $region25: #{_lambda_.31} parent=1 // pred_fallthru
      _
    // Predicated region
    $region26: #{_lambda_.31} parent=1 // pred_check
      _
    $region27: #{_lambda_.31} parent=1 // pred_check_branch
      %26 = sbr.rel (0) target = $region29
    $region28: #{_lambda_.31} parent=1 // pred_region
      _
    $region29: #{_lambda_.31} parent=1 // pred_fallthru
      _
    %v28 = vld [vmem:[%s0] sm:$0xff]
    %v29 = vld [vmem:[%s0 + $0x8] sm:$0xff]
    %v30 = vld [vmem:[%s0 + $0x10] sm:$0xff]
    %v31 = vld [vmem:[%s0 + $0x18] sm:$0xff]
    %v32 = vld [vmem:[%s2] sm:$0xff]
    %v33 = vld [vmem:[%s2 + $0x8] sm:$0xff]
    %v34 = vld [vmem:[%s2 + $0x10] sm:$0xff]
    %v35 = vld [vmem:[%s2 + $0x18] sm:$0xff]
    %v36 = vld [vmem:[%s2 + $0x20] sm:$0xff]
    %v37 = vld [vmem:[%s2 + $0x28] sm:$0xff]
    %v38 = vld [vmem:[%s2 + $0x30] sm:$0xff]
    %v39 = vld [vmem:[%s2 + $0x38] sm:$0xff]
    %v40 = vld [vmem:[%s2 + $0x40] sm:$0xff]
    %v41 = vld [vmem:[%s2 + $0x48] sm:$0xff]
    %v42 = vld [vmem:[%s2 + $0x50] sm:$0xff]
    %v43 = vld [vmem:[%s2 + $0x58] sm:$0xff]
    %v44 = vld [vmem:[%s2 + $0x60] sm:$0xff]
    %v45 = vld [vmem:[%s2 + $0x68] sm:$0xff]
    %v46 = vld [vmem:[%s2 + $0x70] sm:$0xff]
    %v47 = vld [vmem:[%s2 + $0x78] sm:$0xff]
    %v48 = vld [vmem:[%s2 + $0x80] sm:$0xff]
    %v49 = vld [vmem:[%s2 + $0x88] sm:$0xff]
    %v50 = vld [vmem:[%s2 + $0x90] sm:$0xff]
    %v51 = vld [vmem:[%s2 + $0x98] sm:$0xff]
    %v52 = vld [vmem:[%s2 + $0xa0] sm:$0xff]
    %v53 = vld [vmem:[%s2 + $0xa8] sm:$0xff]
    %v54 = vld [vmem:[%s2 + $0xb0] sm:$0xff]
    %v55 = vld [vmem:[%s2 + $0xb8] sm:$0xff]
    %v56 = vld [vmem:[%s2 + $0xc0] sm:$0xff]
    %v57 = vld [vmem:[%s2 + $0xc8] sm:$0xff]
    %v58 = vld [vmem:[%s2 + $0xd0] sm:$0xff]
    %v59 = vld [vmem:[%s2 + $0xd8] sm:$0xff]
    %v60 = vld [vmem:[%s2 + $0xe0] sm:$0xff]
    %v61 = vld [vmem:[%s2 + $0xe8] sm:$0xff]
    %v62 = vld [vmem:[%s2 + $0xf0] sm:$0xff]
    %v63 = vld [vmem:[%s2 + $0xf8] sm:$0xff]
    %v64 = vld [vmem:[%s2 + $0x100] sm:$0xff]
    %v65 = vld [vmem:[%s2 + $0x108] sm:$0xff]
    %v66 = vld [vmem:[%s2 + $0x110] sm:$0xff]
    %v67 = vld [vmem:[%s2 + $0x118] sm:$0xff]
    %v68 = vld [vmem:[%s2 + $0x120] sm:$0xff]
    %v69 = vld [vmem:[%s2 + $0x128] sm:$0xff]
    %v70 = vld [vmem:[%s2 + $0x130] sm:$0xff]
    %v71 = vld [vmem:[%s2 + $0x138] sm:$0xff]
    %v72 = vld [vmem:[%s2 + $0x140] sm:$0xff]
    %v73 = vld [vmem:[%s2 + $0x148] sm:$0xff]
    %v74 = vld [vmem:[%s2 + $0x150] sm:$0xff]
    %v75 = vld [vmem:[%s2 + $0x158] sm:$0xff]
    %v76 = vld [vmem:[%s2 + $0x160] sm:$0xff]
    %v77 = vld [vmem:[%s2 + $0x168] sm:$0xff]
    %v78 = vld [vmem:[%s2 + $0x170] sm:$0xff]
    %v79 = vld [vmem:[%s2 + $0x178] sm:$0xff]
    %v80 = vld [vmem:[%s2 + $0x180] sm:$0xff]
    %v81 = vld [vmem:[%s2 + $0x188] sm:$0xff]
    %v82 = vld [vmem:[%s2 + $0x190] sm:$0xff]
    %v83 = vld [vmem:[%s2 + $0x198] sm:$0xff]
    %v84 = vld [vmem:[%s2 + $0x1a0] sm:$0xff]
    %v85 = vld [vmem:[%s2 + $0x1a8] sm:$0xff]
    %v86 = vld [vmem:[%s2 + $0x1b0] sm:$0xff]
    %v87 = vld [vmem:[%s2 + $0x1b8] sm:$0xff]
    %v88 = vld [vmem:[%s3] sm:$0x3]
    %v90 = vlaneseq
    %v91 = vshrl.u32 %v90, 7
    %v92 = vsub.s32 0, %v91
    %v93 = vrot.slane %v88, %v92
    %v94 = vlaneseq
    %v95 = vshrl.u32 %v94, 7
    %v96 = vsub.s32 1, %v95
    %v97 = vrot.slane %v88, %v96
    %v104 = vunpack.c.l.b16 %v28
    %v105 = vunpack.c.h.b16 %v28
    %v106 = vunpack.c.l.b16 %v29
    %v107 = vunpack.c.h.b16 %v29
    %v108 = vunpack.c.l.b16 %v30
    %v109 = vunpack.c.h.b16 %v30
    %v110 = vunpack.c.l.b16 %v31
    %v111 = vunpack.c.h.b16 %v31
    %v112 = vpack.c.b16 %v108, %v104
    %v113 = vpack.c.b16 %v109, %v105
    %v114 = vpack.c.b16 %v110, %v106
    %v115 = vpack.c.b16 %v111, %v107
    %v175 = vunpack.c.l.b16 %v32
    %v176 = vunpack.c.h.b16 %v32
    %v177 = vunpack.c.l.b16 %v33
    %v178 = vunpack.c.h.b16 %v33
    %v179 = vunpack.c.l.b16 %v34
    %v180 = vunpack.c.h.b16 %v34
    %v181 = vunpack.c.l.b16 %v35
    %v182 = vunpack.c.h.b16 %v35
    %v183 = vunpack.c.l.b16 %v36
    %v184 = vunpack.c.h.b16 %v36
    %v185 = vunpack.c.l.b16 %v37
    %v186 = vunpack.c.h.b16 %v37
    %v187 = vunpack.c.l.b16 %v38
    %v188 = vunpack.c.h.b16 %v38
    %v189 = vunpack.c.l.b16 %v39
    %v190 = vunpack.c.h.b16 %v39
    %v191 = vunpack.c.l.b16 %v40
    %v192 = vunpack.c.h.b16 %v40
    %v193 = vunpack.c.l.b16 %v41
    %v194 = vunpack.c.h.b16 %v41
    %v195 = vunpack.c.l.b16 %v42
    %v196 = vunpack.c.h.b16 %v42
    %v197 = vunpack.c.l.b16 %v43
    %v198 = vunpack.c.h.b16 %v43
    %v199 = vunpack.c.l.b16 %v44
    %v200 = vunpack.c.h.b16 %v44
    %v201 = vunpack.c.l.b16 %v45
    %v202 = vunpack.c.h.b16 %v45
    %v203 = vunpack.c.l.b16 %v46
    %v204 = vunpack.c.h.b16 %v46
    %v205 = vunpack.c.l.b16 %v47
    %v206 = vunpack.c.h.b16 %v47
    %v207 = vunpack.c.l.b16 %v48
    %v208 = vunpack.c.h.b16 %v48
    %v209 = vunpack.c.l.b16 %v49
    %v210 = vunpack.c.h.b16 %v49
    %v211 = vunpack.c.l.b16 %v50
    %v212 = vunpack.c.h.b16 %v50
    %v213 = vunpack.c.l.b16 %v51
    %v214 = vunpack.c.h.b16 %v51
    %v215 = vunpack.c.l.b16 %v52
    %v216 = vunpack.c.h.b16 %v52
    %v217 = vunpack.c.l.b16 %v53
    %v218 = vunpack.c.h.b16 %v53
    %v219 = vunpack.c.l.b16 %v54
    %v220 = vunpack.c.h.b16 %v54
    %v221 = vunpack.c.l.b16 %v55
    %v222 = vunpack.c.h.b16 %v55
    %v223 = vunpack.c.l.b16 %v56
    %v224 = vunpack.c.h.b16 %v56
    %v225 = vunpack.c.l.b16 %v57
    %v226 = vunpack.c.h.b16 %v57
    %v227 = vunpack.c.l.b16 %v58
    %v228 = vunpack.c.h.b16 %v58
    %v229 = vunpack.c.l.b16 %v59
    %v230 = vunpack.c.h.b16 %v59
    %v231 = vunpack.c.l.b16 %v60
    %v232 = vunpack.c.h.b16 %v60
    %v233 = vunpack.c.l.b16 %v61
    %v234 = vunpack.c.h.b16 %v61
    %v235 = vunpack.c.l.b16 %v62
    %v236 = vunpack.c.h.b16 %v62
    %v237 = vunpack.c.l.b16 %v63
    %v238 = vunpack.c.h.b16 %v63
    %v239 = vunpack.c.l.b16 %v64
    %v240 = vunpack.c.h.b16 %v64
    %v241 = vunpack.c.l.b16 %v65
    %v242 = vunpack.c.h.b16 %v65
    %v243 = vunpack.c.l.b16 %v66
    %v244 = vunpack.c.h.b16 %v66
    %v245 = vunpack.c.l.b16 %v67
    %v246 = vunpack.c.h.b16 %v67
    %v247 = vunpack.c.l.b16 %v68
    %v248 = vunpack.c.h.b16 %v68
    %v249 = vunpack.c.l.b16 %v69
    %v250 = vunpack.c.h.b16 %v69
    %v251 = vunpack.c.l.b16 %v70
    %v252 = vunpack.c.h.b16 %v70
    %v253 = vunpack.c.l.b16 %v71
    %v254 = vunpack.c.h.b16 %v71
    %v255 = vunpack.c.l.b16 %v72
    %v256 = vunpack.c.h.b16 %v72
    %v257 = vunpack.c.l.b16 %v73
    %v258 = vunpack.c.h.b16 %v73
    %v259 = vunpack.c.l.b16 %v74
    %v260 = vunpack.c.h.b16 %v74
    %v261 = vunpack.c.l.b16 %v75
    %v262 = vunpack.c.h.b16 %v75
    %v263 = vunpack.c.l.b16 %v76
    %v264 = vunpack.c.h.b16 %v76
    %v265 = vunpack.c.l.b16 %v77
    %v266 = vunpack.c.h.b16 %v77
    %v267 = vunpack.c.l.b16 %v78
    %v268 = vunpack.c.h.b16 %v78
    %v269 = vunpack.c.l.b16 %v79
    %v270 = vunpack.c.h.b16 %v79
    %v271 = vunpack.c.l.b16 %v80
    %v272 = vunpack.c.h.b16 %v80
    %v273 = vunpack.c.l.b16 %v81
    %v274 = vunpack.c.h.b16 %v81
    %v275 = vunpack.c.l.b16 %v82
    %v276 = vunpack.c.h.b16 %v82
    %v277 = vunpack.c.l.b16 %v83
    %v278 = vunpack.c.h.b16 %v83
    %v279 = vunpack.c.l.b16 %v84
    %v280 = vunpack.c.h.b16 %v84
    %v281 = vunpack.c.l.b16 %v85
    %v282 = vunpack.c.h.b16 %v85
    %v283 = vunpack.c.l.b16 %v86
    %v284 = vunpack.c.h.b16 %v86
    %v285 = vunpack.c.l.b16 %v87
    %v286 = vunpack.c.h.b16 %v87
    %v287 = vpack.c.b16 %v177, %v175
    %v288 = vpack.c.b16 %v178, %v176
    %v289 = vpack.c.b16 %v181, %v179
    %v290 = vpack.c.b16 %v182, %v180
    %v291 = vpack.c.b16 %v185, %v183
    %v292 = vpack.c.b16 %v186, %v184
    %v293 = vpack.c.b16 %v189, %v187
    %v294 = vpack.c.b16 %v190, %v188
    %v295 = vpack.c.b16 %v193, %v191
    %v296 = vpack.c.b16 %v194, %v192
    %v297 = vpack.c.b16 %v197, %v195
    %v298 = vpack.c.b16 %v198, %v196
    %v299 = vpack.c.b16 %v201, %v199
    %v300 = vpack.c.b16 %v202, %v200
    %v301 = vpack.c.b16 %v205, %v203
    %v302 = vpack.c.b16 %v206, %v204
    %v303 = vpack.c.b16 %v209, %v207
    %v304 = vpack.c.b16 %v210, %v208
    %v305 = vpack.c.b16 %v213, %v211
    %v306 = vpack.c.b16 %v214, %v212
    %v307 = vpack.c.b16 %v217, %v215
    %v308 = vpack.c.b16 %v218, %v216
    %v309 = vpack.c.b16 %v221, %v219
    %v310 = vpack.c.b16 %v222, %v220
    %v311 = vpack.c.b16 %v225, %v223
    %v312 = vpack.c.b16 %v226, %v224
    %v313 = vpack.c.b16 %v229, %v227
    %v314 = vpack.c.b16 %v230, %v228
    %v315 = vpack.c.b16 %v233, %v231
    %v316 = vpack.c.b16 %v234, %v232
    %v317 = vpack.c.b16 %v237, %v235
    %v318 = vpack.c.b16 %v238, %v236
    %v319 = vpack.c.b16 %v241, %v239
    %v320 = vpack.c.b16 %v242, %v240
    %v321 = vpack.c.b16 %v245, %v243
    %v322 = vpack.c.b16 %v246, %v244
    %v323 = vpack.c.b16 %v249, %v247
    %v324 = vpack.c.b16 %v250, %v248
    %v325 = vpack.c.b16 %v253, %v251
    %v326 = vpack.c.b16 %v254, %v252
    %v327 = vpack.c.b16 %v257, %v255
    %v328 = vpack.c.b16 %v258, %v256
    %v329 = vpack.c.b16 %v261, %v259
    %v330 = vpack.c.b16 %v262, %v260
    %v331 = vpack.c.b16 %v265, %v263
    %v332 = vpack.c.b16 %v266, %v264
    %v333 = vpack.c.b16 %v269, %v267
    %v334 = vpack.c.b16 %v270, %v268
    %v335 = vpack.c.b16 %v273, %v271
    %v336 = vpack.c.b16 %v274, %v272
    %v337 = vpack.c.b16 %v277, %v275
    %v338 = vpack.c.b16 %v278, %v276
    %v339 = vpack.c.b16 %v281, %v279
    %v340 = vpack.c.b16 %v282, %v280
    %v341 = vpack.c.b16 %v285, %v283
    %v342 = vpack.c.b16 %v286, %v284
    %vm399 = vcmask 523264
    %v401 = vsel %vm399, %v115, 0
    %403 = vmatprep.subr.bf16.mxu0 %v302
    %404 = vmatpush1.bf16.msra.mxu0 %v301
    %405 = vmatprep.subr.bf16.mxu0 %v300
    %406 = vmatpush1.bf16.msra.mxu0 %v299
    %407 = vmatprep.subr.bf16.mxu0 %v298
    %408 = vmatpush1.bf16.msra.mxu0 %v297
    %409 = vmatprep.subr.bf16.mxu0 %v296
    %410 = vmatpush1.bf16.msra.mxu0 %v295
    %411 = vmatprep.subr.bf16.mxu0 %v294
    %412 = vmatpush1.bf16.msra.mxu0 %v293
    %413 = vmatprep.subr.bf16.mxu0 %v292
    %414 = vmatpush1.bf16.msra.mxu0 %v291
    %415 = vmatprep.subr.bf16.mxu0 %v290
    %416 = vmatpush1.bf16.msra.mxu0 %v289
    %417 = vmatprep.subr.bf16.mxu0 %v288
    %418 = vmatpush1.bf16.msra.mxu0 %v287
    %419 = vmatprep.subr.bf16.mxu0 %v318
    %420 = vmatpush2.bf16.msra.mxu0 %v317
    %421 = vmatprep.subr.bf16.mxu0 %v316
    %422 = vmatpush2.bf16.msra.mxu0 %v315
    %423 = vmatprep.subr.bf16.mxu0 %v314
    %424 = vmatpush2.bf16.msra.mxu0 %v313
    %425 = vmatprep.subr.bf16.mxu0 %v312
    %426 = vmatpush2.bf16.msra.mxu0 %v311
    %427 = vmatprep.subr.bf16.mxu0 %v310
    %428 = vmatpush2.bf16.msra.mxu0 %v309
    %429 = vmatprep.subr.bf16.mxu0 %v308
    %430 = vmatpush2.bf16.msra.mxu0 %v307
    %431 = vmatprep.subr.bf16.mxu0 %v306
    %432 = vmatpush2.bf16.msra.mxu0 %v305
    %433 = vmatprep.subr.bf16.mxu0 %v304
    %434 = vmatpush2.bf16.msra.mxu0 %v303
    %435 = vmatprep.mubr.bf16.mxu0 %v113
    %436 = vmatmul.mubr.bf16.gmra.mxu0 %v112
    %v437 = vpop.f32.mrf.mxu0
    %v438 = vadd.f32 %v93, %v437
    %v439 = vpop.f32.mrf.mxu0
    %v440 = vadd.f32 %v97, %v439
    %v441 = vpop.f32.mrf.mxu0
    %v442 = vadd.f32 %v93, %v441
    %v443 = vpop.f32.mrf.mxu0
    %v444 = vadd.f32 %v97, %v443
    %445 = vdwg.mxu0
    %446 = vmatprep.subr.bf16.mxu0 %v334
    %447 = vmatpush1.bf16.msra.mxu0 %v333
    %448 = vmatprep.subr.bf16.mxu0 %v332
    %449 = vmatpush1.bf16.msra.mxu0 %v331
    %450 = vmatprep.subr.bf16.mxu0 %v330
    %451 = vmatpush1.bf16.msra.mxu0 %v329
    %452 = vmatprep.subr.bf16.mxu0 %v328
    %453 = vmatpush1.bf16.msra.mxu0 %v327
    %454 = vmatprep.subr.bf16.mxu0 %v326
    %455 = vmatpush1.bf16.msra.mxu0 %v325
    %456 = vmatprep.subr.bf16.mxu0 %v324
    %457 = vmatpush1.bf16.msra.mxu0 %v323
    %458 = vmatprep.subr.bf16.mxu0 %v322
    %459 = vmatpush1.bf16.msra.mxu0 %v321
    %460 = vmatprep.subr.bf16.mxu0 %v320
    %461 = vmatpush1.bf16.msra.mxu0 %v319
    %462 = vmatprep.subr.bf16.mxu0 0
    %463 = vmatpush2.bf16.msra.mxu0 0
    %464 = vmatprep.subr.bf16.mxu0 0
    %465 = vmatpush2.bf16.msra.mxu0 0
    %466 = vmatprep.subr.bf16.mxu0 0
    %467 = vmatpush2.bf16.msra.mxu0 0
    %468 = vmatprep.subr.bf16.mxu0 0
    %469 = vmatpush2.bf16.msra.mxu0 0
    %470 = vmatprep.subr.bf16.mxu0 %v342
    %471 = vmatpush2.bf16.msra.mxu0 %v341
    %472 = vmatprep.subr.bf16.mxu0 %v340
    %473 = vmatpush2.bf16.msra.mxu0 %v339
    %474 = vmatprep.subr.bf16.mxu0 %v338
    %475 = vmatpush2.bf16.msra.mxu0 %v337
    %476 = vmatprep.subr.bf16.mxu0 %v336
    %477 = vmatpush2.bf16.msra.mxu0 %v335
    %478 = vmatprep.mubr.bf16.mxu0 %v401
    %479 = vmatmul.mubr.bf16.gmra.mxu0 %v114
    %v480 = vpop.f32.mrf.mxu0
    %v481 = vadd.f32 %v438, %v480
    %v482 = vpop.f32.mrf.mxu0
    %v483 = vadd.f32 %v440, %v482
    %v484 = vpop.f32.mrf.mxu0
    %v485 = vadd.f32 %v442, %v484
    %v486 = vpop.f32.mrf.mxu0
    %v487 = vadd.f32 %v444, %v486
    %488 = vdwg.mxu0
    %v489 = vpack.c.bf16 %v485, %v481
    %v490 = vpack.c.bf16 %v487, %v483
    %v491 = vld [vmem:[%s4] sm:$0xf]
    %v492 = vld [vmem:[%s4 + $0x4] sm:$0xf]
    %v493 = vld [vmem:[%s4 + $0x8] sm:$0xf]
    %v494 = vld [vmem:[%s4 + $0xc] sm:$0xf]
    %v495 = vld [vmem:[%s4 + $0x10] sm:$0xf]
    %v496 = vld [vmem:[%s4 + $0x14] sm:$0xf]
    %v497 = vld [vmem:[%s4 + $0x18] sm:$0xf]
    %v498 = vld [vmem:[%s4 + $0x1c] sm:$0xf]
    %v499 = vld [vmem:[%s4 + $0x20] sm:$0xf]
    %v500 = vld [vmem:[%s4 + $0x24] sm:$0xf]
    %v501 = vld [vmem:[%s4 + $0x28] sm:$0xf]
    %v502 = vld [vmem:[%s4 + $0x2c] sm:$0xf]
    %v503 = vld [vmem:[%s4 + $0x30] sm:$0xf]
    %v504 = vld [vmem:[%s4 + $0x34] sm:$0xf]
    %v505 = vld [vmem:[%s4 + $0x38] sm:$0xf]
    %v506 = vld [vmem:[%s4 + $0x3c] sm:$0xf]
    %v507 = vld [vmem:[%s4 + $0x40] sm:$0xf]
    %v508 = vld [vmem:[%s4 + $0x44] sm:$0xf]
    %v509 = vld [vmem:[%s4 + $0x48] sm:$0xf]
    %v510 = vld [vmem:[%s4 + $0x4c] sm:$0xf]
    %v511 = vld [vmem:[%s4 + $0x50] sm:$0xf]
    %v512 = vld [vmem:[%s4 + $0x54] sm:$0xf]
    %v513 = vld [vmem:[%s4 + $0x58] sm:$0xf]
    %v514 = vld [vmem:[%s4 + $0x5c] sm:$0xf]
    %v539 = vunpack.c.l.b16 %v491
    %v540 = vunpack.c.l.b16 %v492
    %v541 = vunpack.c.l.b16 %v493
    %v542 = vunpack.c.l.b16 %v494
    %v543 = vunpack.c.l.b16 %v495
    %v544 = vunpack.c.l.b16 %v496
    %v545 = vunpack.c.l.b16 %v497
    %v546 = vunpack.c.l.b16 %v498
    %v547 = vunpack.c.l.b16 %v499
    %v548 = vunpack.c.l.b16 %v500
    %v549 = vunpack.c.l.b16 %v501
    %v550 = vunpack.c.l.b16 %v502
    %v551 = vunpack.c.l.b16 %v503
    %v552 = vunpack.c.l.b16 %v504
    %v553 = vunpack.c.l.b16 %v505
    %v554 = vunpack.c.l.b16 %v506
    %v555 = vunpack.c.l.b16 %v507
    %v556 = vunpack.c.l.b16 %v508
    %v557 = vunpack.c.l.b16 %v509
    %v558 = vunpack.c.l.b16 %v510
    %v559 = vunpack.c.l.b16 %v511
    %v560 = vunpack.c.l.b16 %v512
    %v561 = vunpack.c.l.b16 %v513
    %v562 = vunpack.c.l.b16 %v514
    %v563 = vpack.c.b16 %v540, %v539
    %v564 = vpack.c.b16 %v542, %v541
    %v565 = vpack.c.b16 %v544, %v543
    %v566 = vpack.c.b16 %v546, %v545
    %v567 = vpack.c.b16 %v548, %v547
    %v568 = vpack.c.b16 %v550, %v549
    %v569 = vpack.c.b16 %v552, %v551
    %v570 = vpack.c.b16 %v554, %v553
    %v571 = vpack.c.b16 %v556, %v555
    %v572 = vpack.c.b16 %v558, %v557
    %v573 = vpack.c.b16 %v560, %v559
    %v574 = vpack.c.b16 %v562, %v561
    %v588 = vsel %vm399, %v490, 0
    %590 = vmatprep.subr.bf16.mxu0 0
    %591 = vmatpush1.bf16.msra.mxu0 %v570
    %592 = vmatprep.subr.bf16.mxu0 0
    %593 = vmatpush1.bf16.msra.mxu0 %v569
    %594 = vmatprep.subr.bf16.mxu0 0
    %595 = vmatpush1.bf16.msra.mxu0 %v568
    %596 = vmatprep.subr.bf16.mxu0 0
    %597 = vmatpush1.bf16.msra.mxu0 %v567
    %598 = vmatprep.subr.bf16.mxu0 0
    %599 = vmatpush1.bf16.msra.mxu0 %v566
    %600 = vmatprep.subr.bf16.mxu0 0
    %601 = vmatpush1.bf16.msra.mxu0 %v565
    %602 = vmatprep.subr.bf16.mxu0 0
    %603 = vmatpush1.bf16.msra.mxu0 %v564
    %604 = vmatprep.subr.bf16.mxu0 0
    %605 = vmatpush1.bf16.msra.mxu0 %v563
    %606 = vmatprep.subr.bf16.mxu0 0
    %607 = vmatpush2.bf16.msra.mxu0 0
    %608 = vmatprep.subr.bf16.mxu0 0
    %609 = vmatpush2.bf16.msra.mxu0 0
    %610 = vmatprep.subr.bf16.mxu0 0
    %611 = vmatpush2.bf16.msra.mxu0 0
    %612 = vmatprep.subr.bf16.mxu0 0
    %613 = vmatpush2.bf16.msra.mxu0 0
    %614 = vmatprep.subr.bf16.mxu0 0
    %615 = vmatpush2.bf16.msra.mxu0 %v574
    %616 = vmatprep.subr.bf16.mxu0 0
    %617 = vmatpush2.bf16.msra.mxu0 %v573
    %618 = vmatprep.subr.bf16.mxu0 0
    %619 = vmatpush2.bf16.msra.mxu0 %v572
    %620 = vmatprep.subr.bf16.mxu0 0
    %621 = vmatpush2.bf16.msra.mxu0 %v571
    %622 = vmatprep.mubr.bf16.mxu0 %v588
    %623 = vmatmul.mubr.bf16.gmra.mxu0 %v489
    %v624 = vpop.f32.mrf.mxu0
    %v625 = vadd.f32 0.0, %v624
    %v626 = vpop.f32.mrf.mxu0
    %v627 = vpop.f32.mrf.mxu0
    %v628 = vadd.f32 0.0, %v627
    %v629 = vpop.f32.mrf.mxu0
    %630 = vdwg.mxu0
    %v631 = vmul.f32 %v625, 0.5
    %v632 = vmul.f32 %v628, 0.5
    %v633 = vmul.f32 %v625, 0.044715
    %v634 = vmul.f32 %v628, 0.044715
    %v635 = vmul.f32 %v633, %v625
    %v636 = vmul.f32 %v634, %v628
    %v637 = vmul.f32 %v635, %v625
    %v638 = vmul.f32 %v636, %v628
    %v639 = vadd.f32 %v625, %v637
    %v640 = vadd.f32 %v628, %v638
    %v641 = vmul.f32 %v639, 0.7978846
    %v642 = vmul.f32 %v640, 0.7978846
    %v643 = vtanh.pop %v641
    %v644 = vtanh.pop %v642
    %v645 = vadd.f32 %v643, 1.0
    %v646 = vadd.f32 %v644, 1.0
    %v647 = vmul.f32 %v631, %v645
    %v648 = vmul.f32 %v632, %v646
    %v649 = vsel %vm399, %v647, 0.0
    %650 = vadd.xlane.f32.xlu0 %v649
    %v651 = vpop.xlane.xlu0 %650
    %v652 = vsel %vm399, %v648, 0.0
    %653 = vadd.xlane.f32.xlu0 %v652
    %v654 = vpop.xlane.xlu0 %653
    %v655 = vrcp.pop 64.0
    %v656 = vmul.f32 %v651, %v655
    %v657 = vmul.f32 %v654, %v655
    %v658 = vsub.f32 %v647, %v656
    %v659 = vsub.f32 %v648, %v657
    %v660 = vmul.f32 %v658, %v658
    %v661 = vmul.f32 %v659, %v659
    %v662 = vsel %vm399, %v660, 0.0
    %663 = vadd.xlane.f32.xlu0 %v662
    %v664 = vpop.xlane.xlu0 %663
    %v665 = vsel %vm399, %v661, 0.0
    %666 = vadd.xlane.f32.xlu0 %v665
    %v667 = vpop.xlane.xlu0 %666
    %v668 = vmul.f32 %v664, %v655
    %v669 = vmul.f32 %v667, %v655
    %v670 = vadd.f32 %v668, 1e-05
    %v671 = vadd.f32 %v669, 1e-05
    %v672 = vrsqrt.pop %v670
    %v673 = vrsqrt.pop %v671
    %v674 = vmul.f32 %v658, %v672
    %v675 = vmul.f32 %v659, %v673
    %v676 = vld [vmem:[%s5] sm:$0x1]
    %v678 = vlaneseq
    %v679 = vshrl.u32 %v678, 7
    %v680 = vsub.s32 0, %v679
    %v681 = vrot.slane %v676, %v680
    %v683 = vmul.f32 %v674, %v681
    %v684 = vmul.f32 %v675, %v681
    %v685 = vld [vmem:[%s6] sm:$0x1]
    %v687 = vlaneseq
    %v688 = vshrl.u32 %v687, 7
    %v689 = vsub.s32 0, %v688
    %v690 = vrot.slane %v685, %v689
    %v692 = vadd.f32 %v683, %v690
    %v693 = vadd.f32 %v684, %v690
    %v694 = vld [vmem:[%s1] sm:$0xff]
    %v695 = vld [vmem:[%s1 + $0x8] sm:$0xff]
    %v696 = vadd.f32 %v692, %v694
    %v697 = vadd.f32 %v693, %v695
    %698 = vst.msk [vmem:[#allocation2] sm:$0xff] %vm399, %v696
    %699 = vst.msk [vmem:[#allocation2 + $0x8] sm:$0xff] %vm399, %v697
    // Predicated region
    $region30: #{_lambda_.31} parent=1 // pred_check
      _
    $region31: #{_lambda_.31} parent=1 // pred_check_branch
      %701 = sbr.rel (0) target = $region33
    $region32: #{_lambda_.31} parent=1 // pred_region
      %s703 = ssub.s32 256, 256
      %704 = vsyncadd [#allocation3], %s703
      %s705 = sshll.u32 [#allocation2], 4
      %s706 = int_to_ptr.vmem [resolvable:$true] %s705
      %711 = dma.vmem_to_hbm [thread:$0]  %s706, 256, %s7, [#allocation3], 128, 128, 8
    $region33: #{_lambda_.31} parent=1 // pred_fallthru
      _
    // Predicated region
    $region34: #{_lambda_.31} parent=1 // pred_check
      _
    $region35: #{_lambda_.31} parent=1 // pred_check_branch
      %713 = sbr.rel (0) target = $region37
    $region36: #{_lambda_.31} parent=1 // pred_region
      %714 = dma.done [#allocation3], 256
    $region37: #{_lambda_.31} parent=1 // pred_fallthru
      _
    %715 = vsyncpa [#allocation3], 1

</llo_original>
